<compile_context>
chip_gen: v6e
topology: v6e:2x2x1
jax: 0.10.0
libtpu: 0.0.40
codegen_flags: <defaults>
</compile_context>

<pallas_src>
import jax
import jax.numpy as jnp
from jax.experimental import pallas as pl
from jax.experimental.pallas import tpu as pltpu


# ---------------------------------------------------------------------------
# Fused forward kernel (one image per grid step)
# ---------------------------------------------------------------------------
def _lenet_kernel(xe_ref, xo_ref, w1b_ref, b1t_ref, w2m_ref, b2_ref,
                  fc1w_ref, fc1b_ref, fc2w_ref, fc2b_ref, outw_ref, outb_ref,
                  o_ref, p1s_ref):
    f32 = jnp.float32
    xe = xe_ref[0]            # (14, 28) even image rows
    xo = xo_ref[0]            # (14, 28) odd image rows

    # ---- conv1 (5x5, cin=1, cout=6 padded to 8) as banded matmuls ----------
    # Columns of the result are lane-packed as j*8 + co (j = output W index).
    # Even/odd output rows are accumulated separately so the 2x2 pool over H is
    # just an elementwise max (no sublane-pair reduction needed).
    a1e = jnp.zeros((12, 192), f32)
    a1o = jnp.zeros((12, 192), f32)
    for kh in range(5):
        w = w1b_ref[kh]                                    # (28, 192)
        if kh % 2 == 0:
            m = kh // 2
            a1e = a1e + jnp.dot(xe[m:m + 12, :], w, preferred_element_type=f32)
            a1o = a1o + jnp.dot(xo[m:m + 12, :], w, preferred_element_type=f32)
        else:
            m = (kh - 1) // 2
            a1e = a1e + jnp.dot(xo[m:m + 12, :], w, preferred_element_type=f32)
            a1o = a1o + jnp.dot(xe[m + 1:m + 13, :], w,
                                preferred_element_type=f32)
    # relu(conv + bias), already max-pooled over H (rows are H/2 = 12)
    t1 = jnp.maximum(jnp.maximum(a1e, a1o) + b1t_ref[...], 0.0)   # (12, 192)

    # ---- 2x2 pool over W: max of adjacent 8-lane channel groups ------------
    # Scratch is laid out (j2, i2, cin) so every store is a full leading slab.
    for j2 in range(12):
        p1s_ref[j2] = jnp.maximum(t1[:, 16 * j2:16 * j2 + 8],
                                  t1[:, 16 * j2 + 8:16 * j2 + 16])  # (12, 8)
    p1 = p1s_ref[...]                                      # (12, 12, 8)

    # ---- conv2 (5x5, cin=6(+2 pad), cout=12): 25 tap matmuls ----------------
    # Accumulator rows are ordered (oj, oi); handled downstream.
    acc2 = jnp.zeros((64, 12), f32)
    for tap in range(25):
        kh, kw = tap // 5, tap % 5
        patch = p1[kw:kw + 8, kh:kh + 8, :].reshape(64, 8)  # rows = oj*8 + oi
        acc2 = acc2 + jnp.dot(patch, w2m_ref[tap], preferred_element_type=f32)
    a2 = jnp.maximum(acc2 + b2_ref[...], 0.0)              # (64, 12)
    a2r = a2.reshape(8, 8, 12)                             # (oj, oi, c)

    # ---- 2x2 pool on conv2 output fused with fc1 ---------------------------
    # The PyTorch (c, h, w) flatten order is folded into fc1w's per-position
    # (12, 120) slices, so no transpose/flatten is needed in the kernel.
    acc3 = jnp.zeros((1, 120), f32)
    for idx in range(16):
        i3, j3 = idx // 4, idx % 4                         # (h, w) of pooled map
        v = jnp.maximum(
            jnp.maximum(a2r[2 * j3, 2 * i3:2 * i3 + 1, :],
                        a2r[2 * j3, 2 * i3 + 1:2 * i3 + 2, :]),
            jnp.maximum(a2r[2 * j3 + 1, 2 * i3:2 * i3 + 1, :],
                        a2r[2 * j3 + 1, 2 * i3 + 1:2 * i3 + 2, :]))  # (1, 12)
        acc3 = acc3 + jnp.dot(v, fc1w_ref[idx], preferred_element_type=f32)
    h1 = jnp.maximum(acc3 + fc1b_ref[...], 0.0)            # (1, 120)

    # ---- fc2 (+relu) and output layer ---------------------------------------
    h2 = jnp.maximum(jnp.dot(h1, fc2w_ref[...], preferred_element_type=f32)
                     + fc2b_ref[...], 0.0)                 # (1, 60)
    logits = (jnp.dot(h2, outw_ref[...], preferred_element_type=f32)
              + outb_ref[...])                             # (1, 10)
    o_ref[0] = logits


def _full_spec(shape):
    """Whole-array VMEM block that is constant across the batch grid."""
    zero = (0,) * len(shape)
    return pl.BlockSpec(tuple(shape), lambda b, _z=zero: _z)


# ---------------------------------------------------------------------------
# One-time weight re-layout (done once, outside the hot path)
# ---------------------------------------------------------------------------
def prepare_params(params):
    f32 = jnp.float32
    w1 = params["conv1_w"].astype(f32)                     # (6, 1, 5, 5)
    b1 = params["conv1_b"].astype(f32)                     # (6,)
    w2 = params["conv2_w"].astype(f32)                     # (12, 6, 5, 5)
    b2 = params["conv2_b"].astype(f32)                     # (12,)

    # conv1 banded matrices: w1b[kh][p, j*8 + co] = w1[co, 0, kh, p - j]
    # for 0 <= p - j < 5, else 0; channels padded 6 -> 8 for lane alignment.
    w1_r = jnp.transpose(w1, (2, 3, 1, 0))[:, :, 0, :]     # (5, 5, 6) [kh,kw,co]
    w1_r = jnp.pad(w1_r, ((0, 0), (0, 0), (0, 2)))         # (5, 5, 8)
    p_idx = jnp.arange(28)[:, None]
    j_idx = jnp.arange(24)[None, :]
    d = p_idx - j_idx                                      # (28, 24)
    valid = (d >= 0) & (d < 5)
    band = jnp.where(valid[None, :, :, None],
                     w1_r[:, jnp.clip(d, 0, 4), :], 0.0)   # (5, 28, 24, 8)
    w1b = band.reshape(5, 28, 192)
    b1t = jnp.tile(jnp.pad(b1, (0, 2)), 24).reshape(1, 192)

    # conv2 per-tap weights: (25, 8, 12), tap = kh*5 + kw, cin padded 6 -> 8.
    w2m = jnp.transpose(w2, (2, 3, 1, 0))                  # (5, 5, 6, 12)
    w2m = jnp.pad(w2m, ((0, 0), (0, 0), (0, 2), (0, 0))).reshape(25, 8, 12)
    b2r = b2.reshape(1, 12)

    # fc1 folded over the 16 spatial positions, in PyTorch (c, h, w) order.
    fc1w = jnp.transpose(params["fc1_w"].astype(f32).reshape(120, 12, 4, 4),
                         (2, 3, 1, 0)).reshape(16, 12, 120)
    fc1b = params["fc1_b"].astype(f32).reshape(1, 120)
    fc2w = params["fc2_w"].astype(f32).T                   # (120, 60)
    fc2b = params["fc2_b"].astype(f32).reshape(1, 60)
    outw = params["out_w"].astype(f32).T                   # (60, 10)
    outb = params["out_b"].astype(f32).reshape(1, 10)
    return dict(w1b=w1b, b1t=b1t, w2m=w2m, b2=b2r, fc1w=fc1w, fc1b=fc1b,
                fc2w=fc2w, fc2b=fc2b, outw=outw, outb=outb)


# ---------------------------------------------------------------------------
# Full forward pass (mirrors Network.forward exactly)
# ---------------------------------------------------------------------------
def network_forward(prep, x_nchw):
    B = x_nchw.shape[0]
    assert x_nchw.shape[1:] == (1, 28, 28), x_nchw.shape
    x = x_nchw.reshape(B, 28, 28).astype(jnp.float32)
    xe = x[:, 0::2, :]                                     # (B, 14, 28)
    xo = x[:, 1::2, :]                                     # (B, 14, 28)

    flops_per_img = (10 * 2 * 12 * 28 * 192 + 25 * 2 * 64 * 8 * 12
                     + 16 * 2 * 12 * 120 + 2 * 120 * 60 + 2 * 60 * 10)
    weight_bytes = sum(int(v.size) * 4 for v in prep.values())
    cost = pl.CostEstimate(
        flops=B * flops_per_img,
        transcendentals=0,
        bytes_accessed=weight_bytes + B * (2 * 14 * 28 * 4 + 10 * 4))

    out = pl.pallas_call(
        _lenet_kernel,
        out_shape=jax.ShapeDtypeStruct((B, 1, 10), jnp.float32),
        grid=(B,),
        in_specs=[
            pl.BlockSpec((1, 14, 28), lambda b: (b, 0, 0)),   # even rows
            pl.BlockSpec((1, 14, 28), lambda b: (b, 0, 0)),   # odd rows
            _full_spec(prep["w1b"].shape),
            _full_spec(prep["b1t"].shape),
            _full_spec(prep["w2m"].shape),
            _full_spec(prep["b2"].shape),
            _full_spec(prep["fc1w"].shape),
            _full_spec(prep["fc1b"].shape),
            _full_spec(prep["fc2w"].shape),
            _full_spec(prep["fc2b"].shape),
            _full_spec(prep["outw"].shape),
            _full_spec(prep["outb"].shape),
        ],
        out_specs=pl.BlockSpec((1, 1, 10), lambda b: (b, 0, 0)),
        scratch_shapes=[pltpu.VMEM((12, 12, 8), jnp.float32)],
        compiler_params=pltpu.CompilerParams(
            dimension_semantics=("parallel",)),
        cost_estimate=cost,
    )(xe, xo, prep["w1b"], prep["b1t"], prep["w2m"], prep["b2"],
      prep["fc1w"], prep["fc1b"], prep["fc2w"], prep["fc2b"],
      prep["outw"], prep["outb"])
    return out.reshape(B, 10)


# ---------------------------------------------------------------------------
# Deterministic parameter init (PyTorch-style uniform(-1/sqrt(fan_in), ...))
# ---------------------------------------------------------------------------
def init_params(key):
    def uinit(k, shape, fan_in):
        bound = 1.0 / float(fan_in) ** 0.5
        return jax.random.uniform(k, shape, jnp.float32, -bound, bound)

    ks = jax.random.split(key, 10)
    return {
        "conv1_w": uinit(ks[0], (6, 1, 5, 5), 1 * 5 * 5),
        "conv1_b": uinit(ks[1], (6,), 1 * 5 * 5),
        "conv2_w": uinit(ks[2], (12, 6, 5, 5), 6 * 5 * 5),
        "conv2_b": uinit(ks[3], (12,), 6 * 5 * 5),
        "fc1_w": uinit(ks[4], (120, 192), 192),
        "fc1_b": uinit(ks[5], (120,), 192),
        "fc2_w": uinit(ks[6], (60, 120), 120),
        "fc2_b": uinit(ks[7], (60,), 120),
        "out_w": uinit(ks[8], (10, 60), 60),
        "out_b": uinit(ks[9], (10,), 60),
    }


# ---------------------------------------------------------------------------
# Pure-JAX (XLA) reference for a correctness check
# ---------------------------------------------------------------------------
def reference_forward(params, x_nchw):
    dn = ("NCHW", "OIHW", "NCHW")

    def conv_relu(x, w, b):
        y = jax.lax.conv_general_dilated(x, w, (1, 1), "VALID",
                                         dimension_numbers=dn)
        return jax.nn.relu(y + b[None, :, None, None])

    def pool(x):
        return jax.lax.reduce_window(x, -jnp.inf, jax.lax.max,
                                     (1, 1, 2, 2), (1, 1, 2, 2), "VALID")

    t = pool(conv_relu(x_nchw, params["conv1_w"], params["conv1_b"]))
    t = pool(conv_relu(t, params["conv2_w"], params["conv2_b"]))
    t = t.reshape(t.shape[0], -1)
    t = jax.nn.relu(t @ params["fc1_w"].T + params["fc1_b"])
    t = jax.nn.relu(t @ params["fc2_w"].T + params["fc2_b"])
    return t @ params["out_w"].T + params["out_b"]


if __name__ == "__main__":
    key = jax.random.PRNGKey(0)
    pkey, xkey = jax.random.split(key)
    params = init_params(pkey)
    # Input shape implied by the module: fc1 expects 12*4*4 => 1x28x28 images.
    x = jax.random.normal(xkey, (2, 1, 28, 28), jnp.float32)

    prep = prepare_params(params)            # one-time weight re-layout
    fwd = jax.jit(network_forward)
    out = jax.block_until_ready(fwd(prep, x))

    ref = reference_forward(params, x)
    assert out.shape == (2, 10), out.shape
    err = float(jnp.max(jnp.abs(out - ref)))
    assert err < 2e-3, f"max abs error vs reference: {err}"
    print("KERNEL_OK")
</pallas_src>

<mosaic_0001>
module attributes {stable_mosaic.version = 11 : i64} {
  func.func @_lenet_kernel(%arg0: i32, %arg1: memref<1x14x28xf32, #tpu.memory_space<vmem>>, %arg2: memref<1x14x28xf32, #tpu.memory_space<vmem>>, %arg3: memref<5x28x192xf32, #tpu.memory_space<vmem>>, %arg4: memref<1x192xf32, #tpu.memory_space<vmem>>, %arg5: memref<25x8x12xf32, #tpu.memory_space<vmem>>, %arg6: memref<1x12xf32, #tpu.memory_space<vmem>>, %arg7: memref<16x12x120xf32, #tpu.memory_space<vmem>>, %arg8: memref<1x120xf32, #tpu.memory_space<vmem>>, %arg9: memref<120x60xf32, #tpu.memory_space<vmem>>, %arg10: memref<1x60xf32, #tpu.memory_space<vmem>>, %arg11: memref<60x10xf32, #tpu.memory_space<vmem>>, %arg12: memref<1x10xf32, #tpu.memory_space<vmem>>, %arg13: memref<1x1x10xf32, #tpu.memory_space<vmem>>, %arg14: memref<12x12x8xf32, #tpu.memory_space<vmem>>) attributes {dimension_semantics = [#tpu.dimension_semantics<parallel>], iteration_bounds = array<i64: 2>, scalar_prefetch = 0 : i64, scratch_operands = 1 : i64, tpu.core_type = #tpu.core_type<tc>, window_params = [{transform_indices = @transform_0, window_bounds = array<i64: 1, 14, 28>}, {transform_indices = @transform_1, window_bounds = array<i64: 1, 14, 28>}, {pipeline_mode = #tpu.pipeline_mode<synchronous>, transform_indices = @transform_2, window_bounds = array<i64: 5, 28, 192>}, {pipeline_mode = #tpu.pipeline_mode<synchronous>, transform_indices = @transform_3, window_bounds = array<i64: 1, 192>}, {pipeline_mode = #tpu.pipeline_mode<synchronous>, transform_indices = @transform_4, window_bounds = array<i64: 25, 8, 12>}, {pipeline_mode = #tpu.pipeline_mode<synchronous>, transform_indices = @transform_5, window_bounds = array<i64: 1, 12>}, {pipeline_mode = #tpu.pipeline_mode<synchronous>, transform_indices = @transform_6, window_bounds = array<i64: 16, 12, 120>}, {pipeline_mode = #tpu.pipeline_mode<synchronous>, transform_indices = @transform_7, window_bounds = array<i64: 1, 120>}, {pipeline_mode = #tpu.pipeline_mode<synchronous>, transform_indices = @transform_8, window_bounds = array<i64: 120, 60>}, {pipeline_mode = #tpu.pipeline_mode<synchronous>, transform_indices = @transform_9, window_bounds = array<i64: 1, 60>}, {pipeline_mode = #tpu.pipeline_mode<synchronous>, transform_indices = @transform_10, window_bounds = array<i64: 60, 10>}, {pipeline_mode = #tpu.pipeline_mode<synchronous>, transform_indices = @transform_11, window_bounds = array<i64: 1, 10>}, {transform_indices = @transform_12, window_bounds = array<i64: 1, 1, 10>}]} {
    %c0 = arith.constant 0 : index
    %c0_0 = arith.constant 0 : index
    %c0_1 = arith.constant 0 : index
    %0 = vector.load %arg1[%c0, %c0_0, %c0_1] : memref<1x14x28xf32, #tpu.memory_space<vmem>>, vector<1x14x28xf32>
    %1 = vector.shape_cast %0 : vector<1x14x28xf32> to vector<14x28xf32>
    %c0_2 = arith.constant 0 : index
    %c0_3 = arith.constant 0 : index
    %c0_4 = arith.constant 0 : index
    %2 = vector.load %arg2[%c0_2, %c0_3, %c0_4] : memref<1x14x28xf32, #tpu.memory_space<vmem>>, vector<1x14x28xf32>
    %3 = vector.shape_cast %2 : vector<1x14x28xf32> to vector<14x28xf32>
    %cst = arith.constant 0.000000e+00 : f32
    %4 = vector.broadcast %cst : f32 to vector<12x192xf32>
    %cst_5 = arith.constant 0.000000e+00 : f32
    %5 = vector.broadcast %cst_5 : f32 to vector<12x192xf32>
    %c0_6 = arith.constant 0 : index
    %c0_7 = arith.constant 0 : index
    %c0_8 = arith.constant 0 : index
    %6 = vector.load %arg3[%c0_6, %c0_7, %c0_8] : memref<5x28x192xf32, #tpu.memory_space<vmem>>, vector<1x28x192xf32>
    %7 = vector.shape_cast %6 : vector<1x28x192xf32> to vector<28x192xf32>
    %8 = vector.extract_strided_slice %1 {offsets = [0, 0], sizes = [12, 28], strides = [1, 1]} : vector<14x28xf32> to vector<12x28xf32>
    %cst_9 = arith.constant dense<0.000000e+00> : vector<12x192xf32>
    %9 = tpu.matmul %8, %7, %cst_9 {dimension_numbers = #tpu.dot_dimension_numbers<[1], [0], [0], [1], [0, 0, 1, 1], [], []>} : vector<12x28xf32>, vector<28x192xf32>, vector<12x192xf32> -> vector<12x192xf32>
    %10 = arith.addf %4, %9 : vector<12x192xf32>
    %11 = vector.extract_strided_slice %3 {offsets = [0, 0], sizes = [12, 28], strides = [1, 1]} : vector<14x28xf32> to vector<12x28xf32>
    %cst_10 = arith.constant dense<0.000000e+00> : vector<12x192xf32>
    %12 = tpu.matmul %11, %7, %cst_10 {dimension_numbers = #tpu.dot_dimension_numbers<[1], [0], [0], [1], [0, 0, 1, 1], [], []>} : vector<12x28xf32>, vector<28x192xf32>, vector<12x192xf32> -> vector<12x192xf32>
    %13 = arith.addf %5, %12 : vector<12x192xf32>
    %c1 = arith.constant 1 : index
    %c0_11 = arith.constant 0 : index
    %c0_12 = arith.constant 0 : index
    %14 = vector.load %arg3[%c1, %c0_11, %c0_12] : memref<5x28x192xf32, #tpu.memory_space<vmem>>, vector<1x28x192xf32>
    %15 = vector.shape_cast %14 : vector<1x28x192xf32> to vector<28x192xf32>
    %16 = vector.extract_strided_slice %3 {offsets = [0, 0], sizes = [12, 28], strides = [1, 1]} : vector<14x28xf32> to vector<12x28xf32>
    %cst_13 = arith.constant dense<0.000000e+00> : vector<12x192xf32>
    %17 = tpu.matmul %16, %15, %cst_13 {dimension_numbers = #tpu.dot_dimension_numbers<[1], [0], [0], [1], [0, 0, 1, 1], [], []>} : vector<12x28xf32>, vector<28x192xf32>, vector<12x192xf32> -> vector<12x192xf32>
    %18 = arith.addf %10, %17 : vector<12x192xf32>
    %19 = vector.extract_strided_slice %1 {offsets = [1, 0], sizes = [12, 28], strides = [1, 1]} : vector<14x28xf32> to vector<12x28xf32>
    %cst_14 = arith.constant dense<0.000000e+00> : vector<12x192xf32>
    %20 = tpu.matmul %19, %15, %cst_14 {dimension_numbers = #tpu.dot_dimension_numbers<[1], [0], [0], [1], [0, 0, 1, 1], [], []>} : vector<12x28xf32>, vector<28x192xf32>, vector<12x192xf32> -> vector<12x192xf32>
    %21 = arith.addf %13, %20 : vector<12x192xf32>
    %c2 = arith.constant 2 : index
    %c0_15 = arith.constant 0 : index
    %c0_16 = arith.constant 0 : index
    %22 = vector.load %arg3[%c2, %c0_15, %c0_16] : memref<5x28x192xf32, #tpu.memory_space<vmem>>, vector<1x28x192xf32>
    %23 = vector.shape_cast %22 : vector<1x28x192xf32> to vector<28x192xf32>
    %24 = vector.extract_strided_slice %1 {offsets = [1, 0], sizes = [12, 28], strides = [1, 1]} : vector<14x28xf32> to vector<12x28xf32>
    %cst_17 = arith.constant dense<0.000000e+00> : vector<12x192xf32>
    %25 = tpu.matmul %24, %23, %cst_17 {dimension_numbers = #tpu.dot_dimension_numbers<[1], [0], [0], [1], [0, 0, 1, 1], [], []>} : vector<12x28xf32>, vector<28x192xf32>, vector<12x192xf32> -> vector<12x192xf32>
    %26 = arith.addf %18, %25 : vector<12x192xf32>
    %27 = vector.extract_strided_slice %3 {offsets = [1, 0], sizes = [12, 28], strides = [1, 1]} : vector<14x28xf32> to vector<12x28xf32>
    %cst_18 = arith.constant dense<0.000000e+00> : vector<12x192xf32>
    %28 = tpu.matmul %27, %23, %cst_18 {dimension_numbers = #tpu.dot_dimension_numbers<[1], [0], [0], [1], [0, 0, 1, 1], [], []>} : vector<12x28xf32>, vector<28x192xf32>, vector<12x192xf32> -> vector<12x192xf32>
    %29 = arith.addf %21, %28 : vector<12x192xf32>
    %c3 = arith.constant 3 : index
    %c0_19 = arith.constant 0 : index
    %c0_20 = arith.constant 0 : index
    %30 = vector.load %arg3[%c3, %c0_19, %c0_20] : memref<5x28x192xf32, #tpu.memory_space<vmem>>, vector<1x28x192xf32>
    %31 = vector.shape_cast %30 : vector<1x28x192xf32> to vector<28x192xf32>
    %32 = vector.extract_strided_slice %3 {offsets = [1, 0], sizes = [12, 28], strides = [1, 1]} : vector<14x28xf32> to vector<12x28xf32>
    %cst_21 = arith.constant dense<0.000000e+00> : vector<12x192xf32>
    %33 = tpu.matmul %32, %31, %cst_21 {dimension_numbers = #tpu.dot_dimension_numbers<[1], [0], [0], [1], [0, 0, 1, 1], [], []>} : vector<12x28xf32>, vector<28x192xf32>, vector<12x192xf32> -> vector<12x192xf32>
    %34 = arith.addf %26, %33 : vector<12x192xf32>
    %35 = vector.extract_strided_slice %1 {offsets = [2, 0], sizes = [12, 28], strides = [1, 1]} : vector<14x28xf32> to vector<12x28xf32>
    %cst_22 = arith.constant dense<0.000000e+00> : vector<12x192xf32>
    %36 = tpu.matmul %35, %31, %cst_22 {dimension_numbers = #tpu.dot_dimension_numbers<[1], [0], [0], [1], [0, 0, 1, 1], [], []>} : vector<12x28xf32>, vector<28x192xf32>, vector<12x192xf32> -> vector<12x192xf32>
    %37 = arith.addf %29, %36 : vector<12x192xf32>
    %c4 = arith.constant 4 : index
    %c0_23 = arith.constant 0 : index
    %c0_24 = arith.constant 0 : index
    %38 = vector.load %arg3[%c4, %c0_23, %c0_24] : memref<5x28x192xf32, #tpu.memory_space<vmem>>, vector<1x28x192xf32>
    %39 = vector.shape_cast %38 : vector<1x28x192xf32> to vector<28x192xf32>
    %40 = vector.extract_strided_slice %1 {offsets = [2, 0], sizes = [12, 28], strides = [1, 1]} : vector<14x28xf32> to vector<12x28xf32>
    %cst_25 = arith.constant dense<0.000000e+00> : vector<12x192xf32>
    %41 = tpu.matmul %40, %39, %cst_25 {dimension_numbers = #tpu.dot_dimension_numbers<[1], [0], [0], [1], [0, 0, 1, 1], [], []>} : vector<12x28xf32>, vector<28x192xf32>, vector<12x192xf32> -> vector<12x192xf32>
    %42 = arith.addf %34, %41 : vector<12x192xf32>
    %43 = vector.extract_strided_slice %3 {offsets = [2, 0], sizes = [12, 28], strides = [1, 1]} : vector<14x28xf32> to vector<12x28xf32>
    %cst_26 = arith.constant dense<0.000000e+00> : vector<12x192xf32>
    %44 = tpu.matmul %43, %39, %cst_26 {dimension_numbers = #tpu.dot_dimension_numbers<[1], [0], [0], [1], [0, 0, 1, 1], [], []>} : vector<12x28xf32>, vector<28x192xf32>, vector<12x192xf32> -> vector<12x192xf32>
    %45 = arith.addf %37, %44 : vector<12x192xf32>
    %46 = arith.maximumf %42, %45 : vector<12x192xf32>
    %c0_27 = arith.constant 0 : index
    %c0_28 = arith.constant 0 : index
    %47 = vector.load %arg4[%c0_27, %c0_28] : memref<1x192xf32, #tpu.memory_space<vmem>>, vector<1x192xf32>
    %48 = vector.broadcast %47 : vector<1x192xf32> to vector<12x192xf32>
    %49 = arith.addf %46, %48 : vector<12x192xf32>
    %cst_29 = arith.constant 0.000000e+00 : f32
    %50 = vector.broadcast %cst_29 : f32 to vector<12x192xf32>
    %51 = arith.maximumf %49, %50 : vector<12x192xf32>
    %52 = vector.extract_strided_slice %51 {offsets = [0, 0], sizes = [12, 8], strides = [1, 1]} : vector<12x192xf32> to vector<12x8xf32>
    %53 = vector.extract_strided_slice %51 {offsets = [0, 8], sizes = [12, 8], strides = [1, 1]} : vector<12x192xf32> to vector<12x8xf32>
    %54 = arith.maximumf %52, %53 : vector<12x8xf32>
    %c0_30 = arith.constant 0 : index
    %c0_31 = arith.constant 0 : index
    %c0_32 = arith.constant 0 : index
    %55 = vector.load %arg14[%c0_30, %c0_31, %c0_32] : memref<12x12x8xf32, #tpu.memory_space<vmem>>, vector<1x12x8xf32>
    %56 = vector.shape_cast %55 : vector<1x12x8xf32> to vector<12x8xf32>
    %57 = vector.shape_cast %54 : vector<12x8xf32> to vector<1x12x8xf32>
    tpu.vector_store %arg14[%c0_30, %c0_31, %c0_32], %57 {strides = array<i32>} : memref<12x12x8xf32, #tpu.memory_space<vmem>>, vector<1x12x8xf32>,
    %58 = vector.extract_strided_slice %51 {offsets = [0, 16], sizes = [12, 8], strides = [1, 1]} : vector<12x192xf32> to vector<12x8xf32>
    %59 = vector.extract_strided_slice %51 {offsets = [0, 24], sizes = [12, 8], strides = [1, 1]} : vector<12x192xf32> to vector<12x8xf32>
    %60 = arith.maximumf %58, %59 : vector<12x8xf32>
    %c1_33 = arith.constant 1 : index
    %c0_34 = arith.constant 0 : index
    %c0_35 = arith.constant 0 : index
    %61 = vector.load %arg14[%c1_33, %c0_34, %c0_35] : memref<12x12x8xf32, #tpu.memory_space<vmem>>, vector<1x12x8xf32>
    %62 = vector.shape_cast %61 : vector<1x12x8xf32> to vector<12x8xf32>
    %63 = vector.shape_cast %60 : vector<12x8xf32> to vector<1x12x8xf32>
    tpu.vector_store %arg14[%c1_33, %c0_34, %c0_35], %63 {strides = array<i32>} : memref<12x12x8xf32, #tpu.memory_space<vmem>>, vector<1x12x8xf32>,
    %64 = vector.extract_strided_slice %51 {offsets = [0, 32], sizes = [12, 8], strides = [1, 1]} : vector<12x192xf32> to vector<12x8xf32>
    %65 = vector.extract_strided_slice %51 {offsets = [0, 40], sizes = [12, 8], strides = [1, 1]} : vector<12x192xf32> to vector<12x8xf32>
    %66 = arith.maximumf %64, %65 : vector<12x8xf32>
    %c2_36 = arith.constant 2 : index
    %c0_37 = arith.constant 0 : index
    %c0_38 = arith.constant 0 : index
    %67 = vector.load %arg14[%c2_36, %c0_37, %c0_38] : memref<12x12x8xf32, #tpu.memory_space<vmem>>, vector<1x12x8xf32>
    %68 = vector.shape_cast %67 : vector<1x12x8xf32> to vector<12x8xf32>
    %69 = vector.shape_cast %66 : vector<12x8xf32> to vector<1x12x8xf32>
    tpu.vector_store %arg14[%c2_36, %c0_37, %c0_38], %69 {strides = array<i32>} : memref<12x12x8xf32, #tpu.memory_space<vmem>>, vector<1x12x8xf32>,
    %70 = vector.extract_strided_slice %51 {offsets = [0, 48], sizes = [12, 8], strides = [1, 1]} : vector<12x192xf32> to vector<12x8xf32>
    %71 = vector.extract_strided_slice %51 {offsets = [0, 56], sizes = [12, 8], strides = [1, 1]} : vector<12x192xf32> to vector<12x8xf32>
    %72 = arith.maximumf %70, %71 : vector<12x8xf32>
    %c3_39 = arith.constant 3 : index
    %c0_40 = arith.constant 0 : index
    %c0_41 = arith.constant 0 : index
    %73 = vector.load %arg14[%c3_39, %c0_40, %c0_41] : memref<12x12x8xf32, #tpu.memory_space<vmem>>, vector<1x12x8xf32>
    %74 = vector.shape_cast %73 : vector<1x12x8xf32> to vector<12x8xf32>
    %75 = vector.shape_cast %72 : vector<12x8xf32> to vector<1x12x8xf32>
    tpu.vector_store %arg14[%c3_39, %c0_40, %c0_41], %75 {strides = array<i32>} : memref<12x12x8xf32, #tpu.memory_space<vmem>>, vector<1x12x8xf32>,
    %76 = vector.extract_strided_slice %51 {offsets = [0, 64], sizes = [12, 8], strides = [1, 1]} : vector<12x192xf32> to vector<12x8xf32>
    %77 = vector.extract_strided_slice %51 {offsets = [0, 72], sizes = [12, 8], strides = [1, 1]} : vector<12x192xf32> to vector<12x8xf32>
    %78 = arith.maximumf %76, %77 : vector<12x8xf32>
    %c4_42 = arith.constant 4 : index
    %c0_43 = arith.constant 0 : index
    %c0_44 = arith.constant 0 : index
    %79 = vector.load %arg14[%c4_42, %c0_43, %c0_44] : memref<12x12x8xf32, #tpu.memory_space<vmem>>, vector<1x12x8xf32>
    %80 = vector.shape_cast %79 : vector<1x12x8xf32> to vector<12x8xf32>
    %81 = vector.shape_cast %78 : vector<12x8xf32> to vector<1x12x8xf32>
    tpu.vector_store %arg14[%c4_42, %c0_43, %c0_44], %81 {strides = array<i32>} : memref<12x12x8xf32, #tpu.memory_space<vmem>>, vector<1x12x8xf32>,
    %82 = vector.extract_strided_slice %51 {offsets = [0, 80], sizes = [12, 8], strides = [1, 1]} : vector<12x192xf32> to vector<12x8xf32>
    %83 = vector.extract_strided_slice %51 {offsets = [0, 88], sizes = [12, 8], strides = [1, 1]} : vector<12x192xf32> to vector<12x8xf32>
    %84 = arith.maximumf %82, %83 : vector<12x8xf32>
    %c5 = arith.constant 5 : index
    %c0_45 = arith.constant 0 : index
    %c0_46 = arith.constant 0 : index
    %85 = vector.load %arg14[%c5, %c0_45, %c0_46] : memref<12x12x8xf32, #tpu.memory_space<vmem>>, vector<1x12x8xf32>
    %86 = vector.shape_cast %85 : vector<1x12x8xf32> to vector<12x8xf32>
    %87 = vector.shape_cast %84 : vector<12x8xf32> to vector<1x12x8xf32>
    tpu.vector_store %arg14[%c5, %c0_45, %c0_46], %87 {strides = array<i32>} : memref<12x12x8xf32, #tpu.memory_space<vmem>>, vector<1x12x8xf32>,
    %88 = vector.extract_strided_slice %51 {offsets = [0, 96], sizes = [12, 8], strides = [1, 1]} : vector<12x192xf32> to vector<12x8xf32>
    %89 = vector.extract_strided_slice %51 {offsets = [0, 104], sizes = [12, 8], strides = [1, 1]} : vector<12x192xf32> to vector<12x8xf32>
    %90 = arith.maximumf %88, %89 : vector<12x8xf32>
    %c6 = arith.constant 6 : index
    %c0_47 = arith.constant 0 : index
    %c0_48 = arith.constant 0 : index
    %91 = vector.load %arg14[%c6, %c0_47, %c0_48] : memref<12x12x8xf32, #tpu.memory_space<vmem>>, vector<1x12x8xf32>
    %92 = vector.shape_cast %91 : vector<1x12x8xf32> to vector<12x8xf32>
    %93 = vector.shape_cast %90 : vector<12x8xf32> to vector<1x12x8xf32>
    tpu.vector_store %arg14[%c6, %c0_47, %c0_48], %93 {strides = array<i32>} : memref<12x12x8xf32, #tpu.memory_space<vmem>>, vector<1x12x8xf32>,
    %94 = vector.extract_strided_slice %51 {offsets = [0, 112], sizes = [12, 8], strides = [1, 1]} : vector<12x192xf32> to vector<12x8xf32>
    %95 = vector.extract_strided_slice %51 {offsets = [0, 120], sizes = [12, 8], strides = [1, 1]} : vector<12x192xf32> to vector<12x8xf32>
    %96 = arith.maximumf %94, %95 : vector<12x8xf32>
    %c7 = arith.constant 7 : index
    %c0_49 = arith.constant 0 : index
    %c0_50 = arith.constant 0 : index
    %97 = vector.load %arg14[%c7, %c0_49, %c0_50] : memref<12x12x8xf32, #tpu.memory_space<vmem>>, vector<1x12x8xf32>
    %98 = vector.shape_cast %97 : vector<1x12x8xf32> to vector<12x8xf32>
    %99 = vector.shape_cast %96 : vector<12x8xf32> to vector<1x12x8xf32>
    tpu.vector_store %arg14[%c7, %c0_49, %c0_50], %99 {strides = array<i32>} : memref<12x12x8xf32, #tpu.memory_space<vmem>>, vector<1x12x8xf32>,
    %100 = vector.extract_strided_slice %51 {offsets = [0, 128], sizes = [12, 8], strides = [1, 1]} : vector<12x192xf32> to vector<12x8xf32>
    %101 = vector.extract_strided_slice %51 {offsets = [0, 136], sizes = [12, 8], strides = [1, 1]} : vector<12x192xf32> to vector<12x8xf32>
    %102 = arith.maximumf %100, %101 : vector<12x8xf32>
    %c8 = arith.constant 8 : index
    %c0_51 = arith.constant 0 : index
    %c0_52 = arith.constant 0 : index
    %103 = vector.load %arg14[%c8, %c0_51, %c0_52] : memref<12x12x8xf32, #tpu.memory_space<vmem>>, vector<1x12x8xf32>
    %104 = vector.shape_cast %103 : vector<1x12x8xf32> to vector<12x8xf32>
    %105 = vector.shape_cast %102 : vector<12x8xf32> to vector<1x12x8xf32>
    tpu.vector_store %arg14[%c8, %c0_51, %c0_52], %105 {strides = array<i32>} : memref<12x12x8xf32, #tpu.memory_space<vmem>>, vector<1x12x8xf32>,
    %106 = vector.extract_strided_slice %51 {offsets = [0, 144], sizes = [12, 8], strides = [1, 1]} : vector<12x192xf32> to vector<12x8xf32>
    %107 = vector.extract_strided_slice %51 {offsets = [0, 152], sizes = [12, 8], strides = [1, 1]} : vector<12x192xf32> to vector<12x8xf32>
    %108 = arith.maximumf %106, %107 : vector<12x8xf32>
    %c9 = arith.constant 9 : index
    %c0_53 = arith.constant 0 : index
    %c0_54 = arith.constant 0 : index
    %109 = vector.load %arg14[%c9, %c0_53, %c0_54] : memref<12x12x8xf32, #tpu.memory_space<vmem>>, vector<1x12x8xf32>
    %110 = vector.shape_cast %109 : vector<1x12x8xf32> to vector<12x8xf32>
    %111 = vector.shape_cast %108 : vector<12x8xf32> to vector<1x12x8xf32>
    tpu.vector_store %arg14[%c9, %c0_53, %c0_54], %111 {strides = array<i32>} : memref<12x12x8xf32, #tpu.memory_space<vmem>>, vector<1x12x8xf32>,
    %112 = vector.extract_strided_slice %51 {offsets = [0, 160], sizes = [12, 8], strides = [1, 1]} : vector<12x192xf32> to vector<12x8xf32>
    %113 = vector.extract_strided_slice %51 {offsets = [0, 168], sizes = [12, 8], strides = [1, 1]} : vector<12x192xf32> to vector<12x8xf32>
    %114 = arith.maximumf %112, %113 : vector<12x8xf32>
    %c10 = arith.constant 10 : index
    %c0_55 = arith.constant 0 : index
    %c0_56 = arith.constant 0 : index
    %115 = vector.load %arg14[%c10, %c0_55, %c0_56] : memref<12x12x8xf32, #tpu.memory_space<vmem>>, vector<1x12x8xf32>
    %116 = vector.shape_cast %115 : vector<1x12x8xf32> to vector<12x8xf32>
    %117 = vector.shape_cast %114 : vector<12x8xf32> to vector<1x12x8xf32>
    tpu.vector_store %arg14[%c10, %c0_55, %c0_56], %117 {strides = array<i32>} : memref<12x12x8xf32, #tpu.memory_space<vmem>>, vector<1x12x8xf32>,
    %118 = vector.extract_strided_slice %51 {offsets = [0, 176], sizes = [12, 8], strides = [1, 1]} : vector<12x192xf32> to vector<12x8xf32>
    %119 = vector.extract_strided_slice %51 {offsets = [0, 184], sizes = [12, 8], strides = [1, 1]} : vector<12x192xf32> to vector<12x8xf32>
    %120 = arith.maximumf %118, %119 : vector<12x8xf32>
    %c11 = arith.constant 11 : index
    %c0_57 = arith.constant 0 : index
    %c0_58 = arith.constant 0 : index
    %121 = vector.load %arg14[%c11, %c0_57, %c0_58] : memref<12x12x8xf32, #tpu.memory_space<vmem>>, vector<1x12x8xf32>
    %122 = vector.shape_cast %121 : vector<1x12x8xf32> to vector<12x8xf32>
    %123 = vector.shape_cast %120 : vector<12x8xf32> to vector<1x12x8xf32>
    tpu.vector_store %arg14[%c11, %c0_57, %c0_58], %123 {strides = array<i32>} : memref<12x12x8xf32, #tpu.memory_space<vmem>>, vector<1x12x8xf32>,
    %c0_59 = arith.constant 0 : index
    %c0_60 = arith.constant 0 : index
    %c0_61 = arith.constant 0 : index
    %124 = vector.load %arg14[%c0_59, %c0_60, %c0_61] : memref<12x12x8xf32, #tpu.memory_space<vmem>>, vector<12x12x8xf32>
    %cst_62 = arith.constant 0.000000e+00 : f32
    %125 = vector.broadcast %cst_62 : f32 to vector<64x12xf32>
    %126 = vector.extract_strided_slice %124 {offsets = [0, 0, 0], sizes = [8, 8, 8], strides = [1, 1, 1]} : vector<12x12x8xf32> to vector<8x8x8xf32>
    %127 = vector.shape_cast %126 : vector<8x8x8xf32> to vector<64x8xf32>
    %c0_63 = arith.constant 0 : index
    %c0_64 = arith.constant 0 : index
    %c0_65 = arith.constant 0 : index
    %128 = vector.load %arg5[%c0_63, %c0_64, %c0_65] : memref<25x8x12xf32, #tpu.memory_space<vmem>>, vector<1x8x12xf32>
    %129 = vector.shape_cast %128 : vector<1x8x12xf32> to vector<8x12xf32>
    %cst_66 = arith.constant dense<0.000000e+00> : vector<64x12xf32>
    %130 = tpu.matmul %127, %129, %cst_66 {dimension_numbers = #tpu.dot_dimension_numbers<[1], [0], [0], [1], [0, 0, 1, 1], [], []>} : vector<64x8xf32>, vector<8x12xf32>, vector<64x12xf32> -> vector<64x12xf32>
    %131 = arith.addf %125, %130 : vector<64x12xf32>
    %132 = vector.extract_strided_slice %124 {offsets = [1, 0, 0], sizes = [8, 8, 8], strides = [1, 1, 1]} : vector<12x12x8xf32> to vector<8x8x8xf32>
    %133 = vector.shape_cast %132 : vector<8x8x8xf32> to vector<64x8xf32>
    %c1_67 = arith.constant 1 : index
    %c0_68 = arith.constant 0 : index
    %c0_69 = arith.constant 0 : index
    %134 = vector.load %arg5[%c1_67, %c0_68, %c0_69] : memref<25x8x12xf32, #tpu.memory_space<vmem>>, vector<1x8x12xf32>
    %135 = vector.shape_cast %134 : vector<1x8x12xf32> to vector<8x12xf32>
    %cst_70 = arith.constant dense<0.000000e+00> : vector<64x12xf32>
    %136 = tpu.matmul %133, %135, %cst_70 {dimension_numbers = #tpu.dot_dimension_numbers<[1], [0], [0], [1], [0, 0, 1, 1], [], []>} : vector<64x8xf32>, vector<8x12xf32>, vector<64x12xf32> -> vector<64x12xf32>
    %137 = arith.addf %131, %136 : vector<64x12xf32>
    %138 = vector.extract_strided_slice %124 {offsets = [2, 0, 0], sizes = [8, 8, 8], strides = [1, 1, 1]} : vector<12x12x8xf32> to vector<8x8x8xf32>
    %139 = vector.shape_cast %138 : vector<8x8x8xf32> to vector<64x8xf32>
    %c2_71 = arith.constant 2 : index
    %c0_72 = arith.constant 0 : index
    %c0_73 = arith.constant 0 : index
    %140 = vector.load %arg5[%c2_71, %c0_72, %c0_73] : memref<25x8x12xf32, #tpu.memory_space<vmem>>, vector<1x8x12xf32>
    %141 = vector.shape_cast %140 : vector<1x8x12xf32> to vector<8x12xf32>
    %cst_74 = arith.constant dense<0.000000e+00> : vector<64x12xf32>
    %142 = tpu.matmul %139, %141, %cst_74 {dimension_numbers = #tpu.dot_dimension_numbers<[1], [0], [0], [1], [0, 0, 1, 1], [], []>} : vector<64x8xf32>, vector<8x12xf32>, vector<64x12xf32> -> vector<64x12xf32>
    %143 = arith.addf %137, %142 : vector<64x12xf32>
    %144 = vector.extract_strided_slice %124 {offsets = [3, 0, 0], sizes = [8, 8, 8], strides = [1, 1, 1]} : vector<12x12x8xf32> to vector<8x8x8xf32>
    %145 = vector.shape_cast %144 : vector<8x8x8xf32> to vector<64x8xf32>
    %c3_75 = arith.constant 3 : index
    %c0_76 = arith.constant 0 : index
    %c0_77 = arith.constant 0 : index
    %146 = vector.load %arg5[%c3_75, %c0_76, %c0_77] : memref<25x8x12xf32, #tpu.memory_space<vmem>>, vector<1x8x12xf32>
    %147 = vector.shape_cast %146 : vector<1x8x12xf32> to vector<8x12xf32>
    %cst_78 = arith.constant dense<0.000000e+00> : vector<64x12xf32>
    %148 = tpu.matmul %145, %147, %cst_78 {dimension_numbers = #tpu.dot_dimension_numbers<[1], [0], [0], [1], [0, 0, 1, 1], [], []>} : vector<64x8xf32>, vector<8x12xf32>, vector<64x12xf32> -> vector<64x12xf32>
    %149 = arith.addf %143, %148 : vector<64x12xf32>
    %150 = vector.extract_strided_slice %124 {offsets = [4, 0, 0], sizes = [8, 8, 8], strides = [1, 1, 1]} : vector<12x12x8xf32> to vector<8x8x8xf32>
    %151 = vector.shape_cast %150 : vector<8x8x8xf32> to vector<64x8xf32>
    %c4_79 = arith.constant 4 : index
    %c0_80 = arith.constant 0 : index
    %c0_81 = arith.constant 0 : index
    %152 = vector.load %arg5[%c4_79, %c0_80, %c0_81] : memref<25x8x12xf32, #tpu.memory_space<vmem>>, vector<1x8x12xf32>
    %153 = vector.shape_cast %152 : vector<1x8x12xf32> to vector<8x12xf32>
    %cst_82 = arith.constant dense<0.000000e+00> : vector<64x12xf32>
    %154 = tpu.matmul %151, %153, %cst_82 {dimension_numbers = #tpu.dot_dimension_numbers<[1], [0], [0], [1], [0, 0, 1, 1], [], []>} : vector<64x8xf32>, vector<8x12xf32>, vector<64x12xf32> -> vector<64x12xf32>
    %155 = arith.addf %149, %154 : vector<64x12xf32>
    %156 = vector.extract_strided_slice %124 {offsets = [0, 1, 0], sizes = [8, 8, 8], strides = [1, 1, 1]} : vector<12x12x8xf32> to vector<8x8x8xf32>
    %157 = vector.shape_cast %156 : vector<8x8x8xf32> to vector<64x8xf32>
    %c5_83 = arith.constant 5 : index
    %c0_84 = arith.constant 0 : index
    %c0_85 = arith.constant 0 : index
    %158 = vector.load %arg5[%c5_83, %c0_84, %c0_85] : memref<25x8x12xf32, #tpu.memory_space<vmem>>, vector<1x8x12xf32>
    %159 = vector.shape_cast %158 : vector<1x8x12xf32> to vector<8x12xf32>
    %cst_86 = arith.constant dense<0.000000e+00> : vector<64x12xf32>
    %160 = tpu.matmul %157, %159, %cst_86 {dimension_numbers = #tpu.dot_dimension_numbers<[1], [0], [0], [1], [0, 0, 1, 1], [], []>} : vector<64x8xf32>, vector<8x12xf32>, vector<64x12xf32> -> vector<64x12xf32>
    %161 = arith.addf %155, %160 : vector<64x12xf32>
    %162 = vector.extract_strided_slice %124 {offsets = [1, 1, 0], sizes = [8, 8, 8], strides = [1, 1, 1]} : vector<12x12x8xf32> to vector<8x8x8xf32>
    %163 = vector.shape_cast %162 : vector<8x8x8xf32> to vector<64x8xf32>
    %c6_87 = arith.constant 6 : index
    %c0_88 = arith.constant 0 : index
    %c0_89 = arith.constant 0 : index
    %164 = vector.load %arg5[%c6_87, %c0_88, %c0_89] : memref<25x8x12xf32, #tpu.memory_space<vmem>>, vector<1x8x12xf32>
    %165 = vector.shape_cast %164 : vector<1x8x12xf32> to vector<8x12xf32>
    %cst_90 = arith.constant dense<0.000000e+00> : vector<64x12xf32>
    %166 = tpu.matmul %163, %165, %cst_90 {dimension_numbers = #tpu.dot_dimension_numbers<[1], [0], [0], [1], [0, 0, 1, 1], [], []>} : vector<64x8xf32>, vector<8x12xf32>, vector<64x12xf32> -> vector<64x12xf32>
    %167 = arith.addf %161, %166 : vector<64x12xf32>
    %168 = vector.extract_strided_slice %124 {offsets = [2, 1, 0], sizes = [8, 8, 8], strides = [1, 1, 1]} : vector<12x12x8xf32> to vector<8x8x8xf32>
    %169 = vector.shape_cast %168 : vector<8x8x8xf32> to vector<64x8xf32>
    %c7_91 = arith.constant 7 : index
    %c0_92 = arith.constant 0 : index
    %c0_93 = arith.constant 0 : index
    %170 = vector.load %arg5[%c7_91, %c0_92, %c0_93] : memref<25x8x12xf32, #tpu.memory_space<vmem>>, vector<1x8x12xf32>
    %171 = vector.shape_cast %170 : vector<1x8x12xf32> to vector<8x12xf32>
    %cst_94 = arith.constant dense<0.000000e+00> : vector<64x12xf32>
    %172 = tpu.matmul %169, %171, %cst_94 {dimension_numbers = #tpu.dot_dimension_numbers<[1], [0], [0], [1], [0, 0, 1, 1], [], []>} : vector<64x8xf32>, vector<8x12xf32>, vector<64x12xf32> -> vector<64x12xf32>
    %173 = arith.addf %167, %172 : vector<64x12xf32>
    %174 = vector.extract_strided_slice %124 {offsets = [3, 1, 0], sizes = [8, 8, 8], strides = [1, 1, 1]} : vector<12x12x8xf32> to vector<8x8x8xf32>
    %175 = vector.shape_cast %174 : vector<8x8x8xf32> to vector<64x8xf32>
    %c8_95 = arith.constant 8 : index
    %c0_96 = arith.constant 0 : index
    %c0_97 = arith.constant 0 : index
    %176 = vector.load %arg5[%c8_95, %c0_96, %c0_97] : memref<25x8x12xf32, #tpu.memory_space<vmem>>, vector<1x8x12xf32>
    %177 = vector.shape_cast %176 : vector<1x8x12xf32> to vector<8x12xf32>
    %cst_98 = arith.constant dense<0.000000e+00> : vector<64x12xf32>
    %178 = tpu.matmul %175, %177, %cst_98 {dimension_numbers = #tpu.dot_dimension_numbers<[1], [0], [0], [1], [0, 0, 1, 1], [], []>} : vector<64x8xf32>, vector<8x12xf32>, vector<64x12xf32> -> vector<64x12xf32>
    %179 = arith.addf %173, %178 : vector<64x12xf32>
    %180 = vector.extract_strided_slice %124 {offsets = [4, 1, 0], sizes = [8, 8, 8], strides = [1, 1, 1]} : vector<12x12x8xf32> to vector<8x8x8xf32>
    %181 = vector.shape_cast %180 : vector<8x8x8xf32> to vector<64x8xf32>
    %c9_99 = arith.constant 9 : index
    %c0_100 = arith.constant 0 : index
    %c0_101 = arith.constant 0 : index
    %182 = vector.load %arg5[%c9_99, %c0_100, %c0_101] : memref<25x8x12xf32, #tpu.memory_space<vmem>>, vector<1x8x12xf32>
    %183 = vector.shape_cast %182 : vector<1x8x12xf32> to vector<8x12xf32>
    %cst_102 = arith.constant dense<0.000000e+00> : vector<64x12xf32>
    %184 = tpu.matmul %181, %183, %cst_102 {dimension_numbers = #tpu.dot_dimension_numbers<[1], [0], [0], [1], [0, 0, 1, 1], [], []>} : vector<64x8xf32>, vector<8x12xf32>, vector<64x12xf32> -> vector<64x12xf32>
    %185 = arith.addf %179, %184 : vector<64x12xf32>
    %186 = vector.extract_strided_slice %124 {offsets = [0, 2, 0], sizes = [8, 8, 8], strides = [1, 1, 1]} : vector<12x12x8xf32> to vector<8x8x8xf32>
    %187 = vector.shape_cast %186 : vector<8x8x8xf32> to vector<64x8xf32>
    %c10_103 = arith.constant 10 : index
    %c0_104 = arith.constant 0 : index
    %c0_105 = arith.constant 0 : index
    %188 = vector.load %arg5[%c10_103, %c0_104, %c0_105] : memref<25x8x12xf32, #tpu.memory_space<vmem>>, vector<1x8x12xf32>
    %189 = vector.shape_cast %188 : vector<1x8x12xf32> to vector<8x12xf32>
    %cst_106 = arith.constant dense<0.000000e+00> : vector<64x12xf32>
    %190 = tpu.matmul %187, %189, %cst_106 {dimension_numbers = #tpu.dot_dimension_numbers<[1], [0], [0], [1], [0, 0, 1, 1], [], []>} : vector<64x8xf32>, vector<8x12xf32>, vector<64x12xf32> -> vector<64x12xf32>
    %191 = arith.addf %185, %190 : vector<64x12xf32>
    %192 = vector.extract_strided_slice %124 {offsets = [1, 2, 0], sizes = [8, 8, 8], strides = [1, 1, 1]} : vector<12x12x8xf32> to vector<8x8x8xf32>
    %193 = vector.shape_cast %192 : vector<8x8x8xf32> to vector<64x8xf32>
    %c11_107 = arith.constant 11 : index
    %c0_108 = arith.constant 0 : index
    %c0_109 = arith.constant 0 : index
    %194 = vector.load %arg5[%c11_107, %c0_108, %c0_109] : memref<25x8x12xf32, #tpu.memory_space<vmem>>, vector<1x8x12xf32>
    %195 = vector.shape_cast %194 : vector<1x8x12xf32> to vector<8x12xf32>
    %cst_110 = arith.constant dense<0.000000e+00> : vector<64x12xf32>
    %196 = tpu.matmul %193, %195, %cst_110 {dimension_numbers = #tpu.dot_dimension_numbers<[1], [0], [0], [1], [0, 0, 1, 1], [], []>} : vector<64x8xf32>, vector<8x12xf32>, vector<64x12xf32> -> vector<64x12xf32>
    %197 = arith.addf %191, %196 : vector<64x12xf32>
    %198 = vector.extract_strided_slice %124 {offsets = [2, 2, 0], sizes = [8, 8, 8], strides = [1, 1, 1]} : vector<12x12x8xf32> to vector<8x8x8xf32>
    %199 = vector.shape_cast %198 : vector<8x8x8xf32> to vector<64x8xf32>
    %c12 = arith.constant 12 : index
    %c0_111 = arith.constant 0 : index
    %c0_112 = arith.constant 0 : index
    %200 = vector.load %arg5[%c12, %c0_111, %c0_112] : memref<25x8x12xf32, #tpu.memory_space<vmem>>, vector<1x8x12xf32>
    %201 = vector.shape_cast %200 : vector<1x8x12xf32> to vector<8x12xf32>
    %cst_113 = arith.constant dense<0.000000e+00> : vector<64x12xf32>
    %202 = tpu.matmul %199, %201, %cst_113 {dimension_numbers = #tpu.dot_dimension_numbers<[1], [0], [0], [1], [0, 0, 1, 1], [], []>} : vector<64x8xf32>, vector<8x12xf32>, vector<64x12xf32> -> vector<64x12xf32>
    %203 = arith.addf %197, %202 : vector<64x12xf32>
    %204 = vector.extract_strided_slice %124 {offsets = [3, 2, 0], sizes = [8, 8, 8], strides = [1, 1, 1]} : vector<12x12x8xf32> to vector<8x8x8xf32>
    %205 = vector.shape_cast %204 : vector<8x8x8xf32> to vector<64x8xf32>
    %c13 = arith.constant 13 : index
    %c0_114 = arith.constant 0 : index
    %c0_115 = arith.constant 0 : index
    %206 = vector.load %arg5[%c13, %c0_114, %c0_115] : memref<25x8x12xf32, #tpu.memory_space<vmem>>, vector<1x8x12xf32>
    %207 = vector.shape_cast %206 : vector<1x8x12xf32> to vector<8x12xf32>
    %cst_116 = arith.constant dense<0.000000e+00> : vector<64x12xf32>
    %208 = tpu.matmul %205, %207, %cst_116 {dimension_numbers = #tpu.dot_dimension_numbers<[1], [0], [0], [1], [0, 0, 1, 1], [], []>} : vector<64x8xf32>, vector<8x12xf32>, vector<64x12xf32> -> vector<64x12xf32>
    %209 = arith.addf %203, %208 : vector<64x12xf32>
    %210 = vector.extract_strided_slice %124 {offsets = [4, 2, 0], sizes = [8, 8, 8], strides = [1, 1, 1]} : vector<12x12x8xf32> to vector<8x8x8xf32>
    %211 = vector.shape_cast %210 : vector<8x8x8xf32> to vector<64x8xf32>
    %c14 = arith.constant 14 : index
    %c0_117 = arith.constant 0 : index
    %c0_118 = arith.constant 0 : index
    %212 = vector.load %arg5[%c14, %c0_117, %c0_118] : memref<25x8x12xf32, #tpu.memory_space<vmem>>, vector<1x8x12xf32>
    %213 = vector.shape_cast %212 : vector<1x8x12xf32> to vector<8x12xf32>
    %cst_119 = arith.constant dense<0.000000e+00> : vector<64x12xf32>
    %214 = tpu.matmul %211, %213, %cst_119 {dimension_numbers = #tpu.dot_dimension_numbers<[1], [0], [0], [1], [0, 0, 1, 1], [], []>} : vector<64x8xf32>, vector<8x12xf32>, vector<64x12xf32> -> vector<64x12xf32>
    %215 = arith.addf %209, %214 : vector<64x12xf32>
    %216 = vector.extract_strided_slice %124 {offsets = [0, 3, 0], sizes = [8, 8, 8], strides = [1, 1, 1]} : vector<12x12x8xf32> to vector<8x8x8xf32>
    %217 = vector.shape_cast %216 : vector<8x8x8xf32> to vector<64x8xf32>
    %c15 = arith.constant 15 : index
    %c0_120 = arith.constant 0 : index
    %c0_121 = arith.constant 0 : index
    %218 = vector.load %arg5[%c15, %c0_120, %c0_121] : memref<25x8x12xf32, #tpu.memory_space<vmem>>, vector<1x8x12xf32>
    %219 = vector.shape_cast %218 : vector<1x8x12xf32> to vector<8x12xf32>
    %cst_122 = arith.constant dense<0.000000e+00> : vector<64x12xf32>
    %220 = tpu.matmul %217, %219, %cst_122 {dimension_numbers = #tpu.dot_dimension_numbers<[1], [0], [0], [1], [0, 0, 1, 1], [], []>} : vector<64x8xf32>, vector<8x12xf32>, vector<64x12xf32> -> vector<64x12xf32>
    %221 = arith.addf %215, %220 : vector<64x12xf32>
    %222 = vector.extract_strided_slice %124 {offsets = [1, 3, 0], sizes = [8, 8, 8], strides = [1, 1, 1]} : vector<12x12x8xf32> to vector<8x8x8xf32>
    %223 = vector.shape_cast %222 : vector<8x8x8xf32> to vector<64x8xf32>
    %c16 = arith.constant 16 : index
    %c0_123 = arith.constant 0 : index
    %c0_124 = arith.constant 0 : index
    %224 = vector.load %arg5[%c16, %c0_123, %c0_124] : memref<25x8x12xf32, #tpu.memory_space<vmem>>, vector<1x8x12xf32>
    %225 = vector.shape_cast %224 : vector<1x8x12xf32> to vector<8x12xf32>
    %cst_125 = arith.constant dense<0.000000e+00> : vector<64x12xf32>
    %226 = tpu.matmul %223, %225, %cst_125 {dimension_numbers = #tpu.dot_dimension_numbers<[1], [0], [0], [1], [0, 0, 1, 1], [], []>} : vector<64x8xf32>, vector<8x12xf32>, vector<64x12xf32> -> vector<64x12xf32>
    %227 = arith.addf %221, %226 : vector<64x12xf32>
    %228 = vector.extract_strided_slice %124 {offsets = [2, 3, 0], sizes = [8, 8, 8], strides = [1, 1, 1]} : vector<12x12x8xf32> to vector<8x8x8xf32>
    %229 = vector.shape_cast %228 : vector<8x8x8xf32> to vector<64x8xf32>
    %c17 = arith.constant 17 : index
    %c0_126 = arith.constant 0 : index
    %c0_127 = arith.constant 0 : index
    %230 = vector.load %arg5[%c17, %c0_126, %c0_127] : memref<25x8x12xf32, #tpu.memory_space<vmem>>, vector<1x8x12xf32>
    %231 = vector.shape_cast %230 : vector<1x8x12xf32> to vector<8x12xf32>
    %cst_128 = arith.constant dense<0.000000e+00> : vector<64x12xf32>
    %232 = tpu.matmul %229, %231, %cst_128 {dimension_numbers = #tpu.dot_dimension_numbers<[1], [0], [0], [1], [0, 0, 1, 1], [], []>} : vector<64x8xf32>, vector<8x12xf32>, vector<64x12xf32> -> vector<64x12xf32>
    %233 = arith.addf %227, %232 : vector<64x12xf32>
    %234 = vector.extract_strided_slice %124 {offsets = [3, 3, 0], sizes = [8, 8, 8], strides = [1, 1, 1]} : vector<12x12x8xf32> to vector<8x8x8xf32>
    %235 = vector.shape_cast %234 : vector<8x8x8xf32> to vector<64x8xf32>
    %c18 = arith.constant 18 : index
    %c0_129 = arith.constant 0 : index
    %c0_130 = arith.constant 0 : index
    %236 = vector.load %arg5[%c18, %c0_129, %c0_130] : memref<25x8x12xf32, #tpu.memory_space<vmem>>, vector<1x8x12xf32>
    %237 = vector.shape_cast %236 : vector<1x8x12xf32> to vector<8x12xf32>
    %cst_131 = arith.constant dense<0.000000e+00> : vector<64x12xf32>
    %238 = tpu.matmul %235, %237, %cst_131 {dimension_numbers = #tpu.dot_dimension_numbers<[1], [0], [0], [1], [0, 0, 1, 1], [], []>} : vector<64x8xf32>, vector<8x12xf32>, vector<64x12xf32> -> vector<64x12xf32>
    %239 = arith.addf %233, %238 : vector<64x12xf32>
    %240 = vector.extract_strided_slice %124 {offsets = [4, 3, 0], sizes = [8, 8, 8], strides = [1, 1, 1]} : vector<12x12x8xf32> to vector<8x8x8xf32>
    %241 = vector.shape_cast %240 : vector<8x8x8xf32> to vector<64x8xf32>
    %c19 = arith.constant 19 : index
    %c0_132 = arith.constant 0 : index
    %c0_133 = arith.constant 0 : index
    %242 = vector.load %arg5[%c19, %c0_132, %c0_133] : memref<25x8x12xf32, #tpu.memory_space<vmem>>, vector<1x8x12xf32>
    %243 = vector.shape_cast %242 : vector<1x8x12xf32> to vector<8x12xf32>
    %cst_134 = arith.constant dense<0.000000e+00> : vector<64x12xf32>
    %244 = tpu.matmul %241, %243, %cst_134 {dimension_numbers = #tpu.dot_dimension_numbers<[1], [0], [0], [1], [0, 0, 1, 1], [], []>} : vector<64x8xf32>, vector<8x12xf32>, vector<64x12xf32> -> vector<64x12xf32>
    %245 = arith.addf %239, %244 : vector<64x12xf32>
    %246 = vector.extract_strided_slice %124 {offsets = [0, 4, 0], sizes = [8, 8, 8], strides = [1, 1, 1]} : vector<12x12x8xf32> to vector<8x8x8xf32>
    %247 = vector.shape_cast %246 : vector<8x8x8xf32> to vector<64x8xf32>
    %c20 = arith.constant 20 : index
    %c0_135 = arith.constant 0 : index
    %c0_136 = arith.constant 0 : index
    %248 = vector.load %arg5[%c20, %c0_135, %c0_136] : memref<25x8x12xf32, #tpu.memory_space<vmem>>, vector<1x8x12xf32>
    %249 = vector.shape_cast %248 : vector<1x8x12xf32> to vector<8x12xf32>
    %cst_137 = arith.constant dense<0.000000e+00> : vector<64x12xf32>
    %250 = tpu.matmul %247, %249, %cst_137 {dimension_numbers = #tpu.dot_dimension_numbers<[1], [0], [0], [1], [0, 0, 1, 1], [], []>} : vector<64x8xf32>, vector<8x12xf32>, vector<64x12xf32> -> vector<64x12xf32>
    %251 = arith.addf %245, %250 : vector<64x12xf32>
    %252 = vector.extract_strided_slice %124 {offsets = [1, 4, 0], sizes = [8, 8, 8], strides = [1, 1, 1]} : vector<12x12x8xf32> to vector<8x8x8xf32>
    %253 = vector.shape_cast %252 : vector<8x8x8xf32> to vector<64x8xf32>
    %c21 = arith.constant 21 : index
    %c0_138 = arith.constant 0 : index
    %c0_139 = arith.constant 0 : index
    %254 = vector.load %arg5[%c21, %c0_138, %c0_139] : memref<25x8x12xf32, #tpu.memory_space<vmem>>, vector<1x8x12xf32>
    %255 = vector.shape_cast %254 : vector<1x8x12xf32> to vector<8x12xf32>
    %cst_140 = arith.constant dense<0.000000e+00> : vector<64x12xf32>
    %256 = tpu.matmul %253, %255, %cst_140 {dimension_numbers = #tpu.dot_dimension_numbers<[1], [0], [0], [1], [0, 0, 1, 1], [], []>} : vector<64x8xf32>, vector<8x12xf32>, vector<64x12xf32> -> vector<64x12xf32>
    %257 = arith.addf %251, %256 : vector<64x12xf32>
    %258 = vector.extract_strided_slice %124 {offsets = [2, 4, 0], sizes = [8, 8, 8], strides = [1, 1, 1]} : vector<12x12x8xf32> to vector<8x8x8xf32>
    %259 = vector.shape_cast %258 : vector<8x8x8xf32> to vector<64x8xf32>
    %c22 = arith.constant 22 : index
    %c0_141 = arith.constant 0 : index
    %c0_142 = arith.constant 0 : index
    %260 = vector.load %arg5[%c22, %c0_141, %c0_142] : memref<25x8x12xf32, #tpu.memory_space<vmem>>, vector<1x8x12xf32>
    %261 = vector.shape_cast %260 : vector<1x8x12xf32> to vector<8x12xf32>
    %cst_143 = arith.constant dense<0.000000e+00> : vector<64x12xf32>
    %262 = tpu.matmul %259, %261, %cst_143 {dimension_numbers = #tpu.dot_dimension_numbers<[1], [0], [0], [1], [0, 0, 1, 1], [], []>} : vector<64x8xf32>, vector<8x12xf32>, vector<64x12xf32> -> vector<64x12xf32>
    %263 = arith.addf %257, %262 : vector<64x12xf32>
    %264 = vector.extract_strided_slice %124 {offsets = [3, 4, 0], sizes = [8, 8, 8], strides = [1, 1, 1]} : vector<12x12x8xf32> to vector<8x8x8xf32>
    %265 = vector.shape_cast %264 : vector<8x8x8xf32> to vector<64x8xf32>
    %c23 = arith.constant 23 : index
    %c0_144 = arith.constant 0 : index
    %c0_145 = arith.constant 0 : index
    %266 = vector.load %arg5[%c23, %c0_144, %c0_145] : memref<25x8x12xf32, #tpu.memory_space<vmem>>, vector<1x8x12xf32>
    %267 = vector.shape_cast %266 : vector<1x8x12xf32> to vector<8x12xf32>
    %cst_146 = arith.constant dense<0.000000e+00> : vector<64x12xf32>
    %268 = tpu.matmul %265, %267, %cst_146 {dimension_numbers = #tpu.dot_dimension_numbers<[1], [0], [0], [1], [0, 0, 1, 1], [], []>} : vector<64x8xf32>, vector<8x12xf32>, vector<64x12xf32> -> vector<64x12xf32>
    %269 = arith.addf %263, %268 : vector<64x12xf32>
    %270 = vector.extract_strided_slice %124 {offsets = [4, 4, 0], sizes = [8, 8, 8], strides = [1, 1, 1]} : vector<12x12x8xf32> to vector<8x8x8xf32>
    %271 = vector.shape_cast %270 : vector<8x8x8xf32> to vector<64x8xf32>
    %c24 = arith.constant 24 : index
    %c0_147 = arith.constant 0 : index
    %c0_148 = arith.constant 0 : index
    %272 = vector.load %arg5[%c24, %c0_147, %c0_148] : memref<25x8x12xf32, #tpu.memory_space<vmem>>, vector<1x8x12xf32>
    %273 = vector.shape_cast %272 : vector<1x8x12xf32> to vector<8x12xf32>
    %cst_149 = arith.constant dense<0.000000e+00> : vector<64x12xf32>
    %274 = tpu.matmul %271, %273, %cst_149 {dimension_numbers = #tpu.dot_dimension_numbers<[1], [0], [0], [1], [0, 0, 1, 1], [], []>} : vector<64x8xf32>, vector<8x12xf32>, vector<64x12xf32> -> vector<64x12xf32>
    %275 = arith.addf %269, %274 : vector<64x12xf32>
    %c0_150 = arith.constant 0 : index
    %c0_151 = arith.constant 0 : index
    %276 = vector.load %arg6[%c0_150, %c0_151] : memref<1x12xf32, #tpu.memory_space<vmem>>, vector<1x12xf32>
    %277 = vector.broadcast %276 : vector<1x12xf32> to vector<64x12xf32>
    %278 = arith.addf %275, %277 : vector<64x12xf32>
    %cst_152 = arith.constant 0.000000e+00 : f32
    %279 = vector.broadcast %cst_152 : f32 to vector<64x12xf32>
    %280 = arith.maximumf %278, %279 : vector<64x12xf32>
    %281 = vector.shape_cast %280 : vector<64x12xf32> to vector<8x8x12xf32>
    %cst_153 = arith.constant 0.000000e+00 : f32
    %282 = vector.broadcast %cst_153 : f32 to vector<1x120xf32>
    %283 = vector.extract_strided_slice %281 {offsets = [0, 0, 0], sizes = [1, 1, 12], strides = [1, 1, 1]} : vector<8x8x12xf32> to vector<1x1x12xf32>
    %284 = vector.shape_cast %283 : vector<1x1x12xf32> to vector<1x12xf32>
    %285 = vector.extract_strided_slice %281 {offsets = [0, 1, 0], sizes = [1, 1, 12], strides = [1, 1, 1]} : vector<8x8x12xf32> to vector<1x1x12xf32>
    %286 = vector.shape_cast %285 : vector<1x1x12xf32> to vector<1x12xf32>
    %287 = arith.maximumf %284, %286 : vector<1x12xf32>
    %288 = vector.extract_strided_slice %281 {offsets = [1, 0, 0], sizes = [1, 1, 12], strides = [1, 1, 1]} : vector<8x8x12xf32> to vector<1x1x12xf32>
    %289 = vector.shape_cast %288 : vector<1x1x12xf32> to vector<1x12xf32>
    %290 = vector.extract_strided_slice %281 {offsets = [1, 1, 0], sizes = [1, 1, 12], strides = [1, 1, 1]} : vector<8x8x12xf32> to vector<1x1x12xf32>
    %291 = vector.shape_cast %290 : vector<1x1x12xf32> to vector<1x12xf32>
    %292 = arith.maximumf %289, %291 : vector<1x12xf32>
    %293 = arith.maximumf %287, %292 : vector<1x12xf32>
    %c0_154 = arith.constant 0 : index
    %c0_155 = arith.constant 0 : index
    %c0_156 = arith.constant 0 : index
    %294 = vector.load %arg7[%c0_154, %c0_155, %c0_156] : memref<16x12x120xf32, #tpu.memory_space<vmem>>, vector<1x12x120xf32>
    %295 = vector.shape_cast %294 : vector<1x12x120xf32> to vector<12x120xf32>
    %cst_157 = arith.constant dense<0.000000e+00> : vector<1x120xf32>
    %296 = tpu.matmul %293, %295, %cst_157 {dimension_numbers = #tpu.dot_dimension_numbers<[1], [0], [0], [1], [0, 0, 1, 1], [], []>} : vector<1x12xf32>, vector<12x120xf32>, vector<1x120xf32> -> vector<1x120xf32>
    %297 = arith.addf %282, %296 : vector<1x120xf32>
    %298 = vector.extract_strided_slice %281 {offsets = [2, 0, 0], sizes = [1, 1, 12], strides = [1, 1, 1]} : vector<8x8x12xf32> to vector<1x1x12xf32>
    %299 = vector.shape_cast %298 : vector<1x1x12xf32> to vector<1x12xf32>
    %300 = vector.extract_strided_slice %281 {offsets = [2, 1, 0], sizes = [1, 1, 12], strides = [1, 1, 1]} : vector<8x8x12xf32> to vector<1x1x12xf32>
    %301 = vector.shape_cast %300 : vector<1x1x12xf32> to vector<1x12xf32>
    %302 = arith.maximumf %299, %301 : vector<1x12xf32>
    %303 = vector.extract_strided_slice %281 {offsets = [3, 0, 0], sizes = [1, 1, 12], strides = [1, 1, 1]} : vector<8x8x12xf32> to vector<1x1x12xf32>
    %304 = vector.shape_cast %303 : vector<1x1x12xf32> to vector<1x12xf32>
    %305 = vector.extract_strided_slice %281 {offsets = [3, 1, 0], sizes = [1, 1, 12], strides = [1, 1, 1]} : vector<8x8x12xf32> to vector<1x1x12xf32>
    %306 = vector.shape_cast %305 : vector<1x1x12xf32> to vector<1x12xf32>
    %307 = arith.maximumf %304, %306 : vector<1x12xf32>
    %308 = arith.maximumf %302, %307 : vector<1x12xf32>
    %c1_158 = arith.constant 1 : index
    %c0_159 = arith.constant 0 : index
    %c0_160 = arith.constant 0 : index
    %309 = vector.load %arg7[%c1_158, %c0_159, %c0_160] : memref<16x12x120xf32, #tpu.memory_space<vmem>>, vector<1x12x120xf32>
    %310 = vector.shape_cast %309 : vector<1x12x120xf32> to vector<12x120xf32>
    %cst_161 = arith.constant dense<0.000000e+00> : vector<1x120xf32>
    %311 = tpu.matmul %308, %310, %cst_161 {dimension_numbers = #tpu.dot_dimension_numbers<[1], [0], [0], [1], [0, 0, 1, 1], [], []>} : vector<1x12xf32>, vector<12x120xf32>, vector<1x120xf32> -> vector<1x120xf32>
    %312 = arith.addf %297, %311 : vector<1x120xf32>
    %313 = vector.extract_strided_slice %281 {offsets = [4, 0, 0], sizes = [1, 1, 12], strides = [1, 1, 1]} : vector<8x8x12xf32> to vector<1x1x12xf32>
    %314 = vector.shape_cast %313 : vector<1x1x12xf32> to vector<1x12xf32>
    %315 = vector.extract_strided_slice %281 {offsets = [4, 1, 0], sizes = [1, 1, 12], strides = [1, 1, 1]} : vector<8x8x12xf32> to vector<1x1x12xf32>
    %316 = vector.shape_cast %315 : vector<1x1x12xf32> to vector<1x12xf32>
    %317 = arith.maximumf %314, %316 : vector<1x12xf32>
    %318 = vector.extract_strided_slice %281 {offsets = [5, 0, 0], sizes = [1, 1, 12], strides = [1, 1, 1]} : vector<8x8x12xf32> to vector<1x1x12xf32>
    %319 = vector.shape_cast %318 : vector<1x1x12xf32> to vector<1x12xf32>
    %320 = vector.extract_strided_slice %281 {offsets = [5, 1, 0], sizes = [1, 1, 12], strides = [1, 1, 1]} : vector<8x8x12xf32> to vector<1x1x12xf32>
    %321 = vector.shape_cast %320 : vector<1x1x12xf32> to vector<1x12xf32>
    %322 = arith.maximumf %319, %321 : vector<1x12xf32>
    %323 = arith.maximumf %317, %322 : vector<1x12xf32>
    %c2_162 = arith.constant 2 : index
    %c0_163 = arith.constant 0 : index
    %c0_164 = arith.constant 0 : index
    %324 = vector.load %arg7[%c2_162, %c0_163, %c0_164] : memref<16x12x120xf32, #tpu.memory_space<vmem>>, vector<1x12x120xf32>
    %325 = vector.shape_cast %324 : vector<1x12x120xf32> to vector<12x120xf32>
    %cst_165 = arith.constant dense<0.000000e+00> : vector<1x120xf32>
    %326 = tpu.matmul %323, %325, %cst_165 {dimension_numbers = #tpu.dot_dimension_numbers<[1], [0], [0], [1], [0, 0, 1, 1], [], []>} : vector<1x12xf32>, vector<12x120xf32>, vector<1x120xf32> -> vector<1x120xf32>
    %327 = arith.addf %312, %326 : vector<1x120xf32>
    %328 = vector.extract_strided_slice %281 {offsets = [6, 0, 0], sizes = [1, 1, 12], strides = [1, 1, 1]} : vector<8x8x12xf32> to vector<1x1x12xf32>
    %329 = vector.shape_cast %328 : vector<1x1x12xf32> to vector<1x12xf32>
    %330 = vector.extract_strided_slice %281 {offsets = [6, 1, 0], sizes = [1, 1, 12], strides = [1, 1, 1]} : vector<8x8x12xf32> to vector<1x1x12xf32>
    %331 = vector.shape_cast %330 : vector<1x1x12xf32> to vector<1x12xf32>
    %332 = arith.maximumf %329, %331 : vector<1x12xf32>
    %333 = vector.extract_strided_slice %281 {offsets = [7, 0, 0], sizes = [1, 1, 12], strides = [1, 1, 1]} : vector<8x8x12xf32> to vector<1x1x12xf32>
    %334 = vector.shape_cast %333 : vector<1x1x12xf32> to vector<1x12xf32>
    %335 = vector.extract_strided_slice %281 {offsets = [7, 1, 0], sizes = [1, 1, 12], strides = [1, 1, 1]} : vector<8x8x12xf32> to vector<1x1x12xf32>
    %336 = vector.shape_cast %335 : vector<1x1x12xf32> to vector<1x12xf32>
    %337 = arith.maximumf %334, %336 : vector<1x12xf32>
    %338 = arith.maximumf %332, %337 : vector<1x12xf32>
    %c3_166 = arith.constant 3 : index
    %c0_167 = arith.constant 0 : index
    %c0_168 = arith.constant 0 : index
    %339 = vector.load %arg7[%c3_166, %c0_167, %c0_168] : memref<16x12x120xf32, #tpu.memory_space<vmem>>, vector<1x12x120xf32>
    %340 = vector.shape_cast %339 : vector<1x12x120xf32> to vector<12x120xf32>
    %cst_169 = arith.constant dense<0.000000e+00> : vector<1x120xf32>
    %341 = tpu.matmul %338, %340, %cst_169 {dimension_numbers = #tpu.dot_dimension_numbers<[1], [0], [0], [1], [0, 0, 1, 1], [], []>} : vector<1x12xf32>, vector<12x120xf32>, vector<1x120xf32> -> vector<1x120xf32>
    %342 = arith.addf %327, %341 : vector<1x120xf32>
    %343 = vector.extract_strided_slice %281 {offsets = [0, 2, 0], sizes = [1, 1, 12], strides = [1, 1, 1]} : vector<8x8x12xf32> to vector<1x1x12xf32>
    %344 = vector.shape_cast %343 : vector<1x1x12xf32> to vector<1x12xf32>
    %345 = vector.extract_strided_slice %281 {offsets = [0, 3, 0], sizes = [1, 1, 12], strides = [1, 1, 1]} : vector<8x8x12xf32> to vector<1x1x12xf32>
    %346 = vector.shape_cast %345 : vector<1x1x12xf32> to vector<1x12xf32>
    %347 = arith.maximumf %344, %346 : vector<1x12xf32>
    %348 = vector.extract_strided_slice %281 {offsets = [1, 2, 0], sizes = [1, 1, 12], strides = [1, 1, 1]} : vector<8x8x12xf32> to vector<1x1x12xf32>
    %349 = vector.shape_cast %348 : vector<1x1x12xf32> to vector<1x12xf32>
    %350 = vector.extract_strided_slice %281 {offsets = [1, 3, 0], sizes = [1, 1, 12], strides = [1, 1, 1]} : vector<8x8x12xf32> to vector<1x1x12xf32>
    %351 = vector.shape_cast %350 : vector<1x1x12xf32> to vector<1x12xf32>
    %352 = arith.maximumf %349, %351 : vector<1x12xf32>
    %353 = arith.maximumf %347, %352 : vector<1x12xf32>
    %c4_170 = arith.constant 4 : index
    %c0_171 = arith.constant 0 : index
    %c0_172 = arith.constant 0 : index
    %354 = vector.load %arg7[%c4_170, %c0_171, %c0_172] : memref<16x12x120xf32, #tpu.memory_space<vmem>>, vector<1x12x120xf32>
    %355 = vector.shape_cast %354 : vector<1x12x120xf32> to vector<12x120xf32>
    %cst_173 = arith.constant dense<0.000000e+00> : vector<1x120xf32>
    %356 = tpu.matmul %353, %355, %cst_173 {dimension_numbers = #tpu.dot_dimension_numbers<[1], [0], [0], [1], [0, 0, 1, 1], [], []>} : vector<1x12xf32>, vector<12x120xf32>, vector<1x120xf32> -> vector<1x120xf32>
    %357 = arith.addf %342, %356 : vector<1x120xf32>
    %358 = vector.extract_strided_slice %281 {offsets = [2, 2, 0], sizes = [1, 1, 12], strides = [1, 1, 1]} : vector<8x8x12xf32> to vector<1x1x12xf32>
    %359 = vector.shape_cast %358 : vector<1x1x12xf32> to vector<1x12xf32>
    %360 = vector.extract_strided_slice %281 {offsets = [2, 3, 0], sizes = [1, 1, 12], strides = [1, 1, 1]} : vector<8x8x12xf32> to vector<1x1x12xf32>
    %361 = vector.shape_cast %360 : vector<1x1x12xf32> to vector<1x12xf32>
    %362 = arith.maximumf %359, %361 : vector<1x12xf32>
    %363 = vector.extract_strided_slice %281 {offsets = [3, 2, 0], sizes = [1, 1, 12], strides = [1, 1, 1]} : vector<8x8x12xf32> to vector<1x1x12xf32>
    %364 = vector.shape_cast %363 : vector<1x1x12xf32> to vector<1x12xf32>
    %365 = vector.extract_strided_slice %281 {offsets = [3, 3, 0], sizes = [1, 1, 12], strides = [1, 1, 1]} : vector<8x8x12xf32> to vector<1x1x12xf32>
    %366 = vector.shape_cast %365 : vector<1x1x12xf32> to vector<1x12xf32>
    %367 = arith.maximumf %364, %366 : vector<1x12xf32>
    %368 = arith.maximumf %362, %367 : vector<1x12xf32>
    %c5_174 = arith.constant 5 : index
    %c0_175 = arith.constant 0 : index
    %c0_176 = arith.constant 0 : index
    %369 = vector.load %arg7[%c5_174, %c0_175, %c0_176] : memref<16x12x120xf32, #tpu.memory_space<vmem>>, vector<1x12x120xf32>
    %370 = vector.shape_cast %369 : vector<1x12x120xf32> to vector<12x120xf32>
    %cst_177 = arith.constant dense<0.000000e+00> : vector<1x120xf32>
    %371 = tpu.matmul %368, %370, %cst_177 {dimension_numbers = #tpu.dot_dimension_numbers<[1], [0], [0], [1], [0, 0, 1, 1], [], []>} : vector<1x12xf32>, vector<12x120xf32>, vector<1x120xf32> -> vector<1x120xf32>
    %372 = arith.addf %357, %371 : vector<1x120xf32>
    %373 = vector.extract_strided_slice %281 {offsets = [4, 2, 0], sizes = [1, 1, 12], strides = [1, 1, 1]} : vector<8x8x12xf32> to vector<1x1x12xf32>
    %374 = vector.shape_cast %373 : vector<1x1x12xf32> to vector<1x12xf32>
    %375 = vector.extract_strided_slice %281 {offsets = [4, 3, 0], sizes = [1, 1, 12], strides = [1, 1, 1]} : vector<8x8x12xf32> to vector<1x1x12xf32>
    %376 = vector.shape_cast %375 : vector<1x1x12xf32> to vector<1x12xf32>
    %377 = arith.maximumf %374, %376 : vector<1x12xf32>
    %378 = vector.extract_strided_slice %281 {offsets = [5, 2, 0], sizes = [1, 1, 12], strides = [1, 1, 1]} : vector<8x8x12xf32> to vector<1x1x12xf32>
    %379 = vector.shape_cast %378 : vector<1x1x12xf32> to vector<1x12xf32>
    %380 = vector.extract_strided_slice %281 {offsets = [5, 3, 0], sizes = [1, 1, 12], strides = [1, 1, 1]} : vector<8x8x12xf32> to vector<1x1x12xf32>
    %381 = vector.shape_cast %380 : vector<1x1x12xf32> to vector<1x12xf32>
    %382 = arith.maximumf %379, %381 : vector<1x12xf32>
    %383 = arith.maximumf %377, %382 : vector<1x12xf32>
    %c6_178 = arith.constant 6 : index
    %c0_179 = arith.constant 0 : index
    %c0_180 = arith.constant 0 : index
    %384 = vector.load %arg7[%c6_178, %c0_179, %c0_180] : memref<16x12x120xf32, #tpu.memory_space<vmem>>, vector<1x12x120xf32>
    %385 = vector.shape_cast %384 : vector<1x12x120xf32> to vector<12x120xf32>
    %cst_181 = arith.constant dense<0.000000e+00> : vector<1x120xf32>
    %386 = tpu.matmul %383, %385, %cst_181 {dimension_numbers = #tpu.dot_dimension_numbers<[1], [0], [0], [1], [0, 0, 1, 1], [], []>} : vector<1x12xf32>, vector<12x120xf32>, vector<1x120xf32> -> vector<1x120xf32>
    %387 = arith.addf %372, %386 : vector<1x120xf32>
    %388 = vector.extract_strided_slice %281 {offsets = [6, 2, 0], sizes = [1, 1, 12], strides = [1, 1, 1]} : vector<8x8x12xf32> to vector<1x1x12xf32>
    %389 = vector.shape_cast %388 : vector<1x1x12xf32> to vector<1x12xf32>
    %390 = vector.extract_strided_slice %281 {offsets = [6, 3, 0], sizes = [1, 1, 12], strides = [1, 1, 1]} : vector<8x8x12xf32> to vector<1x1x12xf32>
    %391 = vector.shape_cast %390 : vector<1x1x12xf32> to vector<1x12xf32>
    %392 = arith.maximumf %389, %391 : vector<1x12xf32>
    %393 = vector.extract_strided_slice %281 {offsets = [7, 2, 0], sizes = [1, 1, 12], strides = [1, 1, 1]} : vector<8x8x12xf32> to vector<1x1x12xf32>
    %394 = vector.shape_cast %393 : vector<1x1x12xf32> to vector<1x12xf32>
    %395 = vector.extract_strided_slice %281 {offsets = [7, 3, 0], sizes = [1, 1, 12], strides = [1, 1, 1]} : vector<8x8x12xf32> to vector<1x1x12xf32>
    %396 = vector.shape_cast %395 : vector<1x1x12xf32> to vector<1x12xf32>
    %397 = arith.maximumf %394, %396 : vector<1x12xf32>
    %398 = arith.maximumf %392, %397 : vector<1x12xf32>
    %c7_182 = arith.constant 7 : index
    %c0_183 = arith.constant 0 : index
    %c0_184 = arith.constant 0 : index
    %399 = vector.load %arg7[%c7_182, %c0_183, %c0_184] : memref<16x12x120xf32, #tpu.memory_space<vmem>>, vector<1x12x120xf32>
    %400 = vector.shape_cast %399 : vector<1x12x120xf32> to vector<12x120xf32>
    %cst_185 = arith.constant dense<0.000000e+00> : vector<1x120xf32>
    %401 = tpu.matmul %398, %400, %cst_185 {dimension_numbers = #tpu.dot_dimension_numbers<[1], [0], [0], [1], [0, 0, 1, 1], [], []>} : vector<1x12xf32>, vector<12x120xf32>, vector<1x120xf32> -> vector<1x120xf32>
    %402 = arith.addf %387, %401 : vector<1x120xf32>
    %403 = vector.extract_strided_slice %281 {offsets = [0, 4, 0], sizes = [1, 1, 12], strides = [1, 1, 1]} : vector<8x8x12xf32> to vector<1x1x12xf32>
    %404 = vector.shape_cast %403 : vector<1x1x12xf32> to vector<1x12xf32>
    %405 = vector.extract_strided_slice %281 {offsets = [0, 5, 0], sizes = [1, 1, 12], strides = [1, 1, 1]} : vector<8x8x12xf32> to vector<1x1x12xf32>
    %406 = vector.shape_cast %405 : vector<1x1x12xf32> to vector<1x12xf32>
    %407 = arith.maximumf %404, %406 : vector<1x12xf32>
    %408 = vector.extract_strided_slice %281 {offsets = [1, 4, 0], sizes = [1, 1, 12], strides = [1, 1, 1]} : vector<8x8x12xf32> to vector<1x1x12xf32>
    %409 = vector.shape_cast %408 : vector<1x1x12xf32> to vector<1x12xf32>
    %410 = vector.extract_strided_slice %281 {offsets = [1, 5, 0], sizes = [1, 1, 12], strides = [1, 1, 1]} : vector<8x8x12xf32> to vector<1x1x12xf32>
    %411 = vector.shape_cast %410 : vector<1x1x12xf32> to vector<1x12xf32>
    %412 = arith.maximumf %409, %411 : vector<1x12xf32>
    %413 = arith.maximumf %407, %412 : vector<1x12xf32>
    %c8_186 = arith.constant 8 : index
    %c0_187 = arith.constant 0 : index
    %c0_188 = arith.constant 0 : index
    %414 = vector.load %arg7[%c8_186, %c0_187, %c0_188] : memref<16x12x120xf32, #tpu.memory_space<vmem>>, vector<1x12x120xf32>
    %415 = vector.shape_cast %414 : vector<1x12x120xf32> to vector<12x120xf32>
    %cst_189 = arith.constant dense<0.000000e+00> : vector<1x120xf32>
    %416 = tpu.matmul %413, %415, %cst_189 {dimension_numbers = #tpu.dot_dimension_numbers<[1], [0], [0], [1], [0, 0, 1, 1], [], []>} : vector<1x12xf32>, vector<12x120xf32>, vector<1x120xf32> -> vector<1x120xf32>
    %417 = arith.addf %402, %416 : vector<1x120xf32>
    %418 = vector.extract_strided_slice %281 {offsets = [2, 4, 0], sizes = [1, 1, 12], strides = [1, 1, 1]} : vector<8x8x12xf32> to vector<1x1x12xf32>
    %419 = vector.shape_cast %418 : vector<1x1x12xf32> to vector<1x12xf32>
    %420 = vector.extract_strided_slice %281 {offsets = [2, 5, 0], sizes = [1, 1, 12], strides = [1, 1, 1]} : vector<8x8x12xf32> to vector<1x1x12xf32>
    %421 = vector.shape_cast %420 : vector<1x1x12xf32> to vector<1x12xf32>
    %422 = arith.maximumf %419, %421 : vector<1x12xf32>
    %423 = vector.extract_strided_slice %281 {offsets = [3, 4, 0], sizes = [1, 1, 12], strides = [1, 1, 1]} : vector<8x8x12xf32> to vector<1x1x12xf32>
    %424 = vector.shape_cast %423 : vector<1x1x12xf32> to vector<1x12xf32>
    %425 = vector.extract_strided_slice %281 {offsets = [3, 5, 0], sizes = [1, 1, 12], strides = [1, 1, 1]} : vector<8x8x12xf32> to vector<1x1x12xf32>
    %426 = vector.shape_cast %425 : vector<1x1x12xf32> to vector<1x12xf32>
    %427 = arith.maximumf %424, %426 : vector<1x12xf32>
    %428 = arith.maximumf %422, %427 : vector<1x12xf32>
    %c9_190 = arith.constant 9 : index
    %c0_191 = arith.constant 0 : index
    %c0_192 = arith.constant 0 : index
    %429 = vector.load %arg7[%c9_190, %c0_191, %c0_192] : memref<16x12x120xf32, #tpu.memory_space<vmem>>, vector<1x12x120xf32>
    %430 = vector.shape_cast %429 : vector<1x12x120xf32> to vector<12x120xf32>
    %cst_193 = arith.constant dense<0.000000e+00> : vector<1x120xf32>
    %431 = tpu.matmul %428, %430, %cst_193 {dimension_numbers = #tpu.dot_dimension_numbers<[1], [0], [0], [1], [0, 0, 1, 1], [], []>} : vector<1x12xf32>, vector<12x120xf32>, vector<1x120xf32> -> vector<1x120xf32>
    %432 = arith.addf %417, %431 : vector<1x120xf32>
    %433 = vector.extract_strided_slice %281 {offsets = [4, 4, 0], sizes = [1, 1, 12], strides = [1, 1, 1]} : vector<8x8x12xf32> to vector<1x1x12xf32>
    %434 = vector.shape_cast %433 : vector<1x1x12xf32> to vector<1x12xf32>
    %435 = vector.extract_strided_slice %281 {offsets = [4, 5, 0], sizes = [1, 1, 12], strides = [1, 1, 1]} : vector<8x8x12xf32> to vector<1x1x12xf32>
    %436 = vector.shape_cast %435 : vector<1x1x12xf32> to vector<1x12xf32>
    %437 = arith.maximumf %434, %436 : vector<1x12xf32>
    %438 = vector.extract_strided_slice %281 {offsets = [5, 4, 0], sizes = [1, 1, 12], strides = [1, 1, 1]} : vector<8x8x12xf32> to vector<1x1x12xf32>
    %439 = vector.shape_cast %438 : vector<1x1x12xf32> to vector<1x12xf32>
    %440 = vector.extract_strided_slice %281 {offsets = [5, 5, 0], sizes = [1, 1, 12], strides = [1, 1, 1]} : vector<8x8x12xf32> to vector<1x1x12xf32>
    %441 = vector.shape_cast %440 : vector<1x1x12xf32> to vector<1x12xf32>
    %442 = arith.maximumf %439, %441 : vector<1x12xf32>
    %443 = arith.maximumf %437, %442 : vector<1x12xf32>
    %c10_194 = arith.constant 10 : index
    %c0_195 = arith.constant 0 : index
    %c0_196 = arith.constant 0 : index
    %444 = vector.load %arg7[%c10_194, %c0_195, %c0_196] : memref<16x12x120xf32, #tpu.memory_space<vmem>>, vector<1x12x120xf32>
    %445 = vector.shape_cast %444 : vector<1x12x120xf32> to vector<12x120xf32>
    %cst_197 = arith.constant dense<0.000000e+00> : vector<1x120xf32>
    %446 = tpu.matmul %443, %445, %cst_197 {dimension_numbers = #tpu.dot_dimension_numbers<[1], [0], [0], [1], [0, 0, 1, 1], [], []>} : vector<1x12xf32>, vector<12x120xf32>, vector<1x120xf32> -> vector<1x120xf32>
    %447 = arith.addf %432, %446 : vector<1x120xf32>
    %448 = vector.extract_strided_slice %281 {offsets = [6, 4, 0], sizes = [1, 1, 12], strides = [1, 1, 1]} : vector<8x8x12xf32> to vector<1x1x12xf32>
    %449 = vector.shape_cast %448 : vector<1x1x12xf32> to vector<1x12xf32>
    %450 = vector.extract_strided_slice %281 {offsets = [6, 5, 0], sizes = [1, 1, 12], strides = [1, 1, 1]} : vector<8x8x12xf32> to vector<1x1x12xf32>
    %451 = vector.shape_cast %450 : vector<1x1x12xf32> to vector<1x12xf32>
    %452 = arith.maximumf %449, %451 : vector<1x12xf32>
    %453 = vector.extract_strided_slice %281 {offsets = [7, 4, 0], sizes = [1, 1, 12], strides = [1, 1, 1]} : vector<8x8x12xf32> to vector<1x1x12xf32>
    %454 = vector.shape_cast %453 : vector<1x1x12xf32> to vector<1x12xf32>
    %455 = vector.extract_strided_slice %281 {offsets = [7, 5, 0], sizes = [1, 1, 12], strides = [1, 1, 1]} : vector<8x8x12xf32> to vector<1x1x12xf32>
    %456 = vector.shape_cast %455 : vector<1x1x12xf32> to vector<1x12xf32>
    %457 = arith.maximumf %454, %456 : vector<1x12xf32>
    %458 = arith.maximumf %452, %457 : vector<1x12xf32>
    %c11_198 = arith.constant 11 : index
    %c0_199 = arith.constant 0 : index
    %c0_200 = arith.constant 0 : index
    %459 = vector.load %arg7[%c11_198, %c0_199, %c0_200] : memref<16x12x120xf32, #tpu.memory_space<vmem>>, vector<1x12x120xf32>
    %460 = vector.shape_cast %459 : vector<1x12x120xf32> to vector<12x120xf32>
    %cst_201 = arith.constant dense<0.000000e+00> : vector<1x120xf32>
    %461 = tpu.matmul %458, %460, %cst_201 {dimension_numbers = #tpu.dot_dimension_numbers<[1], [0], [0], [1], [0, 0, 1, 1], [], []>} : vector<1x12xf32>, vector<12x120xf32>, vector<1x120xf32> -> vector<1x120xf32>
    %462 = arith.addf %447, %461 : vector<1x120xf32>
    %463 = vector.extract_strided_slice %281 {offsets = [0, 6, 0], sizes = [1, 1, 12], strides = [1, 1, 1]} : vector<8x8x12xf32> to vector<1x1x12xf32>
    %464 = vector.shape_cast %463 : vector<1x1x12xf32> to vector<1x12xf32>
    %465 = vector.extract_strided_slice %281 {offsets = [0, 7, 0], sizes = [1, 1, 12], strides = [1, 1, 1]} : vector<8x8x12xf32> to vector<1x1x12xf32>
    %466 = vector.shape_cast %465 : vector<1x1x12xf32> to vector<1x12xf32>
    %467 = arith.maximumf %464, %466 : vector<1x12xf32>
    %468 = vector.extract_strided_slice %281 {offsets = [1, 6, 0], sizes = [1, 1, 12], strides = [1, 1, 1]} : vector<8x8x12xf32> to vector<1x1x12xf32>
    %469 = vector.shape_cast %468 : vector<1x1x12xf32> to vector<1x12xf32>
    %470 = vector.extract_strided_slice %281 {offsets = [1, 7, 0], sizes = [1, 1, 12], strides = [1, 1, 1]} : vector<8x8x12xf32> to vector<1x1x12xf32>
    %471 = vector.shape_cast %470 : vector<1x1x12xf32> to vector<1x12xf32>
    %472 = arith.maximumf %469, %471 : vector<1x12xf32>
    %473 = arith.maximumf %467, %472 : vector<1x12xf32>
    %c12_202 = arith.constant 12 : index
    %c0_203 = arith.constant 0 : index
    %c0_204 = arith.constant 0 : index
    %474 = vector.load %arg7[%c12_202, %c0_203, %c0_204] : memref<16x12x120xf32, #tpu.memory_space<vmem>>, vector<1x12x120xf32>
    %475 = vector.shape_cast %474 : vector<1x12x120xf32> to vector<12x120xf32>
    %cst_205 = arith.constant dense<0.000000e+00> : vector<1x120xf32>
    %476 = tpu.matmul %473, %475, %cst_205 {dimension_numbers = #tpu.dot_dimension_numbers<[1], [0], [0], [1], [0, 0, 1, 1], [], []>} : vector<1x12xf32>, vector<12x120xf32>, vector<1x120xf32> -> vector<1x120xf32>
    %477 = arith.addf %462, %476 : vector<1x120xf32>
    %478 = vector.extract_strided_slice %281 {offsets = [2, 6, 0], sizes = [1, 1, 12], strides = [1, 1, 1]} : vector<8x8x12xf32> to vector<1x1x12xf32>
    %479 = vector.shape_cast %478 : vector<1x1x12xf32> to vector<1x12xf32>
    %480 = vector.extract_strided_slice %281 {offsets = [2, 7, 0], sizes = [1, 1, 12], strides = [1, 1, 1]} : vector<8x8x12xf32> to vector<1x1x12xf32>
    %481 = vector.shape_cast %480 : vector<1x1x12xf32> to vector<1x12xf32>
    %482 = arith.maximumf %479, %481 : vector<1x12xf32>
    %483 = vector.extract_strided_slice %281 {offsets = [3, 6, 0], sizes = [1, 1, 12], strides = [1, 1, 1]} : vector<8x8x12xf32> to vector<1x1x12xf32>
    %484 = vector.shape_cast %483 : vector<1x1x12xf32> to vector<1x12xf32>
    %485 = vector.extract_strided_slice %281 {offsets = [3, 7, 0], sizes = [1, 1, 12], strides = [1, 1, 1]} : vector<8x8x12xf32> to vector<1x1x12xf32>
    %486 = vector.shape_cast %485 : vector<1x1x12xf32> to vector<1x12xf32>
    %487 = arith.maximumf %484, %486 : vector<1x12xf32>
    %488 = arith.maximumf %482, %487 : vector<1x12xf32>
    %c13_206 = arith.constant 13 : index
    %c0_207 = arith.constant 0 : index
    %c0_208 = arith.constant 0 : index
    %489 = vector.load %arg7[%c13_206, %c0_207, %c0_208] : memref<16x12x120xf32, #tpu.memory_space<vmem>>, vector<1x12x120xf32>
    %490 = vector.shape_cast %489 : vector<1x12x120xf32> to vector<12x120xf32>
    %cst_209 = arith.constant dense<0.000000e+00> : vector<1x120xf32>
    %491 = tpu.matmul %488, %490, %cst_209 {dimension_numbers = #tpu.dot_dimension_numbers<[1], [0], [0], [1], [0, 0, 1, 1], [], []>} : vector<1x12xf32>, vector<12x120xf32>, vector<1x120xf32> -> vector<1x120xf32>
    %492 = arith.addf %477, %491 : vector<1x120xf32>
    %493 = vector.extract_strided_slice %281 {offsets = [4, 6, 0], sizes = [1, 1, 12], strides = [1, 1, 1]} : vector<8x8x12xf32> to vector<1x1x12xf32>
    %494 = vector.shape_cast %493 : vector<1x1x12xf32> to vector<1x12xf32>
    %495 = vector.extract_strided_slice %281 {offsets = [4, 7, 0], sizes = [1, 1, 12], strides = [1, 1, 1]} : vector<8x8x12xf32> to vector<1x1x12xf32>
    %496 = vector.shape_cast %495 : vector<1x1x12xf32> to vector<1x12xf32>
    %497 = arith.maximumf %494, %496 : vector<1x12xf32>
    %498 = vector.extract_strided_slice %281 {offsets = [5, 6, 0], sizes = [1, 1, 12], strides = [1, 1, 1]} : vector<8x8x12xf32> to vector<1x1x12xf32>
    %499 = vector.shape_cast %498 : vector<1x1x12xf32> to vector<1x12xf32>
    %500 = vector.extract_strided_slice %281 {offsets = [5, 7, 0], sizes = [1, 1, 12], strides = [1, 1, 1]} : vector<8x8x12xf32> to vector<1x1x12xf32>
    %501 = vector.shape_cast %500 : vector<1x1x12xf32> to vector<1x12xf32>
    %502 = arith.maximumf %499, %501 : vector<1x12xf32>
    %503 = arith.maximumf %497, %502 : vector<1x12xf32>
    %c14_210 = arith.constant 14 : index
    %c0_211 = arith.constant 0 : index
    %c0_212 = arith.constant 0 : index
    %504 = vector.load %arg7[%c14_210, %c0_211, %c0_212] : memref<16x12x120xf32, #tpu.memory_space<vmem>>, vector<1x12x120xf32>
    %505 = vector.shape_cast %504 : vector<1x12x120xf32> to vector<12x120xf32>
    %cst_213 = arith.constant dense<0.000000e+00> : vector<1x120xf32>
    %506 = tpu.matmul %503, %505, %cst_213 {dimension_numbers = #tpu.dot_dimension_numbers<[1], [0], [0], [1], [0, 0, 1, 1], [], []>} : vector<1x12xf32>, vector<12x120xf32>, vector<1x120xf32> -> vector<1x120xf32>
    %507 = arith.addf %492, %506 : vector<1x120xf32>
    %508 = vector.extract_strided_slice %281 {offsets = [6, 6, 0], sizes = [1, 1, 12], strides = [1, 1, 1]} : vector<8x8x12xf32> to vector<1x1x12xf32>
    %509 = vector.shape_cast %508 : vector<1x1x12xf32> to vector<1x12xf32>
    %510 = vector.extract_strided_slice %281 {offsets = [6, 7, 0], sizes = [1, 1, 12], strides = [1, 1, 1]} : vector<8x8x12xf32> to vector<1x1x12xf32>
    %511 = vector.shape_cast %510 : vector<1x1x12xf32> to vector<1x12xf32>
    %512 = arith.maximumf %509, %511 : vector<1x12xf32>
    %513 = vector.extract_strided_slice %281 {offsets = [7, 6, 0], sizes = [1, 1, 12], strides = [1, 1, 1]} : vector<8x8x12xf32> to vector<1x1x12xf32>
    %514 = vector.shape_cast %513 : vector<1x1x12xf32> to vector<1x12xf32>
    %515 = vector.extract_strided_slice %281 {offsets = [7, 7, 0], sizes = [1, 1, 12], strides = [1, 1, 1]} : vector<8x8x12xf32> to vector<1x1x12xf32>
    %516 = vector.shape_cast %515 : vector<1x1x12xf32> to vector<1x12xf32>
    %517 = arith.maximumf %514, %516 : vector<1x12xf32>
    %518 = arith.maximumf %512, %517 : vector<1x12xf32>
    %c15_214 = arith.constant 15 : index
    %c0_215 = arith.constant 0 : index
    %c0_216 = arith.constant 0 : index
    %519 = vector.load %arg7[%c15_214, %c0_215, %c0_216] : memref<16x12x120xf32, #tpu.memory_space<vmem>>, vector<1x12x120xf32>
    %520 = vector.shape_cast %519 : vector<1x12x120xf32> to vector<12x120xf32>
    %cst_217 = arith.constant dense<0.000000e+00> : vector<1x120xf32>
    %521 = tpu.matmul %518, %520, %cst_217 {dimension_numbers = #tpu.dot_dimension_numbers<[1], [0], [0], [1], [0, 0, 1, 1], [], []>} : vector<1x12xf32>, vector<12x120xf32>, vector<1x120xf32> -> vector<1x120xf32>
    %522 = arith.addf %507, %521 : vector<1x120xf32>
    %c0_218 = arith.constant 0 : index
    %c0_219 = arith.constant 0 : index
    %523 = vector.load %arg8[%c0_218, %c0_219] : memref<1x120xf32, #tpu.memory_space<vmem>>, vector<1x120xf32>
    %524 = arith.addf %522, %523 : vector<1x120xf32>
    %cst_220 = arith.constant 0.000000e+00 : f32
    %525 = vector.broadcast %cst_220 : f32 to vector<1x120xf32>
    %526 = arith.maximumf %524, %525 : vector<1x120xf32>
    %c0_221 = arith.constant 0 : index
    %c0_222 = arith.constant 0 : index
    %527 = vector.load %arg9[%c0_221, %c0_222] : memref<120x60xf32, #tpu.memory_space<vmem>>, vector<120x60xf32>
    %cst_223 = arith.constant dense<0.000000e+00> : vector<1x60xf32>
    %528 = tpu.matmul %526, %527, %cst_223 {dimension_numbers = #tpu.dot_dimension_numbers<[1], [0], [0], [1], [0, 0, 1, 1], [], []>} : vector<1x120xf32>, vector<120x60xf32>, vector<1x60xf32> -> vector<1x60xf32>
    %c0_224 = arith.constant 0 : index
    %c0_225 = arith.constant 0 : index
    %529 = vector.load %arg10[%c0_224, %c0_225] : memref<1x60xf32, #tpu.memory_space<vmem>>, vector<1x60xf32>
    %530 = arith.addf %528, %529 : vector<1x60xf32>
    %cst_226 = arith.constant 0.000000e+00 : f32
    %531 = vector.broadcast %cst_226 : f32 to vector<1x60xf32>
    %532 = arith.maximumf %530, %531 : vector<1x60xf32>
    %c0_227 = arith.constant 0 : index
    %c0_228 = arith.constant 0 : index
    %533 = vector.load %arg11[%c0_227, %c0_228] : memref<60x10xf32, #tpu.memory_space<vmem>>, vector<60x10xf32>
    %cst_229 = arith.constant dense<0.000000e+00> : vector<1x10xf32>
    %534 = tpu.matmul %532, %533, %cst_229 {dimension_numbers = #tpu.dot_dimension_numbers<[1], [0], [0], [1], [0, 0, 1, 1], [], []>} : vector<1x60xf32>, vector<60x10xf32>, vector<1x10xf32> -> vector<1x10xf32>
    %c0_230 = arith.constant 0 : index
    %c0_231 = arith.constant 0 : index
    %535 = vector.load %arg12[%c0_230, %c0_231] : memref<1x10xf32, #tpu.memory_space<vmem>>, vector<1x10xf32>
    %536 = arith.addf %534, %535 : vector<1x10xf32>
    %c0_232 = arith.constant 0 : index
    %c0_233 = arith.constant 0 : index
    %c0_234 = arith.constant 0 : index
    %537 = vector.load %arg13[%c0_232, %c0_233, %c0_234] : memref<1x1x10xf32, #tpu.memory_space<vmem>>, vector<1x1x10xf32>
    %538 = vector.shape_cast %537 : vector<1x1x10xf32> to vector<1x10xf32>
    %539 = vector.shape_cast %536 : vector<1x10xf32> to vector<1x1x10xf32>
    tpu.vector_store %arg13[%c0_232, %c0_233, %c0_234], %539 {strides = array<i32>} : memref<1x1x10xf32, #tpu.memory_space<vmem>>, vector<1x1x10xf32>,
    return
  }
  func.func @transform_0(%arg0: i32) -> (i32, i32, i32) {
    %c0_i32 = arith.constant 0 : i32
    %c0_i32_0 = arith.constant 0 : i32
    %c0_i32_1 = arith.constant 0 : i32
    return %arg0, %c0_i32, %c0_i32_0 : i32, i32, i32
  }
  func.func @transform_1(%arg0: i32) -> (i32, i32, i32) {
    %c0_i32 = arith.constant 0 : i32
    %c0_i32_0 = arith.constant 0 : i32
    %c0_i32_1 = arith.constant 0 : i32
    return %arg0, %c0_i32, %c0_i32_0 : i32, i32, i32
  }
  func.func @transform_2(%arg0: i32) -> (i32, i32, i32) {
    %c0_i32 = arith.constant 0 : i32
    %c0_i32_0 = arith.constant 0 : i32
    %c0_i32_1 = arith.constant 0 : i32
    %c0_i32_2 = arith.constant 0 : i32
    return %c0_i32, %c0_i32_0, %c0_i32_1 : i32, i32, i32
  }
  func.func @transform_3(%arg0: i32) -> (i32, i32) {
    %c0_i32 = arith.constant 0 : i32
    %c0_i32_0 = arith.constant 0 : i32
    %c0_i32_1 = arith.constant 0 : i32
    return %c0_i32, %c0_i32_0 : i32, i32
  }
  func.func @transform_4(%arg0: i32) -> (i32, i32, i32) {
    %c0_i32 = arith.constant 0 : i32
    %c0_i32_0 = arith.constant 0 : i32
    %c0_i32_1 = arith.constant 0 : i32
    %c0_i32_2 = arith.constant 0 : i32
    return %c0_i32, %c0_i32_0, %c0_i32_1 : i32, i32, i32
  }
  func.func @transform_5(%arg0: i32) -> (i32, i32) {
    %c0_i32 = arith.constant 0 : i32
    %c0_i32_0 = arith.constant 0 : i32
    %c0_i32_1 = arith.constant 0 : i32
    return %c0_i32, %c0_i32_0 : i32, i32
  }
  func.func @transform_6(%arg0: i32) -> (i32, i32, i32) {
    %c0_i32 = arith.constant 0 : i32
    %c0_i32_0 = arith.constant 0 : i32
    %c0_i32_1 = arith.constant 0 : i32
    %c0_i32_2 = arith.constant 0 : i32
    return %c0_i32, %c0_i32_0, %c0_i32_1 : i32, i32, i32
  }
  func.func @transform_7(%arg0: i32) -> (i32, i32) {
    %c0_i32 = arith.constant 0 : i32
    %c0_i32_0 = arith.constant 0 : i32
    %c0_i32_1 = arith.constant 0 : i32
    return %c0_i32, %c0_i32_0 : i32, i32
  }
  func.func @transform_8(%arg0: i32) -> (i32, i32) {
    %c0_i32 = arith.constant 0 : i32
    %c0_i32_0 = arith.constant 0 : i32
    %c0_i32_1 = arith.constant 0 : i32
    return %c0_i32, %c0_i32_0 : i32, i32
  }
  func.func @transform_9(%arg0: i32) -> (i32, i32) {
    %c0_i32 = arith.constant 0 : i32
    %c0_i32_0 = arith.constant 0 : i32
    %c0_i32_1 = arith.constant 0 : i32
    return %c0_i32, %c0_i32_0 : i32, i32
  }
  func.func @transform_10(%arg0: i32) -> (i32, i32) {
    %c0_i32 = arith.constant 0 : i32
    %c0_i32_0 = arith.constant 0 : i32
    %c0_i32_1 = arith.constant 0 : i32
    return %c0_i32, %c0_i32_0 : i32, i32
  }
  func.func @transform_11(%arg0: i32) -> (i32, i32) {
    %c0_i32 = arith.constant 0 : i32
    %c0_i32_0 = arith.constant 0 : i32
    %c0_i32_1 = arith.constant 0 : i32
    return %c0_i32, %c0_i32_0 : i32, i32
  }
  func.func @transform_12(%arg0: i32) -> (i32, i32, i32) {
    %c0_i32 = arith.constant 0 : i32
    %c0_i32_0 = arith.constant 0 : i32
    %c0_i32_1 = arith.constant 0 : i32
    return %arg0, %c0_i32, %c0_i32_0 : i32, i32, i32
  }
}

</mosaic_0001>

<llo_original>
// kernel: network_forward.1
$region0: #{network_forward.1}
  #allocation0 [shape = 'u32[]', space=smem, size = 0x4, offset = 0x4, fixed_abs, tag = 'smem constant byte address 0x4 - core index']
  #allocation1 [shape = 'u32[144,128]{1,0:T(1,128)}', space=vmem, size = 0x12000, scoped, tag = 'internal scratch']
  #allocation2 [shape = 'f32[12,12,8]{2,1,0:T(8,128)}', space=vmem, size = 0x18000, scoped, tag = 'scratch operand']
  %s0 = inlined_call_operand.vmem [shape: f32[2,14,28], index: 0, kind: input, shape index: {}]
  %s1 = inlined_call_operand.vmem [shape: f32[2,14,28], index: 1, kind: input, shape index: {}]
  %s2 = inlined_call_operand.vmem [shape: f32[5,28,192], index: 2, kind: input, shape index: {}]
  %s3 = inlined_call_operand.vmem [shape: f32[1,192], index: 3, kind: input, shape index: {}]
  %s4 = inlined_call_operand.vmem [shape: f32[25,8,12], index: 4, kind: input, shape index: {}]
  %s5 = inlined_call_operand.vmem [shape: f32[1,12], index: 5, kind: input, shape index: {}]
  %s6 = inlined_call_operand.vmem [shape: f32[16,12,120], index: 6, kind: input, shape index: {}]
  %s7 = inlined_call_operand.vmem [shape: f32[1,120], index: 7, kind: input, shape index: {}]
  %s8 = inlined_call_operand.vmem [shape: f32[120,60], index: 8, kind: input, shape index: {}]
  %s9 = inlined_call_operand.vmem [shape: f32[1,60], index: 9, kind: input, shape index: {}]
  %s10 = inlined_call_operand.vmem [shape: f32[60,10], index: 10, kind: input, shape index: {}]
  %s11 = inlined_call_operand.vmem [shape: f32[1,10], index: 11, kind: input, shape index: {}]
  %s12 = inlined_call_operand.hbm [shape: f32[2,1,10], index: 12, kind: output, shape index: {}]
  %s13 = sld [smem:[#allocation0]]
  $region81: #{network_forward.1} parent=0
    _
  %s15 = ssub.s32 1, %s13
  %s16 = scalar_select 0, %s15, %s13
  $region1: #{network_forward.1} parent=0
    #allocation3 [shape = 'u8[1024]{0}', space=vmem, size = 0x400, scoped, tag = 'output window, operand 0']
    #allocation4 [shape = 's32[2]{0}', space=sflag, size = 0x8, scoped, tag = 'scoped memory for network_forward.1']
    %17 = vsyncpa [#allocation4], 0
    %s18 = scalar_lea.sflag [#allocation4], 1
    %19 = vsyncpa %s18, 0
    loop: start=0, step=1, limit=4
    $region2: #{network_forward.1} parent=1 // loop_pre_header
      _
    $region3: #{network_forward.1} parent=1 // loop_header
      %s21 = sphi 0, %s25
      %p22 = scmp.ge.s32.totalorder %s21, 4
      %s31 = sphi 0, %s33
      %s34 = sphi 0, %s31
      %s35 = sphi 0, %s34
      %s51 = sphi 0, %s35
      %s57 = sphi 0, %s59
      %s60 = sphi 0, %s57
      %s61 = sphi 0, %s60
      %s77 = sphi 0, %s61
      %s81 = sphi 0, %s81
      %s83 = sphi 0, %s81
      %s84 = sphi 0, %s83
      %s98 = sphi 0, %s84
      %s102 = sphi 0, %s102
      %s104 = sphi 0, %s102
      %s105 = sphi 0, %s104
      %s119 = sphi 0, %s105
      %s123 = sphi 0, %s123
      %s125 = sphi 0, %s123
      %s126 = sphi 0, %s125
      %s140 = sphi 0, %s126
      %s144 = sphi 0, %s144
      %s146 = sphi 0, %s144
      %s147 = sphi 0, %s146
      %s161 = sphi 0, %s147
      %s165 = sphi 0, %s165
      %s167 = sphi 0, %s165
      %s168 = sphi 0, %s167
      %s182 = sphi 0, %s168
      %s186 = sphi 0, %s186
      %s188 = sphi 0, %s186
      %s189 = sphi 0, %s188
      %s203 = sphi 0, %s189
      %s207 = sphi 0, %s207
      %s209 = sphi 0, %s207
      %s210 = sphi 0, %s209
      %s224 = sphi 0, %s210
      %s228 = sphi 0, %s228
      %s230 = sphi 0, %s228
      %s231 = sphi 0, %s230
      %s245 = sphi 0, %s231
      %s249 = sphi 0, %s249
      %s251 = sphi 0, %s249
      %s252 = sphi 0, %s251
      %s266 = sphi 0, %s252
      %s270 = sphi 0, %s270
      %s272 = sphi 0, %s270
      %s273 = sphi 0, %s272
      %s287 = sphi 0, %s273
      %s293 = sphi 0, %s295
      %s296 = sphi 0, %s293
      %s297 = sphi 0, %s296
      %s313 = sphi 0, %s297
    $region4: #{network_forward.1} parent=1 // loop_header_branch
      %24 = sbr.rel (%p22) target = $region8
    $region5: #{network_forward.1} parent=1 // loop_body
      %s26 = ssub.s32 %s21, 1
      %s27 = ssub.s32 %s21, 2
      %s28 = sadd.s32 %s21, 1
      %s29 = ssub.s32 %s21, %s28
      %p30 = scmp.eq.s32.totalorder %s29, 0
      %s32 = sadd.s32 %s31, 1
      %s33 = scalar_select %p30, %s31, %s32
      %p36 = pneg %p30
      %p37 = scmp.eq.s32.totalorder %s21, 1
      %p38 = por %p36, %p37
      %p39 = scmp.ne.s32.totalorder %s31, %s34
      %p40 = scmp.eq.s32.totalorder %s21, 0
      %p41 = por %p39, %p40
      %p42 = scmp.ne.s32.totalorder %s31, %s34
      %p43 = scmp.eq.s32.totalorder %s26, 1
      %p44 = por %p42, %p43
      %p45 = scmp.ne.s32.totalorder %s34, %s35
      %p46 = scmp.eq.s32.totalorder %s26, 0
      %p47 = por %p45, %p46
      %p48 = scmp.ne.s32.totalorder %s34, %s35
      %p49 = scmp.eq.s32.totalorder %s27, 1
      %p50 = por %p48, %p49
      %p52 = scmp.ne.s32.totalorder %s35, %s51
      %p53 = scmp.eq.s32.totalorder %s27, 0
      %p54 = por %p52, %p53
      %s55 = ssub.s32 %s21, %s28
      %p56 = scmp.eq.s32.totalorder %s55, 0
      %s58 = sadd.s32 %s57, 1
      %s59 = scalar_select %p56, %s57, %s58
      %p62 = pneg %p56
      %p63 = scmp.eq.s32.totalorder %s21, 1
      %p64 = por %p62, %p63
      %p65 = scmp.ne.s32.totalorder %s57, %s60
      %p66 = scmp.eq.s32.totalorder %s21, 0
      %p67 = por %p65, %p66
      %p68 = scmp.ne.s32.totalorder %s57, %s60
      %p69 = scmp.eq.s32.totalorder %s26, 1
      %p70 = por %p68, %p69
      %p71 = scmp.ne.s32.totalorder %s60, %s61
      %p72 = scmp.eq.s32.totalorder %s26, 0
      %p73 = por %p71, %p72
      %p74 = scmp.ne.s32.totalorder %s60, %s61
      %p75 = scmp.eq.s32.totalorder %s27, 1
      %p76 = por %p74, %p75
      %p78 = scmp.ne.s32.totalorder %s61, %s77
      %p79 = scmp.eq.s32.totalorder %s27, 0
      %p80 = por %p78, %p79
      %s82 = sadd.s32 %s81, 1
      %p85 = scmp.eq.s32.totalorder %s21, 1
      %p86 = scmp.ne.s32.totalorder %s81, %s83
      %p87 = scmp.eq.s32.totalorder %s21, 0
      %p88 = por %p86, %p87
      %p89 = scmp.ne.s32.totalorder %s81, %s83
      %p90 = scmp.eq.s32.totalorder %s26, 1
      %p91 = por %p89, %p90
      %p92 = scmp.ne.s32.totalorder %s83, %s84
      %p93 = scmp.eq.s32.totalorder %s26, 0
      %p94 = por %p92, %p93
      %p95 = scmp.ne.s32.totalorder %s83, %s84
      %p96 = scmp.eq.s32.totalorder %s27, 1
      %p97 = por %p95, %p96
      %p99 = scmp.ne.s32.totalorder %s84, %s98
      %p100 = scmp.eq.s32.totalorder %s27, 0
      %p101 = por %p99, %p100
      %s103 = sadd.s32 %s102, 1
      %p106 = scmp.eq.s32.totalorder %s21, 1
      %p107 = scmp.ne.s32.totalorder %s102, %s104
      %p108 = scmp.eq.s32.totalorder %s21, 0
      %p109 = por %p107, %p108
      %p110 = scmp.ne.s32.totalorder %s102, %s104
      %p111 = scmp.eq.s32.totalorder %s26, 1
      %p112 = por %p110, %p111
      %p113 = scmp.ne.s32.totalorder %s104, %s105
      %p114 = scmp.eq.s32.totalorder %s26, 0
      %p115 = por %p113, %p114
      %p116 = scmp.ne.s32.totalorder %s104, %s105
      %p117 = scmp.eq.s32.totalorder %s27, 1
      %p118 = por %p116, %p117
      %p120 = scmp.ne.s32.totalorder %s105, %s119
      %p121 = scmp.eq.s32.totalorder %s27, 0
      %p122 = por %p120, %p121
      %s124 = sadd.s32 %s123, 1
      %p127 = scmp.eq.s32.totalorder %s21, 1
      %p128 = scmp.ne.s32.totalorder %s123, %s125
      %p129 = scmp.eq.s32.totalorder %s21, 0
      %p130 = por %p128, %p129
      %p131 = scmp.ne.s32.totalorder %s123, %s125
      %p132 = scmp.eq.s32.totalorder %s26, 1
      %p133 = por %p131, %p132
      %p134 = scmp.ne.s32.totalorder %s125, %s126
      %p135 = scmp.eq.s32.totalorder %s26, 0
      %p136 = por %p134, %p135
      %p137 = scmp.ne.s32.totalorder %s125, %s126
      %p138 = scmp.eq.s32.totalorder %s27, 1
      %p139 = por %p137, %p138
      %p141 = scmp.ne.s32.totalorder %s126, %s140
      %p142 = scmp.eq.s32.totalorder %s27, 0
      %p143 = por %p141, %p142
      %s145 = sadd.s32 %s144, 1
      %p148 = scmp.eq.s32.totalorder %s21, 1
      %p149 = scmp.ne.s32.totalorder %s144, %s146
      %p150 = scmp.eq.s32.totalorder %s21, 0
      %p151 = por %p149, %p150
      %p152 = scmp.ne.s32.totalorder %s144, %s146
      %p153 = scmp.eq.s32.totalorder %s26, 1
      %p154 = por %p152, %p153
      %p155 = scmp.ne.s32.totalorder %s146, %s147
      %p156 = scmp.eq.s32.totalorder %s26, 0
      %p157 = por %p155, %p156
      %p158 = scmp.ne.s32.totalorder %s146, %s147
      %p159 = scmp.eq.s32.totalorder %s27, 1
      %p160 = por %p158, %p159
      %p162 = scmp.ne.s32.totalorder %s147, %s161
      %p163 = scmp.eq.s32.totalorder %s27, 0
      %p164 = por %p162, %p163
      %s166 = sadd.s32 %s165, 1
      %p169 = scmp.eq.s32.totalorder %s21, 1
      %p170 = scmp.ne.s32.totalorder %s165, %s167
      %p171 = scmp.eq.s32.totalorder %s21, 0
      %p172 = por %p170, %p171
      %p173 = scmp.ne.s32.totalorder %s165, %s167
      %p174 = scmp.eq.s32.totalorder %s26, 1
      %p175 = por %p173, %p174
      %p176 = scmp.ne.s32.totalorder %s167, %s168
      %p177 = scmp.eq.s32.totalorder %s26, 0
      %p178 = por %p176, %p177
      %p179 = scmp.ne.s32.totalorder %s167, %s168
      %p180 = scmp.eq.s32.totalorder %s27, 1
      %p181 = por %p179, %p180
      %p183 = scmp.ne.s32.totalorder %s168, %s182
      %p184 = scmp.eq.s32.totalorder %s27, 0
      %p185 = por %p183, %p184
      %s187 = sadd.s32 %s186, 1
      %p190 = scmp.eq.s32.totalorder %s21, 1
      %p191 = scmp.ne.s32.totalorder %s186, %s188
      %p192 = scmp.eq.s32.totalorder %s21, 0
      %p193 = por %p191, %p192
      %p194 = scmp.ne.s32.totalorder %s186, %s188
      %p195 = scmp.eq.s32.totalorder %s26, 1
      %p196 = por %p194, %p195
      %p197 = scmp.ne.s32.totalorder %s188, %s189
      %p198 = scmp.eq.s32.totalorder %s26, 0
      %p199 = por %p197, %p198
      %p200 = scmp.ne.s32.totalorder %s188, %s189
      %p201 = scmp.eq.s32.totalorder %s27, 1
      %p202 = por %p200, %p201
      %p204 = scmp.ne.s32.totalorder %s189, %s203
      %p205 = scmp.eq.s32.totalorder %s27, 0
      %p206 = por %p204, %p205
      %s208 = sadd.s32 %s207, 1
      %p211 = scmp.eq.s32.totalorder %s21, 1
      %p212 = scmp.ne.s32.totalorder %s207, %s209
      %p213 = scmp.eq.s32.totalorder %s21, 0
      %p214 = por %p212, %p213
      %p215 = scmp.ne.s32.totalorder %s207, %s209
      %p216 = scmp.eq.s32.totalorder %s26, 1
      %p217 = por %p215, %p216
      %p218 = scmp.ne.s32.totalorder %s209, %s210
      %p219 = scmp.eq.s32.totalorder %s26, 0
      %p220 = por %p218, %p219
      %p221 = scmp.ne.s32.totalorder %s209, %s210
      %p222 = scmp.eq.s32.totalorder %s27, 1
      %p223 = por %p221, %p222
      %p225 = scmp.ne.s32.totalorder %s210, %s224
      %p226 = scmp.eq.s32.totalorder %s27, 0
      %p227 = por %p225, %p226
      %s229 = sadd.s32 %s228, 1
      %p232 = scmp.eq.s32.totalorder %s21, 1
      %p233 = scmp.ne.s32.totalorder %s228, %s230
      %p234 = scmp.eq.s32.totalorder %s21, 0
      %p235 = por %p233, %p234
      %p236 = scmp.ne.s32.totalorder %s228, %s230
      %p237 = scmp.eq.s32.totalorder %s26, 1
      %p238 = por %p236, %p237
      %p239 = scmp.ne.s32.totalorder %s230, %s231
      %p240 = scmp.eq.s32.totalorder %s26, 0
      %p241 = por %p239, %p240
      %p242 = scmp.ne.s32.totalorder %s230, %s231
      %p243 = scmp.eq.s32.totalorder %s27, 1
      %p244 = por %p242, %p243
      %p246 = scmp.ne.s32.totalorder %s231, %s245
      %p247 = scmp.eq.s32.totalorder %s27, 0
      %p248 = por %p246, %p247
      %s250 = sadd.s32 %s249, 1
      %p253 = scmp.eq.s32.totalorder %s21, 1
      %p254 = scmp.ne.s32.totalorder %s249, %s251
      %p255 = scmp.eq.s32.totalorder %s21, 0
      %p256 = por %p254, %p255
      %p257 = scmp.ne.s32.totalorder %s249, %s251
      %p258 = scmp.eq.s32.totalorder %s26, 1
      %p259 = por %p257, %p258
      %p260 = scmp.ne.s32.totalorder %s251, %s252
      %p261 = scmp.eq.s32.totalorder %s26, 0
      %p262 = por %p260, %p261
      %p263 = scmp.ne.s32.totalorder %s251, %s252
      %p264 = scmp.eq.s32.totalorder %s27, 1
      %p265 = por %p263, %p264
      %p267 = scmp.ne.s32.totalorder %s252, %s266
      %p268 = scmp.eq.s32.totalorder %s27, 0
      %p269 = por %p267, %p268
      %s271 = sadd.s32 %s270, 1
      %p274 = scmp.eq.s32.totalorder %s21, 1
      %p275 = scmp.ne.s32.totalorder %s270, %s272
      %p276 = scmp.eq.s32.totalorder %s21, 0
      %p277 = por %p275, %p276
      %p278 = scmp.ne.s32.totalorder %s270, %s272
      %p279 = scmp.eq.s32.totalorder %s26, 1
      %p280 = por %p278, %p279
      %p281 = scmp.ne.s32.totalorder %s272, %s273
      %p282 = scmp.eq.s32.totalorder %s26, 0
      %p283 = por %p281, %p282
      %p284 = scmp.ne.s32.totalorder %s272, %s273
      %p285 = scmp.eq.s32.totalorder %s27, 1
      %p286 = por %p284, %p285
      %p288 = scmp.ne.s32.totalorder %s273, %s287
      %p289 = scmp.eq.s32.totalorder %s27, 0
      %p290 = por %p288, %p289
      %s291 = ssub.s32 %s21, %s28
      %p292 = scmp.eq.s32.totalorder %s291, 0
      %s294 = sadd.s32 %s293, 1
      %s295 = scalar_select %p292, %s293, %s294
      %p298 = pneg %p292
      %p299 = scmp.eq.s32.totalorder %s21, 1
      %p300 = por %p298, %p299
      %p301 = scmp.ne.s32.totalorder %s293, %s296
      %p302 = scmp.eq.s32.totalorder %s21, 0
      %p303 = por %p301, %p302
      %p304 = scmp.ne.s32.totalorder %s293, %s296
      %p305 = scmp.eq.s32.totalorder %s26, 1
      %p306 = por %p304, %p305
      %p307 = scmp.ne.s32.totalorder %s296, %s297
      %p308 = scmp.eq.s32.totalorder %s26, 0
      %p309 = por %p307, %p308
      %p310 = scmp.ne.s32.totalorder %s296, %s297
      %p311 = scmp.eq.s32.totalorder %s27, 1
      %p312 = por %p310, %p311
      %p314 = scmp.ne.s32.totalorder %s297, %s313
      %p315 = scmp.eq.s32.totalorder %s27, 0
      %p316 = por %p314, %p315
      %p317 = scmp.le.s32.totalorder 1, %s21
      %p318 = scmp.lt.s32.totalorder %s21, 3
      %p319 = pnand %p317, %p318
      %p320 = pneg %p319
      // Predicated region
      $region9: #{network_forward.1} parent=5 // pred_check
        _
      $region10: #{network_forward.1} parent=5 // pred_check_branch
        %322 = sbr.rel (%p319) target = $region12
      $region11: #{network_forward.1} parent=5 // pred_region
        %s323 = ssub.s32 %s21, 1
        // Predicated region
        $region13: #{network_forward.1} parent=11 // pred_check
          %p324 = pneg %p94
        $region14: #{network_forward.1} parent=11 // pred_check_branch
          %326 = sbr.rel (%p324) target = $region16
        $region15: #{network_forward.1} parent=11 // pred_region
          _
        $region16: #{network_forward.1} parent=11 // pred_fallthru
          _
        // Predicated region
        $region17: #{network_forward.1} parent=11 // pred_check
          %p327 = pneg %p115
        $region18: #{network_forward.1} parent=11 // pred_check_branch
          %329 = sbr.rel (%p327) target = $region20
        $region19: #{network_forward.1} parent=11 // pred_region
          _
        $region20: #{network_forward.1} parent=11 // pred_fallthru
          _
        // Predicated region
        $region21: #{network_forward.1} parent=11 // pred_check
          %p330 = pneg %p136
        $region22: #{network_forward.1} parent=11 // pred_check_branch
          %332 = sbr.rel (%p330) target = $region24
        $region23: #{network_forward.1} parent=11 // pred_region
          _
        $region24: #{network_forward.1} parent=11 // pred_fallthru
          _
        // Predicated region
        $region25: #{network_forward.1} parent=11 // pred_check
          %p333 = pneg %p157
        $region26: #{network_forward.1} parent=11 // pred_check_branch
          %335 = sbr.rel (%p333) target = $region28
        $region27: #{network_forward.1} parent=11 // pred_region
          _
        $region28: #{network_forward.1} parent=11 // pred_fallthru
          _
        // Predicated region
        $region29: #{network_forward.1} parent=11 // pred_check
          %p336 = pneg %p178
        $region30: #{network_forward.1} parent=11 // pred_check_branch
          %338 = sbr.rel (%p336) target = $region32
        $region31: #{network_forward.1} parent=11 // pred_region
          _
        $region32: #{network_forward.1} parent=11 // pred_fallthru
          _
        // Predicated region
        $region33: #{network_forward.1} parent=11 // pred_check
          %p339 = pneg %p199
        $region34: #{network_forward.1} parent=11 // pred_check_branch
          %341 = sbr.rel (%p339) target = $region36
        $region35: #{network_forward.1} parent=11 // pred_region
          _
        $region36: #{network_forward.1} parent=11 // pred_fallthru
          _
        // Predicated region
        $region37: #{network_forward.1} parent=11 // pred_check
          %p342 = pneg %p220
        $region38: #{network_forward.1} parent=11 // pred_check_branch
          %344 = sbr.rel (%p342) target = $region40
        $region39: #{network_forward.1} parent=11 // pred_region
          _
        $region40: #{network_forward.1} parent=11 // pred_fallthru
          _
        // Predicated region
        $region41: #{network_forward.1} parent=11 // pred_check
          %p345 = pneg %p241
        $region42: #{network_forward.1} parent=11 // pred_check_branch
          %347 = sbr.rel (%p345) target = $region44
        $region43: #{network_forward.1} parent=11 // pred_region
          _
        $region44: #{network_forward.1} parent=11 // pred_fallthru
          _
        // Predicated region
        $region45: #{network_forward.1} parent=11 // pred_check
          %p348 = pneg %p262
        $region46: #{network_forward.1} parent=11 // pred_check_branch
          %350 = sbr.rel (%p348) target = $region48
        $region47: #{network_forward.1} parent=11 // pred_region
          _
        $region48: #{network_forward.1} parent=11 // pred_fallthru
          _
        // Predicated region
        $region49: #{network_forward.1} parent=11 // pred_check
          %p351 = pneg %p283
        $region50: #{network_forward.1} parent=11 // pred_check_branch
          %353 = sbr.rel (%p351) target = $region52
        $region51: #{network_forward.1} parent=11 // pred_region
          _
        $region52: #{network_forward.1} parent=11 // pred_fallthru
          _
      $region12: #{network_forward.1} parent=5 // pred_fallthru
        _
      %p354 = scmp.lt.s32.totalorder %s21, 2
      // Predicated region
      $region53: #{network_forward.1} parent=5 // pred_check
        %p355 = pneg %p354
      $region54: #{network_forward.1} parent=5 // pred_check_branch
        %357 = sbr.rel (%p355) target = $region56
      $region55: #{network_forward.1} parent=5 // pred_region
        // Predicated region
        $region57: #{network_forward.1} parent=55 // pred_check
          %p358 = pneg %p41
        $region58: #{network_forward.1} parent=55 // pred_check_branch
          %360 = sbr.rel (%p358) target = $region60
        $region59: #{network_forward.1} parent=55 // pred_region
          %p361 = scmp.lt.s32.totalorder %s21, 1
          %s362 = scalar_select %p361, %s21, 1
          %s363 = smul.addr %s362, 2
          %s364 = smul.addr %s363, 8
          %s365 = scalar_lea.vmem %s0, %s364
        $region60: #{network_forward.1} parent=55 // pred_fallthru
          _
        // Predicated region
        $region61: #{network_forward.1} parent=55 // pred_check
          %p366 = pneg %p67
        $region62: #{network_forward.1} parent=55 // pred_check_branch
          %368 = sbr.rel (%p366) target = $region64
        $region63: #{network_forward.1} parent=55 // pred_region
          %p369 = scmp.lt.s32.totalorder %s21, 1
          %s370 = scalar_select %p369, %s21, 1
          %s371 = smul.addr %s370, 2
          %s372 = smul.addr %s371, 8
          %s373 = scalar_lea.vmem %s1, %s372
        $region64: #{network_forward.1} parent=55 // pred_fallthru
          _
      $region56: #{network_forward.1} parent=5 // pred_fallthru
        _
      %p374 = scmp.le.s32.totalorder 1, %s21
      %p375 = scmp.lt.s32.totalorder %s21, 3
      %p376 = pnand %p374, %p375
      %p377 = pneg %p376
      // Predicated region
      $region65: #{network_forward.1} parent=5 // pred_check
        _
      $region66: #{network_forward.1} parent=5 // pred_check_branch
        %379 = sbr.rel (%p376) target = $region68
      $region67: #{network_forward.1} parent=5 // pred_region
        %s380 = ssub.s32 %s21, 1
        %p381 = scmp.lt.s32.totalorder %s26, 1
        %s382 = scalar_select %p381, %s26, 1
        %s383 = smul.addr %s382, 2
        %s384 = smul.addr %s383, 8
        %s385 = scalar_lea.vmem %s0, %s384
        %p386 = pneg %p47
        %p387 = pneg %p44
        %p388 = scmp.lt.s32.totalorder %s26, 1
        %s389 = scalar_select %p388, %s26, 1
        %s390 = smul.addr %s389, 2
        %s391 = smul.addr %s390, 8
        %s392 = scalar_lea.vmem %s1, %s391
        %p393 = pneg %p73
        %p394 = pneg %p70
        %p395 = pneg %p94
        %p396 = pneg %p91
        %p397 = pneg %p115
        %p398 = pneg %p112
        %p399 = pneg %p136
        %p400 = pneg %p133
        %p401 = pneg %p157
        %p402 = pneg %p154
        %p403 = pneg %p178
        %p404 = pneg %p175
        %p405 = pneg %p199
        %p406 = pneg %p196
        %p407 = pneg %p220
        %p408 = pneg %p217
        %p409 = pneg %p241
        %p410 = pneg %p238
        %p411 = pneg %p262
        %p412 = pneg %p259
        %p413 = pneg %p283
        %p414 = pneg %p280
        %p415 = pneg %p309
        %p416 = pneg %p306
        %s417 = sand.u32 %s296, 1
        %s418 = scalar_lea.sflag [#allocation4], %s417
        %s419 = sand.u32 %s296, 1
        %s420 = scalar_lea.vmem [#allocation3], %s419
        %p421 = scmp.lt.s32.totalorder %s26, 1
        %s422 = scalar_select %p421, %s26, 1
        %s423 = smul.addr %s422, 2
        %s424 = smul.addr %s423, 8
        %s425 = scalar_lea.vmem %s0, %s424
        %p426 = scmp.lt.s32.totalorder %s26, 1
        %s427 = scalar_select %p426, %s26, 1
        %s428 = smul.addr %s427, 2
        %s429 = smul.addr %s428, 8
        %s430 = scalar_lea.vmem %s1, %s429
        %v431 = vld [vmem:[%s425] sm:$0xff]
        %v432 = vld [vmem:[%s425 + $0x8] sm:$0x3f]
        %v433 = vld [vmem:[%s430] sm:$0xff]
        %v434 = vld [vmem:[%s430 + $0x8] sm:$0x3f]
        %v435 = vld [vmem:[%s2] sm:$0xff]
        %v436 = vld [vmem:[%s2 + $0x8] sm:$0xff]
        %v437 = vld [vmem:[%s2 + $0x10] sm:$0xff]
        %v438 = vld [vmem:[%s2 + $0x18] sm:$0xff]
        %v439 = vld [vmem:[%s2 + $0x20] sm:$0xff]
        %v440 = vld [vmem:[%s2 + $0x28] sm:$0xff]
        %v441 = vld [vmem:[%s2 + $0x30] sm:$0xf]
        %v442 = vld [vmem:[%s2 + $0x38] sm:$0xf]
        %s443 = scalar_lea.vmem %s2, 64
        %v444 = vld [vmem:[%s443] sm:$0xff]
        %v445 = vld [vmem:[%s443 + $0x8] sm:$0xff]
        %v446 = vld [vmem:[%s443 + $0x10] sm:$0xff]
        %v447 = vld [vmem:[%s443 + $0x18] sm:$0xff]
        %v448 = vld [vmem:[%s443 + $0x20] sm:$0xff]
        %v449 = vld [vmem:[%s443 + $0x28] sm:$0xff]
        %v450 = vld [vmem:[%s443 + $0x30] sm:$0xf]
        %v451 = vld [vmem:[%s443 + $0x38] sm:$0xf]
        %vm452 = vcmask 228352
        %v454 = vsel %vm452, %v433, 0
        %v457 = vsel %vm452, %v434, 0
        %vm459 = vcmask 1043456
        %v461 = vsel %vm459, %v450, 0
        %v464 = vsel %vm459, %v451, 0
        %466 = vmatprep.subr.mxu0 0.0
        %467 = vmatpush1.msra.mxu0 0.0
        %468 = vmatprep.subr.mxu0 0.0
        %469 = vmatpush1.msra.mxu0 0.0
        %470 = vmatprep.subr.mxu0 0.0
        %471 = vmatpush1.msra.mxu0 0.0
        %472 = vmatprep.subr.mxu0 0.0
        %473 = vmatpush1.msra.mxu0 0.0
        %474 = vmatprep.subr.mxu0 0.0
        %475 = vmatpush1.msra.mxu0 0.0
        %476 = vmatprep.subr.mxu0 0.0
        %477 = vmatpush1.msra.mxu0 0.0
        %478 = vmatprep.subr.mxu0 0.0
        %479 = vmatpush1.msra.mxu0 0.0
        %480 = vmatprep.subr.mxu0 0.0
        %481 = vmatpush1.msra.mxu0 0.0
        %482 = vmatprep.subr.mxu0 0.0
        %483 = vmatpush1.msra.mxu0 0.0
        %484 = vmatprep.subr.mxu0 0.0
        %485 = vmatpush1.msra.mxu0 0.0
        %486 = vmatprep.subr.mxu0 0.0
        %487 = vmatpush1.msra.mxu0 0.0
        %488 = vmatprep.subr.mxu0 0.0
        %489 = vmatpush1.msra.mxu0 0.0
        %490 = vmatprep.subr.mxu0 %v464
        %491 = vmatpush1.msra.mxu0 %v461
        %492 = vmatprep.subr.mxu0 %v449
        %493 = vmatpush1.msra.mxu0 %v448
        %494 = vmatprep.subr.mxu0 %v447
        %495 = vmatpush1.msra.mxu0 %v446
        %496 = vmatprep.subr.mxu0 %v445
        %497 = vmatpush1.msra.mxu0 %v444
        %498 = vmatprep.subr.mxu0 0.0
        %499 = vmatpush2.msra.mxu0 0.0
        %500 = vmatprep.subr.mxu0 0.0
        %501 = vmatpush2.msra.mxu0 0.0
        %502 = vmatprep.subr.mxu0 0.0
        %503 = vmatpush2.msra.mxu0 0.0
        %504 = vmatprep.subr.mxu0 0.0
        %505 = vmatpush2.msra.mxu0 0.0
        %506 = vmatprep.subr.mxu0 0.0
        %507 = vmatpush2.msra.mxu0 0.0
        %508 = vmatprep.subr.mxu0 0.0
        %509 = vmatpush2.msra.mxu0 0.0
        %510 = vmatprep.subr.mxu0 0.0
        %511 = vmatpush2.msra.mxu0 0.0
        %512 = vmatprep.subr.mxu0 0.0
        %513 = vmatpush2.msra.mxu0 0.0
        %514 = vmatprep.subr.mxu0 0.0
        %515 = vmatpush2.msra.mxu0 0.0
        %516 = vmatprep.subr.mxu0 0.0
        %517 = vmatpush2.msra.mxu0 0.0
        %518 = vmatprep.subr.mxu0 0.0
        %519 = vmatpush2.msra.mxu0 0.0
        %520 = vmatprep.subr.mxu0 0.0
        %521 = vmatpush2.msra.mxu0 0.0
        %522 = vmatprep.subr.mxu0 0.0
        %523 = vmatpush2.msra.mxu0 0.0
        %524 = vmatprep.subr.mxu0 0.0
        %525 = vmatpush2.msra.mxu0 0.0
        %526 = vmatprep.subr.mxu0 0.0
        %527 = vmatpush2.msra.mxu0 0.0
        %528 = vmatprep.subr.mxu0 0.0
        %529 = vmatpush2.msra.mxu0 0.0
        %530 = vmatprep.mubr.f32.mxu0 0.0
        %531 = vmatmul.mubr.f32.gmra.mxu0 %v454
        %v532 = vpop.f32.mrf.mxu0
        %v533 = vadd.f32 0.0, %v532
        %v534 = vpop.f32.mrf.mxu0
        %v535 = vadd.f32 0.0, %v534
        %536 = vmatprep.mubr.f32.mxu0 0.0
        %537 = vmatmul.mubr.f32.gmra.mxu0 %v457
        %v538 = vpop.f32.mrf.mxu0
        %v539 = vadd.f32 0.0, %v538
        %v540 = vpop.f32.mrf.mxu0
        %v541 = vadd.f32 0.0, %v540
        %542 = vdwg.mxu0
        %v544 = vsel %vm452, %v431, 0
        %v547 = vsel %vm452, %v432, 0
        %v550 = vsel %vm459, %v441, 0
        %v553 = vsel %vm459, %v442, 0
        %555 = vmatprep.subr.mxu0 0.0
        %556 = vmatpush1.msra.mxu0 0.0
        %557 = vmatprep.subr.mxu0 0.0
        %558 = vmatpush1.msra.mxu0 0.0
        %559 = vmatprep.subr.mxu0 0.0
        %560 = vmatpush1.msra.mxu0 0.0
        %561 = vmatprep.subr.mxu0 0.0
        %562 = vmatpush1.msra.mxu0 0.0
        %563 = vmatprep.subr.mxu0 0.0
        %564 = vmatpush1.msra.mxu0 0.0
        %565 = vmatprep.subr.mxu0 0.0
        %566 = vmatpush1.msra.mxu0 0.0
        %567 = vmatprep.subr.mxu0 0.0
        %568 = vmatpush1.msra.mxu0 0.0
        %569 = vmatprep.subr.mxu0 0.0
        %570 = vmatpush1.msra.mxu0 0.0
        %571 = vmatprep.subr.mxu0 0.0
        %572 = vmatpush1.msra.mxu0 0.0
        %573 = vmatprep.subr.mxu0 0.0
        %574 = vmatpush1.msra.mxu0 0.0
        %575 = vmatprep.subr.mxu0 0.0
        %576 = vmatpush1.msra.mxu0 0.0
        %577 = vmatprep.subr.mxu0 0.0
        %578 = vmatpush1.msra.mxu0 0.0
        %579 = vmatprep.subr.mxu0 %v553
        %580 = vmatpush1.msra.mxu0 %v550
        %581 = vmatprep.subr.mxu0 %v440
        %582 = vmatpush1.msra.mxu0 %v439
        %583 = vmatprep.subr.mxu0 %v438
        %584 = vmatpush1.msra.mxu0 %v437
        %585 = vmatprep.subr.mxu0 %v436
        %586 = vmatpush1.msra.mxu0 %v435
        %587 = vmatprep.subr.mxu0 0.0
        %588 = vmatpush2.msra.mxu0 0.0
        %589 = vmatprep.subr.mxu0 0.0
        %590 = vmatpush2.msra.mxu0 0.0
        %591 = vmatprep.subr.mxu0 0.0
        %592 = vmatpush2.msra.mxu0 0.0
        %593 = vmatprep.subr.mxu0 0.0
        %594 = vmatpush2.msra.mxu0 0.0
        %595 = vmatprep.subr.mxu0 0.0
        %596 = vmatpush2.msra.mxu0 0.0
        %597 = vmatprep.subr.mxu0 0.0
        %598 = vmatpush2.msra.mxu0 0.0
        %599 = vmatprep.subr.mxu0 0.0
        %600 = vmatpush2.msra.mxu0 0.0
        %601 = vmatprep.subr.mxu0 0.0
        %602 = vmatpush2.msra.mxu0 0.0
        %603 = vmatprep.subr.mxu0 0.0
        %604 = vmatpush2.msra.mxu0 0.0
        %605 = vmatprep.subr.mxu0 0.0
        %606 = vmatpush2.msra.mxu0 0.0
        %607 = vmatprep.subr.mxu0 0.0
        %608 = vmatpush2.msra.mxu0 0.0
        %609 = vmatprep.subr.mxu0 0.0
        %610 = vmatpush2.msra.mxu0 0.0
        %611 = vmatprep.subr.mxu0 0.0
        %612 = vmatpush2.msra.mxu0 0.0
        %613 = vmatprep.subr.mxu0 0.0
        %614 = vmatpush2.msra.mxu0 0.0
        %615 = vmatprep.subr.mxu0 0.0
        %616 = vmatpush2.msra.mxu0 0.0
        %617 = vmatprep.subr.mxu0 0.0
        %618 = vmatpush2.msra.mxu0 0.0
        %619 = vmatprep.mubr.f32.mxu0 0.0
        %620 = vmatmul.mubr.f32.gmra.mxu0 %v544
        %v621 = vpop.f32.mrf.mxu0
        %v622 = vadd.f32 %v533, %v621
        %v623 = vpop.f32.mrf.mxu0
        %v624 = vadd.f32 %v535, %v623
        %625 = vmatprep.mubr.f32.mxu0 0.0
        %626 = vmatmul.mubr.f32.gmra.mxu0 %v547
        %v627 = vpop.f32.mrf.mxu0
        %v628 = vadd.f32 %v539, %v627
        %v629 = vpop.f32.mrf.mxu0
        %v630 = vadd.f32 %v541, %v629
        %631 = vdwg.mxu0
        %vm632 = vcmask 1046528
        %v633 = vrot.slane %v431, 1
        %v634 = vrot.slane %v432, 1
        %v635 = vsel %vm632, %v633, %v634
        %v636 = vsel %vm452, %v635, 0
        %v638 = vsel %vm452, %v634, 0
        %640 = vmatprep.subr.mxu0 0.0
        %641 = vmatpush1.msra.mxu0 0.0
        %642 = vmatprep.subr.mxu0 0.0
        %643 = vmatpush1.msra.mxu0 0.0
        %644 = vmatprep.subr.mxu0 0.0
        %645 = vmatpush1.msra.mxu0 0.0
        %646 = vmatprep.subr.mxu0 0.0
        %647 = vmatpush1.msra.mxu0 0.0
        %648 = vmatprep.subr.mxu0 0.0
        %649 = vmatpush1.msra.mxu0 0.0
        %650 = vmatprep.subr.mxu0 0.0
        %651 = vmatpush1.msra.mxu0 0.0
        %652 = vmatprep.subr.mxu0 0.0
        %653 = vmatpush1.msra.mxu0 0.0
        %654 = vmatprep.subr.mxu0 0.0
        %655 = vmatpush1.msra.mxu0 0.0
        %656 = vmatprep.subr.mxu0 0.0
        %657 = vmatpush1.msra.mxu0 0.0
        %658 = vmatprep.subr.mxu0 0.0
        %659 = vmatpush1.msra.mxu0 0.0
        %660 = vmatprep.subr.mxu0 0.0
        %661 = vmatpush1.msra.mxu0 0.0
        %662 = vmatprep.subr.mxu0 0.0
        %663 = vmatpush1.msra.mxu0 0.0
        %664 = vmatprep.subr.mxu0 %v464
        %665 = vmatpush1.msra.mxu0 %v461
        %666 = vmatprep.subr.mxu0 %v449
        %667 = vmatpush1.msra.mxu0 %v448
        %668 = vmatprep.subr.mxu0 %v447
        %669 = vmatpush1.msra.mxu0 %v446
        %670 = vmatprep.subr.mxu0 %v445
        %671 = vmatpush1.msra.mxu0 %v444
        %672 = vmatprep.subr.mxu0 0.0
        %673 = vmatpush2.msra.mxu0 0.0
        %674 = vmatprep.subr.mxu0 0.0
        %675 = vmatpush2.msra.mxu0 0.0
        %676 = vmatprep.subr.mxu0 0.0
        %677 = vmatpush2.msra.mxu0 0.0
        %678 = vmatprep.subr.mxu0 0.0
        %679 = vmatpush2.msra.mxu0 0.0
        %680 = vmatprep.subr.mxu0 0.0
        %681 = vmatpush2.msra.mxu0 0.0
        %682 = vmatprep.subr.mxu0 0.0
        %683 = vmatpush2.msra.mxu0 0.0
        %684 = vmatprep.subr.mxu0 0.0
        %685 = vmatpush2.msra.mxu0 0.0
        %686 = vmatprep.subr.mxu0 0.0
        %687 = vmatpush2.msra.mxu0 0.0
        %688 = vmatprep.subr.mxu0 0.0
        %689 = vmatpush2.msra.mxu0 0.0
        %690 = vmatprep.subr.mxu0 0.0
        %691 = vmatpush2.msra.mxu0 0.0
        %692 = vmatprep.subr.mxu0 0.0
        %693 = vmatpush2.msra.mxu0 0.0
        %694 = vmatprep.subr.mxu0 0.0
        %695 = vmatpush2.msra.mxu0 0.0
        %696 = vmatprep.subr.mxu0 0.0
        %697 = vmatpush2.msra.mxu0 0.0
        %698 = vmatprep.subr.mxu0 0.0
        %699 = vmatpush2.msra.mxu0 0.0
        %700 = vmatprep.subr.mxu0 0.0
        %701 = vmatpush2.msra.mxu0 0.0
        %702 = vmatprep.subr.mxu0 0.0
        %703 = vmatpush2.msra.mxu0 0.0
        %704 = vmatprep.mubr.f32.mxu0 0.0
        %705 = vmatmul.mubr.f32.gmra.mxu0 %v636
        %v706 = vpop.f32.mrf.mxu0
        %v707 = vadd.f32 0.0, %v706
        %v708 = vpop.f32.mrf.mxu0
        %v709 = vadd.f32 0.0, %v708
        %710 = vmatprep.mubr.f32.mxu0 0.0
        %711 = vmatmul.mubr.f32.gmra.mxu0 %v638
        %v712 = vpop.f32.mrf.mxu0
        %v713 = vadd.f32 0.0, %v712
        %v714 = vpop.f32.mrf.mxu0
        %v715 = vadd.f32 0.0, %v714
        %716 = vdwg.mxu0
        %717 = vmatprep.subr.mxu0 0.0
        %718 = vmatpush1.msra.mxu0 0.0
        %719 = vmatprep.subr.mxu0 0.0
        %720 = vmatpush1.msra.mxu0 0.0
        %721 = vmatprep.subr.mxu0 0.0
        %722 = vmatpush1.msra.mxu0 0.0
        %723 = vmatprep.subr.mxu0 0.0
        %724 = vmatpush1.msra.mxu0 0.0
        %725 = vmatprep.subr.mxu0 0.0
        %726 = vmatpush1.msra.mxu0 0.0
        %727 = vmatprep.subr.mxu0 0.0
        %728 = vmatpush1.msra.mxu0 0.0
        %729 = vmatprep.subr.mxu0 0.0
        %730 = vmatpush1.msra.mxu0 0.0
        %731 = vmatprep.subr.mxu0 0.0
        %732 = vmatpush1.msra.mxu0 0.0
        %733 = vmatprep.subr.mxu0 0.0
        %734 = vmatpush1.msra.mxu0 0.0
        %735 = vmatprep.subr.mxu0 0.0
        %736 = vmatpush1.msra.mxu0 0.0
        %737 = vmatprep.subr.mxu0 0.0
        %738 = vmatpush1.msra.mxu0 0.0
        %739 = vmatprep.subr.mxu0 0.0
        %740 = vmatpush1.msra.mxu0 0.0
        %741 = vmatprep.subr.mxu0 %v553
        %742 = vmatpush1.msra.mxu0 %v550
        %743 = vmatprep.subr.mxu0 %v440
        %744 = vmatpush1.msra.mxu0 %v439
        %745 = vmatprep.subr.mxu0 %v438
        %746 = vmatpush1.msra.mxu0 %v437
        %747 = vmatprep.subr.mxu0 %v436
        %748 = vmatpush1.msra.mxu0 %v435
        %749 = vmatprep.subr.mxu0 0.0
        %750 = vmatpush2.msra.mxu0 0.0
        %751 = vmatprep.subr.mxu0 0.0
        %752 = vmatpush2.msra.mxu0 0.0
        %753 = vmatprep.subr.mxu0 0.0
        %754 = vmatpush2.msra.mxu0 0.0
        %755 = vmatprep.subr.mxu0 0.0
        %756 = vmatpush2.msra.mxu0 0.0
        %757 = vmatprep.subr.mxu0 0.0
        %758 = vmatpush2.msra.mxu0 0.0
        %759 = vmatprep.subr.mxu0 0.0
        %760 = vmatpush2.msra.mxu0 0.0
        %761 = vmatprep.subr.mxu0 0.0
        %762 = vmatpush2.msra.mxu0 0.0
        %763 = vmatprep.subr.mxu0 0.0
        %764 = vmatpush2.msra.mxu0 0.0
        %765 = vmatprep.subr.mxu0 0.0
        %766 = vmatpush2.msra.mxu0 0.0
        %767 = vmatprep.subr.mxu0 0.0
        %768 = vmatpush2.msra.mxu0 0.0
        %769 = vmatprep.subr.mxu0 0.0
        %770 = vmatpush2.msra.mxu0 0.0
        %771 = vmatprep.subr.mxu0 0.0
        %772 = vmatpush2.msra.mxu0 0.0
        %773 = vmatprep.subr.mxu0 0.0
        %774 = vmatpush2.msra.mxu0 0.0
        %775 = vmatprep.subr.mxu0 0.0
        %776 = vmatpush2.msra.mxu0 0.0
        %777 = vmatprep.subr.mxu0 0.0
        %778 = vmatpush2.msra.mxu0 0.0
        %779 = vmatprep.subr.mxu0 0.0
        %780 = vmatpush2.msra.mxu0 0.0
        %781 = vmatprep.mubr.f32.mxu0 0.0
        %782 = vmatmul.mubr.f32.gmra.mxu0 %v454
        %v783 = vpop.f32.mrf.mxu0
        %v784 = vadd.f32 %v707, %v783
        %v785 = vpop.f32.mrf.mxu0
        %v786 = vadd.f32 %v709, %v785
        %787 = vmatprep.mubr.f32.mxu0 0.0
        %788 = vmatmul.mubr.f32.gmra.mxu0 %v457
        %v789 = vpop.f32.mrf.mxu0
        %v790 = vadd.f32 %v713, %v789
        %v791 = vpop.f32.mrf.mxu0
        %v792 = vadd.f32 %v715, %v791
        %793 = vdwg.mxu0
        %s794 = scalar_lea.vmem %s2, 128
        %v795 = vld [vmem:[%s794] sm:$0xff]
        %v796 = vld [vmem:[%s794 + $0x8] sm:$0xff]
        %v797 = vld [vmem:[%s794 + $0x10] sm:$0xff]
        %v798 = vld [vmem:[%s794 + $0x18] sm:$0xff]
        %v799 = vld [vmem:[%s794 + $0x20] sm:$0xff]
        %v800 = vld [vmem:[%s794 + $0x28] sm:$0xff]
        %v801 = vld [vmem:[%s794 + $0x30] sm:$0xf]
        %v802 = vld [vmem:[%s794 + $0x38] sm:$0xf]
        %v804 = vsel %vm459, %v801, 0
        %v807 = vsel %vm459, %v802, 0
        %809 = vmatprep.subr.mxu0 0.0
        %810 = vmatpush1.msra.mxu0 0.0
        %811 = vmatprep.subr.mxu0 0.0
        %812 = vmatpush1.msra.mxu0 0.0
        %813 = vmatprep.subr.mxu0 0.0
        %814 = vmatpush1.msra.mxu0 0.0
        %815 = vmatprep.subr.mxu0 0.0
        %816 = vmatpush1.msra.mxu0 0.0
        %817 = vmatprep.subr.mxu0 0.0
        %818 = vmatpush1.msra.mxu0 0.0
        %819 = vmatprep.subr.mxu0 0.0
        %820 = vmatpush1.msra.mxu0 0.0
        %821 = vmatprep.subr.mxu0 0.0
        %822 = vmatpush1.msra.mxu0 0.0
        %823 = vmatprep.subr.mxu0 0.0
        %824 = vmatpush1.msra.mxu0 0.0
        %825 = vmatprep.subr.mxu0 0.0
        %826 = vmatpush1.msra.mxu0 0.0
        %827 = vmatprep.subr.mxu0 0.0
        %828 = vmatpush1.msra.mxu0 0.0
        %829 = vmatprep.subr.mxu0 0.0
        %830 = vmatpush1.msra.mxu0 0.0
        %831 = vmatprep.subr.mxu0 0.0
        %832 = vmatpush1.msra.mxu0 0.0
        %833 = vmatprep.subr.mxu0 %v807
        %834 = vmatpush1.msra.mxu0 %v804
        %835 = vmatprep.subr.mxu0 %v800
        %836 = vmatpush1.msra.mxu0 %v799
        %837 = vmatprep.subr.mxu0 %v798
        %838 = vmatpush1.msra.mxu0 %v797
        %839 = vmatprep.subr.mxu0 %v796
        %840 = vmatpush1.msra.mxu0 %v795
        %841 = vmatprep.subr.mxu0 0.0
        %842 = vmatpush2.msra.mxu0 0.0
        %843 = vmatprep.subr.mxu0 0.0
        %844 = vmatpush2.msra.mxu0 0.0
        %845 = vmatprep.subr.mxu0 0.0
        %846 = vmatpush2.msra.mxu0 0.0
        %847 = vmatprep.subr.mxu0 0.0
        %848 = vmatpush2.msra.mxu0 0.0
        %849 = vmatprep.subr.mxu0 0.0
        %850 = vmatpush2.msra.mxu0 0.0
        %851 = vmatprep.subr.mxu0 0.0
        %852 = vmatpush2.msra.mxu0 0.0
        %853 = vmatprep.subr.mxu0 0.0
        %854 = vmatpush2.msra.mxu0 0.0
        %855 = vmatprep.subr.mxu0 0.0
        %856 = vmatpush2.msra.mxu0 0.0
        %857 = vmatprep.subr.mxu0 0.0
        %858 = vmatpush2.msra.mxu0 0.0
        %859 = vmatprep.subr.mxu0 0.0
        %860 = vmatpush2.msra.mxu0 0.0
        %861 = vmatprep.subr.mxu0 0.0
        %862 = vmatpush2.msra.mxu0 0.0
        %863 = vmatprep.subr.mxu0 0.0
        %864 = vmatpush2.msra.mxu0 0.0
        %865 = vmatprep.subr.mxu0 0.0
        %866 = vmatpush2.msra.mxu0 0.0
        %867 = vmatprep.subr.mxu0 0.0
        %868 = vmatpush2.msra.mxu0 0.0
        %869 = vmatprep.subr.mxu0 0.0
        %870 = vmatpush2.msra.mxu0 0.0
        %871 = vmatprep.subr.mxu0 0.0
        %872 = vmatpush2.msra.mxu0 0.0
        %873 = vmatprep.mubr.f32.mxu0 0.0
        %874 = vmatmul.mubr.f32.gmra.mxu0 %v636
        %v875 = vpop.f32.mrf.mxu0
        %v876 = vadd.f32 0.0, %v875
        %v877 = vpop.f32.mrf.mxu0
        %v878 = vadd.f32 0.0, %v877
        %879 = vmatprep.mubr.f32.mxu0 0.0
        %880 = vmatmul.mubr.f32.gmra.mxu0 %v638
        %v881 = vpop.f32.mrf.mxu0
        %v882 = vadd.f32 0.0, %v881
        %v883 = vpop.f32.mrf.mxu0
        %v884 = vadd.f32 0.0, %v883
        %885 = vdwg.mxu0
        %v886 = vadd.f32 %v622, %v876
        %v887 = vadd.f32 %v624, %v878
        %v888 = vadd.f32 %v628, %v882
        %v889 = vadd.f32 %v630, %v884
        %v890 = vrot.slane %v433, 1
        %v891 = vrot.slane %v434, 1
        %v892 = vsel %vm632, %v890, %v891
        %v893 = vsel %vm452, %v892, 0
        %v895 = vsel %vm452, %v891, 0
        %897 = vmatprep.subr.mxu0 0.0
        %898 = vmatpush1.msra.mxu0 0.0
        %899 = vmatprep.subr.mxu0 0.0
        %900 = vmatpush1.msra.mxu0 0.0
        %901 = vmatprep.subr.mxu0 0.0
        %902 = vmatpush1.msra.mxu0 0.0
        %903 = vmatprep.subr.mxu0 0.0
        %904 = vmatpush1.msra.mxu0 0.0
        %905 = vmatprep.subr.mxu0 0.0
        %906 = vmatpush1.msra.mxu0 0.0
        %907 = vmatprep.subr.mxu0 0.0
        %908 = vmatpush1.msra.mxu0 0.0
        %909 = vmatprep.subr.mxu0 0.0
        %910 = vmatpush1.msra.mxu0 0.0
        %911 = vmatprep.subr.mxu0 0.0
        %912 = vmatpush1.msra.mxu0 0.0
        %913 = vmatprep.subr.mxu0 0.0
        %914 = vmatpush1.msra.mxu0 0.0
        %915 = vmatprep.subr.mxu0 0.0
        %916 = vmatpush1.msra.mxu0 0.0
        %917 = vmatprep.subr.mxu0 0.0
        %918 = vmatpush1.msra.mxu0 0.0
        %919 = vmatprep.subr.mxu0 0.0
        %920 = vmatpush1.msra.mxu0 0.0
        %921 = vmatprep.subr.mxu0 %v807
        %922 = vmatpush1.msra.mxu0 %v804
        %923 = vmatprep.subr.mxu0 %v800
        %924 = vmatpush1.msra.mxu0 %v799
        %925 = vmatprep.subr.mxu0 %v798
        %926 = vmatpush1.msra.mxu0 %v797
        %927 = vmatprep.subr.mxu0 %v796
        %928 = vmatpush1.msra.mxu0 %v795
        %929 = vmatprep.subr.mxu0 0.0
        %930 = vmatpush2.msra.mxu0 0.0
        %931 = vmatprep.subr.mxu0 0.0
        %932 = vmatpush2.msra.mxu0 0.0
        %933 = vmatprep.subr.mxu0 0.0
        %934 = vmatpush2.msra.mxu0 0.0
        %935 = vmatprep.subr.mxu0 0.0
        %936 = vmatpush2.msra.mxu0 0.0
        %937 = vmatprep.subr.mxu0 0.0
        %938 = vmatpush2.msra.mxu0 0.0
        %939 = vmatprep.subr.mxu0 0.0
        %940 = vmatpush2.msra.mxu0 0.0
        %941 = vmatprep.subr.mxu0 0.0
        %942 = vmatpush2.msra.mxu0 0.0
        %943 = vmatprep.subr.mxu0 0.0
        %944 = vmatpush2.msra.mxu0 0.0
        %945 = vmatprep.subr.mxu0 0.0
        %946 = vmatpush2.msra.mxu0 0.0
        %947 = vmatprep.subr.mxu0 0.0
        %948 = vmatpush2.msra.mxu0 0.0
        %949 = vmatprep.subr.mxu0 0.0
        %950 = vmatpush2.msra.mxu0 0.0
        %951 = vmatprep.subr.mxu0 0.0
        %952 = vmatpush2.msra.mxu0 0.0
        %953 = vmatprep.subr.mxu0 0.0
        %954 = vmatpush2.msra.mxu0 0.0
        %955 = vmatprep.subr.mxu0 0.0
        %956 = vmatpush2.msra.mxu0 0.0
        %957 = vmatprep.subr.mxu0 0.0
        %958 = vmatpush2.msra.mxu0 0.0
        %959 = vmatprep.subr.mxu0 0.0
        %960 = vmatpush2.msra.mxu0 0.0
        %961 = vmatprep.mubr.f32.mxu0 0.0
        %962 = vmatmul.mubr.f32.gmra.mxu0 %v893
        %v963 = vpop.f32.mrf.mxu0
        %v964 = vadd.f32 0.0, %v963
        %v965 = vpop.f32.mrf.mxu0
        %v966 = vadd.f32 0.0, %v965
        %967 = vmatprep.mubr.f32.mxu0 0.0
        %968 = vmatmul.mubr.f32.gmra.mxu0 %v895
        %v969 = vpop.f32.mrf.mxu0
        %v970 = vadd.f32 0.0, %v969
        %v971 = vpop.f32.mrf.mxu0
        %v972 = vadd.f32 0.0, %v971
        %973 = vdwg.mxu0
        %v974 = vadd.f32 %v784, %v964
        %v975 = vadd.f32 %v786, %v966
        %v976 = vadd.f32 %v790, %v970
        %v977 = vadd.f32 %v792, %v972
        %s978 = scalar_lea.vmem %s2, 192
        %v979 = vld [vmem:[%s978] sm:$0xff]
        %v980 = vld [vmem:[%s978 + $0x8] sm:$0xff]
        %v981 = vld [vmem:[%s978 + $0x10] sm:$0xff]
        %v982 = vld [vmem:[%s978 + $0x18] sm:$0xff]
        %v983 = vld [vmem:[%s978 + $0x20] sm:$0xff]
        %v984 = vld [vmem:[%s978 + $0x28] sm:$0xff]
        %v985 = vld [vmem:[%s978 + $0x30] sm:$0xf]
        %v986 = vld [vmem:[%s978 + $0x38] sm:$0xf]
        %v988 = vsel %vm459, %v985, 0
        %v991 = vsel %vm459, %v986, 0
        %993 = vmatprep.subr.mxu0 0.0
        %994 = vmatpush1.msra.mxu0 0.0
        %995 = vmatprep.subr.mxu0 0.0
        %996 = vmatpush1.msra.mxu0 0.0
        %997 = vmatprep.subr.mxu0 0.0
        %998 = vmatpush1.msra.mxu0 0.0
        %999 = vmatprep.subr.mxu0 0.0
        %1000 = vmatpush1.msra.mxu0 0.0
        %1001 = vmatprep.subr.mxu0 0.0
        %1002 = vmatpush1.msra.mxu0 0.0
        %1003 = vmatprep.subr.mxu0 0.0
        %1004 = vmatpush1.msra.mxu0 0.0
        %1005 = vmatprep.subr.mxu0 0.0
        %1006 = vmatpush1.msra.mxu0 0.0
        %1007 = vmatprep.subr.mxu0 0.0
        %1008 = vmatpush1.msra.mxu0 0.0
        %1009 = vmatprep.subr.mxu0 0.0
        %1010 = vmatpush1.msra.mxu0 0.0
        %1011 = vmatprep.subr.mxu0 0.0
        %1012 = vmatpush1.msra.mxu0 0.0
        %1013 = vmatprep.subr.mxu0 0.0
        %1014 = vmatpush1.msra.mxu0 0.0
        %1015 = vmatprep.subr.mxu0 0.0
        %1016 = vmatpush1.msra.mxu0 0.0
        %1017 = vmatprep.subr.mxu0 %v991
        %1018 = vmatpush1.msra.mxu0 %v988
        %1019 = vmatprep.subr.mxu0 %v984
        %1020 = vmatpush1.msra.mxu0 %v983
        %1021 = vmatprep.subr.mxu0 %v982
        %1022 = vmatpush1.msra.mxu0 %v981
        %1023 = vmatprep.subr.mxu0 %v980
        %1024 = vmatpush1.msra.mxu0 %v979
        %1025 = vmatprep.subr.mxu0 0.0
        %1026 = vmatpush2.msra.mxu0 0.0
        %1027 = vmatprep.subr.mxu0 0.0
        %1028 = vmatpush2.msra.mxu0 0.0
        %1029 = vmatprep.subr.mxu0 0.0
        %1030 = vmatpush2.msra.mxu0 0.0
        %1031 = vmatprep.subr.mxu0 0.0
        %1032 = vmatpush2.msra.mxu0 0.0
        %1033 = vmatprep.subr.mxu0 0.0
        %1034 = vmatpush2.msra.mxu0 0.0
        %1035 = vmatprep.subr.mxu0 0.0
        %1036 = vmatpush2.msra.mxu0 0.0
        %1037 = vmatprep.subr.mxu0 0.0
        %1038 = vmatpush2.msra.mxu0 0.0
        %1039 = vmatprep.subr.mxu0 0.0
        %1040 = vmatpush2.msra.mxu0 0.0
        %1041 = vmatprep.subr.mxu0 0.0
        %1042 = vmatpush2.msra.mxu0 0.0
        %1043 = vmatprep.subr.mxu0 0.0
        %1044 = vmatpush2.msra.mxu0 0.0
        %1045 = vmatprep.subr.mxu0 0.0
        %1046 = vmatpush2.msra.mxu0 0.0
        %1047 = vmatprep.subr.mxu0 0.0
        %1048 = vmatpush2.msra.mxu0 0.0
        %1049 = vmatprep.subr.mxu0 0.0
        %1050 = vmatpush2.msra.mxu0 0.0
        %1051 = vmatprep.subr.mxu0 0.0
        %1052 = vmatpush2.msra.mxu0 0.0
        %1053 = vmatprep.subr.mxu0 0.0
        %1054 = vmatpush2.msra.mxu0 0.0
        %1055 = vmatprep.subr.mxu0 0.0
        %1056 = vmatpush2.msra.mxu0 0.0
        %1057 = vmatprep.mubr.f32.mxu0 0.0
        %1058 = vmatmul.mubr.f32.gmra.mxu0 %v893
        %v1059 = vpop.f32.mrf.mxu0
        %v1060 = vadd.f32 0.0, %v1059
        %v1061 = vpop.f32.mrf.mxu0
        %v1062 = vadd.f32 0.0, %v1061
        %1063 = vmatprep.mubr.f32.mxu0 0.0
        %1064 = vmatmul.mubr.f32.gmra.mxu0 %v895
        %v1065 = vpop.f32.mrf.mxu0
        %v1066 = vadd.f32 0.0, %v1065
        %v1067 = vpop.f32.mrf.mxu0
        %v1068 = vadd.f32 0.0, %v1067
        %1069 = vdwg.mxu0
        %v1070 = vadd.f32 %v886, %v1060
        %v1071 = vadd.f32 %v887, %v1062
        %v1072 = vadd.f32 %v888, %v1066
        %v1073 = vadd.f32 %v889, %v1068
        %vm1074 = vcmask 1045504
        %v1075 = vrot.slane %v431, 2
        %v1076 = vrot.slane %v432, 2
        %v1077 = vsel %vm1074, %v1075, %v1076
        %v1078 = vsel %vm452, %v1077, 0
        %v1080 = vsel %vm452, %v1076, 0
        %1082 = vmatprep.subr.mxu0 0.0
        %1083 = vmatpush1.msra.mxu0 0.0
        %1084 = vmatprep.subr.mxu0 0.0
        %1085 = vmatpush1.msra.mxu0 0.0
        %1086 = vmatprep.subr.mxu0 0.0
        %1087 = vmatpush1.msra.mxu0 0.0
        %1088 = vmatprep.subr.mxu0 0.0
        %1089 = vmatpush1.msra.mxu0 0.0
        %1090 = vmatprep.subr.mxu0 0.0
        %1091 = vmatpush1.msra.mxu0 0.0
        %1092 = vmatprep.subr.mxu0 0.0
        %1093 = vmatpush1.msra.mxu0 0.0
        %1094 = vmatprep.subr.mxu0 0.0
        %1095 = vmatpush1.msra.mxu0 0.0
        %1096 = vmatprep.subr.mxu0 0.0
        %1097 = vmatpush1.msra.mxu0 0.0
        %1098 = vmatprep.subr.mxu0 0.0
        %1099 = vmatpush1.msra.mxu0 0.0
        %1100 = vmatprep.subr.mxu0 0.0
        %1101 = vmatpush1.msra.mxu0 0.0
        %1102 = vmatprep.subr.mxu0 0.0
        %1103 = vmatpush1.msra.mxu0 0.0
        %1104 = vmatprep.subr.mxu0 0.0
        %1105 = vmatpush1.msra.mxu0 0.0
        %1106 = vmatprep.subr.mxu0 %v991
        %1107 = vmatpush1.msra.mxu0 %v988
        %1108 = vmatprep.subr.mxu0 %v984
        %1109 = vmatpush1.msra.mxu0 %v983
        %1110 = vmatprep.subr.mxu0 %v982
        %1111 = vmatpush1.msra.mxu0 %v981
        %1112 = vmatprep.subr.mxu0 %v980
        %1113 = vmatpush1.msra.mxu0 %v979
        %1114 = vmatprep.subr.mxu0 0.0
        %1115 = vmatpush2.msra.mxu0 0.0
        %1116 = vmatprep.subr.mxu0 0.0
        %1117 = vmatpush2.msra.mxu0 0.0
        %1118 = vmatprep.subr.mxu0 0.0
        %1119 = vmatpush2.msra.mxu0 0.0
        %1120 = vmatprep.subr.mxu0 0.0
        %1121 = vmatpush2.msra.mxu0 0.0
        %1122 = vmatprep.subr.mxu0 0.0
        %1123 = vmatpush2.msra.mxu0 0.0
        %1124 = vmatprep.subr.mxu0 0.0
        %1125 = vmatpush2.msra.mxu0 0.0
        %1126 = vmatprep.subr.mxu0 0.0
        %1127 = vmatpush2.msra.mxu0 0.0
        %1128 = vmatprep.subr.mxu0 0.0
        %1129 = vmatpush2.msra.mxu0 0.0
        %1130 = vmatprep.subr.mxu0 0.0
        %1131 = vmatpush2.msra.mxu0 0.0
        %1132 = vmatprep.subr.mxu0 0.0
        %1133 = vmatpush2.msra.mxu0 0.0
        %1134 = vmatprep.subr.mxu0 0.0
        %1135 = vmatpush2.msra.mxu0 0.0
        %1136 = vmatprep.subr.mxu0 0.0
        %1137 = vmatpush2.msra.mxu0 0.0
        %1138 = vmatprep.subr.mxu0 0.0
        %1139 = vmatpush2.msra.mxu0 0.0
        %1140 = vmatprep.subr.mxu0 0.0
        %1141 = vmatpush2.msra.mxu0 0.0
        %1142 = vmatprep.subr.mxu0 0.0
        %1143 = vmatpush2.msra.mxu0 0.0
        %1144 = vmatprep.subr.mxu0 0.0
        %1145 = vmatpush2.msra.mxu0 0.0
        %1146 = vmatprep.mubr.f32.mxu0 0.0
        %1147 = vmatmul.mubr.f32.gmra.mxu0 %v1078
        %v1148 = vpop.f32.mrf.mxu0
        %v1149 = vadd.f32 0.0, %v1148
        %v1150 = vpop.f32.mrf.mxu0
        %v1151 = vadd.f32 0.0, %v1150
        %1152 = vmatprep.mubr.f32.mxu0 0.0
        %1153 = vmatmul.mubr.f32.gmra.mxu0 %v1080
        %v1154 = vpop.f32.mrf.mxu0
        %v1155 = vadd.f32 0.0, %v1154
        %v1156 = vpop.f32.mrf.mxu0
        %v1157 = vadd.f32 0.0, %v1156
        %1158 = vdwg.mxu0
        %v1159 = vadd.f32 %v974, %v1149
        %v1160 = vadd.f32 %v975, %v1151
        %v1161 = vadd.f32 %v976, %v1155
        %v1162 = vadd.f32 %v977, %v1157
        %s1163 = scalar_lea.vmem %s2, 256
        %v1164 = vld [vmem:[%s1163] sm:$0xff]
        %v1165 = vld [vmem:[%s1163 + $0x8] sm:$0xff]
        %v1166 = vld [vmem:[%s1163 + $0x10] sm:$0xff]
        %v1167 = vld [vmem:[%s1163 + $0x18] sm:$0xff]
        %v1168 = vld [vmem:[%s1163 + $0x20] sm:$0xff]
        %v1169 = vld [vmem:[%s1163 + $0x28] sm:$0xff]
        %v1170 = vld [vmem:[%s1163 + $0x30] sm:$0xf]
        %v1171 = vld [vmem:[%s1163 + $0x38] sm:$0xf]
        %v1173 = vsel %vm459, %v1170, 0
        %v1176 = vsel %vm459, %v1171, 0
        %1178 = vmatprep.subr.mxu0 0.0
        %1179 = vmatpush1.msra.mxu0 0.0
        %1180 = vmatprep.subr.mxu0 0.0
        %1181 = vmatpush1.msra.mxu0 0.0
        %1182 = vmatprep.subr.mxu0 0.0
        %1183 = vmatpush1.msra.mxu0 0.0
        %1184 = vmatprep.subr.mxu0 0.0
        %1185 = vmatpush1.msra.mxu0 0.0
        %1186 = vmatprep.subr.mxu0 0.0
        %1187 = vmatpush1.msra.mxu0 0.0
        %1188 = vmatprep.subr.mxu0 0.0
        %1189 = vmatpush1.msra.mxu0 0.0
        %1190 = vmatprep.subr.mxu0 0.0
        %1191 = vmatpush1.msra.mxu0 0.0
        %1192 = vmatprep.subr.mxu0 0.0
        %1193 = vmatpush1.msra.mxu0 0.0
        %1194 = vmatprep.subr.mxu0 0.0
        %1195 = vmatpush1.msra.mxu0 0.0
        %1196 = vmatprep.subr.mxu0 0.0
        %1197 = vmatpush1.msra.mxu0 0.0
        %1198 = vmatprep.subr.mxu0 0.0
        %1199 = vmatpush1.msra.mxu0 0.0
        %1200 = vmatprep.subr.mxu0 0.0
        %1201 = vmatpush1.msra.mxu0 0.0
        %1202 = vmatprep.subr.mxu0 %v1176
        %1203 = vmatpush1.msra.mxu0 %v1173
        %1204 = vmatprep.subr.mxu0 %v1169
        %1205 = vmatpush1.msra.mxu0 %v1168
        %1206 = vmatprep.subr.mxu0 %v1167
        %1207 = vmatpush1.msra.mxu0 %v1166
        %1208 = vmatprep.subr.mxu0 %v1165
        %1209 = vmatpush1.msra.mxu0 %v1164
        %1210 = vmatprep.subr.mxu0 0.0
        %1211 = vmatpush2.msra.mxu0 0.0
        %1212 = vmatprep.subr.mxu0 0.0
        %1213 = vmatpush2.msra.mxu0 0.0
        %1214 = vmatprep.subr.mxu0 0.0
        %1215 = vmatpush2.msra.mxu0 0.0
        %1216 = vmatprep.subr.mxu0 0.0
        %1217 = vmatpush2.msra.mxu0 0.0
        %1218 = vmatprep.subr.mxu0 0.0
        %1219 = vmatpush2.msra.mxu0 0.0
        %1220 = vmatprep.subr.mxu0 0.0
        %1221 = vmatpush2.msra.mxu0 0.0
        %1222 = vmatprep.subr.mxu0 0.0
        %1223 = vmatpush2.msra.mxu0 0.0
        %1224 = vmatprep.subr.mxu0 0.0
        %1225 = vmatpush2.msra.mxu0 0.0
        %1226 = vmatprep.subr.mxu0 0.0
        %1227 = vmatpush2.msra.mxu0 0.0
        %1228 = vmatprep.subr.mxu0 0.0
        %1229 = vmatpush2.msra.mxu0 0.0
        %1230 = vmatprep.subr.mxu0 0.0
        %1231 = vmatpush2.msra.mxu0 0.0
        %1232 = vmatprep.subr.mxu0 0.0
        %1233 = vmatpush2.msra.mxu0 0.0
        %1234 = vmatprep.subr.mxu0 0.0
        %1235 = vmatpush2.msra.mxu0 0.0
        %1236 = vmatprep.subr.mxu0 0.0
        %1237 = vmatpush2.msra.mxu0 0.0
        %1238 = vmatprep.subr.mxu0 0.0
        %1239 = vmatpush2.msra.mxu0 0.0
        %1240 = vmatprep.subr.mxu0 0.0
        %1241 = vmatpush2.msra.mxu0 0.0
        %1242 = vmatprep.mubr.f32.mxu0 0.0
        %1243 = vmatmul.mubr.f32.gmra.mxu0 %v1078
        %v1244 = vpop.f32.mrf.mxu0
        %v1245 = vadd.f32 0.0, %v1244
        %v1246 = vpop.f32.mrf.mxu0
        %v1247 = vadd.f32 0.0, %v1246
        %1248 = vmatprep.mubr.f32.mxu0 0.0
        %1249 = vmatmul.mubr.f32.gmra.mxu0 %v1080
        %v1250 = vpop.f32.mrf.mxu0
        %v1251 = vadd.f32 0.0, %v1250
        %v1252 = vpop.f32.mrf.mxu0
        %v1253 = vadd.f32 0.0, %v1252
        %1254 = vdwg.mxu0
        %v1255 = vadd.f32 %v1070, %v1245
        %v1256 = vadd.f32 %v1071, %v1247
        %v1257 = vadd.f32 %v1072, %v1251
        %v1258 = vadd.f32 %v1073, %v1253
        %v1259 = vrot.slane %v433, 2
        %v1260 = vrot.slane %v434, 2
        %v1261 = vsel %vm1074, %v1259, %v1260
        %v1262 = vsel %vm452, %v1261, 0
        %v1264 = vsel %vm452, %v1260, 0
        %1266 = vmatprep.subr.mxu0 0.0
        %1267 = vmatpush1.msra.mxu0 0.0
        %1268 = vmatprep.subr.mxu0 0.0
        %1269 = vmatpush1.msra.mxu0 0.0
        %1270 = vmatprep.subr.mxu0 0.0
        %1271 = vmatpush1.msra.mxu0 0.0
        %1272 = vmatprep.subr.mxu0 0.0
        %1273 = vmatpush1.msra.mxu0 0.0
        %1274 = vmatprep.subr.mxu0 0.0
        %1275 = vmatpush1.msra.mxu0 0.0
        %1276 = vmatprep.subr.mxu0 0.0
        %1277 = vmatpush1.msra.mxu0 0.0
        %1278 = vmatprep.subr.mxu0 0.0
        %1279 = vmatpush1.msra.mxu0 0.0
        %1280 = vmatprep.subr.mxu0 0.0
        %1281 = vmatpush1.msra.mxu0 0.0
        %1282 = vmatprep.subr.mxu0 0.0
        %1283 = vmatpush1.msra.mxu0 0.0
        %1284 = vmatprep.subr.mxu0 0.0
        %1285 = vmatpush1.msra.mxu0 0.0
        %1286 = vmatprep.subr.mxu0 0.0
        %1287 = vmatpush1.msra.mxu0 0.0
        %1288 = vmatprep.subr.mxu0 0.0
        %1289 = vmatpush1.msra.mxu0 0.0
        %1290 = vmatprep.subr.mxu0 %v1176
        %1291 = vmatpush1.msra.mxu0 %v1173
        %1292 = vmatprep.subr.mxu0 %v1169
        %1293 = vmatpush1.msra.mxu0 %v1168
        %1294 = vmatprep.subr.mxu0 %v1167
        %1295 = vmatpush1.msra.mxu0 %v1166
        %1296 = vmatprep.subr.mxu0 %v1165
        %1297 = vmatpush1.msra.mxu0 %v1164
        %1298 = vmatprep.subr.mxu0 0.0
        %1299 = vmatpush2.msra.mxu0 0.0
        %1300 = vmatprep.subr.mxu0 0.0
        %1301 = vmatpush2.msra.mxu0 0.0
        %1302 = vmatprep.subr.mxu0 0.0
        %1303 = vmatpush2.msra.mxu0 0.0
        %1304 = vmatprep.subr.mxu0 0.0
        %1305 = vmatpush2.msra.mxu0 0.0
        %1306 = vmatprep.subr.mxu0 0.0
        %1307 = vmatpush2.msra.mxu0 0.0
        %1308 = vmatprep.subr.mxu0 0.0
        %1309 = vmatpush2.msra.mxu0 0.0
        %1310 = vmatprep.subr.mxu0 0.0
        %1311 = vmatpush2.msra.mxu0 0.0
        %1312 = vmatprep.subr.mxu0 0.0
        %1313 = vmatpush2.msra.mxu0 0.0
        %1314 = vmatprep.subr.mxu0 0.0
        %1315 = vmatpush2.msra.mxu0 0.0
        %1316 = vmatprep.subr.mxu0 0.0
        %1317 = vmatpush2.msra.mxu0 0.0
        %1318 = vmatprep.subr.mxu0 0.0
        %1319 = vmatpush2.msra.mxu0 0.0
        %1320 = vmatprep.subr.mxu0 0.0
        %1321 = vmatpush2.msra.mxu0 0.0
        %1322 = vmatprep.subr.mxu0 0.0
        %1323 = vmatpush2.msra.mxu0 0.0
        %1324 = vmatprep.subr.mxu0 0.0
        %1325 = vmatpush2.msra.mxu0 0.0
        %1326 = vmatprep.subr.mxu0 0.0
        %1327 = vmatpush2.msra.mxu0 0.0
        %1328 = vmatprep.subr.mxu0 0.0
        %1329 = vmatpush2.msra.mxu0 0.0
        %1330 = vmatprep.mubr.f32.mxu0 0.0
        %1331 = vmatmul.mubr.f32.gmra.mxu0 %v1262
        %v1332 = vpop.f32.mrf.mxu0
        %v1333 = vadd.f32 0.0, %v1332
        %v1334 = vpop.f32.mrf.mxu0
        %v1335 = vadd.f32 0.0, %v1334
        %1336 = vmatprep.mubr.f32.mxu0 0.0
        %1337 = vmatmul.mubr.f32.gmra.mxu0 %v1264
        %v1338 = vpop.f32.mrf.mxu0
        %v1339 = vadd.f32 0.0, %v1338
        %v1340 = vpop.f32.mrf.mxu0
        %v1341 = vadd.f32 0.0, %v1340
        %1342 = vdwg.mxu0
        %v1343 = vadd.f32 %v1159, %v1333
        %v1344 = vadd.f32 %v1160, %v1335
        %v1345 = vadd.f32 %v1161, %v1339
        %v1346 = vadd.f32 %v1162, %v1341
        %v1347 = vmax.f32 %v1255, %v1343
        %v1348 = vmax.f32 %v1256, %v1344
        %v1349 = vmax.f32 %v1257, %v1345
        %v1350 = vmax.f32 %v1258, %v1346
        %v1351 = vld [vmem:[%s3] sm:$0x3]
        %v1353 = vlaneseq
        %v1354 = vshrl.u32 %v1353, 7
        %v1355 = vsub.s32 0, %v1354
        %v1356 = vrot.slane %v1351, %v1355
        %v1357 = vlaneseq
        %v1358 = vshrl.u32 %v1357, 7
        %v1359 = vsub.s32 1, %v1358
        %v1360 = vrot.slane %v1351, %v1359
        %v1363 = vadd.f32 %v1347, %v1356
        %v1364 = vadd.f32 %v1348, %v1360
        %v1365 = vadd.f32 %v1349, %v1356
        %v1366 = vadd.f32 %v1350, %v1360
        %v1367 = vmax.f32 %v1363, 0.0
        %v1368 = vmax.f32 %v1364, 0.0
        %v1369 = vmax.f32 %v1365, 0.0
        %v1370 = vmax.f32 %v1366, 0.0
        %1373 = vrot.lane.b32.xlu0 %v1367, 120
        %v1374 = vpop.permute.xlu0 %1373
        %1375 = vrot.lane.b32.xlu0 %v1369, 120
        %v1376 = vpop.permute.xlu0 %1375
        %v1379 = vmax.f32 %v1367, %v1374
        %v1380 = vmax.f32 %v1369, %v1376
        %vm1381 = vcmask 64512
        %1382 = vst.msk [vmem:[#allocation2] sm:$0xff] %vm1381, %v1379
        %vm1383 = vcmask 60416
        %1384 = vst.msk [vmem:[#allocation2 + $0x8] sm:$0xf] %vm1383, %v1380
        %1387 = vrot.lane.b32.xlu0 %v1379, 112
        %v1388 = vpop.permute.xlu0 %1387
        %1389 = vrot.lane.b32.xlu0 %v1380, 112
        %v1390 = vpop.permute.xlu0 %1389
        %s1393 = scalar_lea.vmem [#allocation2], 16
        %1394 = vst.msk [vmem:[%s1393] sm:$0xff] %vm1381, %v1388
        %1395 = vst.msk [vmem:[%s1393 + $0x8] sm:$0xf] %vm1383, %v1390
        %1396 = vrot.lane.b32.xlu0 %v1379, 96
        %v1397 = vpop.permute.xlu0 %1396
        %1398 = vrot.lane.b32.xlu0 %v1380, 96
        %v1399 = vpop.permute.xlu0 %1398
        %s1402 = scalar_lea.vmem [#allocation2], 32
        %1403 = vst.msk [vmem:[%s1402] sm:$0xff] %vm1381, %v1397
        %1404 = vst.msk [vmem:[%s1402 + $0x8] sm:$0xf] %vm1383, %v1399
        %1405 = vrot.lane.b32.xlu0 %v1379, 80
        %v1406 = vpop.permute.xlu0 %1405
        %1407 = vrot.lane.b32.xlu0 %v1380, 80
        %v1408 = vpop.permute.xlu0 %1407
        %s1411 = scalar_lea.vmem [#allocation2], 48
        %1412 = vst.msk [vmem:[%s1411] sm:$0xff] %vm1381, %v1406
        %1413 = vst.msk [vmem:[%s1411 + $0x8] sm:$0xf] %vm1383, %v1408
        %1414 = vrot.lane.b32.xlu0 %v1379, 64
        %v1415 = vpop.permute.xlu0 %1414
        %1416 = vrot.lane.b32.xlu0 %v1380, 64
        %v1417 = vpop.permute.xlu0 %1416
        %s1420 = scalar_lea.vmem [#allocation2], 64
        %1421 = vst.msk [vmem:[%s1420] sm:$0xff] %vm1381, %v1415
        %1422 = vst.msk [vmem:[%s1420 + $0x8] sm:$0xf] %vm1383, %v1417
        %1423 = vrot.lane.b32.xlu0 %v1379, 48
        %v1424 = vpop.permute.xlu0 %1423
        %1425 = vrot.lane.b32.xlu0 %v1380, 48
        %v1426 = vpop.permute.xlu0 %1425
        %s1429 = scalar_lea.vmem [#allocation2], 80
        %1430 = vst.msk [vmem:[%s1429] sm:$0xff] %vm1381, %v1424
        %1431 = vst.msk [vmem:[%s1429 + $0x8] sm:$0xf] %vm1383, %v1426
        %1432 = vrot.lane.b32.xlu0 %v1379, 32
        %v1433 = vpop.permute.xlu0 %1432
        %1434 = vrot.lane.b32.xlu0 %v1380, 32
        %v1435 = vpop.permute.xlu0 %1434
        %s1438 = scalar_lea.vmem [#allocation2], 96
        %1439 = vst.msk [vmem:[%s1438] sm:$0xff] %vm1381, %v1433
        %1440 = vst.msk [vmem:[%s1438 + $0x8] sm:$0xf] %vm1383, %v1435
        %1441 = vrot.lane.b32.xlu0 %v1379, 16
        %v1442 = vpop.permute.xlu0 %1441
        %1443 = vrot.lane.b32.xlu0 %v1380, 16
        %v1444 = vpop.permute.xlu0 %1443
        %s1447 = scalar_lea.vmem [#allocation2], 112
        %1448 = vst.msk [vmem:[%s1447] sm:$0xff] %vm1381, %v1442
        %1449 = vst.msk [vmem:[%s1447 + $0x8] sm:$0xf] %vm1383, %v1444
        %1452 = vrot.lane.b32.xlu0 %v1368, 120
        %v1453 = vpop.permute.xlu0 %1452
        %1454 = vrot.lane.b32.xlu0 %v1370, 120
        %v1455 = vpop.permute.xlu0 %1454
        %v1458 = vmax.f32 %v1368, %v1453
        %v1459 = vmax.f32 %v1370, %v1455
        %s1460 = scalar_lea.vmem [#allocation2], 128
        %1461 = vst.msk [vmem:[%s1460] sm:$0xff] %vm1381, %v1458
        %1462 = vst.msk [vmem:[%s1460 + $0x8] sm:$0xf] %vm1383, %v1459
        %1465 = vrot.lane.b32.xlu0 %v1458, 112
        %v1466 = vpop.permute.xlu0 %1465
        %1467 = vrot.lane.b32.xlu0 %v1459, 112
        %v1468 = vpop.permute.xlu0 %1467
        %s1471 = scalar_lea.vmem [#allocation2], 144
        %1472 = vst.msk [vmem:[%s1471] sm:$0xff] %vm1381, %v1466
        %1473 = vst.msk [vmem:[%s1471 + $0x8] sm:$0xf] %vm1383, %v1468
        %1474 = vrot.lane.b32.xlu0 %v1458, 96
        %v1475 = vpop.permute.xlu0 %1474
        %1476 = vrot.lane.b32.xlu0 %v1459, 96
        %v1477 = vpop.permute.xlu0 %1476
        %s1480 = scalar_lea.vmem [#allocation2], 160
        %1481 = vst.msk [vmem:[%s1480] sm:$0xff] %vm1381, %v1475
        %1482 = vst.msk [vmem:[%s1480 + $0x8] sm:$0xf] %vm1383, %v1477
        %1483 = vrot.lane.b32.xlu0 %v1458, 80
        %v1484 = vpop.permute.xlu0 %1483
        %1485 = vrot.lane.b32.xlu0 %v1459, 80
        %v1486 = vpop.permute.xlu0 %1485
        %s1489 = scalar_lea.vmem [#allocation2], 176
        %1490 = vst.msk [vmem:[%s1489] sm:$0xff] %vm1381, %v1484
        %1491 = vst.msk [vmem:[%s1489 + $0x8] sm:$0xf] %vm1383, %v1486
        %v1492 = vld [vmem:[#allocation2] sm:$0xff]
        %v1493 = vld [vmem:[#allocation2 + $0x8] sm:$0xf]
        %v1494 = vld [vmem:[#allocation2 + $0x10] sm:$0xff]
        %v1495 = vld [vmem:[#allocation2 + $0x18] sm:$0xf]
        %v1496 = vld [vmem:[#allocation2 + $0x20] sm:$0xff]
        %v1497 = vld [vmem:[#allocation2 + $0x28] sm:$0xf]
        %v1498 = vld [vmem:[#allocation2 + $0x30] sm:$0xff]
        %v1499 = vld [vmem:[#allocation2 + $0x38] sm:$0xf]
        %v1500 = vld [vmem:[#allocation2 + $0x40] sm:$0xff]
        %v1501 = vld [vmem:[#allocation2 + $0x48] sm:$0xf]
        %v1502 = vld [vmem:[#allocation2 + $0x50] sm:$0xff]
        %v1503 = vld [vmem:[#allocation2 + $0x58] sm:$0xf]
        %v1504 = vld [vmem:[#allocation2 + $0x60] sm:$0xff]
        %v1505 = vld [vmem:[#allocation2 + $0x68] sm:$0xf]
        %v1506 = vld [vmem:[#allocation2 + $0x70] sm:$0xff]
        %v1507 = vld [vmem:[#allocation2 + $0x78] sm:$0xf]
        %v1508 = vld [vmem:[#allocation2 + $0x80] sm:$0xff]
        %v1509 = vld [vmem:[#allocation2 + $0x88] sm:$0xf]
        %v1510 = vld [vmem:[#allocation2 + $0x90] sm:$0xff]
        %v1511 = vld [vmem:[#allocation2 + $0x98] sm:$0xf]
        %v1512 = vld [vmem:[#allocation2 + $0xa0] sm:$0xff]
        %v1513 = vld [vmem:[#allocation2 + $0xa8] sm:$0xf]
        %v1514 = vld [vmem:[#allocation2 + $0xb0] sm:$0xff]
        %v1515 = vld [vmem:[#allocation2 + $0xb8] sm:$0xf]
        %v1516 = vld [vmem:[%s4] sm:$0xff]
        %s1517 = scalar_lea.vmem %s4, 8
        %v1518 = vld [vmem:[%s1517] sm:$0xff]
        %v1520 = vsel %vm1381, %v1494, 0
        %v1523 = vsel %vm1381, %v1496, 0
        %v1526 = vsel %vm1381, %v1498, 0
        %v1529 = vsel %vm1381, %v1500, 0
        %v1532 = vsel %vm1381, %v1502, 0
        %v1535 = vsel %vm1381, %v1504, 0
        %v1538 = vsel %vm1381, %v1506, 0
        %v1541 = vsel %vm1381, %v1508, 0
        %1543 = vmatprep.subr.mxu0 0.0
        %1544 = vmatpush1.msra.mxu0 0.0
        %1545 = vmatprep.subr.mxu0 0.0
        %1546 = vmatpush1.msra.mxu0 0.0
        %1547 = vmatprep.subr.mxu0 0.0
        %1548 = vmatpush1.msra.mxu0 0.0
        %1549 = vmatprep.subr.mxu0 0.0
        %1550 = vmatpush1.msra.mxu0 0.0
        %1551 = vmatprep.subr.mxu0 0.0
        %1552 = vmatpush1.msra.mxu0 0.0
        %1553 = vmatprep.subr.mxu0 0.0
        %1554 = vmatpush1.msra.mxu0 0.0
        %1555 = vmatprep.subr.mxu0 0.0
        %1556 = vmatpush1.msra.mxu0 0.0
        %1557 = vmatprep.subr.mxu0 0.0
        %1558 = vmatpush1.msra.mxu0 0.0
        %1559 = vmatprep.subr.mxu0 0.0
        %1560 = vmatpush1.msra.mxu0 0.0
        %1561 = vmatprep.subr.mxu0 0.0
        %1562 = vmatpush1.msra.mxu0 0.0
        %1563 = vmatprep.subr.mxu0 0.0
        %1564 = vmatpush1.msra.mxu0 0.0
        %1565 = vmatprep.subr.mxu0 0.0
        %1566 = vmatpush1.msra.mxu0 0.0
        %1567 = vmatprep.subr.mxu0 0.0
        %1568 = vmatpush1.msra.mxu0 0.0
        %1569 = vmatprep.subr.mxu0 0.0
        %1570 = vmatpush1.msra.mxu0 0.0
        %1571 = vmatprep.subr.mxu0 0.0
        %1572 = vmatpush1.msra.mxu0 0.0
        %1573 = vmatprep.subr.mxu0 0.0
        %1574 = vmatpush1.msra.mxu0 %v1518
        %1575 = vmatprep.subr.mxu0 0.0
        %1576 = vmatpush2.msra.mxu0 0.0
        %1577 = vmatprep.subr.mxu0 0.0
        %1578 = vmatpush2.msra.mxu0 0.0
        %1579 = vmatprep.subr.mxu0 0.0
        %1580 = vmatpush2.msra.mxu0 0.0
        %1581 = vmatprep.subr.mxu0 0.0
        %1582 = vmatpush2.msra.mxu0 0.0
        %1583 = vmatprep.subr.mxu0 0.0
        %1584 = vmatpush2.msra.mxu0 0.0
        %1585 = vmatprep.subr.mxu0 0.0
        %1586 = vmatpush2.msra.mxu0 0.0
        %1587 = vmatprep.subr.mxu0 0.0
        %1588 = vmatpush2.msra.mxu0 0.0
        %1589 = vmatprep.subr.mxu0 0.0
        %1590 = vmatpush2.msra.mxu0 0.0
        %1591 = vmatprep.subr.mxu0 0.0
        %1592 = vmatpush2.msra.mxu0 0.0
        %1593 = vmatprep.subr.mxu0 0.0
        %1594 = vmatpush2.msra.mxu0 0.0
        %1595 = vmatprep.subr.mxu0 0.0
        %1596 = vmatpush2.msra.mxu0 0.0
        %1597 = vmatprep.subr.mxu0 0.0
        %1598 = vmatpush2.msra.mxu0 0.0
        %1599 = vmatprep.subr.mxu0 0.0
        %1600 = vmatpush2.msra.mxu0 0.0
        %1601 = vmatprep.subr.mxu0 0.0
        %1602 = vmatpush2.msra.mxu0 0.0
        %1603 = vmatprep.subr.mxu0 0.0
        %1604 = vmatpush2.msra.mxu0 0.0
        %1605 = vmatprep.subr.mxu0 0.0
        %1606 = vmatpush2.msra.mxu0 0.0
        %1607 = vmatprep.mubr.f32.mxu0 0.0
        %1608 = vmatmul.mubr.f32.gmra.mxu0 %v1520
        %v1609 = vpop.f32.mrf.mxu0
        %v1610 = vadd.f32 0.0, %v1609
        %v1611 = vpop.f32.mrf.mxu0
        %1612 = vmatprep.mubr.f32.mxu0 0.0
        %1613 = vmatmul.mubr.f32.gmra.mxu0 %v1523
        %v1614 = vpop.f32.mrf.mxu0
        %v1615 = vadd.f32 0.0, %v1614
        %v1616 = vpop.f32.mrf.mxu0
        %1617 = vmatprep.mubr.f32.mxu0 0.0
        %1618 = vmatmul.mubr.f32.gmra.mxu0 %v1526
        %v1619 = vpop.f32.mrf.mxu0
        %v1620 = vadd.f32 0.0, %v1619
        %v1621 = vpop.f32.mrf.mxu0
        %1622 = vmatprep.mubr.f32.mxu0 0.0
        %1623 = vmatmul.mubr.f32.gmra.mxu0 %v1529
        %v1624 = vpop.f32.mrf.mxu0
        %v1625 = vadd.f32 0.0, %v1624
        %v1626 = vpop.f32.mrf.mxu0
        %1627 = vmatprep.mubr.f32.mxu0 0.0
        %1628 = vmatmul.mubr.f32.gmra.mxu0 %v1532
        %v1629 = vpop.f32.mrf.mxu0
        %v1630 = vadd.f32 0.0, %v1629
        %v1631 = vpop.f32.mrf.mxu0
        %1632 = vmatprep.mubr.f32.mxu0 0.0
        %1633 = vmatmul.mubr.f32.gmra.mxu0 %v1535
        %v1634 = vpop.f32.mrf.mxu0
        %v1635 = vadd.f32 0.0, %v1634
        %v1636 = vpop.f32.mrf.mxu0
        %1637 = vmatprep.mubr.f32.mxu0 0.0
        %1638 = vmatmul.mubr.f32.gmra.mxu0 %v1538
        %v1639 = vpop.f32.mrf.mxu0
        %v1640 = vadd.f32 0.0, %v1639
        %v1641 = vpop.f32.mrf.mxu0
        %1642 = vmatprep.mubr.f32.mxu0 0.0
        %1643 = vmatmul.mubr.f32.gmra.mxu0 %v1541
        %v1644 = vpop.f32.mrf.mxu0
        %v1645 = vadd.f32 0.0, %v1644
        %v1646 = vpop.f32.mrf.mxu0
        %1647 = vdwg.mxu0
        %v1649 = vsel %vm1381, %v1492, 0
        %1651 = vmatprep.subr.mxu0 0.0
        %1652 = vmatpush1.msra.mxu0 0.0
        %1653 = vmatprep.subr.mxu0 0.0
        %1654 = vmatpush1.msra.mxu0 0.0
        %1655 = vmatprep.subr.mxu0 0.0
        %1656 = vmatpush1.msra.mxu0 0.0
        %1657 = vmatprep.subr.mxu0 0.0
        %1658 = vmatpush1.msra.mxu0 0.0
        %1659 = vmatprep.subr.mxu0 0.0
        %1660 = vmatpush1.msra.mxu0 0.0
        %1661 = vmatprep.subr.mxu0 0.0
        %1662 = vmatpush1.msra.mxu0 0.0
        %1663 = vmatprep.subr.mxu0 0.0
        %1664 = vmatpush1.msra.mxu0 0.0
        %1665 = vmatprep.subr.mxu0 0.0
        %1666 = vmatpush1.msra.mxu0 0.0
        %1667 = vmatprep.subr.mxu0 0.0
        %1668 = vmatpush1.msra.mxu0 0.0
        %1669 = vmatprep.subr.mxu0 0.0
        %1670 = vmatpush1.msra.mxu0 0.0
        %1671 = vmatprep.subr.mxu0 0.0
        %1672 = vmatpush1.msra.mxu0 0.0
        %1673 = vmatprep.subr.mxu0 0.0
        %1674 = vmatpush1.msra.mxu0 0.0
        %1675 = vmatprep.subr.mxu0 0.0
        %1676 = vmatpush1.msra.mxu0 0.0
        %1677 = vmatprep.subr.mxu0 0.0
        %1678 = vmatpush1.msra.mxu0 0.0
        %1679 = vmatprep.subr.mxu0 0.0
        %1680 = vmatpush1.msra.mxu0 0.0
        %1681 = vmatprep.subr.mxu0 0.0
        %1682 = vmatpush1.msra.mxu0 %v1516
        %1683 = vmatprep.subr.mxu0 0.0
        %1684 = vmatpush2.msra.mxu0 0.0
        %1685 = vmatprep.subr.mxu0 0.0
        %1686 = vmatpush2.msra.mxu0 0.0
        %1687 = vmatprep.subr.mxu0 0.0
        %1688 = vmatpush2.msra.mxu0 0.0
        %1689 = vmatprep.subr.mxu0 0.0
        %1690 = vmatpush2.msra.mxu0 0.0
        %1691 = vmatprep.subr.mxu0 0.0
        %1692 = vmatpush2.msra.mxu0 0.0
        %1693 = vmatprep.subr.mxu0 0.0
        %1694 = vmatpush2.msra.mxu0 0.0
        %1695 = vmatprep.subr.mxu0 0.0
        %1696 = vmatpush2.msra.mxu0 0.0
        %1697 = vmatprep.subr.mxu0 0.0
        %1698 = vmatpush2.msra.mxu0 0.0
        %1699 = vmatprep.subr.mxu0 0.0
        %1700 = vmatpush2.msra.mxu0 0.0
        %1701 = vmatprep.subr.mxu0 0.0
        %1702 = vmatpush2.msra.mxu0 0.0
        %1703 = vmatprep.subr.mxu0 0.0
        %1704 = vmatpush2.msra.mxu0 0.0
        %1705 = vmatprep.subr.mxu0 0.0
        %1706 = vmatpush2.msra.mxu0 0.0
        %1707 = vmatprep.subr.mxu0 0.0
        %1708 = vmatpush2.msra.mxu0 0.0
        %1709 = vmatprep.subr.mxu0 0.0
        %1710 = vmatpush2.msra.mxu0 0.0
        %1711 = vmatprep.subr.mxu0 0.0
        %1712 = vmatpush2.msra.mxu0 0.0
        %1713 = vmatprep.subr.mxu0 0.0
        %1714 = vmatpush2.msra.mxu0 0.0
        %1715 = vmatprep.mubr.f32.mxu0 0.0
        %1716 = vmatmul.mubr.f32.gmra.mxu0 %v1649
        %v1717 = vpop.f32.mrf.mxu0
        %v1718 = vadd.f32 %v1610, %v1717
        %v1719 = vpop.f32.mrf.mxu0
        %1720 = vmatprep.mubr.f32.mxu0 0.0
        %1721 = vmatmul.mubr.f32.gmra.mxu0 %v1520
        %v1722 = vpop.f32.mrf.mxu0
        %v1723 = vadd.f32 %v1615, %v1722
        %v1724 = vpop.f32.mrf.mxu0
        %1725 = vmatprep.mubr.f32.mxu0 0.0
        %1726 = vmatmul.mubr.f32.gmra.mxu0 %v1523
        %v1727 = vpop.f32.mrf.mxu0
        %v1728 = vadd.f32 %v1620, %v1727
        %v1729 = vpop.f32.mrf.mxu0
        %1730 = vmatprep.mubr.f32.mxu0 0.0
        %1731 = vmatmul.mubr.f32.gmra.mxu0 %v1526
        %v1732 = vpop.f32.mrf.mxu0
        %v1733 = vadd.f32 %v1625, %v1732
        %v1734 = vpop.f32.mrf.mxu0
        %1735 = vmatprep.mubr.f32.mxu0 0.0
        %1736 = vmatmul.mubr.f32.gmra.mxu0 %v1529
        %v1737 = vpop.f32.mrf.mxu0
        %v1738 = vadd.f32 %v1630, %v1737
        %v1739 = vpop.f32.mrf.mxu0
        %1740 = vmatprep.mubr.f32.mxu0 0.0
        %1741 = vmatmul.mubr.f32.gmra.mxu0 %v1532
        %v1742 = vpop.f32.mrf.mxu0
        %v1743 = vadd.f32 %v1635, %v1742
        %v1744 = vpop.f32.mrf.mxu0
        %1745 = vmatprep.mubr.f32.mxu0 0.0
        %1746 = vmatmul.mubr.f32.gmra.mxu0 %v1535
        %v1747 = vpop.f32.mrf.mxu0
        %v1748 = vadd.f32 %v1640, %v1747
        %v1749 = vpop.f32.mrf.mxu0
        %1750 = vmatprep.mubr.f32.mxu0 0.0
        %1751 = vmatmul.mubr.f32.gmra.mxu0 %v1538
        %v1752 = vpop.f32.mrf.mxu0
        %v1753 = vadd.f32 %v1645, %v1752
        %v1754 = vpop.f32.mrf.mxu0
        %1755 = vdwg.mxu0
        %s1756 = scalar_lea.vmem %s4, 16
        %v1757 = vld [vmem:[%s1756] sm:$0xff]
        %v1759 = vsel %vm1381, %v1510, 0
        %1761 = vmatprep.subr.mxu0 0.0
        %1762 = vmatpush1.msra.mxu0 0.0
        %1763 = vmatprep.subr.mxu0 0.0
        %1764 = vmatpush1.msra.mxu0 0.0
        %1765 = vmatprep.subr.mxu0 0.0
        %1766 = vmatpush1.msra.mxu0 0.0
        %1767 = vmatprep.subr.mxu0 0.0
        %1768 = vmatpush1.msra.mxu0 0.0
        %1769 = vmatprep.subr.mxu0 0.0
        %1770 = vmatpush1.msra.mxu0 0.0
        %1771 = vmatprep.subr.mxu0 0.0
        %1772 = vmatpush1.msra.mxu0 0.0
        %1773 = vmatprep.subr.mxu0 0.0
        %1774 = vmatpush1.msra.mxu0 0.0
        %1775 = vmatprep.subr.mxu0 0.0
        %1776 = vmatpush1.msra.mxu0 0.0
        %1777 = vmatprep.subr.mxu0 0.0
        %1778 = vmatpush1.msra.mxu0 0.0
        %1779 = vmatprep.subr.mxu0 0.0
        %1780 = vmatpush1.msra.mxu0 0.0
        %1781 = vmatprep.subr.mxu0 0.0
        %1782 = vmatpush1.msra.mxu0 0.0
        %1783 = vmatprep.subr.mxu0 0.0
        %1784 = vmatpush1.msra.mxu0 0.0
        %1785 = vmatprep.subr.mxu0 0.0
        %1786 = vmatpush1.msra.mxu0 0.0
        %1787 = vmatprep.subr.mxu0 0.0
        %1788 = vmatpush1.msra.mxu0 0.0
        %1789 = vmatprep.subr.mxu0 0.0
        %1790 = vmatpush1.msra.mxu0 0.0
        %1791 = vmatprep.subr.mxu0 0.0
        %1792 = vmatpush1.msra.mxu0 %v1757
        %1793 = vmatprep.subr.mxu0 0.0
        %1794 = vmatpush2.msra.mxu0 0.0
        %1795 = vmatprep.subr.mxu0 0.0
        %1796 = vmatpush2.msra.mxu0 0.0
        %1797 = vmatprep.subr.mxu0 0.0
        %1798 = vmatpush2.msra.mxu0 0.0
        %1799 = vmatprep.subr.mxu0 0.0
        %1800 = vmatpush2.msra.mxu0 0.0
        %1801 = vmatprep.subr.mxu0 0.0
        %1802 = vmatpush2.msra.mxu0 0.0
        %1803 = vmatprep.subr.mxu0 0.0
        %1804 = vmatpush2.msra.mxu0 0.0
        %1805 = vmatprep.subr.mxu0 0.0
        %1806 = vmatpush2.msra.mxu0 0.0
        %1807 = vmatprep.subr.mxu0 0.0
        %1808 = vmatpush2.msra.mxu0 0.0
        %1809 = vmatprep.subr.mxu0 0.0
        %1810 = vmatpush2.msra.mxu0 0.0
        %1811 = vmatprep.subr.mxu0 0.0
        %1812 = vmatpush2.msra.mxu0 0.0
        %1813 = vmatprep.subr.mxu0 0.0
        %1814 = vmatpush2.msra.mxu0 0.0
        %1815 = vmatprep.subr.mxu0 0.0
        %1816 = vmatpush2.msra.mxu0 0.0
        %1817 = vmatprep.subr.mxu0 0.0
        %1818 = vmatpush2.msra.mxu0 0.0
        %1819 = vmatprep.subr.mxu0 0.0
        %1820 = vmatpush2.msra.mxu0 0.0
        %1821 = vmatprep.subr.mxu0 0.0
        %1822 = vmatpush2.msra.mxu0 0.0
        %1823 = vmatprep.subr.mxu0 0.0
        %1824 = vmatpush2.msra.mxu0 0.0
        %1825 = vmatprep.mubr.f32.mxu0 0.0
        %1826 = vmatmul.mubr.f32.gmra.mxu0 %v1523
        %v1827 = vpop.f32.mrf.mxu0
        %v1828 = vadd.f32 0.0, %v1827
        %v1829 = vpop.f32.mrf.mxu0
        %1830 = vmatprep.mubr.f32.mxu0 0.0
        %1831 = vmatmul.mubr.f32.gmra.mxu0 %v1526
        %v1832 = vpop.f32.mrf.mxu0
        %v1833 = vadd.f32 0.0, %v1832
        %v1834 = vpop.f32.mrf.mxu0
        %1835 = vmatprep.mubr.f32.mxu0 0.0
        %1836 = vmatmul.mubr.f32.gmra.mxu0 %v1529
        %v1837 = vpop.f32.mrf.mxu0
        %v1838 = vadd.f32 0.0, %v1837
        %v1839 = vpop.f32.mrf.mxu0
        %1840 = vmatprep.mubr.f32.mxu0 0.0
        %1841 = vmatmul.mubr.f32.gmra.mxu0 %v1532
        %v1842 = vpop.f32.mrf.mxu0
        %v1843 = vadd.f32 0.0, %v1842
        %v1844 = vpop.f32.mrf.mxu0
        %1845 = vmatprep.mubr.f32.mxu0 0.0
        %1846 = vmatmul.mubr.f32.gmra.mxu0 %v1535
        %v1847 = vpop.f32.mrf.mxu0
        %v1848 = vadd.f32 0.0, %v1847
        %v1849 = vpop.f32.mrf.mxu0
        %1850 = vmatprep.mubr.f32.mxu0 0.0
        %1851 = vmatmul.mubr.f32.gmra.mxu0 %v1538
        %v1852 = vpop.f32.mrf.mxu0
        %v1853 = vadd.f32 0.0, %v1852
        %v1854 = vpop.f32.mrf.mxu0
        %1855 = vmatprep.mubr.f32.mxu0 0.0
        %1856 = vmatmul.mubr.f32.gmra.mxu0 %v1541
        %v1857 = vpop.f32.mrf.mxu0
        %v1858 = vadd.f32 0.0, %v1857
        %v1859 = vpop.f32.mrf.mxu0
        %1860 = vmatprep.mubr.f32.mxu0 0.0
        %1861 = vmatmul.mubr.f32.gmra.mxu0 %v1759
        %v1862 = vpop.f32.mrf.mxu0
        %v1863 = vadd.f32 0.0, %v1862
        %v1864 = vpop.f32.mrf.mxu0
        %1865 = vdwg.mxu0
        %v1866 = vadd.f32 %v1718, %v1828
        %v1867 = vadd.f32 %v1723, %v1833
        %v1868 = vadd.f32 %v1728, %v1838
        %v1869 = vadd.f32 %v1733, %v1843
        %v1870 = vadd.f32 %v1738, %v1848
        %v1871 = vadd.f32 %v1743, %v1853
        %v1872 = vadd.f32 %v1748, %v1858
        %v1873 = vadd.f32 %v1753, %v1863
        %s1874 = scalar_lea.vmem %s4, 24
        %v1875 = vld [vmem:[%s1874] sm:$0xff]
        %v1877 = vsel %vm1381, %v1512, 0
        %1879 = vmatprep.subr.mxu0 0.0
        %1880 = vmatpush1.msra.mxu0 0.0
        %1881 = vmatprep.subr.mxu0 0.0
        %1882 = vmatpush1.msra.mxu0 0.0
        %1883 = vmatprep.subr.mxu0 0.0
        %1884 = vmatpush1.msra.mxu0 0.0
        %1885 = vmatprep.subr.mxu0 0.0
        %1886 = vmatpush1.msra.mxu0 0.0
        %1887 = vmatprep.subr.mxu0 0.0
        %1888 = vmatpush1.msra.mxu0 0.0
        %1889 = vmatprep.subr.mxu0 0.0
        %1890 = vmatpush1.msra.mxu0 0.0
        %1891 = vmatprep.subr.mxu0 0.0
        %1892 = vmatpush1.msra.mxu0 0.0
        %1893 = vmatprep.subr.mxu0 0.0
        %1894 = vmatpush1.msra.mxu0 0.0
        %1895 = vmatprep.subr.mxu0 0.0
        %1896 = vmatpush1.msra.mxu0 0.0
        %1897 = vmatprep.subr.mxu0 0.0
        %1898 = vmatpush1.msra.mxu0 0.0
        %1899 = vmatprep.subr.mxu0 0.0
        %1900 = vmatpush1.msra.mxu0 0.0
        %1901 = vmatprep.subr.mxu0 0.0
        %1902 = vmatpush1.msra.mxu0 0.0
        %1903 = vmatprep.subr.mxu0 0.0
        %1904 = vmatpush1.msra.mxu0 0.0
        %1905 = vmatprep.subr.mxu0 0.0
        %1906 = vmatpush1.msra.mxu0 0.0
        %1907 = vmatprep.subr.mxu0 0.0
        %1908 = vmatpush1.msra.mxu0 0.0
        %1909 = vmatprep.subr.mxu0 0.0
        %1910 = vmatpush1.msra.mxu0 %v1875
        %1911 = vmatprep.subr.mxu0 0.0
        %1912 = vmatpush2.msra.mxu0 0.0
        %1913 = vmatprep.subr.mxu0 0.0
        %1914 = vmatpush2.msra.mxu0 0.0
        %1915 = vmatprep.subr.mxu0 0.0
        %1916 = vmatpush2.msra.mxu0 0.0
        %1917 = vmatprep.subr.mxu0 0.0
        %1918 = vmatpush2.msra.mxu0 0.0
        %1919 = vmatprep.subr.mxu0 0.0
        %1920 = vmatpush2.msra.mxu0 0.0
        %1921 = vmatprep.subr.mxu0 0.0
        %1922 = vmatpush2.msra.mxu0 0.0
        %1923 = vmatprep.subr.mxu0 0.0
        %1924 = vmatpush2.msra.mxu0 0.0
        %1925 = vmatprep.subr.mxu0 0.0
        %1926 = vmatpush2.msra.mxu0 0.0
        %1927 = vmatprep.subr.mxu0 0.0
        %1928 = vmatpush2.msra.mxu0 0.0
        %1929 = vmatprep.subr.mxu0 0.0
        %1930 = vmatpush2.msra.mxu0 0.0
        %1931 = vmatprep.subr.mxu0 0.0
        %1932 = vmatpush2.msra.mxu0 0.0
        %1933 = vmatprep.subr.mxu0 0.0
        %1934 = vmatpush2.msra.mxu0 0.0
        %1935 = vmatprep.subr.mxu0 0.0
        %1936 = vmatpush2.msra.mxu0 0.0
        %1937 = vmatprep.subr.mxu0 0.0
        %1938 = vmatpush2.msra.mxu0 0.0
        %1939 = vmatprep.subr.mxu0 0.0
        %1940 = vmatpush2.msra.mxu0 0.0
        %1941 = vmatprep.subr.mxu0 0.0
        %1942 = vmatpush2.msra.mxu0 0.0
        %1943 = vmatprep.mubr.f32.mxu0 0.0
        %1944 = vmatmul.mubr.f32.gmra.mxu0 %v1526
        %v1945 = vpop.f32.mrf.mxu0
        %v1946 = vadd.f32 0.0, %v1945
        %v1947 = vpop.f32.mrf.mxu0
        %1948 = vmatprep.mubr.f32.mxu0 0.0
        %1949 = vmatmul.mubr.f32.gmra.mxu0 %v1529
        %v1950 = vpop.f32.mrf.mxu0
        %v1951 = vadd.f32 0.0, %v1950
        %v1952 = vpop.f32.mrf.mxu0
        %1953 = vmatprep.mubr.f32.mxu0 0.0
        %1954 = vmatmul.mubr.f32.gmra.mxu0 %v1532
        %v1955 = vpop.f32.mrf.mxu0
        %v1956 = vadd.f32 0.0, %v1955
        %v1957 = vpop.f32.mrf.mxu0
        %1958 = vmatprep.mubr.f32.mxu0 0.0
        %1959 = vmatmul.mubr.f32.gmra.mxu0 %v1535
        %v1960 = vpop.f32.mrf.mxu0
        %v1961 = vadd.f32 0.0, %v1960
        %v1962 = vpop.f32.mrf.mxu0
        %1963 = vmatprep.mubr.f32.mxu0 0.0
        %1964 = vmatmul.mubr.f32.gmra.mxu0 %v1538
        %v1965 = vpop.f32.mrf.mxu0
        %v1966 = vadd.f32 0.0, %v1965
        %v1967 = vpop.f32.mrf.mxu0
        %1968 = vmatprep.mubr.f32.mxu0 0.0
        %1969 = vmatmul.mubr.f32.gmra.mxu0 %v1541
        %v1970 = vpop.f32.mrf.mxu0
        %v1971 = vadd.f32 0.0, %v1970
        %v1972 = vpop.f32.mrf.mxu0
        %1973 = vmatprep.mubr.f32.mxu0 0.0
        %1974 = vmatmul.mubr.f32.gmra.mxu0 %v1759
        %v1975 = vpop.f32.mrf.mxu0
        %v1976 = vadd.f32 0.0, %v1975
        %v1977 = vpop.f32.mrf.mxu0
        %1978 = vmatprep.mubr.f32.mxu0 0.0
        %1979 = vmatmul.mubr.f32.gmra.mxu0 %v1877
        %v1980 = vpop.f32.mrf.mxu0
        %v1981 = vadd.f32 0.0, %v1980
        %v1982 = vpop.f32.mrf.mxu0
        %1983 = vdwg.mxu0
        %v1984 = vadd.f32 %v1866, %v1946
        %v1985 = vadd.f32 %v1867, %v1951
        %v1986 = vadd.f32 %v1868, %v1956
        %v1987 = vadd.f32 %v1869, %v1961
        %v1988 = vadd.f32 %v1870, %v1966
        %v1989 = vadd.f32 %v1871, %v1971
        %v1990 = vadd.f32 %v1872, %v1976
        %v1991 = vadd.f32 %v1873, %v1981
        %s1992 = scalar_lea.vmem %s4, 32
        %v1993 = vld [vmem:[%s1992] sm:$0xff]
        %v1995 = vsel %vm1381, %v1514, 0
        %1997 = vmatprep.subr.mxu0 0.0
        %1998 = vmatpush1.msra.mxu0 0.0
        %1999 = vmatprep.subr.mxu0 0.0
        %2000 = vmatpush1.msra.mxu0 0.0
        %2001 = vmatprep.subr.mxu0 0.0
        %2002 = vmatpush1.msra.mxu0 0.0
        %2003 = vmatprep.subr.mxu0 0.0
        %2004 = vmatpush1.msra.mxu0 0.0
        %2005 = vmatprep.subr.mxu0 0.0
        %2006 = vmatpush1.msra.mxu0 0.0
        %2007 = vmatprep.subr.mxu0 0.0
        %2008 = vmatpush1.msra.mxu0 0.0
        %2009 = vmatprep.subr.mxu0 0.0
        %2010 = vmatpush1.msra.mxu0 0.0
        %2011 = vmatprep.subr.mxu0 0.0
        %2012 = vmatpush1.msra.mxu0 0.0
        %2013 = vmatprep.subr.mxu0 0.0
        %2014 = vmatpush1.msra.mxu0 0.0
        %2015 = vmatprep.subr.mxu0 0.0
        %2016 = vmatpush1.msra.mxu0 0.0
        %2017 = vmatprep.subr.mxu0 0.0
        %2018 = vmatpush1.msra.mxu0 0.0
        %2019 = vmatprep.subr.mxu0 0.0
        %2020 = vmatpush1.msra.mxu0 0.0
        %2021 = vmatprep.subr.mxu0 0.0
        %2022 = vmatpush1.msra.mxu0 0.0
        %2023 = vmatprep.subr.mxu0 0.0
        %2024 = vmatpush1.msra.mxu0 0.0
        %2025 = vmatprep.subr.mxu0 0.0
        %2026 = vmatpush1.msra.mxu0 0.0
        %2027 = vmatprep.subr.mxu0 0.0
        %2028 = vmatpush1.msra.mxu0 %v1993
        %2029 = vmatprep.subr.mxu0 0.0
        %2030 = vmatpush2.msra.mxu0 0.0
        %2031 = vmatprep.subr.mxu0 0.0
        %2032 = vmatpush2.msra.mxu0 0.0
        %2033 = vmatprep.subr.mxu0 0.0
        %2034 = vmatpush2.msra.mxu0 0.0
        %2035 = vmatprep.subr.mxu0 0.0
        %2036 = vmatpush2.msra.mxu0 0.0
        %2037 = vmatprep.subr.mxu0 0.0
        %2038 = vmatpush2.msra.mxu0 0.0
        %2039 = vmatprep.subr.mxu0 0.0
        %2040 = vmatpush2.msra.mxu0 0.0
        %2041 = vmatprep.subr.mxu0 0.0
        %2042 = vmatpush2.msra.mxu0 0.0
        %2043 = vmatprep.subr.mxu0 0.0
        %2044 = vmatpush2.msra.mxu0 0.0
        %2045 = vmatprep.subr.mxu0 0.0
        %2046 = vmatpush2.msra.mxu0 0.0
        %2047 = vmatprep.subr.mxu0 0.0
        %2048 = vmatpush2.msra.mxu0 0.0
        %2049 = vmatprep.subr.mxu0 0.0
        %2050 = vmatpush2.msra.mxu0 0.0
        %2051 = vmatprep.subr.mxu0 0.0
        %2052 = vmatpush2.msra.mxu0 0.0
        %2053 = vmatprep.subr.mxu0 0.0
        %2054 = vmatpush2.msra.mxu0 0.0
        %2055 = vmatprep.subr.mxu0 0.0
        %2056 = vmatpush2.msra.mxu0 0.0
        %2057 = vmatprep.subr.mxu0 0.0
        %2058 = vmatpush2.msra.mxu0 0.0
        %2059 = vmatprep.subr.mxu0 0.0
        %2060 = vmatpush2.msra.mxu0 0.0
        %2061 = vmatprep.mubr.f32.mxu0 0.0
        %2062 = vmatmul.mubr.f32.gmra.mxu0 %v1529
        %v2063 = vpop.f32.mrf.mxu0
        %v2064 = vadd.f32 0.0, %v2063
        %v2065 = vpop.f32.mrf.mxu0
        %2066 = vmatprep.mubr.f32.mxu0 0.0
        %2067 = vmatmul.mubr.f32.gmra.mxu0 %v1532
        %v2068 = vpop.f32.mrf.mxu0
        %v2069 = vadd.f32 0.0, %v2068
        %v2070 = vpop.f32.mrf.mxu0
        %2071 = vmatprep.mubr.f32.mxu0 0.0
        %2072 = vmatmul.mubr.f32.gmra.mxu0 %v1535
        %v2073 = vpop.f32.mrf.mxu0
        %v2074 = vadd.f32 0.0, %v2073
        %v2075 = vpop.f32.mrf.mxu0
        %2076 = vmatprep.mubr.f32.mxu0 0.0
        %2077 = vmatmul.mubr.f32.gmra.mxu0 %v1538
        %v2078 = vpop.f32.mrf.mxu0
        %v2079 = vadd.f32 0.0, %v2078
        %v2080 = vpop.f32.mrf.mxu0
        %2081 = vmatprep.mubr.f32.mxu0 0.0
        %2082 = vmatmul.mubr.f32.gmra.mxu0 %v1541
        %v2083 = vpop.f32.mrf.mxu0
        %v2084 = vadd.f32 0.0, %v2083
        %v2085 = vpop.f32.mrf.mxu0
        %2086 = vmatprep.mubr.f32.mxu0 0.0
        %2087 = vmatmul.mubr.f32.gmra.mxu0 %v1759
        %v2088 = vpop.f32.mrf.mxu0
        %v2089 = vadd.f32 0.0, %v2088
        %v2090 = vpop.f32.mrf.mxu0
        %2091 = vmatprep.mubr.f32.mxu0 0.0
        %2092 = vmatmul.mubr.f32.gmra.mxu0 %v1877
        %v2093 = vpop.f32.mrf.mxu0
        %v2094 = vadd.f32 0.0, %v2093
        %v2095 = vpop.f32.mrf.mxu0
        %2096 = vmatprep.mubr.f32.mxu0 0.0
        %2097 = vmatmul.mubr.f32.gmra.mxu0 %v1995
        %v2098 = vpop.f32.mrf.mxu0
        %v2099 = vadd.f32 0.0, %v2098
        %v2100 = vpop.f32.mrf.mxu0
        %2101 = vdwg.mxu0
        %v2102 = vadd.f32 %v1984, %v2064
        %v2103 = vadd.f32 %v1985, %v2069
        %v2104 = vadd.f32 %v1986, %v2074
        %v2105 = vadd.f32 %v1987, %v2079
        %v2106 = vadd.f32 %v1988, %v2084
        %v2107 = vadd.f32 %v1989, %v2089
        %v2108 = vadd.f32 %v1990, %v2094
        %v2109 = vadd.f32 %v1991, %v2099
        %v2118 = vrot.slane %v1492, 1
        %v2119 = vrot.slane %v1493, 1
        %v2120 = vsel %vm632, %v2118, %v2119
        %v2121 = vrot.slane %v1494, 1
        %v2122 = vrot.slane %v1495, 1
        %v2123 = vsel %vm632, %v2121, %v2122
        %v2124 = vrot.slane %v1496, 1
        %v2125 = vrot.slane %v1497, 1
        %v2126 = vsel %vm632, %v2124, %v2125
        %v2127 = vrot.slane %v1498, 1
        %v2128 = vrot.slane %v1499, 1
        %v2129 = vsel %vm632, %v2127, %v2128
        %v2130 = vrot.slane %v1500, 1
        %v2131 = vrot.slane %v1501, 1
        %v2132 = vsel %vm632, %v2130, %v2131
        %v2133 = vrot.slane %v1502, 1
        %v2134 = vrot.slane %v1503, 1
        %v2135 = vsel %vm632, %v2133, %v2134
        %v2136 = vrot.slane %v1504, 1
        %v2137 = vrot.slane %v1505, 1
        %v2138 = vsel %vm632, %v2136, %v2137
        %v2139 = vrot.slane %v1506, 1
        %v2140 = vrot.slane %v1507, 1
        %v2141 = vsel %vm632, %v2139, %v2140
        %s2142 = scalar_lea.vmem %s4, 40
        %v2143 = vld [vmem:[%s2142] sm:$0xff]
        %v2144 = vsel %vm1381, %v2120, 0
        %v2146 = vsel %vm1381, %v2123, 0
        %v2148 = vsel %vm1381, %v2126, 0
        %v2150 = vsel %vm1381, %v2129, 0
        %v2152 = vsel %vm1381, %v2132, 0
        %v2154 = vsel %vm1381, %v2135, 0
        %v2156 = vsel %vm1381, %v2138, 0
        %v2158 = vsel %vm1381, %v2141, 0
        %2160 = vmatprep.subr.mxu0 0.0
        %2161 = vmatpush1.msra.mxu0 0.0
        %2162 = vmatprep.subr.mxu0 0.0
        %2163 = vmatpush1.msra.mxu0 0.0
        %2164 = vmatprep.subr.mxu0 0.0
        %2165 = vmatpush1.msra.mxu0 0.0
        %2166 = vmatprep.subr.mxu0 0.0
        %2167 = vmatpush1.msra.mxu0 0.0
        %2168 = vmatprep.subr.mxu0 0.0
        %2169 = vmatpush1.msra.mxu0 0.0
        %2170 = vmatprep.subr.mxu0 0.0
        %2171 = vmatpush1.msra.mxu0 0.0
        %2172 = vmatprep.subr.mxu0 0.0
        %2173 = vmatpush1.msra.mxu0 0.0
        %2174 = vmatprep.subr.mxu0 0.0
        %2175 = vmatpush1.msra.mxu0 0.0
        %2176 = vmatprep.subr.mxu0 0.0
        %2177 = vmatpush1.msra.mxu0 0.0
        %2178 = vmatprep.subr.mxu0 0.0
        %2179 = vmatpush1.msra.mxu0 0.0
        %2180 = vmatprep.subr.mxu0 0.0
        %2181 = vmatpush1.msra.mxu0 0.0
        %2182 = vmatprep.subr.mxu0 0.0
        %2183 = vmatpush1.msra.mxu0 0.0
        %2184 = vmatprep.subr.mxu0 0.0
        %2185 = vmatpush1.msra.mxu0 0.0
        %2186 = vmatprep.subr.mxu0 0.0
        %2187 = vmatpush1.msra.mxu0 0.0
        %2188 = vmatprep.subr.mxu0 0.0
        %2189 = vmatpush1.msra.mxu0 0.0
        %2190 = vmatprep.subr.mxu0 0.0
        %2191 = vmatpush1.msra.mxu0 %v2143
        %2192 = vmatprep.subr.mxu0 0.0
        %2193 = vmatpush2.msra.mxu0 0.0
        %2194 = vmatprep.subr.mxu0 0.0
        %2195 = vmatpush2.msra.mxu0 0.0
        %2196 = vmatprep.subr.mxu0 0.0
        %2197 = vmatpush2.msra.mxu0 0.0
        %2198 = vmatprep.subr.mxu0 0.0
        %2199 = vmatpush2.msra.mxu0 0.0
        %2200 = vmatprep.subr.mxu0 0.0
        %2201 = vmatpush2.msra.mxu0 0.0
        %2202 = vmatprep.subr.mxu0 0.0
        %2203 = vmatpush2.msra.mxu0 0.0
        %2204 = vmatprep.subr.mxu0 0.0
        %2205 = vmatpush2.msra.mxu0 0.0
        %2206 = vmatprep.subr.mxu0 0.0
        %2207 = vmatpush2.msra.mxu0 0.0
        %2208 = vmatprep.subr.mxu0 0.0
        %2209 = vmatpush2.msra.mxu0 0.0
        %2210 = vmatprep.subr.mxu0 0.0
        %2211 = vmatpush2.msra.mxu0 0.0
        %2212 = vmatprep.subr.mxu0 0.0
        %2213 = vmatpush2.msra.mxu0 0.0
        %2214 = vmatprep.subr.mxu0 0.0
        %2215 = vmatpush2.msra.mxu0 0.0
        %2216 = vmatprep.subr.mxu0 0.0
        %2217 = vmatpush2.msra.mxu0 0.0
        %2218 = vmatprep.subr.mxu0 0.0
        %2219 = vmatpush2.msra.mxu0 0.0
        %2220 = vmatprep.subr.mxu0 0.0
        %2221 = vmatpush2.msra.mxu0 0.0
        %2222 = vmatprep.subr.mxu0 0.0
        %2223 = vmatpush2.msra.mxu0 0.0
        %2224 = vmatprep.mubr.f32.mxu0 0.0
        %2225 = vmatmul.mubr.f32.gmra.mxu0 %v2144
        %v2226 = vpop.f32.mrf.mxu0
        %v2227 = vadd.f32 0.0, %v2226
        %v2228 = vpop.f32.mrf.mxu0
        %2229 = vmatprep.mubr.f32.mxu0 0.0
        %2230 = vmatmul.mubr.f32.gmra.mxu0 %v2146
        %v2231 = vpop.f32.mrf.mxu0
        %v2232 = vadd.f32 0.0, %v2231
        %v2233 = vpop.f32.mrf.mxu0
        %2234 = vmatprep.mubr.f32.mxu0 0.0
        %2235 = vmatmul.mubr.f32.gmra.mxu0 %v2148
        %v2236 = vpop.f32.mrf.mxu0
        %v2237 = vadd.f32 0.0, %v2236
        %v2238 = vpop.f32.mrf.mxu0
        %2239 = vmatprep.mubr.f32.mxu0 0.0
        %2240 = vmatmul.mubr.f32.gmra.mxu0 %v2150
        %v2241 = vpop.f32.mrf.mxu0
        %v2242 = vadd.f32 0.0, %v2241
        %v2243 = vpop.f32.mrf.mxu0
        %2244 = vmatprep.mubr.f32.mxu0 0.0
        %2245 = vmatmul.mubr.f32.gmra.mxu0 %v2152
        %v2246 = vpop.f32.mrf.mxu0
        %v2247 = vadd.f32 0.0, %v2246
        %v2248 = vpop.f32.mrf.mxu0
        %2249 = vmatprep.mubr.f32.mxu0 0.0
        %2250 = vmatmul.mubr.f32.gmra.mxu0 %v2154
        %v2251 = vpop.f32.mrf.mxu0
        %v2252 = vadd.f32 0.0, %v2251
        %v2253 = vpop.f32.mrf.mxu0
        %2254 = vmatprep.mubr.f32.mxu0 0.0
        %2255 = vmatmul.mubr.f32.gmra.mxu0 %v2156
        %v2256 = vpop.f32.mrf.mxu0
        %v2257 = vadd.f32 0.0, %v2256
        %v2258 = vpop.f32.mrf.mxu0
        %2259 = vmatprep.mubr.f32.mxu0 0.0
        %2260 = vmatmul.mubr.f32.gmra.mxu0 %v2158
        %v2261 = vpop.f32.mrf.mxu0
        %v2262 = vadd.f32 0.0, %v2261
        %v2263 = vpop.f32.mrf.mxu0
        %2264 = vdwg.mxu0
        %v2265 = vadd.f32 %v2102, %v2227
        %v2266 = vadd.f32 %v2103, %v2232
        %v2267 = vadd.f32 %v2104, %v2237
        %v2268 = vadd.f32 %v2105, %v2242
        %v2269 = vadd.f32 %v2106, %v2247
        %v2270 = vadd.f32 %v2107, %v2252
        %v2271 = vadd.f32 %v2108, %v2257
        %v2272 = vadd.f32 %v2109, %v2262
        %v2274 = vrot.slane %v1508, 1
        %v2275 = vrot.slane %v1509, 1
        %v2276 = vsel %vm632, %v2274, %v2275
        %s2277 = scalar_lea.vmem %s4, 48
        %v2278 = vld [vmem:[%s2277] sm:$0xff]
        %v2279 = vsel %vm1381, %v2276, 0
        %2281 = vmatprep.subr.mxu0 0.0
        %2282 = vmatpush1.msra.mxu0 0.0
        %2283 = vmatprep.subr.mxu0 0.0
        %2284 = vmatpush1.msra.mxu0 0.0
        %2285 = vmatprep.subr.mxu0 0.0
        %2286 = vmatpush1.msra.mxu0 0.0
        %2287 = vmatprep.subr.mxu0 0.0
        %2288 = vmatpush1.msra.mxu0 0.0
        %2289 = vmatprep.subr.mxu0 0.0
        %2290 = vmatpush1.msra.mxu0 0.0
        %2291 = vmatprep.subr.mxu0 0.0
        %2292 = vmatpush1.msra.mxu0 0.0
        %2293 = vmatprep.subr.mxu0 0.0
        %2294 = vmatpush1.msra.mxu0 0.0
        %2295 = vmatprep.subr.mxu0 0.0
        %2296 = vmatpush1.msra.mxu0 0.0
        %2297 = vmatprep.subr.mxu0 0.0
        %2298 = vmatpush1.msra.mxu0 0.0
        %2299 = vmatprep.subr.mxu0 0.0
        %2300 = vmatpush1.msra.mxu0 0.0
        %2301 = vmatprep.subr.mxu0 0.0
        %2302 = vmatpush1.msra.mxu0 0.0
        %2303 = vmatprep.subr.mxu0 0.0
        %2304 = vmatpush1.msra.mxu0 0.0
        %2305 = vmatprep.subr.mxu0 0.0
        %2306 = vmatpush1.msra.mxu0 0.0
        %2307 = vmatprep.subr.mxu0 0.0
        %2308 = vmatpush1.msra.mxu0 0.0
        %2309 = vmatprep.subr.mxu0 0.0
        %2310 = vmatpush1.msra.mxu0 0.0
        %2311 = vmatprep.subr.mxu0 0.0
        %2312 = vmatpush1.msra.mxu0 %v2278
        %2313 = vmatprep.subr.mxu0 0.0
        %2314 = vmatpush2.msra.mxu0 0.0
        %2315 = vmatprep.subr.mxu0 0.0
        %2316 = vmatpush2.msra.mxu0 0.0
        %2317 = vmatprep.subr.mxu0 0.0
        %2318 = vmatpush2.msra.mxu0 0.0
        %2319 = vmatprep.subr.mxu0 0.0
        %2320 = vmatpush2.msra.mxu0 0.0
        %2321 = vmatprep.subr.mxu0 0.0
        %2322 = vmatpush2.msra.mxu0 0.0
        %2323 = vmatprep.subr.mxu0 0.0
        %2324 = vmatpush2.msra.mxu0 0.0
        %2325 = vmatprep.subr.mxu0 0.0
        %2326 = vmatpush2.msra.mxu0 0.0
        %2327 = vmatprep.subr.mxu0 0.0
        %2328 = vmatpush2.msra.mxu0 0.0
        %2329 = vmatprep.subr.mxu0 0.0
        %2330 = vmatpush2.msra.mxu0 0.0
        %2331 = vmatprep.subr.mxu0 0.0
        %2332 = vmatpush2.msra.mxu0 0.0
        %2333 = vmatprep.subr.mxu0 0.0
        %2334 = vmatpush2.msra.mxu0 0.0
        %2335 = vmatprep.subr.mxu0 0.0
        %2336 = vmatpush2.msra.mxu0 0.0
        %2337 = vmatprep.subr.mxu0 0.0
        %2338 = vmatpush2.msra.mxu0 0.0
        %2339 = vmatprep.subr.mxu0 0.0
        %2340 = vmatpush2.msra.mxu0 0.0
        %2341 = vmatprep.subr.mxu0 0.0
        %2342 = vmatpush2.msra.mxu0 0.0
        %2343 = vmatprep.subr.mxu0 0.0
        %2344 = vmatpush2.msra.mxu0 0.0
        %2345 = vmatprep.mubr.f32.mxu0 0.0
        %2346 = vmatmul.mubr.f32.gmra.mxu0 %v2146
        %v2347 = vpop.f32.mrf.mxu0
        %v2348 = vadd.f32 0.0, %v2347
        %v2349 = vpop.f32.mrf.mxu0
        %2350 = vmatprep.mubr.f32.mxu0 0.0
        %2351 = vmatmul.mubr.f32.gmra.mxu0 %v2148
        %v2352 = vpop.f32.mrf.mxu0
        %v2353 = vadd.f32 0.0, %v2352
        %v2354 = vpop.f32.mrf.mxu0
        %2355 = vmatprep.mubr.f32.mxu0 0.0
        %2356 = vmatmul.mubr.f32.gmra.mxu0 %v2150
        %v2357 = vpop.f32.mrf.mxu0
        %v2358 = vadd.f32 0.0, %v2357
        %v2359 = vpop.f32.mrf.mxu0
        %2360 = vmatprep.mubr.f32.mxu0 0.0
        %2361 = vmatmul.mubr.f32.gmra.mxu0 %v2152
        %v2362 = vpop.f32.mrf.mxu0
        %v2363 = vadd.f32 0.0, %v2362
        %v2364 = vpop.f32.mrf.mxu0
        %2365 = vmatprep.mubr.f32.mxu0 0.0
        %2366 = vmatmul.mubr.f32.gmra.mxu0 %v2154
        %v2367 = vpop.f32.mrf.mxu0
        %v2368 = vadd.f32 0.0, %v2367
        %v2369 = vpop.f32.mrf.mxu0
        %2370 = vmatprep.mubr.f32.mxu0 0.0
        %2371 = vmatmul.mubr.f32.gmra.mxu0 %v2156
        %v2372 = vpop.f32.mrf.mxu0
        %v2373 = vadd.f32 0.0, %v2372
        %v2374 = vpop.f32.mrf.mxu0
        %2375 = vmatprep.mubr.f32.mxu0 0.0
        %2376 = vmatmul.mubr.f32.gmra.mxu0 %v2158
        %v2377 = vpop.f32.mrf.mxu0
        %v2378 = vadd.f32 0.0, %v2377
        %v2379 = vpop.f32.mrf.mxu0
        %2380 = vmatprep.mubr.f32.mxu0 0.0
        %2381 = vmatmul.mubr.f32.gmra.mxu0 %v2279
        %v2382 = vpop.f32.mrf.mxu0
        %v2383 = vadd.f32 0.0, %v2382
        %v2384 = vpop.f32.mrf.mxu0
        %2385 = vdwg.mxu0
        %v2386 = vadd.f32 %v2265, %v2348
        %v2387 = vadd.f32 %v2266, %v2353
        %v2388 = vadd.f32 %v2267, %v2358
        %v2389 = vadd.f32 %v2268, %v2363
        %v2390 = vadd.f32 %v2269, %v2368
        %v2391 = vadd.f32 %v2270, %v2373
        %v2392 = vadd.f32 %v2271, %v2378
        %v2393 = vadd.f32 %v2272, %v2383
        %v2395 = vrot.slane %v1510, 1
        %v2396 = vrot.slane %v1511, 1
        %v2397 = vsel %vm632, %v2395, %v2396
        %s2398 = scalar_lea.vmem %s4, 56
        %v2399 = vld [vmem:[%s2398] sm:$0xff]
        %v2400 = vsel %vm1381, %v2397, 0
        %2402 = vmatprep.subr.mxu0 0.0
        %2403 = vmatpush1.msra.mxu0 0.0
        %2404 = vmatprep.subr.mxu0 0.0
        %2405 = vmatpush1.msra.mxu0 0.0
        %2406 = vmatprep.subr.mxu0 0.0
        %2407 = vmatpush1.msra.mxu0 0.0
        %2408 = vmatprep.subr.mxu0 0.0
        %2409 = vmatpush1.msra.mxu0 0.0
        %2410 = vmatprep.subr.mxu0 0.0
        %2411 = vmatpush1.msra.mxu0 0.0
        %2412 = vmatprep.subr.mxu0 0.0
        %2413 = vmatpush1.msra.mxu0 0.0
        %2414 = vmatprep.subr.mxu0 0.0
        %2415 = vmatpush1.msra.mxu0 0.0
        %2416 = vmatprep.subr.mxu0 0.0
        %2417 = vmatpush1.msra.mxu0 0.0
        %2418 = vmatprep.subr.mxu0 0.0
        %2419 = vmatpush1.msra.mxu0 0.0
        %2420 = vmatprep.subr.mxu0 0.0
        %2421 = vmatpush1.msra.mxu0 0.0
        %2422 = vmatprep.subr.mxu0 0.0
        %2423 = vmatpush1.msra.mxu0 0.0
        %2424 = vmatprep.subr.mxu0 0.0
        %2425 = vmatpush1.msra.mxu0 0.0
        %2426 = vmatprep.subr.mxu0 0.0
        %2427 = vmatpush1.msra.mxu0 0.0
        %2428 = vmatprep.subr.mxu0 0.0
        %2429 = vmatpush1.msra.mxu0 0.0
        %2430 = vmatprep.subr.mxu0 0.0
        %2431 = vmatpush1.msra.mxu0 0.0
        %2432 = vmatprep.subr.mxu0 0.0
        %2433 = vmatpush1.msra.mxu0 %v2399
        %2434 = vmatprep.subr.mxu0 0.0
        %2435 = vmatpush2.msra.mxu0 0.0
        %2436 = vmatprep.subr.mxu0 0.0
        %2437 = vmatpush2.msra.mxu0 0.0
        %2438 = vmatprep.subr.mxu0 0.0
        %2439 = vmatpush2.msra.mxu0 0.0
        %2440 = vmatprep.subr.mxu0 0.0
        %2441 = vmatpush2.msra.mxu0 0.0
        %2442 = vmatprep.subr.mxu0 0.0
        %2443 = vmatpush2.msra.mxu0 0.0
        %2444 = vmatprep.subr.mxu0 0.0
        %2445 = vmatpush2.msra.mxu0 0.0
        %2446 = vmatprep.subr.mxu0 0.0
        %2447 = vmatpush2.msra.mxu0 0.0
        %2448 = vmatprep.subr.mxu0 0.0
        %2449 = vmatpush2.msra.mxu0 0.0
        %2450 = vmatprep.subr.mxu0 0.0
        %2451 = vmatpush2.msra.mxu0 0.0
        %2452 = vmatprep.subr.mxu0 0.0
        %2453 = vmatpush2.msra.mxu0 0.0
        %2454 = vmatprep.subr.mxu0 0.0
        %2455 = vmatpush2.msra.mxu0 0.0
        %2456 = vmatprep.subr.mxu0 0.0
        %2457 = vmatpush2.msra.mxu0 0.0
        %2458 = vmatprep.subr.mxu0 0.0
        %2459 = vmatpush2.msra.mxu0 0.0
        %2460 = vmatprep.subr.mxu0 0.0
        %2461 = vmatpush2.msra.mxu0 0.0
        %2462 = vmatprep.subr.mxu0 0.0
        %2463 = vmatpush2.msra.mxu0 0.0
        %2464 = vmatprep.subr.mxu0 0.0
        %2465 = vmatpush2.msra.mxu0 0.0
        %2466 = vmatprep.mubr.f32.mxu0 0.0
        %2467 = vmatmul.mubr.f32.gmra.mxu0 %v2148
        %v2468 = vpop.f32.mrf.mxu0
        %v2469 = vadd.f32 0.0, %v2468
        %v2470 = vpop.f32.mrf.mxu0
        %2471 = vmatprep.mubr.f32.mxu0 0.0
        %2472 = vmatmul.mubr.f32.gmra.mxu0 %v2150
        %v2473 = vpop.f32.mrf.mxu0
        %v2474 = vadd.f32 0.0, %v2473
        %v2475 = vpop.f32.mrf.mxu0
        %2476 = vmatprep.mubr.f32.mxu0 0.0
        %2477 = vmatmul.mubr.f32.gmra.mxu0 %v2152
        %v2478 = vpop.f32.mrf.mxu0
        %v2479 = vadd.f32 0.0, %v2478
        %v2480 = vpop.f32.mrf.mxu0
        %2481 = vmatprep.mubr.f32.mxu0 0.0
        %2482 = vmatmul.mubr.f32.gmra.mxu0 %v2154
        %v2483 = vpop.f32.mrf.mxu0
        %v2484 = vadd.f32 0.0, %v2483
        %v2485 = vpop.f32.mrf.mxu0
        %2486 = vmatprep.mubr.f32.mxu0 0.0
        %2487 = vmatmul.mubr.f32.gmra.mxu0 %v2156
        %v2488 = vpop.f32.mrf.mxu0
        %v2489 = vadd.f32 0.0, %v2488
        %v2490 = vpop.f32.mrf.mxu0
        %2491 = vmatprep.mubr.f32.mxu0 0.0
        %2492 = vmatmul.mubr.f32.gmra.mxu0 %v2158
        %v2493 = vpop.f32.mrf.mxu0
        %v2494 = vadd.f32 0.0, %v2493
        %v2495 = vpop.f32.mrf.mxu0
        %2496 = vmatprep.mubr.f32.mxu0 0.0
        %2497 = vmatmul.mubr.f32.gmra.mxu0 %v2279
        %v2498 = vpop.f32.mrf.mxu0
        %v2499 = vadd.f32 0.0, %v2498
        %v2500 = vpop.f32.mrf.mxu0
        %2501 = vmatprep.mubr.f32.mxu0 0.0
        %2502 = vmatmul.mubr.f32.gmra.mxu0 %v2400
        %v2503 = vpop.f32.mrf.mxu0
        %v2504 = vadd.f32 0.0, %v2503
        %v2505 = vpop.f32.mrf.mxu0
        %2506 = vdwg.mxu0
        %v2507 = vadd.f32 %v2386, %v2469
        %v2508 = vadd.f32 %v2387, %v2474
        %v2509 = vadd.f32 %v2388, %v2479
        %v2510 = vadd.f32 %v2389, %v2484
        %v2511 = vadd.f32 %v2390, %v2489
        %v2512 = vadd.f32 %v2391, %v2494
        %v2513 = vadd.f32 %v2392, %v2499
        %v2514 = vadd.f32 %v2393, %v2504
        %v2516 = vrot.slane %v1512, 1
        %v2517 = vrot.slane %v1513, 1
        %v2518 = vsel %vm632, %v2516, %v2517
        %s2519 = scalar_lea.vmem %s4, 64
        %v2520 = vld [vmem:[%s2519] sm:$0xff]
        %v2521 = vsel %vm1381, %v2518, 0
        %2523 = vmatprep.subr.mxu0 0.0
        %2524 = vmatpush1.msra.mxu0 0.0
        %2525 = vmatprep.subr.mxu0 0.0
        %2526 = vmatpush1.msra.mxu0 0.0
        %2527 = vmatprep.subr.mxu0 0.0
        %2528 = vmatpush1.msra.mxu0 0.0
        %2529 = vmatprep.subr.mxu0 0.0
        %2530 = vmatpush1.msra.mxu0 0.0
        %2531 = vmatprep.subr.mxu0 0.0
        %2532 = vmatpush1.msra.mxu0 0.0
        %2533 = vmatprep.subr.mxu0 0.0
        %2534 = vmatpush1.msra.mxu0 0.0
        %2535 = vmatprep.subr.mxu0 0.0
        %2536 = vmatpush1.msra.mxu0 0.0
        %2537 = vmatprep.subr.mxu0 0.0
        %2538 = vmatpush1.msra.mxu0 0.0
        %2539 = vmatprep.subr.mxu0 0.0
        %2540 = vmatpush1.msra.mxu0 0.0
        %2541 = vmatprep.subr.mxu0 0.0
        %2542 = vmatpush1.msra.mxu0 0.0
        %2543 = vmatprep.subr.mxu0 0.0
        %2544 = vmatpush1.msra.mxu0 0.0
        %2545 = vmatprep.subr.mxu0 0.0
        %2546 = vmatpush1.msra.mxu0 0.0
        %2547 = vmatprep.subr.mxu0 0.0
        %2548 = vmatpush1.msra.mxu0 0.0
        %2549 = vmatprep.subr.mxu0 0.0
        %2550 = vmatpush1.msra.mxu0 0.0
        %2551 = vmatprep.subr.mxu0 0.0
        %2552 = vmatpush1.msra.mxu0 0.0
        %2553 = vmatprep.subr.mxu0 0.0
        %2554 = vmatpush1.msra.mxu0 %v2520
        %2555 = vmatprep.subr.mxu0 0.0
        %2556 = vmatpush2.msra.mxu0 0.0
        %2557 = vmatprep.subr.mxu0 0.0
        %2558 = vmatpush2.msra.mxu0 0.0
        %2559 = vmatprep.subr.mxu0 0.0
        %2560 = vmatpush2.msra.mxu0 0.0
        %2561 = vmatprep.subr.mxu0 0.0
        %2562 = vmatpush2.msra.mxu0 0.0
        %2563 = vmatprep.subr.mxu0 0.0
        %2564 = vmatpush2.msra.mxu0 0.0
        %2565 = vmatprep.subr.mxu0 0.0
        %2566 = vmatpush2.msra.mxu0 0.0
        %2567 = vmatprep.subr.mxu0 0.0
        %2568 = vmatpush2.msra.mxu0 0.0
        %2569 = vmatprep.subr.mxu0 0.0
        %2570 = vmatpush2.msra.mxu0 0.0
        %2571 = vmatprep.subr.mxu0 0.0
        %2572 = vmatpush2.msra.mxu0 0.0
        %2573 = vmatprep.subr.mxu0 0.0
        %2574 = vmatpush2.msra.mxu0 0.0
        %2575 = vmatprep.subr.mxu0 0.0
        %2576 = vmatpush2.msra.mxu0 0.0
        %2577 = vmatprep.subr.mxu0 0.0
        %2578 = vmatpush2.msra.mxu0 0.0
        %2579 = vmatprep.subr.mxu0 0.0
        %2580 = vmatpush2.msra.mxu0 0.0
        %2581 = vmatprep.subr.mxu0 0.0
        %2582 = vmatpush2.msra.mxu0 0.0
        %2583 = vmatprep.subr.mxu0 0.0
        %2584 = vmatpush2.msra.mxu0 0.0
        %2585 = vmatprep.subr.mxu0 0.0
        %2586 = vmatpush2.msra.mxu0 0.0
        %2587 = vmatprep.mubr.f32.mxu0 0.0
        %2588 = vmatmul.mubr.f32.gmra.mxu0 %v2150
        %v2589 = vpop.f32.mrf.mxu0
        %v2590 = vadd.f32 0.0, %v2589
        %v2591 = vpop.f32.mrf.mxu0
        %2592 = vmatprep.mubr.f32.mxu0 0.0
        %2593 = vmatmul.mubr.f32.gmra.mxu0 %v2152
        %v2594 = vpop.f32.mrf.mxu0
        %v2595 = vadd.f32 0.0, %v2594
        %v2596 = vpop.f32.mrf.mxu0
        %2597 = vmatprep.mubr.f32.mxu0 0.0
        %2598 = vmatmul.mubr.f32.gmra.mxu0 %v2154
        %v2599 = vpop.f32.mrf.mxu0
        %v2600 = vadd.f32 0.0, %v2599
        %v2601 = vpop.f32.mrf.mxu0
        %2602 = vmatprep.mubr.f32.mxu0 0.0
        %2603 = vmatmul.mubr.f32.gmra.mxu0 %v2156
        %v2604 = vpop.f32.mrf.mxu0
        %v2605 = vadd.f32 0.0, %v2604
        %v2606 = vpop.f32.mrf.mxu0
        %2607 = vmatprep.mubr.f32.mxu0 0.0
        %2608 = vmatmul.mubr.f32.gmra.mxu0 %v2158
        %v2609 = vpop.f32.mrf.mxu0
        %v2610 = vadd.f32 0.0, %v2609
        %v2611 = vpop.f32.mrf.mxu0
        %2612 = vmatprep.mubr.f32.mxu0 0.0
        %2613 = vmatmul.mubr.f32.gmra.mxu0 %v2279
        %v2614 = vpop.f32.mrf.mxu0
        %v2615 = vadd.f32 0.0, %v2614
        %v2616 = vpop.f32.mrf.mxu0
        %2617 = vmatprep.mubr.f32.mxu0 0.0
        %2618 = vmatmul.mubr.f32.gmra.mxu0 %v2400
        %v2619 = vpop.f32.mrf.mxu0
        %v2620 = vadd.f32 0.0, %v2619
        %v2621 = vpop.f32.mrf.mxu0
        %2622 = vmatprep.mubr.f32.mxu0 0.0
        %2623 = vmatmul.mubr.f32.gmra.mxu0 %v2521
        %v2624 = vpop.f32.mrf.mxu0
        %v2625 = vadd.f32 0.0, %v2624
        %v2626 = vpop.f32.mrf.mxu0
        %2627 = vdwg.mxu0
        %v2628 = vadd.f32 %v2507, %v2590
        %v2629 = vadd.f32 %v2508, %v2595
        %v2630 = vadd.f32 %v2509, %v2600
        %v2631 = vadd.f32 %v2510, %v2605
        %v2632 = vadd.f32 %v2511, %v2610
        %v2633 = vadd.f32 %v2512, %v2615
        %v2634 = vadd.f32 %v2513, %v2620
        %v2635 = vadd.f32 %v2514, %v2625
        %v2637 = vrot.slane %v1514, 1
        %v2638 = vrot.slane %v1515, 1
        %v2639 = vsel %vm632, %v2637, %v2638
        %s2640 = scalar_lea.vmem %s4, 72
        %v2641 = vld [vmem:[%s2640] sm:$0xff]
        %v2642 = vsel %vm1381, %v2639, 0
        %2644 = vmatprep.subr.mxu0 0.0
        %2645 = vmatpush1.msra.mxu0 0.0
        %2646 = vmatprep.subr.mxu0 0.0
        %2647 = vmatpush1.msra.mxu0 0.0
        %2648 = vmatprep.subr.mxu0 0.0
        %2649 = vmatpush1.msra.mxu0 0.0
        %2650 = vmatprep.subr.mxu0 0.0
        %2651 = vmatpush1.msra.mxu0 0.0
        %2652 = vmatprep.subr.mxu0 0.0
        %2653 = vmatpush1.msra.mxu0 0.0
        %2654 = vmatprep.subr.mxu0 0.0
        %2655 = vmatpush1.msra.mxu0 0.0
        %2656 = vmatprep.subr.mxu0 0.0
        %2657 = vmatpush1.msra.mxu0 0.0
        %2658 = vmatprep.subr.mxu0 0.0
        %2659 = vmatpush1.msra.mxu0 0.0
        %2660 = vmatprep.subr.mxu0 0.0
        %2661 = vmatpush1.msra.mxu0 0.0
        %2662 = vmatprep.subr.mxu0 0.0
        %2663 = vmatpush1.msra.mxu0 0.0
        %2664 = vmatprep.subr.mxu0 0.0
        %2665 = vmatpush1.msra.mxu0 0.0
        %2666 = vmatprep.subr.mxu0 0.0
        %2667 = vmatpush1.msra.mxu0 0.0
        %2668 = vmatprep.subr.mxu0 0.0
        %2669 = vmatpush1.msra.mxu0 0.0
        %2670 = vmatprep.subr.mxu0 0.0
        %2671 = vmatpush1.msra.mxu0 0.0
        %2672 = vmatprep.subr.mxu0 0.0
        %2673 = vmatpush1.msra.mxu0 0.0
        %2674 = vmatprep.subr.mxu0 0.0
        %2675 = vmatpush1.msra.mxu0 %v2641
        %2676 = vmatprep.subr.mxu0 0.0
        %2677 = vmatpush2.msra.mxu0 0.0
        %2678 = vmatprep.subr.mxu0 0.0
        %2679 = vmatpush2.msra.mxu0 0.0
        %2680 = vmatprep.subr.mxu0 0.0
        %2681 = vmatpush2.msra.mxu0 0.0
        %2682 = vmatprep.subr.mxu0 0.0
        %2683 = vmatpush2.msra.mxu0 0.0
        %2684 = vmatprep.subr.mxu0 0.0
        %2685 = vmatpush2.msra.mxu0 0.0
        %2686 = vmatprep.subr.mxu0 0.0
        %2687 = vmatpush2.msra.mxu0 0.0
        %2688 = vmatprep.subr.mxu0 0.0
        %2689 = vmatpush2.msra.mxu0 0.0
        %2690 = vmatprep.subr.mxu0 0.0
        %2691 = vmatpush2.msra.mxu0 0.0
        %2692 = vmatprep.subr.mxu0 0.0
        %2693 = vmatpush2.msra.mxu0 0.0
        %2694 = vmatprep.subr.mxu0 0.0
        %2695 = vmatpush2.msra.mxu0 0.0
        %2696 = vmatprep.subr.mxu0 0.0
        %2697 = vmatpush2.msra.mxu0 0.0
        %2698 = vmatprep.subr.mxu0 0.0
        %2699 = vmatpush2.msra.mxu0 0.0
        %2700 = vmatprep.subr.mxu0 0.0
        %2701 = vmatpush2.msra.mxu0 0.0
        %2702 = vmatprep.subr.mxu0 0.0
        %2703 = vmatpush2.msra.mxu0 0.0
        %2704 = vmatprep.subr.mxu0 0.0
        %2705 = vmatpush2.msra.mxu0 0.0
        %2706 = vmatprep.subr.mxu0 0.0
        %2707 = vmatpush2.msra.mxu0 0.0
        %2708 = vmatprep.mubr.f32.mxu0 0.0
        %2709 = vmatmul.mubr.f32.gmra.mxu0 %v2152
        %v2710 = vpop.f32.mrf.mxu0
        %v2711 = vadd.f32 0.0, %v2710
        %v2712 = vpop.f32.mrf.mxu0
        %2713 = vmatprep.mubr.f32.mxu0 0.0
        %2714 = vmatmul.mubr.f32.gmra.mxu0 %v2154
        %v2715 = vpop.f32.mrf.mxu0
        %v2716 = vadd.f32 0.0, %v2715
        %v2717 = vpop.f32.mrf.mxu0
        %2718 = vmatprep.mubr.f32.mxu0 0.0
        %2719 = vmatmul.mubr.f32.gmra.mxu0 %v2156
        %v2720 = vpop.f32.mrf.mxu0
        %v2721 = vadd.f32 0.0, %v2720
        %v2722 = vpop.f32.mrf.mxu0
        %2723 = vmatprep.mubr.f32.mxu0 0.0
        %2724 = vmatmul.mubr.f32.gmra.mxu0 %v2158
        %v2725 = vpop.f32.mrf.mxu0
        %v2726 = vadd.f32 0.0, %v2725
        %v2727 = vpop.f32.mrf.mxu0
        %2728 = vmatprep.mubr.f32.mxu0 0.0
        %2729 = vmatmul.mubr.f32.gmra.mxu0 %v2279
        %v2730 = vpop.f32.mrf.mxu0
        %v2731 = vadd.f32 0.0, %v2730
        %v2732 = vpop.f32.mrf.mxu0
        %2733 = vmatprep.mubr.f32.mxu0 0.0
        %2734 = vmatmul.mubr.f32.gmra.mxu0 %v2400
        %v2735 = vpop.f32.mrf.mxu0
        %v2736 = vadd.f32 0.0, %v2735
        %v2737 = vpop.f32.mrf.mxu0
        %2738 = vmatprep.mubr.f32.mxu0 0.0
        %2739 = vmatmul.mubr.f32.gmra.mxu0 %v2521
        %v2740 = vpop.f32.mrf.mxu0
        %v2741 = vadd.f32 0.0, %v2740
        %v2742 = vpop.f32.mrf.mxu0
        %2743 = vmatprep.mubr.f32.mxu0 0.0
        %2744 = vmatmul.mubr.f32.gmra.mxu0 %v2642
        %v2745 = vpop.f32.mrf.mxu0
        %v2746 = vadd.f32 0.0, %v2745
        %v2747 = vpop.f32.mrf.mxu0
        %2748 = vdwg.mxu0
        %v2749 = vadd.f32 %v2628, %v2711
        %v2750 = vadd.f32 %v2629, %v2716
        %v2751 = vadd.f32 %v2630, %v2721
        %v2752 = vadd.f32 %v2631, %v2726
        %v2753 = vadd.f32 %v2632, %v2731
        %v2754 = vadd.f32 %v2633, %v2736
        %v2755 = vadd.f32 %v2634, %v2741
        %v2756 = vadd.f32 %v2635, %v2746
        %v2757 = vrot.slane %v1492, 2
        %v2758 = vrot.slane %v1493, 2
        %v2759 = vsel %vm1074, %v2757, %v2758
        %v2760 = vrot.slane %v1494, 2
        %v2761 = vrot.slane %v1495, 2
        %v2762 = vsel %vm1074, %v2760, %v2761
        %v2763 = vrot.slane %v1496, 2
        %v2764 = vrot.slane %v1497, 2
        %v2765 = vsel %vm1074, %v2763, %v2764
        %v2766 = vrot.slane %v1498, 2
        %v2767 = vrot.slane %v1499, 2
        %v2768 = vsel %vm1074, %v2766, %v2767
        %v2769 = vrot.slane %v1500, 2
        %v2770 = vrot.slane %v1501, 2
        %v2771 = vsel %vm1074, %v2769, %v2770
        %v2772 = vrot.slane %v1502, 2
        %v2773 = vrot.slane %v1503, 2
        %v2774 = vsel %vm1074, %v2772, %v2773
        %v2775 = vrot.slane %v1504, 2
        %v2776 = vrot.slane %v1505, 2
        %v2777 = vsel %vm1074, %v2775, %v2776
        %v2778 = vrot.slane %v1506, 2
        %v2779 = vrot.slane %v1507, 2
        %v2780 = vsel %vm1074, %v2778, %v2779
        %s2781 = scalar_lea.vmem %s4, 80
        %v2782 = vld [vmem:[%s2781] sm:$0xff]
        %v2783 = vsel %vm1381, %v2759, 0
        %v2785 = vsel %vm1381, %v2762, 0
        %v2787 = vsel %vm1381, %v2765, 0
        %v2789 = vsel %vm1381, %v2768, 0
        %v2791 = vsel %vm1381, %v2771, 0
        %v2793 = vsel %vm1381, %v2774, 0
        %v2795 = vsel %vm1381, %v2777, 0
        %v2797 = vsel %vm1381, %v2780, 0
        %2799 = vmatprep.subr.mxu0 0.0
        %2800 = vmatpush1.msra.mxu0 0.0
        %2801 = vmatprep.subr.mxu0 0.0
        %2802 = vmatpush1.msra.mxu0 0.0
        %2803 = vmatprep.subr.mxu0 0.0
        %2804 = vmatpush1.msra.mxu0 0.0
        %2805 = vmatprep.subr.mxu0 0.0
        %2806 = vmatpush1.msra.mxu0 0.0
        %2807 = vmatprep.subr.mxu0 0.0
        %2808 = vmatpush1.msra.mxu0 0.0
        %2809 = vmatprep.subr.mxu0 0.0
        %2810 = vmatpush1.msra.mxu0 0.0
        %2811 = vmatprep.subr.mxu0 0.0
        %2812 = vmatpush1.msra.mxu0 0.0
        %2813 = vmatprep.subr.mxu0 0.0
        %2814 = vmatpush1.msra.mxu0 0.0
        %2815 = vmatprep.subr.mxu0 0.0
        %2816 = vmatpush1.msra.mxu0 0.0
        %2817 = vmatprep.subr.mxu0 0.0
        %2818 = vmatpush1.msra.mxu0 0.0
        %2819 = vmatprep.subr.mxu0 0.0
        %2820 = vmatpush1.msra.mxu0 0.0
        %2821 = vmatprep.subr.mxu0 0.0
        %2822 = vmatpush1.msra.mxu0 0.0
        %2823 = vmatprep.subr.mxu0 0.0
        %2824 = vmatpush1.msra.mxu0 0.0
        %2825 = vmatprep.subr.mxu0 0.0
        %2826 = vmatpush1.msra.mxu0 0.0
        %2827 = vmatprep.subr.mxu0 0.0
        %2828 = vmatpush1.msra.mxu0 0.0
        %2829 = vmatprep.subr.mxu0 0.0
        %2830 = vmatpush1.msra.mxu0 %v2782
        %2831 = vmatprep.subr.mxu0 0.0
        %2832 = vmatpush2.msra.mxu0 0.0
        %2833 = vmatprep.subr.mxu0 0.0
        %2834 = vmatpush2.msra.mxu0 0.0
        %2835 = vmatprep.subr.mxu0 0.0
        %2836 = vmatpush2.msra.mxu0 0.0
        %2837 = vmatprep.subr.mxu0 0.0
        %2838 = vmatpush2.msra.mxu0 0.0
        %2839 = vmatprep.subr.mxu0 0.0
        %2840 = vmatpush2.msra.mxu0 0.0
        %2841 = vmatprep.subr.mxu0 0.0
        %2842 = vmatpush2.msra.mxu0 0.0
        %2843 = vmatprep.subr.mxu0 0.0
        %2844 = vmatpush2.msra.mxu0 0.0
        %2845 = vmatprep.subr.mxu0 0.0
        %2846 = vmatpush2.msra.mxu0 0.0
        %2847 = vmatprep.subr.mxu0 0.0
        %2848 = vmatpush2.msra.mxu0 0.0
        %2849 = vmatprep.subr.mxu0 0.0
        %2850 = vmatpush2.msra.mxu0 0.0
        %2851 = vmatprep.subr.mxu0 0.0
        %2852 = vmatpush2.msra.mxu0 0.0
        %2853 = vmatprep.subr.mxu0 0.0
        %2854 = vmatpush2.msra.mxu0 0.0
        %2855 = vmatprep.subr.mxu0 0.0
        %2856 = vmatpush2.msra.mxu0 0.0
        %2857 = vmatprep.subr.mxu0 0.0
        %2858 = vmatpush2.msra.mxu0 0.0
        %2859 = vmatprep.subr.mxu0 0.0
        %2860 = vmatpush2.msra.mxu0 0.0
        %2861 = vmatprep.subr.mxu0 0.0
        %2862 = vmatpush2.msra.mxu0 0.0
        %2863 = vmatprep.mubr.f32.mxu0 0.0
        %2864 = vmatmul.mubr.f32.gmra.mxu0 %v2783
        %v2865 = vpop.f32.mrf.mxu0
        %v2866 = vadd.f32 0.0, %v2865
        %v2867 = vpop.f32.mrf.mxu0
        %2868 = vmatprep.mubr.f32.mxu0 0.0
        %2869 = vmatmul.mubr.f32.gmra.mxu0 %v2785
        %v2870 = vpop.f32.mrf.mxu0
        %v2871 = vadd.f32 0.0, %v2870
        %v2872 = vpop.f32.mrf.mxu0
        %2873 = vmatprep.mubr.f32.mxu0 0.0
        %2874 = vmatmul.mubr.f32.gmra.mxu0 %v2787
        %v2875 = vpop.f32.mrf.mxu0
        %v2876 = vadd.f32 0.0, %v2875
        %v2877 = vpop.f32.mrf.mxu0
        %2878 = vmatprep.mubr.f32.mxu0 0.0
        %2879 = vmatmul.mubr.f32.gmra.mxu0 %v2789
        %v2880 = vpop.f32.mrf.mxu0
        %v2881 = vadd.f32 0.0, %v2880
        %v2882 = vpop.f32.mrf.mxu0
        %2883 = vmatprep.mubr.f32.mxu0 0.0
        %2884 = vmatmul.mubr.f32.gmra.mxu0 %v2791
        %v2885 = vpop.f32.mrf.mxu0
        %v2886 = vadd.f32 0.0, %v2885
        %v2887 = vpop.f32.mrf.mxu0
        %2888 = vmatprep.mubr.f32.mxu0 0.0
        %2889 = vmatmul.mubr.f32.gmra.mxu0 %v2793
        %v2890 = vpop.f32.mrf.mxu0
        %v2891 = vadd.f32 0.0, %v2890
        %v2892 = vpop.f32.mrf.mxu0
        %2893 = vmatprep.mubr.f32.mxu0 0.0
        %2894 = vmatmul.mubr.f32.gmra.mxu0 %v2795
        %v2895 = vpop.f32.mrf.mxu0
        %v2896 = vadd.f32 0.0, %v2895
        %v2897 = vpop.f32.mrf.mxu0
        %2898 = vmatprep.mubr.f32.mxu0 0.0
        %2899 = vmatmul.mubr.f32.gmra.mxu0 %v2797
        %v2900 = vpop.f32.mrf.mxu0
        %v2901 = vadd.f32 0.0, %v2900
        %v2902 = vpop.f32.mrf.mxu0
        %2903 = vdwg.mxu0
        %v2904 = vadd.f32 %v2749, %v2866
        %v2905 = vadd.f32 %v2750, %v2871
        %v2906 = vadd.f32 %v2751, %v2876
        %v2907 = vadd.f32 %v2752, %v2881
        %v2908 = vadd.f32 %v2753, %v2886
        %v2909 = vadd.f32 %v2754, %v2891
        %v2910 = vadd.f32 %v2755, %v2896
        %v2911 = vadd.f32 %v2756, %v2901
        %v2912 = vrot.slane %v1508, 2
        %v2913 = vrot.slane %v1509, 2
        %v2914 = vsel %vm1074, %v2912, %v2913
        %s2915 = scalar_lea.vmem %s4, 88
        %v2916 = vld [vmem:[%s2915] sm:$0xff]
        %v2917 = vsel %vm1381, %v2914, 0
        %2919 = vmatprep.subr.mxu0 0.0
        %2920 = vmatpush1.msra.mxu0 0.0
        %2921 = vmatprep.subr.mxu0 0.0
        %2922 = vmatpush1.msra.mxu0 0.0
        %2923 = vmatprep.subr.mxu0 0.0
        %2924 = vmatpush1.msra.mxu0 0.0
        %2925 = vmatprep.subr.mxu0 0.0
        %2926 = vmatpush1.msra.mxu0 0.0
        %2927 = vmatprep.subr.mxu0 0.0
        %2928 = vmatpush1.msra.mxu0 0.0
        %2929 = vmatprep.subr.mxu0 0.0
        %2930 = vmatpush1.msra.mxu0 0.0
        %2931 = vmatprep.subr.mxu0 0.0
        %2932 = vmatpush1.msra.mxu0 0.0
        %2933 = vmatprep.subr.mxu0 0.0
        %2934 = vmatpush1.msra.mxu0 0.0
        %2935 = vmatprep.subr.mxu0 0.0
        %2936 = vmatpush1.msra.mxu0 0.0
        %2937 = vmatprep.subr.mxu0 0.0
        %2938 = vmatpush1.msra.mxu0 0.0
        %2939 = vmatprep.subr.mxu0 0.0
        %2940 = vmatpush1.msra.mxu0 0.0
        %2941 = vmatprep.subr.mxu0 0.0
        %2942 = vmatpush1.msra.mxu0 0.0
        %2943 = vmatprep.subr.mxu0 0.0
        %2944 = vmatpush1.msra.mxu0 0.0
        %2945 = vmatprep.subr.mxu0 0.0
        %2946 = vmatpush1.msra.mxu0 0.0
        %2947 = vmatprep.subr.mxu0 0.0
        %2948 = vmatpush1.msra.mxu0 0.0
        %2949 = vmatprep.subr.mxu0 0.0
        %2950 = vmatpush1.msra.mxu0 %v2916
        %2951 = vmatprep.subr.mxu0 0.0
        %2952 = vmatpush2.msra.mxu0 0.0
        %2953 = vmatprep.subr.mxu0 0.0
        %2954 = vmatpush2.msra.mxu0 0.0
        %2955 = vmatprep.subr.mxu0 0.0
        %2956 = vmatpush2.msra.mxu0 0.0
        %2957 = vmatprep.subr.mxu0 0.0
        %2958 = vmatpush2.msra.mxu0 0.0
        %2959 = vmatprep.subr.mxu0 0.0
        %2960 = vmatpush2.msra.mxu0 0.0
        %2961 = vmatprep.subr.mxu0 0.0
        %2962 = vmatpush2.msra.mxu0 0.0
        %2963 = vmatprep.subr.mxu0 0.0
        %2964 = vmatpush2.msra.mxu0 0.0
        %2965 = vmatprep.subr.mxu0 0.0
        %2966 = vmatpush2.msra.mxu0 0.0
        %2967 = vmatprep.subr.mxu0 0.0
        %2968 = vmatpush2.msra.mxu0 0.0
        %2969 = vmatprep.subr.mxu0 0.0
        %2970 = vmatpush2.msra.mxu0 0.0
        %2971 = vmatprep.subr.mxu0 0.0
        %2972 = vmatpush2.msra.mxu0 0.0
        %2973 = vmatprep.subr.mxu0 0.0
        %2974 = vmatpush2.msra.mxu0 0.0
        %2975 = vmatprep.subr.mxu0 0.0
        %2976 = vmatpush2.msra.mxu0 0.0
        %2977 = vmatprep.subr.mxu0 0.0
        %2978 = vmatpush2.msra.mxu0 0.0
        %2979 = vmatprep.subr.mxu0 0.0
        %2980 = vmatpush2.msra.mxu0 0.0
        %2981 = vmatprep.subr.mxu0 0.0
        %2982 = vmatpush2.msra.mxu0 0.0
        %2983 = vmatprep.mubr.f32.mxu0 0.0
        %2984 = vmatmul.mubr.f32.gmra.mxu0 %v2785
        %v2985 = vpop.f32.mrf.mxu0
        %v2986 = vadd.f32 0.0, %v2985
        %v2987 = vpop.f32.mrf.mxu0
        %2988 = vmatprep.mubr.f32.mxu0 0.0
        %2989 = vmatmul.mubr.f32.gmra.mxu0 %v2787
        %v2990 = vpop.f32.mrf.mxu0
        %v2991 = vadd.f32 0.0, %v2990
        %v2992 = vpop.f32.mrf.mxu0
        %2993 = vmatprep.mubr.f32.mxu0 0.0
        %2994 = vmatmul.mubr.f32.gmra.mxu0 %v2789
        %v2995 = vpop.f32.mrf.mxu0
        %v2996 = vadd.f32 0.0, %v2995
        %v2997 = vpop.f32.mrf.mxu0
        %2998 = vmatprep.mubr.f32.mxu0 0.0
        %2999 = vmatmul.mubr.f32.gmra.mxu0 %v2791
        %v3000 = vpop.f32.mrf.mxu0
        %v3001 = vadd.f32 0.0, %v3000
        %v3002 = vpop.f32.mrf.mxu0
        %3003 = vmatprep.mubr.f32.mxu0 0.0
        %3004 = vmatmul.mubr.f32.gmra.mxu0 %v2793
        %v3005 = vpop.f32.mrf.mxu0
        %v3006 = vadd.f32 0.0, %v3005
        %v3007 = vpop.f32.mrf.mxu0
        %3008 = vmatprep.mubr.f32.mxu0 0.0
        %3009 = vmatmul.mubr.f32.gmra.mxu0 %v2795
        %v3010 = vpop.f32.mrf.mxu0
        %v3011 = vadd.f32 0.0, %v3010
        %v3012 = vpop.f32.mrf.mxu0
        %3013 = vmatprep.mubr.f32.mxu0 0.0
        %3014 = vmatmul.mubr.f32.gmra.mxu0 %v2797
        %v3015 = vpop.f32.mrf.mxu0
        %v3016 = vadd.f32 0.0, %v3015
        %v3017 = vpop.f32.mrf.mxu0
        %3018 = vmatprep.mubr.f32.mxu0 0.0
        %3019 = vmatmul.mubr.f32.gmra.mxu0 %v2917
        %v3020 = vpop.f32.mrf.mxu0
        %v3021 = vadd.f32 0.0, %v3020
        %v3022 = vpop.f32.mrf.mxu0
        %3023 = vdwg.mxu0
        %v3024 = vadd.f32 %v2904, %v2986
        %v3025 = vadd.f32 %v2905, %v2991
        %v3026 = vadd.f32 %v2906, %v2996
        %v3027 = vadd.f32 %v2907, %v3001
        %v3028 = vadd.f32 %v2908, %v3006
        %v3029 = vadd.f32 %v2909, %v3011
        %v3030 = vadd.f32 %v2910, %v3016
        %v3031 = vadd.f32 %v2911, %v3021
        %v3032 = vrot.slane %v1510, 2
        %v3033 = vrot.slane %v1511, 2
        %v3034 = vsel %vm1074, %v3032, %v3033
        %s3035 = scalar_lea.vmem %s4, 96
        %v3036 = vld [vmem:[%s3035] sm:$0xff]
        %v3037 = vsel %vm1381, %v3034, 0
        %3039 = vmatprep.subr.mxu0 0.0
        %3040 = vmatpush1.msra.mxu0 0.0
        %3041 = vmatprep.subr.mxu0 0.0
        %3042 = vmatpush1.msra.mxu0 0.0
        %3043 = vmatprep.subr.mxu0 0.0
        %3044 = vmatpush1.msra.mxu0 0.0
        %3045 = vmatprep.subr.mxu0 0.0
        %3046 = vmatpush1.msra.mxu0 0.0
        %3047 = vmatprep.subr.mxu0 0.0
        %3048 = vmatpush1.msra.mxu0 0.0
        %3049 = vmatprep.subr.mxu0 0.0
        %3050 = vmatpush1.msra.mxu0 0.0
        %3051 = vmatprep.subr.mxu0 0.0
        %3052 = vmatpush1.msra.mxu0 0.0
        %3053 = vmatprep.subr.mxu0 0.0
        %3054 = vmatpush1.msra.mxu0 0.0
        %3055 = vmatprep.subr.mxu0 0.0
        %3056 = vmatpush1.msra.mxu0 0.0
        %3057 = vmatprep.subr.mxu0 0.0
        %3058 = vmatpush1.msra.mxu0 0.0
        %3059 = vmatprep.subr.mxu0 0.0
        %3060 = vmatpush1.msra.mxu0 0.0
        %3061 = vmatprep.subr.mxu0 0.0
        %3062 = vmatpush1.msra.mxu0 0.0
        %3063 = vmatprep.subr.mxu0 0.0
        %3064 = vmatpush1.msra.mxu0 0.0
        %3065 = vmatprep.subr.mxu0 0.0
        %3066 = vmatpush1.msra.mxu0 0.0
        %3067 = vmatprep.subr.mxu0 0.0
        %3068 = vmatpush1.msra.mxu0 0.0
        %3069 = vmatprep.subr.mxu0 0.0
        %3070 = vmatpush1.msra.mxu0 %v3036
        %3071 = vmatprep.subr.mxu0 0.0
        %3072 = vmatpush2.msra.mxu0 0.0
        %3073 = vmatprep.subr.mxu0 0.0
        %3074 = vmatpush2.msra.mxu0 0.0
        %3075 = vmatprep.subr.mxu0 0.0
        %3076 = vmatpush2.msra.mxu0 0.0
        %3077 = vmatprep.subr.mxu0 0.0
        %3078 = vmatpush2.msra.mxu0 0.0
        %3079 = vmatprep.subr.mxu0 0.0
        %3080 = vmatpush2.msra.mxu0 0.0
        %3081 = vmatprep.subr.mxu0 0.0
        %3082 = vmatpush2.msra.mxu0 0.0
        %3083 = vmatprep.subr.mxu0 0.0
        %3084 = vmatpush2.msra.mxu0 0.0
        %3085 = vmatprep.subr.mxu0 0.0
        %3086 = vmatpush2.msra.mxu0 0.0
        %3087 = vmatprep.subr.mxu0 0.0
        %3088 = vmatpush2.msra.mxu0 0.0
        %3089 = vmatprep.subr.mxu0 0.0
        %3090 = vmatpush2.msra.mxu0 0.0
        %3091 = vmatprep.subr.mxu0 0.0
        %3092 = vmatpush2.msra.mxu0 0.0
        %3093 = vmatprep.subr.mxu0 0.0
        %3094 = vmatpush2.msra.mxu0 0.0
        %3095 = vmatprep.subr.mxu0 0.0
        %3096 = vmatpush2.msra.mxu0 0.0
        %3097 = vmatprep.subr.mxu0 0.0
        %3098 = vmatpush2.msra.mxu0 0.0
        %3099 = vmatprep.subr.mxu0 0.0
        %3100 = vmatpush2.msra.mxu0 0.0
        %3101 = vmatprep.subr.mxu0 0.0
        %3102 = vmatpush2.msra.mxu0 0.0
        %3103 = vmatprep.mubr.f32.mxu0 0.0
        %3104 = vmatmul.mubr.f32.gmra.mxu0 %v2787
        %v3105 = vpop.f32.mrf.mxu0
        %v3106 = vadd.f32 0.0, %v3105
        %v3107 = vpop.f32.mrf.mxu0
        %3108 = vmatprep.mubr.f32.mxu0 0.0
        %3109 = vmatmul.mubr.f32.gmra.mxu0 %v2789
        %v3110 = vpop.f32.mrf.mxu0
        %v3111 = vadd.f32 0.0, %v3110
        %v3112 = vpop.f32.mrf.mxu0
        %3113 = vmatprep.mubr.f32.mxu0 0.0
        %3114 = vmatmul.mubr.f32.gmra.mxu0 %v2791
        %v3115 = vpop.f32.mrf.mxu0
        %v3116 = vadd.f32 0.0, %v3115
        %v3117 = vpop.f32.mrf.mxu0
        %3118 = vmatprep.mubr.f32.mxu0 0.0
        %3119 = vmatmul.mubr.f32.gmra.mxu0 %v2793
        %v3120 = vpop.f32.mrf.mxu0
        %v3121 = vadd.f32 0.0, %v3120
        %v3122 = vpop.f32.mrf.mxu0
        %3123 = vmatprep.mubr.f32.mxu0 0.0
        %3124 = vmatmul.mubr.f32.gmra.mxu0 %v2795
        %v3125 = vpop.f32.mrf.mxu0
        %v3126 = vadd.f32 0.0, %v3125
        %v3127 = vpop.f32.mrf.mxu0
        %3128 = vmatprep.mubr.f32.mxu0 0.0
        %3129 = vmatmul.mubr.f32.gmra.mxu0 %v2797
        %v3130 = vpop.f32.mrf.mxu0
        %v3131 = vadd.f32 0.0, %v3130
        %v3132 = vpop.f32.mrf.mxu0
        %3133 = vmatprep.mubr.f32.mxu0 0.0
        %3134 = vmatmul.mubr.f32.gmra.mxu0 %v2917
        %v3135 = vpop.f32.mrf.mxu0
        %v3136 = vadd.f32 0.0, %v3135
        %v3137 = vpop.f32.mrf.mxu0
        %3138 = vmatprep.mubr.f32.mxu0 0.0
        %3139 = vmatmul.mubr.f32.gmra.mxu0 %v3037
        %v3140 = vpop.f32.mrf.mxu0
        %v3141 = vadd.f32 0.0, %v3140
        %v3142 = vpop.f32.mrf.mxu0
        %3143 = vdwg.mxu0
        %v3144 = vadd.f32 %v3024, %v3106
        %v3145 = vadd.f32 %v3025, %v3111
        %v3146 = vadd.f32 %v3026, %v3116
        %v3147 = vadd.f32 %v3027, %v3121
        %v3148 = vadd.f32 %v3028, %v3126
        %v3149 = vadd.f32 %v3029, %v3131
        %v3150 = vadd.f32 %v3030, %v3136
        %v3151 = vadd.f32 %v3031, %v3141
        %v3152 = vrot.slane %v1512, 2
        %v3153 = vrot.slane %v1513, 2
        %v3154 = vsel %vm1074, %v3152, %v3153
        %s3155 = scalar_lea.vmem %s4, 104
        %v3156 = vld [vmem:[%s3155] sm:$0xff]
        %v3157 = vsel %vm1381, %v3154, 0
        %3159 = vmatprep.subr.mxu0 0.0
        %3160 = vmatpush1.msra.mxu0 0.0
        %3161 = vmatprep.subr.mxu0 0.0
        %3162 = vmatpush1.msra.mxu0 0.0
        %3163 = vmatprep.subr.mxu0 0.0
        %3164 = vmatpush1.msra.mxu0 0.0
        %3165 = vmatprep.subr.mxu0 0.0
        %3166 = vmatpush1.msra.mxu0 0.0
        %3167 = vmatprep.subr.mxu0 0.0
        %3168 = vmatpush1.msra.mxu0 0.0
        %3169 = vmatprep.subr.mxu0 0.0
        %3170 = vmatpush1.msra.mxu0 0.0
        %3171 = vmatprep.subr.mxu0 0.0
        %3172 = vmatpush1.msra.mxu0 0.0
        %3173 = vmatprep.subr.mxu0 0.0
        %3174 = vmatpush1.msra.mxu0 0.0
        %3175 = vmatprep.subr.mxu0 0.0
        %3176 = vmatpush1.msra.mxu0 0.0
        %3177 = vmatprep.subr.mxu0 0.0
        %3178 = vmatpush1.msra.mxu0 0.0
        %3179 = vmatprep.subr.mxu0 0.0
        %3180 = vmatpush1.msra.mxu0 0.0
        %3181 = vmatprep.subr.mxu0 0.0
        %3182 = vmatpush1.msra.mxu0 0.0
        %3183 = vmatprep.subr.mxu0 0.0
        %3184 = vmatpush1.msra.mxu0 0.0
        %3185 = vmatprep.subr.mxu0 0.0
        %3186 = vmatpush1.msra.mxu0 0.0
        %3187 = vmatprep.subr.mxu0 0.0
        %3188 = vmatpush1.msra.mxu0 0.0
        %3189 = vmatprep.subr.mxu0 0.0
        %3190 = vmatpush1.msra.mxu0 %v3156
        %3191 = vmatprep.subr.mxu0 0.0
        %3192 = vmatpush2.msra.mxu0 0.0
        %3193 = vmatprep.subr.mxu0 0.0
        %3194 = vmatpush2.msra.mxu0 0.0
        %3195 = vmatprep.subr.mxu0 0.0
        %3196 = vmatpush2.msra.mxu0 0.0
        %3197 = vmatprep.subr.mxu0 0.0
        %3198 = vmatpush2.msra.mxu0 0.0
        %3199 = vmatprep.subr.mxu0 0.0
        %3200 = vmatpush2.msra.mxu0 0.0
        %3201 = vmatprep.subr.mxu0 0.0
        %3202 = vmatpush2.msra.mxu0 0.0
        %3203 = vmatprep.subr.mxu0 0.0
        %3204 = vmatpush2.msra.mxu0 0.0
        %3205 = vmatprep.subr.mxu0 0.0
        %3206 = vmatpush2.msra.mxu0 0.0
        %3207 = vmatprep.subr.mxu0 0.0
        %3208 = vmatpush2.msra.mxu0 0.0
        %3209 = vmatprep.subr.mxu0 0.0
        %3210 = vmatpush2.msra.mxu0 0.0
        %3211 = vmatprep.subr.mxu0 0.0
        %3212 = vmatpush2.msra.mxu0 0.0
        %3213 = vmatprep.subr.mxu0 0.0
        %3214 = vmatpush2.msra.mxu0 0.0
        %3215 = vmatprep.subr.mxu0 0.0
        %3216 = vmatpush2.msra.mxu0 0.0
        %3217 = vmatprep.subr.mxu0 0.0
        %3218 = vmatpush2.msra.mxu0 0.0
        %3219 = vmatprep.subr.mxu0 0.0
        %3220 = vmatpush2.msra.mxu0 0.0
        %3221 = vmatprep.subr.mxu0 0.0
        %3222 = vmatpush2.msra.mxu0 0.0
        %3223 = vmatprep.mubr.f32.mxu0 0.0
        %3224 = vmatmul.mubr.f32.gmra.mxu0 %v2789
        %v3225 = vpop.f32.mrf.mxu0
        %v3226 = vadd.f32 0.0, %v3225
        %v3227 = vpop.f32.mrf.mxu0
        %3228 = vmatprep.mubr.f32.mxu0 0.0
        %3229 = vmatmul.mubr.f32.gmra.mxu0 %v2791
        %v3230 = vpop.f32.mrf.mxu0
        %v3231 = vadd.f32 0.0, %v3230
        %v3232 = vpop.f32.mrf.mxu0
        %3233 = vmatprep.mubr.f32.mxu0 0.0
        %3234 = vmatmul.mubr.f32.gmra.mxu0 %v2793
        %v3235 = vpop.f32.mrf.mxu0
        %v3236 = vadd.f32 0.0, %v3235
        %v3237 = vpop.f32.mrf.mxu0
        %3238 = vmatprep.mubr.f32.mxu0 0.0
        %3239 = vmatmul.mubr.f32.gmra.mxu0 %v2795
        %v3240 = vpop.f32.mrf.mxu0
        %v3241 = vadd.f32 0.0, %v3240
        %v3242 = vpop.f32.mrf.mxu0
        %3243 = vmatprep.mubr.f32.mxu0 0.0
        %3244 = vmatmul.mubr.f32.gmra.mxu0 %v2797
        %v3245 = vpop.f32.mrf.mxu0
        %v3246 = vadd.f32 0.0, %v3245
        %v3247 = vpop.f32.mrf.mxu0
        %3248 = vmatprep.mubr.f32.mxu0 0.0
        %3249 = vmatmul.mubr.f32.gmra.mxu0 %v2917
        %v3250 = vpop.f32.mrf.mxu0
        %v3251 = vadd.f32 0.0, %v3250
        %v3252 = vpop.f32.mrf.mxu0
        %3253 = vmatprep.mubr.f32.mxu0 0.0
        %3254 = vmatmul.mubr.f32.gmra.mxu0 %v3037
        %v3255 = vpop.f32.mrf.mxu0
        %v3256 = vadd.f32 0.0, %v3255
        %v3257 = vpop.f32.mrf.mxu0
        %3258 = vmatprep.mubr.f32.mxu0 0.0
        %3259 = vmatmul.mubr.f32.gmra.mxu0 %v3157
        %v3260 = vpop.f32.mrf.mxu0
        %v3261 = vadd.f32 0.0, %v3260
        %v3262 = vpop.f32.mrf.mxu0
        %3263 = vdwg.mxu0
        %v3264 = vadd.f32 %v3144, %v3226
        %v3265 = vadd.f32 %v3145, %v3231
        %v3266 = vadd.f32 %v3146, %v3236
        %v3267 = vadd.f32 %v3147, %v3241
        %v3268 = vadd.f32 %v3148, %v3246
        %v3269 = vadd.f32 %v3149, %v3251
        %v3270 = vadd.f32 %v3150, %v3256
        %v3271 = vadd.f32 %v3151, %v3261
        %v3272 = vrot.slane %v1514, 2
        %v3273 = vrot.slane %v1515, 2
        %v3274 = vsel %vm1074, %v3272, %v3273
        %s3275 = scalar_lea.vmem %s4, 112
        %v3276 = vld [vmem:[%s3275] sm:$0xff]
        %v3277 = vsel %vm1381, %v3274, 0
        %3279 = vmatprep.subr.mxu0 0.0
        %3280 = vmatpush1.msra.mxu0 0.0
        %3281 = vmatprep.subr.mxu0 0.0
        %3282 = vmatpush1.msra.mxu0 0.0
        %3283 = vmatprep.subr.mxu0 0.0
        %3284 = vmatpush1.msra.mxu0 0.0
        %3285 = vmatprep.subr.mxu0 0.0
        %3286 = vmatpush1.msra.mxu0 0.0
        %3287 = vmatprep.subr.mxu0 0.0
        %3288 = vmatpush1.msra.mxu0 0.0
        %3289 = vmatprep.subr.mxu0 0.0
        %3290 = vmatpush1.msra.mxu0 0.0
        %3291 = vmatprep.subr.mxu0 0.0
        %3292 = vmatpush1.msra.mxu0 0.0
        %3293 = vmatprep.subr.mxu0 0.0
        %3294 = vmatpush1.msra.mxu0 0.0
        %3295 = vmatprep.subr.mxu0 0.0
        %3296 = vmatpush1.msra.mxu0 0.0
        %3297 = vmatprep.subr.mxu0 0.0
        %3298 = vmatpush1.msra.mxu0 0.0
        %3299 = vmatprep.subr.mxu0 0.0
        %3300 = vmatpush1.msra.mxu0 0.0
        %3301 = vmatprep.subr.mxu0 0.0
        %3302 = vmatpush1.msra.mxu0 0.0
        %3303 = vmatprep.subr.mxu0 0.0
        %3304 = vmatpush1.msra.mxu0 0.0
        %3305 = vmatprep.subr.mxu0 0.0
        %3306 = vmatpush1.msra.mxu0 0.0
        %3307 = vmatprep.subr.mxu0 0.0
        %3308 = vmatpush1.msra.mxu0 0.0
        %3309 = vmatprep.subr.mxu0 0.0
        %3310 = vmatpush1.msra.mxu0 %v3276
        %3311 = vmatprep.subr.mxu0 0.0
        %3312 = vmatpush2.msra.mxu0 0.0
        %3313 = vmatprep.subr.mxu0 0.0
        %3314 = vmatpush2.msra.mxu0 0.0
        %3315 = vmatprep.subr.mxu0 0.0
        %3316 = vmatpush2.msra.mxu0 0.0
        %3317 = vmatprep.subr.mxu0 0.0
        %3318 = vmatpush2.msra.mxu0 0.0
        %3319 = vmatprep.subr.mxu0 0.0
        %3320 = vmatpush2.msra.mxu0 0.0
        %3321 = vmatprep.subr.mxu0 0.0
        %3322 = vmatpush2.msra.mxu0 0.0
        %3323 = vmatprep.subr.mxu0 0.0
        %3324 = vmatpush2.msra.mxu0 0.0
        %3325 = vmatprep.subr.mxu0 0.0
        %3326 = vmatpush2.msra.mxu0 0.0
        %3327 = vmatprep.subr.mxu0 0.0
        %3328 = vmatpush2.msra.mxu0 0.0
        %3329 = vmatprep.subr.mxu0 0.0
        %3330 = vmatpush2.msra.mxu0 0.0
        %3331 = vmatprep.subr.mxu0 0.0
        %3332 = vmatpush2.msra.mxu0 0.0
        %3333 = vmatprep.subr.mxu0 0.0
        %3334 = vmatpush2.msra.mxu0 0.0
        %3335 = vmatprep.subr.mxu0 0.0
        %3336 = vmatpush2.msra.mxu0 0.0
        %3337 = vmatprep.subr.mxu0 0.0
        %3338 = vmatpush2.msra.mxu0 0.0
        %3339 = vmatprep.subr.mxu0 0.0
        %3340 = vmatpush2.msra.mxu0 0.0
        %3341 = vmatprep.subr.mxu0 0.0
        %3342 = vmatpush2.msra.mxu0 0.0
        %3343 = vmatprep.mubr.f32.mxu0 0.0
        %3344 = vmatmul.mubr.f32.gmra.mxu0 %v2791
        %v3345 = vpop.f32.mrf.mxu0
        %v3346 = vadd.f32 0.0, %v3345
        %v3347 = vpop.f32.mrf.mxu0
        %3348 = vmatprep.mubr.f32.mxu0 0.0
        %3349 = vmatmul.mubr.f32.gmra.mxu0 %v2793
        %v3350 = vpop.f32.mrf.mxu0
        %v3351 = vadd.f32 0.0, %v3350
        %v3352 = vpop.f32.mrf.mxu0
        %3353 = vmatprep.mubr.f32.mxu0 0.0
        %3354 = vmatmul.mubr.f32.gmra.mxu0 %v2795
        %v3355 = vpop.f32.mrf.mxu0
        %v3356 = vadd.f32 0.0, %v3355
        %v3357 = vpop.f32.mrf.mxu0
        %3358 = vmatprep.mubr.f32.mxu0 0.0
        %3359 = vmatmul.mubr.f32.gmra.mxu0 %v2797
        %v3360 = vpop.f32.mrf.mxu0
        %v3361 = vadd.f32 0.0, %v3360
        %v3362 = vpop.f32.mrf.mxu0
        %3363 = vmatprep.mubr.f32.mxu0 0.0
        %3364 = vmatmul.mubr.f32.gmra.mxu0 %v2917
        %v3365 = vpop.f32.mrf.mxu0
        %v3366 = vadd.f32 0.0, %v3365
        %v3367 = vpop.f32.mrf.mxu0
        %3368 = vmatprep.mubr.f32.mxu0 0.0
        %3369 = vmatmul.mubr.f32.gmra.mxu0 %v3037
        %v3370 = vpop.f32.mrf.mxu0
        %v3371 = vadd.f32 0.0, %v3370
        %v3372 = vpop.f32.mrf.mxu0
        %3373 = vmatprep.mubr.f32.mxu0 0.0
        %3374 = vmatmul.mubr.f32.gmra.mxu0 %v3157
        %v3375 = vpop.f32.mrf.mxu0
        %v3376 = vadd.f32 0.0, %v3375
        %v3377 = vpop.f32.mrf.mxu0
        %3378 = vmatprep.mubr.f32.mxu0 0.0
        %3379 = vmatmul.mubr.f32.gmra.mxu0 %v3277
        %v3380 = vpop.f32.mrf.mxu0
        %v3381 = vadd.f32 0.0, %v3380
        %v3382 = vpop.f32.mrf.mxu0
        %3383 = vdwg.mxu0
        %v3384 = vadd.f32 %v3264, %v3346
        %v3385 = vadd.f32 %v3265, %v3351
        %v3386 = vadd.f32 %v3266, %v3356
        %v3387 = vadd.f32 %v3267, %v3361
        %v3388 = vadd.f32 %v3268, %v3366
        %v3389 = vadd.f32 %v3269, %v3371
        %v3390 = vadd.f32 %v3270, %v3376
        %v3391 = vadd.f32 %v3271, %v3381
        %vm3392 = vcmask 1044480
        %v3393 = vrot.slane %v1492, 3
        %v3394 = vrot.slane %v1493, 3
        %v3395 = vsel %vm3392, %v3393, %v3394
        %v3396 = vrot.slane %v1494, 3
        %v3397 = vrot.slane %v1495, 3
        %v3398 = vsel %vm3392, %v3396, %v3397
        %v3399 = vrot.slane %v1496, 3
        %v3400 = vrot.slane %v1497, 3
        %v3401 = vsel %vm3392, %v3399, %v3400
        %v3402 = vrot.slane %v1498, 3
        %v3403 = vrot.slane %v1499, 3
        %v3404 = vsel %vm3392, %v3402, %v3403
        %v3405 = vrot.slane %v1500, 3
        %v3406 = vrot.slane %v1501, 3
        %v3407 = vsel %vm3392, %v3405, %v3406
        %v3408 = vrot.slane %v1502, 3
        %v3409 = vrot.slane %v1503, 3
        %v3410 = vsel %vm3392, %v3408, %v3409
        %v3411 = vrot.slane %v1504, 3
        %v3412 = vrot.slane %v1505, 3
        %v3413 = vsel %vm3392, %v3411, %v3412
        %v3414 = vrot.slane %v1506, 3
        %v3415 = vrot.slane %v1507, 3
        %v3416 = vsel %vm3392, %v3414, %v3415
        %s3417 = scalar_lea.vmem %s4, 120
        %v3418 = vld [vmem:[%s3417] sm:$0xff]
        %v3419 = vsel %vm1381, %v3395, 0
        %v3421 = vsel %vm1381, %v3398, 0
        %v3423 = vsel %vm1381, %v3401, 0
        %v3425 = vsel %vm1381, %v3404, 0
        %v3427 = vsel %vm1381, %v3407, 0
        %v3429 = vsel %vm1381, %v3410, 0
        %v3431 = vsel %vm1381, %v3413, 0
        %v3433 = vsel %vm1381, %v3416, 0
        %3435 = vmatprep.subr.mxu0 0.0
        %3436 = vmatpush1.msra.mxu0 0.0
        %3437 = vmatprep.subr.mxu0 0.0
        %3438 = vmatpush1.msra.mxu0 0.0
        %3439 = vmatprep.subr.mxu0 0.0
        %3440 = vmatpush1.msra.mxu0 0.0
        %3441 = vmatprep.subr.mxu0 0.0
        %3442 = vmatpush1.msra.mxu0 0.0
        %3443 = vmatprep.subr.mxu0 0.0
        %3444 = vmatpush1.msra.mxu0 0.0
        %3445 = vmatprep.subr.mxu0 0.0
        %3446 = vmatpush1.msra.mxu0 0.0
        %3447 = vmatprep.subr.mxu0 0.0
        %3448 = vmatpush1.msra.mxu0 0.0
        %3449 = vmatprep.subr.mxu0 0.0
        %3450 = vmatpush1.msra.mxu0 0.0
        %3451 = vmatprep.subr.mxu0 0.0
        %3452 = vmatpush1.msra.mxu0 0.0
        %3453 = vmatprep.subr.mxu0 0.0
        %3454 = vmatpush1.msra.mxu0 0.0
        %3455 = vmatprep.subr.mxu0 0.0
        %3456 = vmatpush1.msra.mxu0 0.0
        %3457 = vmatprep.subr.mxu0 0.0
        %3458 = vmatpush1.msra.mxu0 0.0
        %3459 = vmatprep.subr.mxu0 0.0
        %3460 = vmatpush1.msra.mxu0 0.0
        %3461 = vmatprep.subr.mxu0 0.0
        %3462 = vmatpush1.msra.mxu0 0.0
        %3463 = vmatprep.subr.mxu0 0.0
        %3464 = vmatpush1.msra.mxu0 0.0
        %3465 = vmatprep.subr.mxu0 0.0
        %3466 = vmatpush1.msra.mxu0 %v3418
        %3467 = vmatprep.subr.mxu0 0.0
        %3468 = vmatpush2.msra.mxu0 0.0
        %3469 = vmatprep.subr.mxu0 0.0
        %3470 = vmatpush2.msra.mxu0 0.0
        %3471 = vmatprep.subr.mxu0 0.0
        %3472 = vmatpush2.msra.mxu0 0.0
        %3473 = vmatprep.subr.mxu0 0.0
        %3474 = vmatpush2.msra.mxu0 0.0
        %3475 = vmatprep.subr.mxu0 0.0
        %3476 = vmatpush2.msra.mxu0 0.0
        %3477 = vmatprep.subr.mxu0 0.0
        %3478 = vmatpush2.msra.mxu0 0.0
        %3479 = vmatprep.subr.mxu0 0.0
        %3480 = vmatpush2.msra.mxu0 0.0
        %3481 = vmatprep.subr.mxu0 0.0
        %3482 = vmatpush2.msra.mxu0 0.0
        %3483 = vmatprep.subr.mxu0 0.0
        %3484 = vmatpush2.msra.mxu0 0.0
        %3485 = vmatprep.subr.mxu0 0.0
        %3486 = vmatpush2.msra.mxu0 0.0
        %3487 = vmatprep.subr.mxu0 0.0
        %3488 = vmatpush2.msra.mxu0 0.0
        %3489 = vmatprep.subr.mxu0 0.0
        %3490 = vmatpush2.msra.mxu0 0.0
        %3491 = vmatprep.subr.mxu0 0.0
        %3492 = vmatpush2.msra.mxu0 0.0
        %3493 = vmatprep.subr.mxu0 0.0
        %3494 = vmatpush2.msra.mxu0 0.0
        %3495 = vmatprep.subr.mxu0 0.0
        %3496 = vmatpush2.msra.mxu0 0.0
        %3497 = vmatprep.subr.mxu0 0.0
        %3498 = vmatpush2.msra.mxu0 0.0
        %3499 = vmatprep.mubr.f32.mxu0 0.0
        %3500 = vmatmul.mubr.f32.gmra.mxu0 %v3419
        %v3501 = vpop.f32.mrf.mxu0
        %v3502 = vadd.f32 0.0, %v3501
        %v3503 = vpop.f32.mrf.mxu0
        %3504 = vmatprep.mubr.f32.mxu0 0.0
        %3505 = vmatmul.mubr.f32.gmra.mxu0 %v3421
        %v3506 = vpop.f32.mrf.mxu0
        %v3507 = vadd.f32 0.0, %v3506
        %v3508 = vpop.f32.mrf.mxu0
        %3509 = vmatprep.mubr.f32.mxu0 0.0
        %3510 = vmatmul.mubr.f32.gmra.mxu0 %v3423
        %v3511 = vpop.f32.mrf.mxu0
        %v3512 = vadd.f32 0.0, %v3511
        %v3513 = vpop.f32.mrf.mxu0
        %3514 = vmatprep.mubr.f32.mxu0 0.0
        %3515 = vmatmul.mubr.f32.gmra.mxu0 %v3425
        %v3516 = vpop.f32.mrf.mxu0
        %v3517 = vadd.f32 0.0, %v3516
        %v3518 = vpop.f32.mrf.mxu0
        %3519 = vmatprep.mubr.f32.mxu0 0.0
        %3520 = vmatmul.mubr.f32.gmra.mxu0 %v3427
        %v3521 = vpop.f32.mrf.mxu0
        %v3522 = vadd.f32 0.0, %v3521
        %v3523 = vpop.f32.mrf.mxu0
        %3524 = vmatprep.mubr.f32.mxu0 0.0
        %3525 = vmatmul.mubr.f32.gmra.mxu0 %v3429
        %v3526 = vpop.f32.mrf.mxu0
        %v3527 = vadd.f32 0.0, %v3526
        %v3528 = vpop.f32.mrf.mxu0
        %3529 = vmatprep.mubr.f32.mxu0 0.0
        %3530 = vmatmul.mubr.f32.gmra.mxu0 %v3431
        %v3531 = vpop.f32.mrf.mxu0
        %v3532 = vadd.f32 0.0, %v3531
        %v3533 = vpop.f32.mrf.mxu0
        %3534 = vmatprep.mubr.f32.mxu0 0.0
        %3535 = vmatmul.mubr.f32.gmra.mxu0 %v3433
        %v3536 = vpop.f32.mrf.mxu0
        %v3537 = vadd.f32 0.0, %v3536
        %v3538 = vpop.f32.mrf.mxu0
        %3539 = vdwg.mxu0
        %v3540 = vadd.f32 %v3384, %v3502
        %v3541 = vadd.f32 %v3385, %v3507
        %v3542 = vadd.f32 %v3386, %v3512
        %v3543 = vadd.f32 %v3387, %v3517
        %v3544 = vadd.f32 %v3388, %v3522
        %v3545 = vadd.f32 %v3389, %v3527
        %v3546 = vadd.f32 %v3390, %v3532
        %v3547 = vadd.f32 %v3391, %v3537
        %v3548 = vrot.slane %v1508, 3
        %v3549 = vrot.slane %v1509, 3
        %v3550 = vsel %vm3392, %v3548, %v3549
        %s3551 = scalar_lea.vmem %s4, 128
        %v3552 = vld [vmem:[%s3551] sm:$0xff]
        %v3553 = vsel %vm1381, %v3550, 0
        %3555 = vmatprep.subr.mxu0 0.0
        %3556 = vmatpush1.msra.mxu0 0.0
        %3557 = vmatprep.subr.mxu0 0.0
        %3558 = vmatpush1.msra.mxu0 0.0
        %3559 = vmatprep.subr.mxu0 0.0
        %3560 = vmatpush1.msra.mxu0 0.0
        %3561 = vmatprep.subr.mxu0 0.0
        %3562 = vmatpush1.msra.mxu0 0.0
        %3563 = vmatprep.subr.mxu0 0.0
        %3564 = vmatpush1.msra.mxu0 0.0
        %3565 = vmatprep.subr.mxu0 0.0
        %3566 = vmatpush1.msra.mxu0 0.0
        %3567 = vmatprep.subr.mxu0 0.0
        %3568 = vmatpush1.msra.mxu0 0.0
        %3569 = vmatprep.subr.mxu0 0.0
        %3570 = vmatpush1.msra.mxu0 0.0
        %3571 = vmatprep.subr.mxu0 0.0
        %3572 = vmatpush1.msra.mxu0 0.0
        %3573 = vmatprep.subr.mxu0 0.0
        %3574 = vmatpush1.msra.mxu0 0.0
        %3575 = vmatprep.subr.mxu0 0.0
        %3576 = vmatpush1.msra.mxu0 0.0
        %3577 = vmatprep.subr.mxu0 0.0
        %3578 = vmatpush1.msra.mxu0 0.0
        %3579 = vmatprep.subr.mxu0 0.0
        %3580 = vmatpush1.msra.mxu0 0.0
        %3581 = vmatprep.subr.mxu0 0.0
        %3582 = vmatpush1.msra.mxu0 0.0
        %3583 = vmatprep.subr.mxu0 0.0
        %3584 = vmatpush1.msra.mxu0 0.0
        %3585 = vmatprep.subr.mxu0 0.0
        %3586 = vmatpush1.msra.mxu0 %v3552
        %3587 = vmatprep.subr.mxu0 0.0
        %3588 = vmatpush2.msra.mxu0 0.0
        %3589 = vmatprep.subr.mxu0 0.0
        %3590 = vmatpush2.msra.mxu0 0.0
        %3591 = vmatprep.subr.mxu0 0.0
        %3592 = vmatpush2.msra.mxu0 0.0
        %3593 = vmatprep.subr.mxu0 0.0
        %3594 = vmatpush2.msra.mxu0 0.0
        %3595 = vmatprep.subr.mxu0 0.0
        %3596 = vmatpush2.msra.mxu0 0.0
        %3597 = vmatprep.subr.mxu0 0.0
        %3598 = vmatpush2.msra.mxu0 0.0
        %3599 = vmatprep.subr.mxu0 0.0
        %3600 = vmatpush2.msra.mxu0 0.0
        %3601 = vmatprep.subr.mxu0 0.0
        %3602 = vmatpush2.msra.mxu0 0.0
        %3603 = vmatprep.subr.mxu0 0.0
        %3604 = vmatpush2.msra.mxu0 0.0
        %3605 = vmatprep.subr.mxu0 0.0
        %3606 = vmatpush2.msra.mxu0 0.0
        %3607 = vmatprep.subr.mxu0 0.0
        %3608 = vmatpush2.msra.mxu0 0.0
        %3609 = vmatprep.subr.mxu0 0.0
        %3610 = vmatpush2.msra.mxu0 0.0
        %3611 = vmatprep.subr.mxu0 0.0
        %3612 = vmatpush2.msra.mxu0 0.0
        %3613 = vmatprep.subr.mxu0 0.0
        %3614 = vmatpush2.msra.mxu0 0.0
        %3615 = vmatprep.subr.mxu0 0.0
        %3616 = vmatpush2.msra.mxu0 0.0
        %3617 = vmatprep.subr.mxu0 0.0
        %3618 = vmatpush2.msra.mxu0 0.0
        %3619 = vmatprep.mubr.f32.mxu0 0.0
        %3620 = vmatmul.mubr.f32.gmra.mxu0 %v3421
        %v3621 = vpop.f32.mrf.mxu0
        %v3622 = vadd.f32 0.0, %v3621
        %v3623 = vpop.f32.mrf.mxu0
        %3624 = vmatprep.mubr.f32.mxu0 0.0
        %3625 = vmatmul.mubr.f32.gmra.mxu0 %v3423
        %v3626 = vpop.f32.mrf.mxu0
        %v3627 = vadd.f32 0.0, %v3626
        %v3628 = vpop.f32.mrf.mxu0
        %3629 = vmatprep.mubr.f32.mxu0 0.0
        %3630 = vmatmul.mubr.f32.gmra.mxu0 %v3425
        %v3631 = vpop.f32.mrf.mxu0
        %v3632 = vadd.f32 0.0, %v3631
        %v3633 = vpop.f32.mrf.mxu0
        %3634 = vmatprep.mubr.f32.mxu0 0.0
        %3635 = vmatmul.mubr.f32.gmra.mxu0 %v3427
        %v3636 = vpop.f32.mrf.mxu0
        %v3637 = vadd.f32 0.0, %v3636
        %v3638 = vpop.f32.mrf.mxu0
        %3639 = vmatprep.mubr.f32.mxu0 0.0
        %3640 = vmatmul.mubr.f32.gmra.mxu0 %v3429
        %v3641 = vpop.f32.mrf.mxu0
        %v3642 = vadd.f32 0.0, %v3641
        %v3643 = vpop.f32.mrf.mxu0
        %3644 = vmatprep.mubr.f32.mxu0 0.0
        %3645 = vmatmul.mubr.f32.gmra.mxu0 %v3431
        %v3646 = vpop.f32.mrf.mxu0
        %v3647 = vadd.f32 0.0, %v3646
        %v3648 = vpop.f32.mrf.mxu0
        %3649 = vmatprep.mubr.f32.mxu0 0.0
        %3650 = vmatmul.mubr.f32.gmra.mxu0 %v3433
        %v3651 = vpop.f32.mrf.mxu0
        %v3652 = vadd.f32 0.0, %v3651
        %v3653 = vpop.f32.mrf.mxu0
        %3654 = vmatprep.mubr.f32.mxu0 0.0
        %3655 = vmatmul.mubr.f32.gmra.mxu0 %v3553
        %v3656 = vpop.f32.mrf.mxu0
        %v3657 = vadd.f32 0.0, %v3656
        %v3658 = vpop.f32.mrf.mxu0
        %3659 = vdwg.mxu0
        %v3660 = vadd.f32 %v3540, %v3622
        %v3661 = vadd.f32 %v3541, %v3627
        %v3662 = vadd.f32 %v3542, %v3632
        %v3663 = vadd.f32 %v3543, %v3637
        %v3664 = vadd.f32 %v3544, %v3642
        %v3665 = vadd.f32 %v3545, %v3647
        %v3666 = vadd.f32 %v3546, %v3652
        %v3667 = vadd.f32 %v3547, %v3657
        %v3668 = vrot.slane %v1510, 3
        %v3669 = vrot.slane %v1511, 3
        %v3670 = vsel %vm3392, %v3668, %v3669
        %s3671 = scalar_lea.vmem %s4, 136
        %v3672 = vld [vmem:[%s3671] sm:$0xff]
        %v3673 = vsel %vm1381, %v3670, 0
        %3675 = vmatprep.subr.mxu0 0.0
        %3676 = vmatpush1.msra.mxu0 0.0
        %3677 = vmatprep.subr.mxu0 0.0
        %3678 = vmatpush1.msra.mxu0 0.0
        %3679 = vmatprep.subr.mxu0 0.0
        %3680 = vmatpush1.msra.mxu0 0.0
        %3681 = vmatprep.subr.mxu0 0.0
        %3682 = vmatpush1.msra.mxu0 0.0
        %3683 = vmatprep.subr.mxu0 0.0
        %3684 = vmatpush1.msra.mxu0 0.0
        %3685 = vmatprep.subr.mxu0 0.0
        %3686 = vmatpush1.msra.mxu0 0.0
        %3687 = vmatprep.subr.mxu0 0.0
        %3688 = vmatpush1.msra.mxu0 0.0
        %3689 = vmatprep.subr.mxu0 0.0
        %3690 = vmatpush1.msra.mxu0 0.0
        %3691 = vmatprep.subr.mxu0 0.0
        %3692 = vmatpush1.msra.mxu0 0.0
        %3693 = vmatprep.subr.mxu0 0.0
        %3694 = vmatpush1.msra.mxu0 0.0
        %3695 = vmatprep.subr.mxu0 0.0
        %3696 = vmatpush1.msra.mxu0 0.0
        %3697 = vmatprep.subr.mxu0 0.0
        %3698 = vmatpush1.msra.mxu0 0.0
        %3699 = vmatprep.subr.mxu0 0.0
        %3700 = vmatpush1.msra.mxu0 0.0
        %3701 = vmatprep.subr.mxu0 0.0
        %3702 = vmatpush1.msra.mxu0 0.0
        %3703 = vmatprep.subr.mxu0 0.0
        %3704 = vmatpush1.msra.mxu0 0.0
        %3705 = vmatprep.subr.mxu0 0.0
        %3706 = vmatpush1.msra.mxu0 %v3672
        %3707 = vmatprep.subr.mxu0 0.0
        %3708 = vmatpush2.msra.mxu0 0.0
        %3709 = vmatprep.subr.mxu0 0.0
        %3710 = vmatpush2.msra.mxu0 0.0
        %3711 = vmatprep.subr.mxu0 0.0
        %3712 = vmatpush2.msra.mxu0 0.0
        %3713 = vmatprep.subr.mxu0 0.0
        %3714 = vmatpush2.msra.mxu0 0.0
        %3715 = vmatprep.subr.mxu0 0.0
        %3716 = vmatpush2.msra.mxu0 0.0
        %3717 = vmatprep.subr.mxu0 0.0
        %3718 = vmatpush2.msra.mxu0 0.0
        %3719 = vmatprep.subr.mxu0 0.0
        %3720 = vmatpush2.msra.mxu0 0.0
        %3721 = vmatprep.subr.mxu0 0.0
        %3722 = vmatpush2.msra.mxu0 0.0
        %3723 = vmatprep.subr.mxu0 0.0
        %3724 = vmatpush2.msra.mxu0 0.0
        %3725 = vmatprep.subr.mxu0 0.0
        %3726 = vmatpush2.msra.mxu0 0.0
        %3727 = vmatprep.subr.mxu0 0.0
        %3728 = vmatpush2.msra.mxu0 0.0
        %3729 = vmatprep.subr.mxu0 0.0
        %3730 = vmatpush2.msra.mxu0 0.0
        %3731 = vmatprep.subr.mxu0 0.0
        %3732 = vmatpush2.msra.mxu0 0.0
        %3733 = vmatprep.subr.mxu0 0.0
        %3734 = vmatpush2.msra.mxu0 0.0
        %3735 = vmatprep.subr.mxu0 0.0
        %3736 = vmatpush2.msra.mxu0 0.0
        %3737 = vmatprep.subr.mxu0 0.0
        %3738 = vmatpush2.msra.mxu0 0.0
        %3739 = vmatprep.mubr.f32.mxu0 0.0
        %3740 = vmatmul.mubr.f32.gmra.mxu0 %v3423
        %v3741 = vpop.f32.mrf.mxu0
        %v3742 = vadd.f32 0.0, %v3741
        %v3743 = vpop.f32.mrf.mxu0
        %3744 = vmatprep.mubr.f32.mxu0 0.0
        %3745 = vmatmul.mubr.f32.gmra.mxu0 %v3425
        %v3746 = vpop.f32.mrf.mxu0
        %v3747 = vadd.f32 0.0, %v3746
        %v3748 = vpop.f32.mrf.mxu0
        %3749 = vmatprep.mubr.f32.mxu0 0.0
        %3750 = vmatmul.mubr.f32.gmra.mxu0 %v3427
        %v3751 = vpop.f32.mrf.mxu0
        %v3752 = vadd.f32 0.0, %v3751
        %v3753 = vpop.f32.mrf.mxu0
        %3754 = vmatprep.mubr.f32.mxu0 0.0
        %3755 = vmatmul.mubr.f32.gmra.mxu0 %v3429
        %v3756 = vpop.f32.mrf.mxu0
        %v3757 = vadd.f32 0.0, %v3756
        %v3758 = vpop.f32.mrf.mxu0
        %3759 = vmatprep.mubr.f32.mxu0 0.0
        %3760 = vmatmul.mubr.f32.gmra.mxu0 %v3431
        %v3761 = vpop.f32.mrf.mxu0
        %v3762 = vadd.f32 0.0, %v3761
        %v3763 = vpop.f32.mrf.mxu0
        %3764 = vmatprep.mubr.f32.mxu0 0.0
        %3765 = vmatmul.mubr.f32.gmra.mxu0 %v3433
        %v3766 = vpop.f32.mrf.mxu0
        %v3767 = vadd.f32 0.0, %v3766
        %v3768 = vpop.f32.mrf.mxu0
        %3769 = vmatprep.mubr.f32.mxu0 0.0
        %3770 = vmatmul.mubr.f32.gmra.mxu0 %v3553
        %v3771 = vpop.f32.mrf.mxu0
        %v3772 = vadd.f32 0.0, %v3771
        %v3773 = vpop.f32.mrf.mxu0
        %3774 = vmatprep.mubr.f32.mxu0 0.0
        %3775 = vmatmul.mubr.f32.gmra.mxu0 %v3673
        %v3776 = vpop.f32.mrf.mxu0
        %v3777 = vadd.f32 0.0, %v3776
        %v3778 = vpop.f32.mrf.mxu0
        %3779 = vdwg.mxu0
        %v3780 = vadd.f32 %v3660, %v3742
        %v3781 = vadd.f32 %v3661, %v3747
        %v3782 = vadd.f32 %v3662, %v3752
        %v3783 = vadd.f32 %v3663, %v3757
        %v3784 = vadd.f32 %v3664, %v3762
        %v3785 = vadd.f32 %v3665, %v3767
        %v3786 = vadd.f32 %v3666, %v3772
        %v3787 = vadd.f32 %v3667, %v3777
        %v3788 = vrot.slane %v1512, 3
        %v3789 = vrot.slane %v1513, 3
        %v3790 = vsel %vm3392, %v3788, %v3789
        %s3791 = scalar_lea.vmem %s4, 144
        %v3792 = vld [vmem:[%s3791] sm:$0xff]
        %v3793 = vsel %vm1381, %v3790, 0
        %3795 = vmatprep.subr.mxu0 0.0
        %3796 = vmatpush1.msra.mxu0 0.0
        %3797 = vmatprep.subr.mxu0 0.0
        %3798 = vmatpush1.msra.mxu0 0.0
        %3799 = vmatprep.subr.mxu0 0.0
        %3800 = vmatpush1.msra.mxu0 0.0
        %3801 = vmatprep.subr.mxu0 0.0
        %3802 = vmatpush1.msra.mxu0 0.0
        %3803 = vmatprep.subr.mxu0 0.0
        %3804 = vmatpush1.msra.mxu0 0.0
        %3805 = vmatprep.subr.mxu0 0.0
        %3806 = vmatpush1.msra.mxu0 0.0
        %3807 = vmatprep.subr.mxu0 0.0
        %3808 = vmatpush1.msra.mxu0 0.0
        %3809 = vmatprep.subr.mxu0 0.0
        %3810 = vmatpush1.msra.mxu0 0.0
        %3811 = vmatprep.subr.mxu0 0.0
        %3812 = vmatpush1.msra.mxu0 0.0
        %3813 = vmatprep.subr.mxu0 0.0
        %3814 = vmatpush1.msra.mxu0 0.0
        %3815 = vmatprep.subr.mxu0 0.0
        %3816 = vmatpush1.msra.mxu0 0.0
        %3817 = vmatprep.subr.mxu0 0.0
        %3818 = vmatpush1.msra.mxu0 0.0
        %3819 = vmatprep.subr.mxu0 0.0
        %3820 = vmatpush1.msra.mxu0 0.0
        %3821 = vmatprep.subr.mxu0 0.0
        %3822 = vmatpush1.msra.mxu0 0.0
        %3823 = vmatprep.subr.mxu0 0.0
        %3824 = vmatpush1.msra.mxu0 0.0
        %3825 = vmatprep.subr.mxu0 0.0
        %3826 = vmatpush1.msra.mxu0 %v3792
        %3827 = vmatprep.subr.mxu0 0.0
        %3828 = vmatpush2.msra.mxu0 0.0
        %3829 = vmatprep.subr.mxu0 0.0
        %3830 = vmatpush2.msra.mxu0 0.0
        %3831 = vmatprep.subr.mxu0 0.0
        %3832 = vmatpush2.msra.mxu0 0.0
        %3833 = vmatprep.subr.mxu0 0.0
        %3834 = vmatpush2.msra.mxu0 0.0
        %3835 = vmatprep.subr.mxu0 0.0
        %3836 = vmatpush2.msra.mxu0 0.0
        %3837 = vmatprep.subr.mxu0 0.0
        %3838 = vmatpush2.msra.mxu0 0.0
        %3839 = vmatprep.subr.mxu0 0.0
        %3840 = vmatpush2.msra.mxu0 0.0
        %3841 = vmatprep.subr.mxu0 0.0
        %3842 = vmatpush2.msra.mxu0 0.0
        %3843 = vmatprep.subr.mxu0 0.0
        %3844 = vmatpush2.msra.mxu0 0.0
        %3845 = vmatprep.subr.mxu0 0.0
        %3846 = vmatpush2.msra.mxu0 0.0
        %3847 = vmatprep.subr.mxu0 0.0
        %3848 = vmatpush2.msra.mxu0 0.0
        %3849 = vmatprep.subr.mxu0 0.0
        %3850 = vmatpush2.msra.mxu0 0.0
        %3851 = vmatprep.subr.mxu0 0.0
        %3852 = vmatpush2.msra.mxu0 0.0
        %3853 = vmatprep.subr.mxu0 0.0
        %3854 = vmatpush2.msra.mxu0 0.0
        %3855 = vmatprep.subr.mxu0 0.0
        %3856 = vmatpush2.msra.mxu0 0.0
        %3857 = vmatprep.subr.mxu0 0.0
        %3858 = vmatpush2.msra.mxu0 0.0
        %3859 = vmatprep.mubr.f32.mxu0 0.0
        %3860 = vmatmul.mubr.f32.gmra.mxu0 %v3425
        %v3861 = vpop.f32.mrf.mxu0
        %v3862 = vadd.f32 0.0, %v3861
        %v3863 = vpop.f32.mrf.mxu0
        %3864 = vmatprep.mubr.f32.mxu0 0.0
        %3865 = vmatmul.mubr.f32.gmra.mxu0 %v3427
        %v3866 = vpop.f32.mrf.mxu0
        %v3867 = vadd.f32 0.0, %v3866
        %v3868 = vpop.f32.mrf.mxu0
        %3869 = vmatprep.mubr.f32.mxu0 0.0
        %3870 = vmatmul.mubr.f32.gmra.mxu0 %v3429
        %v3871 = vpop.f32.mrf.mxu0
        %v3872 = vadd.f32 0.0, %v3871
        %v3873 = vpop.f32.mrf.mxu0
        %3874 = vmatprep.mubr.f32.mxu0 0.0
        %3875 = vmatmul.mubr.f32.gmra.mxu0 %v3431
        %v3876 = vpop.f32.mrf.mxu0
        %v3877 = vadd.f32 0.0, %v3876
        %v3878 = vpop.f32.mrf.mxu0
        %3879 = vmatprep.mubr.f32.mxu0 0.0
        %3880 = vmatmul.mubr.f32.gmra.mxu0 %v3433
        %v3881 = vpop.f32.mrf.mxu0
        %v3882 = vadd.f32 0.0, %v3881
        %v3883 = vpop.f32.mrf.mxu0
        %3884 = vmatprep.mubr.f32.mxu0 0.0
        %3885 = vmatmul.mubr.f32.gmra.mxu0 %v3553
        %v3886 = vpop.f32.mrf.mxu0
        %v3887 = vadd.f32 0.0, %v3886
        %v3888 = vpop.f32.mrf.mxu0
        %3889 = vmatprep.mubr.f32.mxu0 0.0
        %3890 = vmatmul.mubr.f32.gmra.mxu0 %v3673
        %v3891 = vpop.f32.mrf.mxu0
        %v3892 = vadd.f32 0.0, %v3891
        %v3893 = vpop.f32.mrf.mxu0
        %3894 = vmatprep.mubr.f32.mxu0 0.0
        %3895 = vmatmul.mubr.f32.gmra.mxu0 %v3793
        %v3896 = vpop.f32.mrf.mxu0
        %v3897 = vadd.f32 0.0, %v3896
        %v3898 = vpop.f32.mrf.mxu0
        %3899 = vdwg.mxu0
        %v3900 = vadd.f32 %v3780, %v3862
        %v3901 = vadd.f32 %v3781, %v3867
        %v3902 = vadd.f32 %v3782, %v3872
        %v3903 = vadd.f32 %v3783, %v3877
        %v3904 = vadd.f32 %v3784, %v3882
        %v3905 = vadd.f32 %v3785, %v3887
        %v3906 = vadd.f32 %v3786, %v3892
        %v3907 = vadd.f32 %v3787, %v3897
        %v3908 = vrot.slane %v1514, 3
        %v3909 = vrot.slane %v1515, 3
        %v3910 = vsel %vm3392, %v3908, %v3909
        %s3911 = scalar_lea.vmem %s4, 152
        %v3912 = vld [vmem:[%s3911] sm:$0xff]
        %v3913 = vsel %vm1381, %v3910, 0
        %3915 = vmatprep.subr.mxu0 0.0
        %3916 = vmatpush1.msra.mxu0 0.0
        %3917 = vmatprep.subr.mxu0 0.0
        %3918 = vmatpush1.msra.mxu0 0.0
        %3919 = vmatprep.subr.mxu0 0.0
        %3920 = vmatpush1.msra.mxu0 0.0
        %3921 = vmatprep.subr.mxu0 0.0
        %3922 = vmatpush1.msra.mxu0 0.0
        %3923 = vmatprep.subr.mxu0 0.0
        %3924 = vmatpush1.msra.mxu0 0.0
        %3925 = vmatprep.subr.mxu0 0.0
        %3926 = vmatpush1.msra.mxu0 0.0
        %3927 = vmatprep.subr.mxu0 0.0
        %3928 = vmatpush1.msra.mxu0 0.0
        %3929 = vmatprep.subr.mxu0 0.0
        %3930 = vmatpush1.msra.mxu0 0.0
        %3931 = vmatprep.subr.mxu0 0.0
        %3932 = vmatpush1.msra.mxu0 0.0
        %3933 = vmatprep.subr.mxu0 0.0
        %3934 = vmatpush1.msra.mxu0 0.0
        %3935 = vmatprep.subr.mxu0 0.0
        %3936 = vmatpush1.msra.mxu0 0.0
        %3937 = vmatprep.subr.mxu0 0.0
        %3938 = vmatpush1.msra.mxu0 0.0
        %3939 = vmatprep.subr.mxu0 0.0
        %3940 = vmatpush1.msra.mxu0 0.0
        %3941 = vmatprep.subr.mxu0 0.0
        %3942 = vmatpush1.msra.mxu0 0.0
        %3943 = vmatprep.subr.mxu0 0.0
        %3944 = vmatpush1.msra.mxu0 0.0
        %3945 = vmatprep.subr.mxu0 0.0
        %3946 = vmatpush1.msra.mxu0 %v3912
        %3947 = vmatprep.subr.mxu0 0.0
        %3948 = vmatpush2.msra.mxu0 0.0
        %3949 = vmatprep.subr.mxu0 0.0
        %3950 = vmatpush2.msra.mxu0 0.0
        %3951 = vmatprep.subr.mxu0 0.0
        %3952 = vmatpush2.msra.mxu0 0.0
        %3953 = vmatprep.subr.mxu0 0.0
        %3954 = vmatpush2.msra.mxu0 0.0
        %3955 = vmatprep.subr.mxu0 0.0
        %3956 = vmatpush2.msra.mxu0 0.0
        %3957 = vmatprep.subr.mxu0 0.0
        %3958 = vmatpush2.msra.mxu0 0.0
        %3959 = vmatprep.subr.mxu0 0.0
        %3960 = vmatpush2.msra.mxu0 0.0
        %3961 = vmatprep.subr.mxu0 0.0
        %3962 = vmatpush2.msra.mxu0 0.0
        %3963 = vmatprep.subr.mxu0 0.0
        %3964 = vmatpush2.msra.mxu0 0.0
        %3965 = vmatprep.subr.mxu0 0.0
        %3966 = vmatpush2.msra.mxu0 0.0
        %3967 = vmatprep.subr.mxu0 0.0
        %3968 = vmatpush2.msra.mxu0 0.0
        %3969 = vmatprep.subr.mxu0 0.0
        %3970 = vmatpush2.msra.mxu0 0.0
        %3971 = vmatprep.subr.mxu0 0.0
        %3972 = vmatpush2.msra.mxu0 0.0
        %3973 = vmatprep.subr.mxu0 0.0
        %3974 = vmatpush2.msra.mxu0 0.0
        %3975 = vmatprep.subr.mxu0 0.0
        %3976 = vmatpush2.msra.mxu0 0.0
        %3977 = vmatprep.subr.mxu0 0.0
        %3978 = vmatpush2.msra.mxu0 0.0
        %3979 = vmatprep.mubr.f32.mxu0 0.0
        %3980 = vmatmul.mubr.f32.gmra.mxu0 %v3427
        %v3981 = vpop.f32.mrf.mxu0
        %v3982 = vadd.f32 0.0, %v3981
        %v3983 = vpop.f32.mrf.mxu0
        %3984 = vmatprep.mubr.f32.mxu0 0.0
        %3985 = vmatmul.mubr.f32.gmra.mxu0 %v3429
        %v3986 = vpop.f32.mrf.mxu0
        %v3987 = vadd.f32 0.0, %v3986
        %v3988 = vpop.f32.mrf.mxu0
        %3989 = vmatprep.mubr.f32.mxu0 0.0
        %3990 = vmatmul.mubr.f32.gmra.mxu0 %v3431
        %v3991 = vpop.f32.mrf.mxu0
        %v3992 = vadd.f32 0.0, %v3991
        %v3993 = vpop.f32.mrf.mxu0
        %3994 = vmatprep.mubr.f32.mxu0 0.0
        %3995 = vmatmul.mubr.f32.gmra.mxu0 %v3433
        %v3996 = vpop.f32.mrf.mxu0
        %v3997 = vadd.f32 0.0, %v3996
        %v3998 = vpop.f32.mrf.mxu0
        %3999 = vmatprep.mubr.f32.mxu0 0.0
        %4000 = vmatmul.mubr.f32.gmra.mxu0 %v3553
        %v4001 = vpop.f32.mrf.mxu0
        %v4002 = vadd.f32 0.0, %v4001
        %v4003 = vpop.f32.mrf.mxu0
        %4004 = vmatprep.mubr.f32.mxu0 0.0
        %4005 = vmatmul.mubr.f32.gmra.mxu0 %v3673
        %v4006 = vpop.f32.mrf.mxu0
        %v4007 = vadd.f32 0.0, %v4006
        %v4008 = vpop.f32.mrf.mxu0
        %4009 = vmatprep.mubr.f32.mxu0 0.0
        %4010 = vmatmul.mubr.f32.gmra.mxu0 %v3793
        %v4011 = vpop.f32.mrf.mxu0
        %v4012 = vadd.f32 0.0, %v4011
        %v4013 = vpop.f32.mrf.mxu0
        %4014 = vmatprep.mubr.f32.mxu0 0.0
        %4015 = vmatmul.mubr.f32.gmra.mxu0 %v3913
        %v4016 = vpop.f32.mrf.mxu0
        %v4017 = vadd.f32 0.0, %v4016
        %v4018 = vpop.f32.mrf.mxu0
        %4019 = vdwg.mxu0
        %v4020 = vadd.f32 %v3900, %v3982
        %v4021 = vadd.f32 %v3901, %v3987
        %v4022 = vadd.f32 %v3902, %v3992
        %v4023 = vadd.f32 %v3903, %v3997
        %v4024 = vadd.f32 %v3904, %v4002
        %v4025 = vadd.f32 %v3905, %v4007
        %v4026 = vadd.f32 %v3906, %v4012
        %v4027 = vadd.f32 %v3907, %v4017
        %v4028 = vrot.slane %v1492, 4
        %v4029 = vrot.slane %v1493, 4
        %v4030 = vsel %vm459, %v4028, %v4029
        %v4031 = vrot.slane %v1494, 4
        %v4032 = vrot.slane %v1495, 4
        %v4033 = vsel %vm459, %v4031, %v4032
        %v4034 = vrot.slane %v1496, 4
        %v4035 = vrot.slane %v1497, 4
        %v4036 = vsel %vm459, %v4034, %v4035
        %v4037 = vrot.slane %v1498, 4
        %v4038 = vrot.slane %v1499, 4
        %v4039 = vsel %vm459, %v4037, %v4038
        %v4040 = vrot.slane %v1500, 4
        %v4041 = vrot.slane %v1501, 4
        %v4042 = vsel %vm459, %v4040, %v4041
        %v4043 = vrot.slane %v1502, 4
        %v4044 = vrot.slane %v1503, 4
        %v4045 = vsel %vm459, %v4043, %v4044
        %v4046 = vrot.slane %v1504, 4
        %v4047 = vrot.slane %v1505, 4
        %v4048 = vsel %vm459, %v4046, %v4047
        %v4049 = vrot.slane %v1506, 4
        %v4050 = vrot.slane %v1507, 4
        %v4051 = vsel %vm459, %v4049, %v4050
        %s4052 = scalar_lea.vmem %s4, 160
        %v4053 = vld [vmem:[%s4052] sm:$0xff]
        %v4054 = vsel %vm1381, %v4030, 0
        %v4056 = vsel %vm1381, %v4033, 0
        %v4058 = vsel %vm1381, %v4036, 0
        %v4060 = vsel %vm1381, %v4039, 0
        %v4062 = vsel %vm1381, %v4042, 0
        %v4064 = vsel %vm1381, %v4045, 0
        %v4066 = vsel %vm1381, %v4048, 0
        %v4068 = vsel %vm1381, %v4051, 0
        %4070 = vmatprep.subr.mxu0 0.0
        %4071 = vmatpush1.msra.mxu0 0.0
        %4072 = vmatprep.subr.mxu0 0.0
        %4073 = vmatpush1.msra.mxu0 0.0
        %4074 = vmatprep.subr.mxu0 0.0
        %4075 = vmatpush1.msra.mxu0 0.0
        %4076 = vmatprep.subr.mxu0 0.0
        %4077 = vmatpush1.msra.mxu0 0.0
        %4078 = vmatprep.subr.mxu0 0.0
        %4079 = vmatpush1.msra.mxu0 0.0
        %4080 = vmatprep.subr.mxu0 0.0
        %4081 = vmatpush1.msra.mxu0 0.0
        %4082 = vmatprep.subr.mxu0 0.0
        %4083 = vmatpush1.msra.mxu0 0.0
        %4084 = vmatprep.subr.mxu0 0.0
        %4085 = vmatpush1.msra.mxu0 0.0
        %4086 = vmatprep.subr.mxu0 0.0
        %4087 = vmatpush1.msra.mxu0 0.0
        %4088 = vmatprep.subr.mxu0 0.0
        %4089 = vmatpush1.msra.mxu0 0.0
        %4090 = vmatprep.subr.mxu0 0.0
        %4091 = vmatpush1.msra.mxu0 0.0
        %4092 = vmatprep.subr.mxu0 0.0
        %4093 = vmatpush1.msra.mxu0 0.0
        %4094 = vmatprep.subr.mxu0 0.0
        %4095 = vmatpush1.msra.mxu0 0.0
        %4096 = vmatprep.subr.mxu0 0.0
        %4097 = vmatpush1.msra.mxu0 0.0
        %4098 = vmatprep.subr.mxu0 0.0
        %4099 = vmatpush1.msra.mxu0 0.0
        %4100 = vmatprep.subr.mxu0 0.0
        %4101 = vmatpush1.msra.mxu0 %v4053
        %4102 = vmatprep.subr.mxu0 0.0
        %4103 = vmatpush2.msra.mxu0 0.0
        %4104 = vmatprep.subr.mxu0 0.0
        %4105 = vmatpush2.msra.mxu0 0.0
        %4106 = vmatprep.subr.mxu0 0.0
        %4107 = vmatpush2.msra.mxu0 0.0
        %4108 = vmatprep.subr.mxu0 0.0
        %4109 = vmatpush2.msra.mxu0 0.0
        %4110 = vmatprep.subr.mxu0 0.0
        %4111 = vmatpush2.msra.mxu0 0.0
        %4112 = vmatprep.subr.mxu0 0.0
        %4113 = vmatpush2.msra.mxu0 0.0
        %4114 = vmatprep.subr.mxu0 0.0
        %4115 = vmatpush2.msra.mxu0 0.0
        %4116 = vmatprep.subr.mxu0 0.0
        %4117 = vmatpush2.msra.mxu0 0.0
        %4118 = vmatprep.subr.mxu0 0.0
        %4119 = vmatpush2.msra.mxu0 0.0
        %4120 = vmatprep.subr.mxu0 0.0
        %4121 = vmatpush2.msra.mxu0 0.0
        %4122 = vmatprep.subr.mxu0 0.0
        %4123 = vmatpush2.msra.mxu0 0.0
        %4124 = vmatprep.subr.mxu0 0.0
        %4125 = vmatpush2.msra.mxu0 0.0
        %4126 = vmatprep.subr.mxu0 0.0
        %4127 = vmatpush2.msra.mxu0 0.0
        %4128 = vmatprep.subr.mxu0 0.0
        %4129 = vmatpush2.msra.mxu0 0.0
        %4130 = vmatprep.subr.mxu0 0.0
        %4131 = vmatpush2.msra.mxu0 0.0
        %4132 = vmatprep.subr.mxu0 0.0
        %4133 = vmatpush2.msra.mxu0 0.0
        %4134 = vmatprep.mubr.f32.mxu0 0.0
        %4135 = vmatmul.mubr.f32.gmra.mxu0 %v4054
        %v4136 = vpop.f32.mrf.mxu0
        %v4137 = vadd.f32 0.0, %v4136
        %v4138 = vpop.f32.mrf.mxu0
        %4139 = vmatprep.mubr.f32.mxu0 0.0
        %4140 = vmatmul.mubr.f32.gmra.mxu0 %v4056
        %v4141 = vpop.f32.mrf.mxu0
        %v4142 = vadd.f32 0.0, %v4141
        %v4143 = vpop.f32.mrf.mxu0
        %4144 = vmatprep.mubr.f32.mxu0 0.0
        %4145 = vmatmul.mubr.f32.gmra.mxu0 %v4058
        %v4146 = vpop.f32.mrf.mxu0
        %v4147 = vadd.f32 0.0, %v4146
        %v4148 = vpop.f32.mrf.mxu0
        %4149 = vmatprep.mubr.f32.mxu0 0.0
        %4150 = vmatmul.mubr.f32.gmra.mxu0 %v4060
        %v4151 = vpop.f32.mrf.mxu0
        %v4152 = vadd.f32 0.0, %v4151
        %v4153 = vpop.f32.mrf.mxu0
        %4154 = vmatprep.mubr.f32.mxu0 0.0
        %4155 = vmatmul.mubr.f32.gmra.mxu0 %v4062
        %v4156 = vpop.f32.mrf.mxu0
        %v4157 = vadd.f32 0.0, %v4156
        %v4158 = vpop.f32.mrf.mxu0
        %4159 = vmatprep.mubr.f32.mxu0 0.0
        %4160 = vmatmul.mubr.f32.gmra.mxu0 %v4064
        %v4161 = vpop.f32.mrf.mxu0
        %v4162 = vadd.f32 0.0, %v4161
        %v4163 = vpop.f32.mrf.mxu0
        %4164 = vmatprep.mubr.f32.mxu0 0.0
        %4165 = vmatmul.mubr.f32.gmra.mxu0 %v4066
        %v4166 = vpop.f32.mrf.mxu0
        %v4167 = vadd.f32 0.0, %v4166
        %v4168 = vpop.f32.mrf.mxu0
        %4169 = vmatprep.mubr.f32.mxu0 0.0
        %4170 = vmatmul.mubr.f32.gmra.mxu0 %v4068
        %v4171 = vpop.f32.mrf.mxu0
        %v4172 = vadd.f32 0.0, %v4171
        %v4173 = vpop.f32.mrf.mxu0
        %4174 = vdwg.mxu0
        %v4175 = vadd.f32 %v4020, %v4137
        %v4176 = vadd.f32 %v4021, %v4142
        %v4177 = vadd.f32 %v4022, %v4147
        %v4178 = vadd.f32 %v4023, %v4152
        %v4179 = vadd.f32 %v4024, %v4157
        %v4180 = vadd.f32 %v4025, %v4162
        %v4181 = vadd.f32 %v4026, %v4167
        %v4182 = vadd.f32 %v4027, %v4172
        %v4183 = vrot.slane %v1508, 4
        %v4184 = vrot.slane %v1509, 4
        %v4185 = vsel %vm459, %v4183, %v4184
        %s4186 = scalar_lea.vmem %s4, 168
        %v4187 = vld [vmem:[%s4186] sm:$0xff]
        %v4188 = vsel %vm1381, %v4185, 0
        %4190 = vmatprep.subr.mxu0 0.0
        %4191 = vmatpush1.msra.mxu0 0.0
        %4192 = vmatprep.subr.mxu0 0.0
        %4193 = vmatpush1.msra.mxu0 0.0
        %4194 = vmatprep.subr.mxu0 0.0
        %4195 = vmatpush1.msra.mxu0 0.0
        %4196 = vmatprep.subr.mxu0 0.0
        %4197 = vmatpush1.msra.mxu0 0.0
        %4198 = vmatprep.subr.mxu0 0.0
        %4199 = vmatpush1.msra.mxu0 0.0
        %4200 = vmatprep.subr.mxu0 0.0
        %4201 = vmatpush1.msra.mxu0 0.0
        %4202 = vmatprep.subr.mxu0 0.0
        %4203 = vmatpush1.msra.mxu0 0.0
        %4204 = vmatprep.subr.mxu0 0.0
        %4205 = vmatpush1.msra.mxu0 0.0
        %4206 = vmatprep.subr.mxu0 0.0
        %4207 = vmatpush1.msra.mxu0 0.0
        %4208 = vmatprep.subr.mxu0 0.0
        %4209 = vmatpush1.msra.mxu0 0.0
        %4210 = vmatprep.subr.mxu0 0.0
        %4211 = vmatpush1.msra.mxu0 0.0
        %4212 = vmatprep.subr.mxu0 0.0
        %4213 = vmatpush1.msra.mxu0 0.0
        %4214 = vmatprep.subr.mxu0 0.0
        %4215 = vmatpush1.msra.mxu0 0.0
        %4216 = vmatprep.subr.mxu0 0.0
        %4217 = vmatpush1.msra.mxu0 0.0
        %4218 = vmatprep.subr.mxu0 0.0
        %4219 = vmatpush1.msra.mxu0 0.0
        %4220 = vmatprep.subr.mxu0 0.0
        %4221 = vmatpush1.msra.mxu0 %v4187
        %4222 = vmatprep.subr.mxu0 0.0
        %4223 = vmatpush2.msra.mxu0 0.0
        %4224 = vmatprep.subr.mxu0 0.0
        %4225 = vmatpush2.msra.mxu0 0.0
        %4226 = vmatprep.subr.mxu0 0.0
        %4227 = vmatpush2.msra.mxu0 0.0
        %4228 = vmatprep.subr.mxu0 0.0
        %4229 = vmatpush2.msra.mxu0 0.0
        %4230 = vmatprep.subr.mxu0 0.0
        %4231 = vmatpush2.msra.mxu0 0.0
        %4232 = vmatprep.subr.mxu0 0.0
        %4233 = vmatpush2.msra.mxu0 0.0
        %4234 = vmatprep.subr.mxu0 0.0
        %4235 = vmatpush2.msra.mxu0 0.0
        %4236 = vmatprep.subr.mxu0 0.0
        %4237 = vmatpush2.msra.mxu0 0.0
        %4238 = vmatprep.subr.mxu0 0.0
        %4239 = vmatpush2.msra.mxu0 0.0
        %4240 = vmatprep.subr.mxu0 0.0
        %4241 = vmatpush2.msra.mxu0 0.0
        %4242 = vmatprep.subr.mxu0 0.0
        %4243 = vmatpush2.msra.mxu0 0.0
        %4244 = vmatprep.subr.mxu0 0.0
        %4245 = vmatpush2.msra.mxu0 0.0
        %4246 = vmatprep.subr.mxu0 0.0
        %4247 = vmatpush2.msra.mxu0 0.0
        %4248 = vmatprep.subr.mxu0 0.0
        %4249 = vmatpush2.msra.mxu0 0.0
        %4250 = vmatprep.subr.mxu0 0.0
        %4251 = vmatpush2.msra.mxu0 0.0
        %4252 = vmatprep.subr.mxu0 0.0
        %4253 = vmatpush2.msra.mxu0 0.0
        %4254 = vmatprep.mubr.f32.mxu0 0.0
        %4255 = vmatmul.mubr.f32.gmra.mxu0 %v4056
        %v4256 = vpop.f32.mrf.mxu0
        %v4257 = vadd.f32 0.0, %v4256
        %v4258 = vpop.f32.mrf.mxu0
        %4259 = vmatprep.mubr.f32.mxu0 0.0
        %4260 = vmatmul.mubr.f32.gmra.mxu0 %v4058
        %v4261 = vpop.f32.mrf.mxu0
        %v4262 = vadd.f32 0.0, %v4261
        %v4263 = vpop.f32.mrf.mxu0
        %4264 = vmatprep.mubr.f32.mxu0 0.0
        %4265 = vmatmul.mubr.f32.gmra.mxu0 %v4060
        %v4266 = vpop.f32.mrf.mxu0
        %v4267 = vadd.f32 0.0, %v4266
        %v4268 = vpop.f32.mrf.mxu0
        %4269 = vmatprep.mubr.f32.mxu0 0.0
        %4270 = vmatmul.mubr.f32.gmra.mxu0 %v4062
        %v4271 = vpop.f32.mrf.mxu0
        %v4272 = vadd.f32 0.0, %v4271
        %v4273 = vpop.f32.mrf.mxu0
        %4274 = vmatprep.mubr.f32.mxu0 0.0
        %4275 = vmatmul.mubr.f32.gmra.mxu0 %v4064
        %v4276 = vpop.f32.mrf.mxu0
        %v4277 = vadd.f32 0.0, %v4276
        %v4278 = vpop.f32.mrf.mxu0
        %4279 = vmatprep.mubr.f32.mxu0 0.0
        %4280 = vmatmul.mubr.f32.gmra.mxu0 %v4066
        %v4281 = vpop.f32.mrf.mxu0
        %v4282 = vadd.f32 0.0, %v4281
        %v4283 = vpop.f32.mrf.mxu0
        %4284 = vmatprep.mubr.f32.mxu0 0.0
        %4285 = vmatmul.mubr.f32.gmra.mxu0 %v4068
        %v4286 = vpop.f32.mrf.mxu0
        %v4287 = vadd.f32 0.0, %v4286
        %v4288 = vpop.f32.mrf.mxu0
        %4289 = vmatprep.mubr.f32.mxu0 0.0
        %4290 = vmatmul.mubr.f32.gmra.mxu0 %v4188
        %v4291 = vpop.f32.mrf.mxu0
        %v4292 = vadd.f32 0.0, %v4291
        %v4293 = vpop.f32.mrf.mxu0
        %4294 = vdwg.mxu0
        %v4295 = vadd.f32 %v4175, %v4257
        %v4296 = vadd.f32 %v4176, %v4262
        %v4297 = vadd.f32 %v4177, %v4267
        %v4298 = vadd.f32 %v4178, %v4272
        %v4299 = vadd.f32 %v4179, %v4277
        %v4300 = vadd.f32 %v4180, %v4282
        %v4301 = vadd.f32 %v4181, %v4287
        %v4302 = vadd.f32 %v4182, %v4292
        %v4303 = vrot.slane %v1510, 4
        %v4304 = vrot.slane %v1511, 4
        %v4305 = vsel %vm459, %v4303, %v4304
        %s4306 = scalar_lea.vmem %s4, 176
        %v4307 = vld [vmem:[%s4306] sm:$0xff]
        %v4308 = vsel %vm1381, %v4305, 0
        %4310 = vmatprep.subr.mxu0 0.0
        %4311 = vmatpush1.msra.mxu0 0.0
        %4312 = vmatprep.subr.mxu0 0.0
        %4313 = vmatpush1.msra.mxu0 0.0
        %4314 = vmatprep.subr.mxu0 0.0
        %4315 = vmatpush1.msra.mxu0 0.0
        %4316 = vmatprep.subr.mxu0 0.0
        %4317 = vmatpush1.msra.mxu0 0.0
        %4318 = vmatprep.subr.mxu0 0.0
        %4319 = vmatpush1.msra.mxu0 0.0
        %4320 = vmatprep.subr.mxu0 0.0
        %4321 = vmatpush1.msra.mxu0 0.0
        %4322 = vmatprep.subr.mxu0 0.0
        %4323 = vmatpush1.msra.mxu0 0.0
        %4324 = vmatprep.subr.mxu0 0.0
        %4325 = vmatpush1.msra.mxu0 0.0
        %4326 = vmatprep.subr.mxu0 0.0
        %4327 = vmatpush1.msra.mxu0 0.0
        %4328 = vmatprep.subr.mxu0 0.0
        %4329 = vmatpush1.msra.mxu0 0.0
        %4330 = vmatprep.subr.mxu0 0.0
        %4331 = vmatpush1.msra.mxu0 0.0
        %4332 = vmatprep.subr.mxu0 0.0
        %4333 = vmatpush1.msra.mxu0 0.0
        %4334 = vmatprep.subr.mxu0 0.0
        %4335 = vmatpush1.msra.mxu0 0.0
        %4336 = vmatprep.subr.mxu0 0.0
        %4337 = vmatpush1.msra.mxu0 0.0
        %4338 = vmatprep.subr.mxu0 0.0
        %4339 = vmatpush1.msra.mxu0 0.0
        %4340 = vmatprep.subr.mxu0 0.0
        %4341 = vmatpush1.msra.mxu0 %v4307
        %4342 = vmatprep.subr.mxu0 0.0
        %4343 = vmatpush2.msra.mxu0 0.0
        %4344 = vmatprep.subr.mxu0 0.0
        %4345 = vmatpush2.msra.mxu0 0.0
        %4346 = vmatprep.subr.mxu0 0.0
        %4347 = vmatpush2.msra.mxu0 0.0
        %4348 = vmatprep.subr.mxu0 0.0
        %4349 = vmatpush2.msra.mxu0 0.0
        %4350 = vmatprep.subr.mxu0 0.0
        %4351 = vmatpush2.msra.mxu0 0.0
        %4352 = vmatprep.subr.mxu0 0.0
        %4353 = vmatpush2.msra.mxu0 0.0
        %4354 = vmatprep.subr.mxu0 0.0
        %4355 = vmatpush2.msra.mxu0 0.0
        %4356 = vmatprep.subr.mxu0 0.0
        %4357 = vmatpush2.msra.mxu0 0.0
        %4358 = vmatprep.subr.mxu0 0.0
        %4359 = vmatpush2.msra.mxu0 0.0
        %4360 = vmatprep.subr.mxu0 0.0
        %4361 = vmatpush2.msra.mxu0 0.0
        %4362 = vmatprep.subr.mxu0 0.0
        %4363 = vmatpush2.msra.mxu0 0.0
        %4364 = vmatprep.subr.mxu0 0.0
        %4365 = vmatpush2.msra.mxu0 0.0
        %4366 = vmatprep.subr.mxu0 0.0
        %4367 = vmatpush2.msra.mxu0 0.0
        %4368 = vmatprep.subr.mxu0 0.0
        %4369 = vmatpush2.msra.mxu0 0.0
        %4370 = vmatprep.subr.mxu0 0.0
        %4371 = vmatpush2.msra.mxu0 0.0
        %4372 = vmatprep.subr.mxu0 0.0
        %4373 = vmatpush2.msra.mxu0 0.0
        %4374 = vmatprep.mubr.f32.mxu0 0.0
        %4375 = vmatmul.mubr.f32.gmra.mxu0 %v4058
        %v4376 = vpop.f32.mrf.mxu0
        %v4377 = vadd.f32 0.0, %v4376
        %v4378 = vpop.f32.mrf.mxu0
        %4379 = vmatprep.mubr.f32.mxu0 0.0
        %4380 = vmatmul.mubr.f32.gmra.mxu0 %v4060
        %v4381 = vpop.f32.mrf.mxu0
        %v4382 = vadd.f32 0.0, %v4381
        %v4383 = vpop.f32.mrf.mxu0
        %4384 = vmatprep.mubr.f32.mxu0 0.0
        %4385 = vmatmul.mubr.f32.gmra.mxu0 %v4062
        %v4386 = vpop.f32.mrf.mxu0
        %v4387 = vadd.f32 0.0, %v4386
        %v4388 = vpop.f32.mrf.mxu0
        %4389 = vmatprep.mubr.f32.mxu0 0.0
        %4390 = vmatmul.mubr.f32.gmra.mxu0 %v4064
        %v4391 = vpop.f32.mrf.mxu0
        %v4392 = vadd.f32 0.0, %v4391
        %v4393 = vpop.f32.mrf.mxu0
        %4394 = vmatprep.mubr.f32.mxu0 0.0
        %4395 = vmatmul.mubr.f32.gmra.mxu0 %v4066
        %v4396 = vpop.f32.mrf.mxu0
        %v4397 = vadd.f32 0.0, %v4396
        %v4398 = vpop.f32.mrf.mxu0
        %4399 = vmatprep.mubr.f32.mxu0 0.0
        %4400 = vmatmul.mubr.f32.gmra.mxu0 %v4068
        %v4401 = vpop.f32.mrf.mxu0
        %v4402 = vadd.f32 0.0, %v4401
        %v4403 = vpop.f32.mrf.mxu0
        %4404 = vmatprep.mubr.f32.mxu0 0.0
        %4405 = vmatmul.mubr.f32.gmra.mxu0 %v4188
        %v4406 = vpop.f32.mrf.mxu0
        %v4407 = vadd.f32 0.0, %v4406
        %v4408 = vpop.f32.mrf.mxu0
        %4409 = vmatprep.mubr.f32.mxu0 0.0
        %4410 = vmatmul.mubr.f32.gmra.mxu0 %v4308
        %v4411 = vpop.f32.mrf.mxu0
        %v4412 = vadd.f32 0.0, %v4411
        %v4413 = vpop.f32.mrf.mxu0
        %4414 = vdwg.mxu0
        %v4415 = vadd.f32 %v4295, %v4377
        %v4416 = vadd.f32 %v4296, %v4382
        %v4417 = vadd.f32 %v4297, %v4387
        %v4418 = vadd.f32 %v4298, %v4392
        %v4419 = vadd.f32 %v4299, %v4397
        %v4420 = vadd.f32 %v4300, %v4402
        %v4421 = vadd.f32 %v4301, %v4407
        %v4422 = vadd.f32 %v4302, %v4412
        %v4423 = vrot.slane %v1512, 4
        %v4424 = vrot.slane %v1513, 4
        %v4425 = vsel %vm459, %v4423, %v4424
        %s4426 = scalar_lea.vmem %s4, 184
        %v4427 = vld [vmem:[%s4426] sm:$0xff]
        %v4428 = vsel %vm1381, %v4425, 0
        %4430 = vmatprep.subr.mxu0 0.0
        %4431 = vmatpush1.msra.mxu0 0.0
        %4432 = vmatprep.subr.mxu0 0.0
        %4433 = vmatpush1.msra.mxu0 0.0
        %4434 = vmatprep.subr.mxu0 0.0
        %4435 = vmatpush1.msra.mxu0 0.0
        %4436 = vmatprep.subr.mxu0 0.0
        %4437 = vmatpush1.msra.mxu0 0.0
        %4438 = vmatprep.subr.mxu0 0.0
        %4439 = vmatpush1.msra.mxu0 0.0
        %4440 = vmatprep.subr.mxu0 0.0
        %4441 = vmatpush1.msra.mxu0 0.0
        %4442 = vmatprep.subr.mxu0 0.0
        %4443 = vmatpush1.msra.mxu0 0.0
        %4444 = vmatprep.subr.mxu0 0.0
        %4445 = vmatpush1.msra.mxu0 0.0
        %4446 = vmatprep.subr.mxu0 0.0
        %4447 = vmatpush1.msra.mxu0 0.0
        %4448 = vmatprep.subr.mxu0 0.0
        %4449 = vmatpush1.msra.mxu0 0.0
        %4450 = vmatprep.subr.mxu0 0.0
        %4451 = vmatpush1.msra.mxu0 0.0
        %4452 = vmatprep.subr.mxu0 0.0
        %4453 = vmatpush1.msra.mxu0 0.0
        %4454 = vmatprep.subr.mxu0 0.0
        %4455 = vmatpush1.msra.mxu0 0.0
        %4456 = vmatprep.subr.mxu0 0.0
        %4457 = vmatpush1.msra.mxu0 0.0
        %4458 = vmatprep.subr.mxu0 0.0
        %4459 = vmatpush1.msra.mxu0 0.0
        %4460 = vmatprep.subr.mxu0 0.0
        %4461 = vmatpush1.msra.mxu0 %v4427
        %4462 = vmatprep.subr.mxu0 0.0
        %4463 = vmatpush2.msra.mxu0 0.0
        %4464 = vmatprep.subr.mxu0 0.0
        %4465 = vmatpush2.msra.mxu0 0.0
        %4466 = vmatprep.subr.mxu0 0.0
        %4467 = vmatpush2.msra.mxu0 0.0
        %4468 = vmatprep.subr.mxu0 0.0
        %4469 = vmatpush2.msra.mxu0 0.0
        %4470 = vmatprep.subr.mxu0 0.0
        %4471 = vmatpush2.msra.mxu0 0.0
        %4472 = vmatprep.subr.mxu0 0.0
        %4473 = vmatpush2.msra.mxu0 0.0
        %4474 = vmatprep.subr.mxu0 0.0
        %4475 = vmatpush2.msra.mxu0 0.0
        %4476 = vmatprep.subr.mxu0 0.0
        %4477 = vmatpush2.msra.mxu0 0.0
        %4478 = vmatprep.subr.mxu0 0.0
        %4479 = vmatpush2.msra.mxu0 0.0
        %4480 = vmatprep.subr.mxu0 0.0
        %4481 = vmatpush2.msra.mxu0 0.0
        %4482 = vmatprep.subr.mxu0 0.0
        %4483 = vmatpush2.msra.mxu0 0.0
        %4484 = vmatprep.subr.mxu0 0.0
        %4485 = vmatpush2.msra.mxu0 0.0
        %4486 = vmatprep.subr.mxu0 0.0
        %4487 = vmatpush2.msra.mxu0 0.0
        %4488 = vmatprep.subr.mxu0 0.0
        %4489 = vmatpush2.msra.mxu0 0.0
        %4490 = vmatprep.subr.mxu0 0.0
        %4491 = vmatpush2.msra.mxu0 0.0
        %4492 = vmatprep.subr.mxu0 0.0
        %4493 = vmatpush2.msra.mxu0 0.0
        %4494 = vmatprep.mubr.f32.mxu0 0.0
        %4495 = vmatmul.mubr.f32.gmra.mxu0 %v4060
        %v4496 = vpop.f32.mrf.mxu0
        %v4497 = vadd.f32 0.0, %v4496
        %v4498 = vpop.f32.mrf.mxu0
        %4499 = vmatprep.mubr.f32.mxu0 0.0
        %4500 = vmatmul.mubr.f32.gmra.mxu0 %v4062
        %v4501 = vpop.f32.mrf.mxu0
        %v4502 = vadd.f32 0.0, %v4501
        %v4503 = vpop.f32.mrf.mxu0
        %4504 = vmatprep.mubr.f32.mxu0 0.0
        %4505 = vmatmul.mubr.f32.gmra.mxu0 %v4064
        %v4506 = vpop.f32.mrf.mxu0
        %v4507 = vadd.f32 0.0, %v4506
        %v4508 = vpop.f32.mrf.mxu0
        %4509 = vmatprep.mubr.f32.mxu0 0.0
        %4510 = vmatmul.mubr.f32.gmra.mxu0 %v4066
        %v4511 = vpop.f32.mrf.mxu0
        %v4512 = vadd.f32 0.0, %v4511
        %v4513 = vpop.f32.mrf.mxu0
        %4514 = vmatprep.mubr.f32.mxu0 0.0
        %4515 = vmatmul.mubr.f32.gmra.mxu0 %v4068
        %v4516 = vpop.f32.mrf.mxu0
        %v4517 = vadd.f32 0.0, %v4516
        %v4518 = vpop.f32.mrf.mxu0
        %4519 = vmatprep.mubr.f32.mxu0 0.0
        %4520 = vmatmul.mubr.f32.gmra.mxu0 %v4188
        %v4521 = vpop.f32.mrf.mxu0
        %v4522 = vadd.f32 0.0, %v4521
        %v4523 = vpop.f32.mrf.mxu0
        %4524 = vmatprep.mubr.f32.mxu0 0.0
        %4525 = vmatmul.mubr.f32.gmra.mxu0 %v4308
        %v4526 = vpop.f32.mrf.mxu0
        %v4527 = vadd.f32 0.0, %v4526
        %v4528 = vpop.f32.mrf.mxu0
        %4529 = vmatprep.mubr.f32.mxu0 0.0
        %4530 = vmatmul.mubr.f32.gmra.mxu0 %v4428
        %v4531 = vpop.f32.mrf.mxu0
        %v4532 = vadd.f32 0.0, %v4531
        %v4533 = vpop.f32.mrf.mxu0
        %4534 = vdwg.mxu0
        %v4535 = vadd.f32 %v4415, %v4497
        %v4536 = vadd.f32 %v4416, %v4502
        %v4537 = vadd.f32 %v4417, %v4507
        %v4538 = vadd.f32 %v4418, %v4512
        %v4539 = vadd.f32 %v4419, %v4517
        %v4540 = vadd.f32 %v4420, %v4522
        %v4541 = vadd.f32 %v4421, %v4527
        %v4542 = vadd.f32 %v4422, %v4532
        %v4543 = vrot.slane %v1514, 4
        %v4544 = vrot.slane %v1515, 4
        %v4545 = vsel %vm459, %v4543, %v4544
        %s4546 = scalar_lea.vmem %s4, 192
        %v4547 = vld [vmem:[%s4546] sm:$0xff]
        %v4548 = vsel %vm1381, %v4545, 0
        %4550 = vmatprep.subr.mxu0 0.0
        %4551 = vmatpush1.msra.mxu0 0.0
        %4552 = vmatprep.subr.mxu0 0.0
        %4553 = vmatpush1.msra.mxu0 0.0
        %4554 = vmatprep.subr.mxu0 0.0
        %4555 = vmatpush1.msra.mxu0 0.0
        %4556 = vmatprep.subr.mxu0 0.0
        %4557 = vmatpush1.msra.mxu0 0.0
        %4558 = vmatprep.subr.mxu0 0.0
        %4559 = vmatpush1.msra.mxu0 0.0
        %4560 = vmatprep.subr.mxu0 0.0
        %4561 = vmatpush1.msra.mxu0 0.0
        %4562 = vmatprep.subr.mxu0 0.0
        %4563 = vmatpush1.msra.mxu0 0.0
        %4564 = vmatprep.subr.mxu0 0.0
        %4565 = vmatpush1.msra.mxu0 0.0
        %4566 = vmatprep.subr.mxu0 0.0
        %4567 = vmatpush1.msra.mxu0 0.0
        %4568 = vmatprep.subr.mxu0 0.0
        %4569 = vmatpush1.msra.mxu0 0.0
        %4570 = vmatprep.subr.mxu0 0.0
        %4571 = vmatpush1.msra.mxu0 0.0
        %4572 = vmatprep.subr.mxu0 0.0
        %4573 = vmatpush1.msra.mxu0 0.0
        %4574 = vmatprep.subr.mxu0 0.0
        %4575 = vmatpush1.msra.mxu0 0.0
        %4576 = vmatprep.subr.mxu0 0.0
        %4577 = vmatpush1.msra.mxu0 0.0
        %4578 = vmatprep.subr.mxu0 0.0
        %4579 = vmatpush1.msra.mxu0 0.0
        %4580 = vmatprep.subr.mxu0 0.0
        %4581 = vmatpush1.msra.mxu0 %v4547
        %4582 = vmatprep.subr.mxu0 0.0
        %4583 = vmatpush2.msra.mxu0 0.0
        %4584 = vmatprep.subr.mxu0 0.0
        %4585 = vmatpush2.msra.mxu0 0.0
        %4586 = vmatprep.subr.mxu0 0.0
        %4587 = vmatpush2.msra.mxu0 0.0
        %4588 = vmatprep.subr.mxu0 0.0
        %4589 = vmatpush2.msra.mxu0 0.0
        %4590 = vmatprep.subr.mxu0 0.0
        %4591 = vmatpush2.msra.mxu0 0.0
        %4592 = vmatprep.subr.mxu0 0.0
        %4593 = vmatpush2.msra.mxu0 0.0
        %4594 = vmatprep.subr.mxu0 0.0
        %4595 = vmatpush2.msra.mxu0 0.0
        %4596 = vmatprep.subr.mxu0 0.0
        %4597 = vmatpush2.msra.mxu0 0.0
        %4598 = vmatprep.subr.mxu0 0.0
        %4599 = vmatpush2.msra.mxu0 0.0
        %4600 = vmatprep.subr.mxu0 0.0
        %4601 = vmatpush2.msra.mxu0 0.0
        %4602 = vmatprep.subr.mxu0 0.0
        %4603 = vmatpush2.msra.mxu0 0.0
        %4604 = vmatprep.subr.mxu0 0.0
        %4605 = vmatpush2.msra.mxu0 0.0
        %4606 = vmatprep.subr.mxu0 0.0
        %4607 = vmatpush2.msra.mxu0 0.0
        %4608 = vmatprep.subr.mxu0 0.0
        %4609 = vmatpush2.msra.mxu0 0.0
        %4610 = vmatprep.subr.mxu0 0.0
        %4611 = vmatpush2.msra.mxu0 0.0
        %4612 = vmatprep.subr.mxu0 0.0
        %4613 = vmatpush2.msra.mxu0 0.0
        %4614 = vmatprep.mubr.f32.mxu0 0.0
        %4615 = vmatmul.mubr.f32.gmra.mxu0 %v4062
        %v4616 = vpop.f32.mrf.mxu0
        %v4617 = vadd.f32 0.0, %v4616
        %v4618 = vpop.f32.mrf.mxu0
        %4619 = vmatprep.mubr.f32.mxu0 0.0
        %4620 = vmatmul.mubr.f32.gmra.mxu0 %v4064
        %v4621 = vpop.f32.mrf.mxu0
        %v4622 = vadd.f32 0.0, %v4621
        %v4623 = vpop.f32.mrf.mxu0
        %4624 = vmatprep.mubr.f32.mxu0 0.0
        %4625 = vmatmul.mubr.f32.gmra.mxu0 %v4066
        %v4626 = vpop.f32.mrf.mxu0
        %v4627 = vadd.f32 0.0, %v4626
        %v4628 = vpop.f32.mrf.mxu0
        %4629 = vmatprep.mubr.f32.mxu0 0.0
        %4630 = vmatmul.mubr.f32.gmra.mxu0 %v4068
        %v4631 = vpop.f32.mrf.mxu0
        %v4632 = vadd.f32 0.0, %v4631
        %v4633 = vpop.f32.mrf.mxu0
        %4634 = vmatprep.mubr.f32.mxu0 0.0
        %4635 = vmatmul.mubr.f32.gmra.mxu0 %v4188
        %v4636 = vpop.f32.mrf.mxu0
        %v4637 = vadd.f32 0.0, %v4636
        %v4638 = vpop.f32.mrf.mxu0
        %4639 = vmatprep.mubr.f32.mxu0 0.0
        %4640 = vmatmul.mubr.f32.gmra.mxu0 %v4308
        %v4641 = vpop.f32.mrf.mxu0
        %v4642 = vadd.f32 0.0, %v4641
        %v4643 = vpop.f32.mrf.mxu0
        %4644 = vmatprep.mubr.f32.mxu0 0.0
        %4645 = vmatmul.mubr.f32.gmra.mxu0 %v4428
        %v4646 = vpop.f32.mrf.mxu0
        %v4647 = vadd.f32 0.0, %v4646
        %v4648 = vpop.f32.mrf.mxu0
        %4649 = vmatprep.mubr.f32.mxu0 0.0
        %4650 = vmatmul.mubr.f32.gmra.mxu0 %v4548
        %v4651 = vpop.f32.mrf.mxu0
        %v4652 = vadd.f32 0.0, %v4651
        %v4653 = vpop.f32.mrf.mxu0
        %4654 = vdwg.mxu0
        %v4655 = vadd.f32 %v4535, %v4617
        %v4656 = vadd.f32 %v4536, %v4622
        %v4657 = vadd.f32 %v4537, %v4627
        %v4658 = vadd.f32 %v4538, %v4632
        %v4659 = vadd.f32 %v4539, %v4637
        %v4660 = vadd.f32 %v4540, %v4642
        %v4661 = vadd.f32 %v4541, %v4647
        %v4662 = vadd.f32 %v4542, %v4652
        %v4663 = vld [vmem:[%s5] sm:$0x1]
        %v4665 = vlaneseq
        %v4666 = vshrl.u32 %v4665, 7
        %v4667 = vsub.s32 0, %v4666
        %v4668 = vrot.slane %v4663, %v4667
        %v4670 = vadd.f32 %v4655, %v4668
        %v4671 = vadd.f32 %v4656, %v4668
        %v4672 = vadd.f32 %v4657, %v4668
        %v4673 = vadd.f32 %v4658, %v4668
        %v4674 = vadd.f32 %v4659, %v4668
        %v4675 = vadd.f32 %v4660, %v4668
        %v4676 = vadd.f32 %v4661, %v4668
        %v4677 = vadd.f32 %v4662, %v4668
        %v4678 = vmax.f32 %v4670, 0.0
        %v4679 = vmax.f32 %v4671, 0.0
        %v4680 = vmax.f32 %v4672, 0.0
        %v4681 = vmax.f32 %v4673, 0.0
        %v4682 = vmax.f32 %v4674, 0.0
        %v4683 = vmax.f32 %v4675, 0.0
        %v4684 = vmax.f32 %v4676, 0.0
        %v4685 = vmax.f32 %v4677, 0.0
        %v4687 = vrot.slane %v4678, 1
        %v4689 = vmax.f32 %v4678, %v4687
        %v4691 = vrot.slane %v4679, 1
        %v4693 = vmax.f32 %v4679, %v4691
        %v4694 = vmax.f32 %v4689, %v4693
        %v4695 = vld [vmem:[%s6] sm:$0xff]
        %v4696 = vld [vmem:[%s6 + $0x8] sm:$0xf]
        %v4698 = vrot.slane %v4680, 1
        %v4700 = vmax.f32 %v4680, %v4698
        %v4702 = vrot.slane %v4681, 1
        %v4704 = vmax.f32 %v4681, %v4702
        %v4705 = vmax.f32 %v4700, %v4704
        %s4706 = scalar_lea.vmem %s6, 16
        %v4707 = vld [vmem:[%s4706] sm:$0xff]
        %v4708 = vld [vmem:[%s4706 + $0x8] sm:$0xf]
        %vm4709 = vcmask 97280
        %v4711 = vsel %vm4709, %v4705, 0
        %v4714 = vsel %vm459, %v4708, 0
        %4716 = vmatprep.subr.mxu0 0.0
        %4717 = vmatpush1.msra.mxu0 0.0
        %4718 = vmatprep.subr.mxu0 0.0
        %4719 = vmatpush1.msra.mxu0 0.0
        %4720 = vmatprep.subr.mxu0 0.0
        %4721 = vmatpush1.msra.mxu0 0.0
        %4722 = vmatprep.subr.mxu0 0.0
        %4723 = vmatpush1.msra.mxu0 0.0
        %4724 = vmatprep.subr.mxu0 0.0
        %4725 = vmatpush1.msra.mxu0 0.0
        %4726 = vmatprep.subr.mxu0 0.0
        %4727 = vmatpush1.msra.mxu0 0.0
        %4728 = vmatprep.subr.mxu0 0.0
        %4729 = vmatpush1.msra.mxu0 0.0
        %4730 = vmatprep.subr.mxu0 0.0
        %4731 = vmatpush1.msra.mxu0 0.0
        %4732 = vmatprep.subr.mxu0 0.0
        %4733 = vmatpush1.msra.mxu0 0.0
        %4734 = vmatprep.subr.mxu0 0.0
        %4735 = vmatpush1.msra.mxu0 0.0
        %4736 = vmatprep.subr.mxu0 0.0
        %4737 = vmatpush1.msra.mxu0 0.0
        %4738 = vmatprep.subr.mxu0 0.0
        %4739 = vmatpush1.msra.mxu0 0.0
        %4740 = vmatprep.subr.mxu0 0.0
        %4741 = vmatpush1.msra.mxu0 0.0
        %4742 = vmatprep.subr.mxu0 0.0
        %4743 = vmatpush1.msra.mxu0 0.0
        %4744 = vmatprep.subr.mxu0 0.0
        %4745 = vmatpush1.msra.mxu0 %v4714
        %4746 = vmatprep.subr.mxu0 0.0
        %4747 = vmatpush1.msra.mxu0 %v4707
        %4748 = vmatprep.subr.mxu0 0.0
        %4749 = vmatpush2.msra.mxu0 0.0
        %4750 = vmatprep.subr.mxu0 0.0
        %4751 = vmatpush2.msra.mxu0 0.0
        %4752 = vmatprep.subr.mxu0 0.0
        %4753 = vmatpush2.msra.mxu0 0.0
        %4754 = vmatprep.subr.mxu0 0.0
        %4755 = vmatpush2.msra.mxu0 0.0
        %4756 = vmatprep.subr.mxu0 0.0
        %4757 = vmatpush2.msra.mxu0 0.0
        %4758 = vmatprep.subr.mxu0 0.0
        %4759 = vmatpush2.msra.mxu0 0.0
        %4760 = vmatprep.subr.mxu0 0.0
        %4761 = vmatpush2.msra.mxu0 0.0
        %4762 = vmatprep.subr.mxu0 0.0
        %4763 = vmatpush2.msra.mxu0 0.0
        %4764 = vmatprep.subr.mxu0 0.0
        %4765 = vmatpush2.msra.mxu0 0.0
        %4766 = vmatprep.subr.mxu0 0.0
        %4767 = vmatpush2.msra.mxu0 0.0
        %4768 = vmatprep.subr.mxu0 0.0
        %4769 = vmatpush2.msra.mxu0 0.0
        %4770 = vmatprep.subr.mxu0 0.0
        %4771 = vmatpush2.msra.mxu0 0.0
        %4772 = vmatprep.subr.mxu0 0.0
        %4773 = vmatpush2.msra.mxu0 0.0
        %4774 = vmatprep.subr.mxu0 0.0
        %4775 = vmatpush2.msra.mxu0 0.0
        %4776 = vmatprep.subr.mxu0 0.0
        %4777 = vmatpush2.msra.mxu0 0.0
        %4778 = vmatprep.subr.mxu0 0.0
        %4779 = vmatpush2.msra.mxu0 0.0
        %4780 = vmatprep.mubr.f32.mxu0 0.0
        %4781 = vmatmul.mubr.f32.gmra.mxu0 %v4711
        %v4782 = vpop.f32.mrf.mxu0
        %v4783 = vadd.f32 0.0, %v4782
        %v4784 = vpop.f32.mrf.mxu0
        %4785 = vdwg.mxu0
        %v4787 = vsel %vm4709, %v4694, 0
        %v4790 = vsel %vm459, %v4696, 0
        %4792 = vmatprep.subr.mxu0 0.0
        %4793 = vmatpush1.msra.mxu0 0.0
        %4794 = vmatprep.subr.mxu0 0.0
        %4795 = vmatpush1.msra.mxu0 0.0
        %4796 = vmatprep.subr.mxu0 0.0
        %4797 = vmatpush1.msra.mxu0 0.0
        %4798 = vmatprep.subr.mxu0 0.0
        %4799 = vmatpush1.msra.mxu0 0.0
        %4800 = vmatprep.subr.mxu0 0.0
        %4801 = vmatpush1.msra.mxu0 0.0
        %4802 = vmatprep.subr.mxu0 0.0
        %4803 = vmatpush1.msra.mxu0 0.0
        %4804 = vmatprep.subr.mxu0 0.0
        %4805 = vmatpush1.msra.mxu0 0.0
        %4806 = vmatprep.subr.mxu0 0.0
        %4807 = vmatpush1.msra.mxu0 0.0
        %4808 = vmatprep.subr.mxu0 0.0
        %4809 = vmatpush1.msra.mxu0 0.0
        %4810 = vmatprep.subr.mxu0 0.0
        %4811 = vmatpush1.msra.mxu0 0.0
        %4812 = vmatprep.subr.mxu0 0.0
        %4813 = vmatpush1.msra.mxu0 0.0
        %4814 = vmatprep.subr.mxu0 0.0
        %4815 = vmatpush1.msra.mxu0 0.0
        %4816 = vmatprep.subr.mxu0 0.0
        %4817 = vmatpush1.msra.mxu0 0.0
        %4818 = vmatprep.subr.mxu0 0.0
        %4819 = vmatpush1.msra.mxu0 0.0
        %4820 = vmatprep.subr.mxu0 0.0
        %4821 = vmatpush1.msra.mxu0 %v4790
        %4822 = vmatprep.subr.mxu0 0.0
        %4823 = vmatpush1.msra.mxu0 %v4695
        %4824 = vmatprep.subr.mxu0 0.0
        %4825 = vmatpush2.msra.mxu0 0.0
        %4826 = vmatprep.subr.mxu0 0.0
        %4827 = vmatpush2.msra.mxu0 0.0
        %4828 = vmatprep.subr.mxu0 0.0
        %4829 = vmatpush2.msra.mxu0 0.0
        %4830 = vmatprep.subr.mxu0 0.0
        %4831 = vmatpush2.msra.mxu0 0.0
        %4832 = vmatprep.subr.mxu0 0.0
        %4833 = vmatpush2.msra.mxu0 0.0
        %4834 = vmatprep.subr.mxu0 0.0
        %4835 = vmatpush2.msra.mxu0 0.0
        %4836 = vmatprep.subr.mxu0 0.0
        %4837 = vmatpush2.msra.mxu0 0.0
        %4838 = vmatprep.subr.mxu0 0.0
        %4839 = vmatpush2.msra.mxu0 0.0
        %4840 = vmatprep.subr.mxu0 0.0
        %4841 = vmatpush2.msra.mxu0 0.0
        %4842 = vmatprep.subr.mxu0 0.0
        %4843 = vmatpush2.msra.mxu0 0.0
        %4844 = vmatprep.subr.mxu0 0.0
        %4845 = vmatpush2.msra.mxu0 0.0
        %4846 = vmatprep.subr.mxu0 0.0
        %4847 = vmatpush2.msra.mxu0 0.0
        %4848 = vmatprep.subr.mxu0 0.0
        %4849 = vmatpush2.msra.mxu0 0.0
        %4850 = vmatprep.subr.mxu0 0.0
        %4851 = vmatpush2.msra.mxu0 0.0
        %4852 = vmatprep.subr.mxu0 0.0
        %4853 = vmatpush2.msra.mxu0 0.0
        %4854 = vmatprep.subr.mxu0 0.0
        %4855 = vmatpush2.msra.mxu0 0.0
        %4856 = vmatprep.mubr.f32.mxu0 0.0
        %4857 = vmatmul.mubr.f32.gmra.mxu0 %v4787
        %v4858 = vpop.f32.mrf.mxu0
        %v4859 = vadd.f32 %v4783, %v4858
        %v4860 = vpop.f32.mrf.mxu0
        %4861 = vdwg.mxu0
        %v4863 = vrot.slane %v4682, 1
        %v4865 = vmax.f32 %v4682, %v4863
        %v4867 = vrot.slane %v4683, 1
        %v4869 = vmax.f32 %v4683, %v4867
        %v4870 = vmax.f32 %v4865, %v4869
        %s4871 = scalar_lea.vmem %s6, 32
        %v4872 = vld [vmem:[%s4871] sm:$0xff]
        %v4873 = vld [vmem:[%s4871 + $0x8] sm:$0xf]
        %v4875 = vsel %vm4709, %v4870, 0
        %v4878 = vsel %vm459, %v4873, 0
        %4880 = vmatprep.subr.mxu0 0.0
        %4881 = vmatpush1.msra.mxu0 0.0
        %4882 = vmatprep.subr.mxu0 0.0
        %4883 = vmatpush1.msra.mxu0 0.0
        %4884 = vmatprep.subr.mxu0 0.0
        %4885 = vmatpush1.msra.mxu0 0.0
        %4886 = vmatprep.subr.mxu0 0.0
        %4887 = vmatpush1.msra.mxu0 0.0
        %4888 = vmatprep.subr.mxu0 0.0
        %4889 = vmatpush1.msra.mxu0 0.0
        %4890 = vmatprep.subr.mxu0 0.0
        %4891 = vmatpush1.msra.mxu0 0.0
        %4892 = vmatprep.subr.mxu0 0.0
        %4893 = vmatpush1.msra.mxu0 0.0
        %4894 = vmatprep.subr.mxu0 0.0
        %4895 = vmatpush1.msra.mxu0 0.0
        %4896 = vmatprep.subr.mxu0 0.0
        %4897 = vmatpush1.msra.mxu0 0.0
        %4898 = vmatprep.subr.mxu0 0.0
        %4899 = vmatpush1.msra.mxu0 0.0
        %4900 = vmatprep.subr.mxu0 0.0
        %4901 = vmatpush1.msra.mxu0 0.0
        %4902 = vmatprep.subr.mxu0 0.0
        %4903 = vmatpush1.msra.mxu0 0.0
        %4904 = vmatprep.subr.mxu0 0.0
        %4905 = vmatpush1.msra.mxu0 0.0
        %4906 = vmatprep.subr.mxu0 0.0
        %4907 = vmatpush1.msra.mxu0 0.0
        %4908 = vmatprep.subr.mxu0 0.0
        %4909 = vmatpush1.msra.mxu0 %v4878
        %4910 = vmatprep.subr.mxu0 0.0
        %4911 = vmatpush1.msra.mxu0 %v4872
        %4912 = vmatprep.subr.mxu0 0.0
        %4913 = vmatpush2.msra.mxu0 0.0
        %4914 = vmatprep.subr.mxu0 0.0
        %4915 = vmatpush2.msra.mxu0 0.0
        %4916 = vmatprep.subr.mxu0 0.0
        %4917 = vmatpush2.msra.mxu0 0.0
        %4918 = vmatprep.subr.mxu0 0.0
        %4919 = vmatpush2.msra.mxu0 0.0
        %4920 = vmatprep.subr.mxu0 0.0
        %4921 = vmatpush2.msra.mxu0 0.0
        %4922 = vmatprep.subr.mxu0 0.0
        %4923 = vmatpush2.msra.mxu0 0.0
        %4924 = vmatprep.subr.mxu0 0.0
        %4925 = vmatpush2.msra.mxu0 0.0
        %4926 = vmatprep.subr.mxu0 0.0
        %4927 = vmatpush2.msra.mxu0 0.0
        %4928 = vmatprep.subr.mxu0 0.0
        %4929 = vmatpush2.msra.mxu0 0.0
        %4930 = vmatprep.subr.mxu0 0.0
        %4931 = vmatpush2.msra.mxu0 0.0
        %4932 = vmatprep.subr.mxu0 0.0
        %4933 = vmatpush2.msra.mxu0 0.0
        %4934 = vmatprep.subr.mxu0 0.0
        %4935 = vmatpush2.msra.mxu0 0.0
        %4936 = vmatprep.subr.mxu0 0.0
        %4937 = vmatpush2.msra.mxu0 0.0
        %4938 = vmatprep.subr.mxu0 0.0
        %4939 = vmatpush2.msra.mxu0 0.0
        %4940 = vmatprep.subr.mxu0 0.0
        %4941 = vmatpush2.msra.mxu0 0.0
        %4942 = vmatprep.subr.mxu0 0.0
        %4943 = vmatpush2.msra.mxu0 0.0
        %4944 = vmatprep.mubr.f32.mxu0 0.0
        %4945 = vmatmul.mubr.f32.gmra.mxu0 %v4875
        %v4946 = vpop.f32.mrf.mxu0
        %v4947 = vadd.f32 0.0, %v4946
        %v4948 = vpop.f32.mrf.mxu0
        %4949 = vdwg.mxu0
        %v4950 = vadd.f32 %v4859, %v4947
        %v4952 = vrot.slane %v4684, 1
        %v4954 = vmax.f32 %v4684, %v4952
        %v4956 = vrot.slane %v4685, 1
        %v4958 = vmax.f32 %v4685, %v4956
        %v4959 = vmax.f32 %v4954, %v4958
        %s4960 = scalar_lea.vmem %s6, 48
        %v4961 = vld [vmem:[%s4960] sm:$0xff]
        %v4962 = vld [vmem:[%s4960 + $0x8] sm:$0xf]
        %v4964 = vsel %vm4709, %v4959, 0
        %v4967 = vsel %vm459, %v4962, 0
        %4969 = vmatprep.subr.mxu0 0.0
        %4970 = vmatpush1.msra.mxu0 0.0
        %4971 = vmatprep.subr.mxu0 0.0
        %4972 = vmatpush1.msra.mxu0 0.0
        %4973 = vmatprep.subr.mxu0 0.0
        %4974 = vmatpush1.msra.mxu0 0.0
        %4975 = vmatprep.subr.mxu0 0.0
        %4976 = vmatpush1.msra.mxu0 0.0
        %4977 = vmatprep.subr.mxu0 0.0
        %4978 = vmatpush1.msra.mxu0 0.0
        %4979 = vmatprep.subr.mxu0 0.0
        %4980 = vmatpush1.msra.mxu0 0.0
        %4981 = vmatprep.subr.mxu0 0.0
        %4982 = vmatpush1.msra.mxu0 0.0
        %4983 = vmatprep.subr.mxu0 0.0
        %4984 = vmatpush1.msra.mxu0 0.0
        %4985 = vmatprep.subr.mxu0 0.0
        %4986 = vmatpush1.msra.mxu0 0.0
        %4987 = vmatprep.subr.mxu0 0.0
        %4988 = vmatpush1.msra.mxu0 0.0
        %4989 = vmatprep.subr.mxu0 0.0
        %4990 = vmatpush1.msra.mxu0 0.0
        %4991 = vmatprep.subr.mxu0 0.0
        %4992 = vmatpush1.msra.mxu0 0.0
        %4993 = vmatprep.subr.mxu0 0.0
        %4994 = vmatpush1.msra.mxu0 0.0
        %4995 = vmatprep.subr.mxu0 0.0
        %4996 = vmatpush1.msra.mxu0 0.0
        %4997 = vmatprep.subr.mxu0 0.0
        %4998 = vmatpush1.msra.mxu0 %v4967
        %4999 = vmatprep.subr.mxu0 0.0
        %5000 = vmatpush1.msra.mxu0 %v4961
        %5001 = vmatprep.subr.mxu0 0.0
        %5002 = vmatpush2.msra.mxu0 0.0
        %5003 = vmatprep.subr.mxu0 0.0
        %5004 = vmatpush2.msra.mxu0 0.0
        %5005 = vmatprep.subr.mxu0 0.0
        %5006 = vmatpush2.msra.mxu0 0.0
        %5007 = vmatprep.subr.mxu0 0.0
        %5008 = vmatpush2.msra.mxu0 0.0
        %5009 = vmatprep.subr.mxu0 0.0
        %5010 = vmatpush2.msra.mxu0 0.0
        %5011 = vmatprep.subr.mxu0 0.0
        %5012 = vmatpush2.msra.mxu0 0.0
        %5013 = vmatprep.subr.mxu0 0.0
        %5014 = vmatpush2.msra.mxu0 0.0
        %5015 = vmatprep.subr.mxu0 0.0
        %5016 = vmatpush2.msra.mxu0 0.0
        %5017 = vmatprep.subr.mxu0 0.0
        %5018 = vmatpush2.msra.mxu0 0.0
        %5019 = vmatprep.subr.mxu0 0.0
        %5020 = vmatpush2.msra.mxu0 0.0
        %5021 = vmatprep.subr.mxu0 0.0
        %5022 = vmatpush2.msra.mxu0 0.0
        %5023 = vmatprep.subr.mxu0 0.0
        %5024 = vmatpush2.msra.mxu0 0.0
        %5025 = vmatprep.subr.mxu0 0.0
        %5026 = vmatpush2.msra.mxu0 0.0
        %5027 = vmatprep.subr.mxu0 0.0
        %5028 = vmatpush2.msra.mxu0 0.0
        %5029 = vmatprep.subr.mxu0 0.0
        %5030 = vmatpush2.msra.mxu0 0.0
        %5031 = vmatprep.subr.mxu0 0.0
        %5032 = vmatpush2.msra.mxu0 0.0
        %5033 = vmatprep.mubr.f32.mxu0 0.0
        %5034 = vmatmul.mubr.f32.gmra.mxu0 %v4964
        %v5035 = vpop.f32.mrf.mxu0
        %v5036 = vadd.f32 0.0, %v5035
        %v5037 = vpop.f32.mrf.mxu0
        %5038 = vdwg.mxu0
        %v5039 = vadd.f32 %v4950, %v5036
        %s5040 = scalar_lea.vmem %s6, 64
        %v5041 = vld [vmem:[%s5040] sm:$0xff]
        %v5042 = vld [vmem:[%s5040 + $0x8] sm:$0xf]
        %v5043 = vrot.slane %v4694, 2
        %v5044 = vsel %vm4709, %v5043, 0
        %v5047 = vsel %vm459, %v5042, 0
        %5049 = vmatprep.subr.mxu0 0.0
        %5050 = vmatpush1.msra.mxu0 0.0
        %5051 = vmatprep.subr.mxu0 0.0
        %5052 = vmatpush1.msra.mxu0 0.0
        %5053 = vmatprep.subr.mxu0 0.0
        %5054 = vmatpush1.msra.mxu0 0.0
        %5055 = vmatprep.subr.mxu0 0.0
        %5056 = vmatpush1.msra.mxu0 0.0
        %5057 = vmatprep.subr.mxu0 0.0
        %5058 = vmatpush1.msra.mxu0 0.0
        %5059 = vmatprep.subr.mxu0 0.0
        %5060 = vmatpush1.msra.mxu0 0.0
        %5061 = vmatprep.subr.mxu0 0.0
        %5062 = vmatpush1.msra.mxu0 0.0
        %5063 = vmatprep.subr.mxu0 0.0
        %5064 = vmatpush1.msra.mxu0 0.0
        %5065 = vmatprep.subr.mxu0 0.0
        %5066 = vmatpush1.msra.mxu0 0.0
        %5067 = vmatprep.subr.mxu0 0.0
        %5068 = vmatpush1.msra.mxu0 0.0
        %5069 = vmatprep.subr.mxu0 0.0
        %5070 = vmatpush1.msra.mxu0 0.0
        %5071 = vmatprep.subr.mxu0 0.0
        %5072 = vmatpush1.msra.mxu0 0.0
        %5073 = vmatprep.subr.mxu0 0.0
        %5074 = vmatpush1.msra.mxu0 0.0
        %5075 = vmatprep.subr.mxu0 0.0
        %5076 = vmatpush1.msra.mxu0 0.0
        %5077 = vmatprep.subr.mxu0 0.0
        %5078 = vmatpush1.msra.mxu0 %v5047
        %5079 = vmatprep.subr.mxu0 0.0
        %5080 = vmatpush1.msra.mxu0 %v5041
        %5081 = vmatprep.subr.mxu0 0.0
        %5082 = vmatpush2.msra.mxu0 0.0
        %5083 = vmatprep.subr.mxu0 0.0
        %5084 = vmatpush2.msra.mxu0 0.0
        %5085 = vmatprep.subr.mxu0 0.0
        %5086 = vmatpush2.msra.mxu0 0.0
        %5087 = vmatprep.subr.mxu0 0.0
        %5088 = vmatpush2.msra.mxu0 0.0
        %5089 = vmatprep.subr.mxu0 0.0
        %5090 = vmatpush2.msra.mxu0 0.0
        %5091 = vmatprep.subr.mxu0 0.0
        %5092 = vmatpush2.msra.mxu0 0.0
        %5093 = vmatprep.subr.mxu0 0.0
        %5094 = vmatpush2.msra.mxu0 0.0
        %5095 = vmatprep.subr.mxu0 0.0
        %5096 = vmatpush2.msra.mxu0 0.0
        %5097 = vmatprep.subr.mxu0 0.0
        %5098 = vmatpush2.msra.mxu0 0.0
        %5099 = vmatprep.subr.mxu0 0.0
        %5100 = vmatpush2.msra.mxu0 0.0
        %5101 = vmatprep.subr.mxu0 0.0
        %5102 = vmatpush2.msra.mxu0 0.0
        %5103 = vmatprep.subr.mxu0 0.0
        %5104 = vmatpush2.msra.mxu0 0.0
        %5105 = vmatprep.subr.mxu0 0.0
        %5106 = vmatpush2.msra.mxu0 0.0
        %5107 = vmatprep.subr.mxu0 0.0
        %5108 = vmatpush2.msra.mxu0 0.0
        %5109 = vmatprep.subr.mxu0 0.0
        %5110 = vmatpush2.msra.mxu0 0.0
        %5111 = vmatprep.subr.mxu0 0.0
        %5112 = vmatpush2.msra.mxu0 0.0
        %5113 = vmatprep.mubr.f32.mxu0 0.0
        %5114 = vmatmul.mubr.f32.gmra.mxu0 %v5044
        %v5115 = vpop.f32.mrf.mxu0
        %v5116 = vadd.f32 0.0, %v5115
        %v5117 = vpop.f32.mrf.mxu0
        %5118 = vdwg.mxu0
        %v5119 = vadd.f32 %v5039, %v5116
        %s5120 = scalar_lea.vmem %s6, 80
        %v5121 = vld [vmem:[%s5120] sm:$0xff]
        %v5122 = vld [vmem:[%s5120 + $0x8] sm:$0xf]
        %v5123 = vrot.slane %v4705, 2
        %v5124 = vsel %vm4709, %v5123, 0
        %v5127 = vsel %vm459, %v5122, 0
        %5129 = vmatprep.subr.mxu0 0.0
        %5130 = vmatpush1.msra.mxu0 0.0
        %5131 = vmatprep.subr.mxu0 0.0
        %5132 = vmatpush1.msra.mxu0 0.0
        %5133 = vmatprep.subr.mxu0 0.0
        %5134 = vmatpush1.msra.mxu0 0.0
        %5135 = vmatprep.subr.mxu0 0.0
        %5136 = vmatpush1.msra.mxu0 0.0
        %5137 = vmatprep.subr.mxu0 0.0
        %5138 = vmatpush1.msra.mxu0 0.0
        %5139 = vmatprep.subr.mxu0 0.0
        %5140 = vmatpush1.msra.mxu0 0.0
        %5141 = vmatprep.subr.mxu0 0.0
        %5142 = vmatpush1.msra.mxu0 0.0
        %5143 = vmatprep.subr.mxu0 0.0
        %5144 = vmatpush1.msra.mxu0 0.0
        %5145 = vmatprep.subr.mxu0 0.0
        %5146 = vmatpush1.msra.mxu0 0.0
        %5147 = vmatprep.subr.mxu0 0.0
        %5148 = vmatpush1.msra.mxu0 0.0
        %5149 = vmatprep.subr.mxu0 0.0
        %5150 = vmatpush1.msra.mxu0 0.0
        %5151 = vmatprep.subr.mxu0 0.0
        %5152 = vmatpush1.msra.mxu0 0.0
        %5153 = vmatprep.subr.mxu0 0.0
        %5154 = vmatpush1.msra.mxu0 0.0
        %5155 = vmatprep.subr.mxu0 0.0
        %5156 = vmatpush1.msra.mxu0 0.0
        %5157 = vmatprep.subr.mxu0 0.0
        %5158 = vmatpush1.msra.mxu0 %v5127
        %5159 = vmatprep.subr.mxu0 0.0
        %5160 = vmatpush1.msra.mxu0 %v5121
        %5161 = vmatprep.subr.mxu0 0.0
        %5162 = vmatpush2.msra.mxu0 0.0
        %5163 = vmatprep.subr.mxu0 0.0
        %5164 = vmatpush2.msra.mxu0 0.0
        %5165 = vmatprep.subr.mxu0 0.0
        %5166 = vmatpush2.msra.mxu0 0.0
        %5167 = vmatprep.subr.mxu0 0.0
        %5168 = vmatpush2.msra.mxu0 0.0
        %5169 = vmatprep.subr.mxu0 0.0
        %5170 = vmatpush2.msra.mxu0 0.0
        %5171 = vmatprep.subr.mxu0 0.0
        %5172 = vmatpush2.msra.mxu0 0.0
        %5173 = vmatprep.subr.mxu0 0.0
        %5174 = vmatpush2.msra.mxu0 0.0
        %5175 = vmatprep.subr.mxu0 0.0
        %5176 = vmatpush2.msra.mxu0 0.0
        %5177 = vmatprep.subr.mxu0 0.0
        %5178 = vmatpush2.msra.mxu0 0.0
        %5179 = vmatprep.subr.mxu0 0.0
        %5180 = vmatpush2.msra.mxu0 0.0
        %5181 = vmatprep.subr.mxu0 0.0
        %5182 = vmatpush2.msra.mxu0 0.0
        %5183 = vmatprep.subr.mxu0 0.0
        %5184 = vmatpush2.msra.mxu0 0.0
        %5185 = vmatprep.subr.mxu0 0.0
        %5186 = vmatpush2.msra.mxu0 0.0
        %5187 = vmatprep.subr.mxu0 0.0
        %5188 = vmatpush2.msra.mxu0 0.0
        %5189 = vmatprep.subr.mxu0 0.0
        %5190 = vmatpush2.msra.mxu0 0.0
        %5191 = vmatprep.subr.mxu0 0.0
        %5192 = vmatpush2.msra.mxu0 0.0
        %5193 = vmatprep.mubr.f32.mxu0 0.0
        %5194 = vmatmul.mubr.f32.gmra.mxu0 %v5124
        %v5195 = vpop.f32.mrf.mxu0
        %v5196 = vadd.f32 0.0, %v5195
        %v5197 = vpop.f32.mrf.mxu0
        %5198 = vdwg.mxu0
        %v5199 = vadd.f32 %v5119, %v5196
        %s5200 = scalar_lea.vmem %s6, 96
        %v5201 = vld [vmem:[%s5200] sm:$0xff]
        %v5202 = vld [vmem:[%s5200 + $0x8] sm:$0xf]
        %v5203 = vrot.slane %v4870, 2
        %v5204 = vsel %vm4709, %v5203, 0
        %v5207 = vsel %vm459, %v5202, 0
        %5209 = vmatprep.subr.mxu0 0.0
        %5210 = vmatpush1.msra.mxu0 0.0
        %5211 = vmatprep.subr.mxu0 0.0
        %5212 = vmatpush1.msra.mxu0 0.0
        %5213 = vmatprep.subr.mxu0 0.0
        %5214 = vmatpush1.msra.mxu0 0.0
        %5215 = vmatprep.subr.mxu0 0.0
        %5216 = vmatpush1.msra.mxu0 0.0
        %5217 = vmatprep.subr.mxu0 0.0
        %5218 = vmatpush1.msra.mxu0 0.0
        %5219 = vmatprep.subr.mxu0 0.0
        %5220 = vmatpush1.msra.mxu0 0.0
        %5221 = vmatprep.subr.mxu0 0.0
        %5222 = vmatpush1.msra.mxu0 0.0
        %5223 = vmatprep.subr.mxu0 0.0
        %5224 = vmatpush1.msra.mxu0 0.0
        %5225 = vmatprep.subr.mxu0 0.0
        %5226 = vmatpush1.msra.mxu0 0.0
        %5227 = vmatprep.subr.mxu0 0.0
        %5228 = vmatpush1.msra.mxu0 0.0
        %5229 = vmatprep.subr.mxu0 0.0
        %5230 = vmatpush1.msra.mxu0 0.0
        %5231 = vmatprep.subr.mxu0 0.0
        %5232 = vmatpush1.msra.mxu0 0.0
        %5233 = vmatprep.subr.mxu0 0.0
        %5234 = vmatpush1.msra.mxu0 0.0
        %5235 = vmatprep.subr.mxu0 0.0
        %5236 = vmatpush1.msra.mxu0 0.0
        %5237 = vmatprep.subr.mxu0 0.0
        %5238 = vmatpush1.msra.mxu0 %v5207
        %5239 = vmatprep.subr.mxu0 0.0
        %5240 = vmatpush1.msra.mxu0 %v5201
        %5241 = vmatprep.subr.mxu0 0.0
        %5242 = vmatpush2.msra.mxu0 0.0
        %5243 = vmatprep.subr.mxu0 0.0
        %5244 = vmatpush2.msra.mxu0 0.0
        %5245 = vmatprep.subr.mxu0 0.0
        %5246 = vmatpush2.msra.mxu0 0.0
        %5247 = vmatprep.subr.mxu0 0.0
        %5248 = vmatpush2.msra.mxu0 0.0
        %5249 = vmatprep.subr.mxu0 0.0
        %5250 = vmatpush2.msra.mxu0 0.0
        %5251 = vmatprep.subr.mxu0 0.0
        %5252 = vmatpush2.msra.mxu0 0.0
        %5253 = vmatprep.subr.mxu0 0.0
        %5254 = vmatpush2.msra.mxu0 0.0
        %5255 = vmatprep.subr.mxu0 0.0
        %5256 = vmatpush2.msra.mxu0 0.0
        %5257 = vmatprep.subr.mxu0 0.0
        %5258 = vmatpush2.msra.mxu0 0.0
        %5259 = vmatprep.subr.mxu0 0.0
        %5260 = vmatpush2.msra.mxu0 0.0
        %5261 = vmatprep.subr.mxu0 0.0
        %5262 = vmatpush2.msra.mxu0 0.0
        %5263 = vmatprep.subr.mxu0 0.0
        %5264 = vmatpush2.msra.mxu0 0.0
        %5265 = vmatprep.subr.mxu0 0.0
        %5266 = vmatpush2.msra.mxu0 0.0
        %5267 = vmatprep.subr.mxu0 0.0
        %5268 = vmatpush2.msra.mxu0 0.0
        %5269 = vmatprep.subr.mxu0 0.0
        %5270 = vmatpush2.msra.mxu0 0.0
        %5271 = vmatprep.subr.mxu0 0.0
        %5272 = vmatpush2.msra.mxu0 0.0
        %5273 = vmatprep.mubr.f32.mxu0 0.0
        %5274 = vmatmul.mubr.f32.gmra.mxu0 %v5204
        %v5275 = vpop.f32.mrf.mxu0
        %v5276 = vadd.f32 0.0, %v5275
        %v5277 = vpop.f32.mrf.mxu0
        %5278 = vdwg.mxu0
        %v5279 = vadd.f32 %v5199, %v5276
        %s5280 = scalar_lea.vmem %s6, 112
        %v5281 = vld [vmem:[%s5280] sm:$0xff]
        %v5282 = vld [vmem:[%s5280 + $0x8] sm:$0xf]
        %v5283 = vrot.slane %v4959, 2
        %v5284 = vsel %vm4709, %v5283, 0
        %v5287 = vsel %vm459, %v5282, 0
        %5289 = vmatprep.subr.mxu0 0.0
        %5290 = vmatpush1.msra.mxu0 0.0
        %5291 = vmatprep.subr.mxu0 0.0
        %5292 = vmatpush1.msra.mxu0 0.0
        %5293 = vmatprep.subr.mxu0 0.0
        %5294 = vmatpush1.msra.mxu0 0.0
        %5295 = vmatprep.subr.mxu0 0.0
        %5296 = vmatpush1.msra.mxu0 0.0
        %5297 = vmatprep.subr.mxu0 0.0
        %5298 = vmatpush1.msra.mxu0 0.0
        %5299 = vmatprep.subr.mxu0 0.0
        %5300 = vmatpush1.msra.mxu0 0.0
        %5301 = vmatprep.subr.mxu0 0.0
        %5302 = vmatpush1.msra.mxu0 0.0
        %5303 = vmatprep.subr.mxu0 0.0
        %5304 = vmatpush1.msra.mxu0 0.0
        %5305 = vmatprep.subr.mxu0 0.0
        %5306 = vmatpush1.msra.mxu0 0.0
        %5307 = vmatprep.subr.mxu0 0.0
        %5308 = vmatpush1.msra.mxu0 0.0
        %5309 = vmatprep.subr.mxu0 0.0
        %5310 = vmatpush1.msra.mxu0 0.0
        %5311 = vmatprep.subr.mxu0 0.0
        %5312 = vmatpush1.msra.mxu0 0.0
        %5313 = vmatprep.subr.mxu0 0.0
        %5314 = vmatpush1.msra.mxu0 0.0
        %5315 = vmatprep.subr.mxu0 0.0
        %5316 = vmatpush1.msra.mxu0 0.0
        %5317 = vmatprep.subr.mxu0 0.0
        %5318 = vmatpush1.msra.mxu0 %v5287
        %5319 = vmatprep.subr.mxu0 0.0
        %5320 = vmatpush1.msra.mxu0 %v5281
        %5321 = vmatprep.subr.mxu0 0.0
        %5322 = vmatpush2.msra.mxu0 0.0
        %5323 = vmatprep.subr.mxu0 0.0
        %5324 = vmatpush2.msra.mxu0 0.0
        %5325 = vmatprep.subr.mxu0 0.0
        %5326 = vmatpush2.msra.mxu0 0.0
        %5327 = vmatprep.subr.mxu0 0.0
        %5328 = vmatpush2.msra.mxu0 0.0
        %5329 = vmatprep.subr.mxu0 0.0
        %5330 = vmatpush2.msra.mxu0 0.0
        %5331 = vmatprep.subr.mxu0 0.0
        %5332 = vmatpush2.msra.mxu0 0.0
        %5333 = vmatprep.subr.mxu0 0.0
        %5334 = vmatpush2.msra.mxu0 0.0
        %5335 = vmatprep.subr.mxu0 0.0
        %5336 = vmatpush2.msra.mxu0 0.0
        %5337 = vmatprep.subr.mxu0 0.0
        %5338 = vmatpush2.msra.mxu0 0.0
        %5339 = vmatprep.subr.mxu0 0.0
        %5340 = vmatpush2.msra.mxu0 0.0
        %5341 = vmatprep.subr.mxu0 0.0
        %5342 = vmatpush2.msra.mxu0 0.0
        %5343 = vmatprep.subr.mxu0 0.0
        %5344 = vmatpush2.msra.mxu0 0.0
        %5345 = vmatprep.subr.mxu0 0.0
        %5346 = vmatpush2.msra.mxu0 0.0
        %5347 = vmatprep.subr.mxu0 0.0
        %5348 = vmatpush2.msra.mxu0 0.0
        %5349 = vmatprep.subr.mxu0 0.0
        %5350 = vmatpush2.msra.mxu0 0.0
        %5351 = vmatprep.subr.mxu0 0.0
        %5352 = vmatpush2.msra.mxu0 0.0
        %5353 = vmatprep.mubr.f32.mxu0 0.0
        %5354 = vmatmul.mubr.f32.gmra.mxu0 %v5284
        %v5355 = vpop.f32.mrf.mxu0
        %v5356 = vadd.f32 0.0, %v5355
        %v5357 = vpop.f32.mrf.mxu0
        %5358 = vdwg.mxu0
        %v5359 = vadd.f32 %v5279, %v5356
        %s5360 = scalar_lea.vmem %s6, 128
        %v5361 = vld [vmem:[%s5360] sm:$0xff]
        %v5362 = vld [vmem:[%s5360 + $0x8] sm:$0xf]
        %v5363 = vrot.slane %v4694, 4
        %v5364 = vsel %vm4709, %v5363, 0
        %v5367 = vsel %vm459, %v5362, 0
        %5369 = vmatprep.subr.mxu0 0.0
        %5370 = vmatpush1.msra.mxu0 0.0
        %5371 = vmatprep.subr.mxu0 0.0
        %5372 = vmatpush1.msra.mxu0 0.0
        %5373 = vmatprep.subr.mxu0 0.0
        %5374 = vmatpush1.msra.mxu0 0.0
        %5375 = vmatprep.subr.mxu0 0.0
        %5376 = vmatpush1.msra.mxu0 0.0
        %5377 = vmatprep.subr.mxu0 0.0
        %5378 = vmatpush1.msra.mxu0 0.0
        %5379 = vmatprep.subr.mxu0 0.0
        %5380 = vmatpush1.msra.mxu0 0.0
        %5381 = vmatprep.subr.mxu0 0.0
        %5382 = vmatpush1.msra.mxu0 0.0
        %5383 = vmatprep.subr.mxu0 0.0
        %5384 = vmatpush1.msra.mxu0 0.0
        %5385 = vmatprep.subr.mxu0 0.0
        %5386 = vmatpush1.msra.mxu0 0.0
        %5387 = vmatprep.subr.mxu0 0.0
        %5388 = vmatpush1.msra.mxu0 0.0
        %5389 = vmatprep.subr.mxu0 0.0
        %5390 = vmatpush1.msra.mxu0 0.0
        %5391 = vmatprep.subr.mxu0 0.0
        %5392 = vmatpush1.msra.mxu0 0.0
        %5393 = vmatprep.subr.mxu0 0.0
        %5394 = vmatpush1.msra.mxu0 0.0
        %5395 = vmatprep.subr.mxu0 0.0
        %5396 = vmatpush1.msra.mxu0 0.0
        %5397 = vmatprep.subr.mxu0 0.0
        %5398 = vmatpush1.msra.mxu0 %v5367
        %5399 = vmatprep.subr.mxu0 0.0
        %5400 = vmatpush1.msra.mxu0 %v5361
        %5401 = vmatprep.subr.mxu0 0.0
        %5402 = vmatpush2.msra.mxu0 0.0
        %5403 = vmatprep.subr.mxu0 0.0
        %5404 = vmatpush2.msra.mxu0 0.0
        %5405 = vmatprep.subr.mxu0 0.0
        %5406 = vmatpush2.msra.mxu0 0.0
        %5407 = vmatprep.subr.mxu0 0.0
        %5408 = vmatpush2.msra.mxu0 0.0
        %5409 = vmatprep.subr.mxu0 0.0
        %5410 = vmatpush2.msra.mxu0 0.0
        %5411 = vmatprep.subr.mxu0 0.0
        %5412 = vmatpush2.msra.mxu0 0.0
        %5413 = vmatprep.subr.mxu0 0.0
        %5414 = vmatpush2.msra.mxu0 0.0
        %5415 = vmatprep.subr.mxu0 0.0
        %5416 = vmatpush2.msra.mxu0 0.0
        %5417 = vmatprep.subr.mxu0 0.0
        %5418 = vmatpush2.msra.mxu0 0.0
        %5419 = vmatprep.subr.mxu0 0.0
        %5420 = vmatpush2.msra.mxu0 0.0
        %5421 = vmatprep.subr.mxu0 0.0
        %5422 = vmatpush2.msra.mxu0 0.0
        %5423 = vmatprep.subr.mxu0 0.0
        %5424 = vmatpush2.msra.mxu0 0.0
        %5425 = vmatprep.subr.mxu0 0.0
        %5426 = vmatpush2.msra.mxu0 0.0
        %5427 = vmatprep.subr.mxu0 0.0
        %5428 = vmatpush2.msra.mxu0 0.0
        %5429 = vmatprep.subr.mxu0 0.0
        %5430 = vmatpush2.msra.mxu0 0.0
        %5431 = vmatprep.subr.mxu0 0.0
        %5432 = vmatpush2.msra.mxu0 0.0
        %5433 = vmatprep.mubr.f32.mxu0 0.0
        %5434 = vmatmul.mubr.f32.gmra.mxu0 %v5364
        %v5435 = vpop.f32.mrf.mxu0
        %v5436 = vadd.f32 0.0, %v5435
        %v5437 = vpop.f32.mrf.mxu0
        %5438 = vdwg.mxu0
        %v5439 = vadd.f32 %v5359, %v5436
        %s5440 = scalar_lea.vmem %s6, 144
        %v5441 = vld [vmem:[%s5440] sm:$0xff]
        %v5442 = vld [vmem:[%s5440 + $0x8] sm:$0xf]
        %v5443 = vrot.slane %v4705, 4
        %v5444 = vsel %vm4709, %v5443, 0
        %v5447 = vsel %vm459, %v5442, 0
        %5449 = vmatprep.subr.mxu0 0.0
        %5450 = vmatpush1.msra.mxu0 0.0
        %5451 = vmatprep.subr.mxu0 0.0
        %5452 = vmatpush1.msra.mxu0 0.0
        %5453 = vmatprep.subr.mxu0 0.0
        %5454 = vmatpush1.msra.mxu0 0.0
        %5455 = vmatprep.subr.mxu0 0.0
        %5456 = vmatpush1.msra.mxu0 0.0
        %5457 = vmatprep.subr.mxu0 0.0
        %5458 = vmatpush1.msra.mxu0 0.0
        %5459 = vmatprep.subr.mxu0 0.0
        %5460 = vmatpush1.msra.mxu0 0.0
        %5461 = vmatprep.subr.mxu0 0.0
        %5462 = vmatpush1.msra.mxu0 0.0
        %5463 = vmatprep.subr.mxu0 0.0
        %5464 = vmatpush1.msra.mxu0 0.0
        %5465 = vmatprep.subr.mxu0 0.0
        %5466 = vmatpush1.msra.mxu0 0.0
        %5467 = vmatprep.subr.mxu0 0.0
        %5468 = vmatpush1.msra.mxu0 0.0
        %5469 = vmatprep.subr.mxu0 0.0
        %5470 = vmatpush1.msra.mxu0 0.0
        %5471 = vmatprep.subr.mxu0 0.0
        %5472 = vmatpush1.msra.mxu0 0.0
        %5473 = vmatprep.subr.mxu0 0.0
        %5474 = vmatpush1.msra.mxu0 0.0
        %5475 = vmatprep.subr.mxu0 0.0
        %5476 = vmatpush1.msra.mxu0 0.0
        %5477 = vmatprep.subr.mxu0 0.0
        %5478 = vmatpush1.msra.mxu0 %v5447
        %5479 = vmatprep.subr.mxu0 0.0
        %5480 = vmatpush1.msra.mxu0 %v5441
        %5481 = vmatprep.subr.mxu0 0.0
        %5482 = vmatpush2.msra.mxu0 0.0
        %5483 = vmatprep.subr.mxu0 0.0
        %5484 = vmatpush2.msra.mxu0 0.0
        %5485 = vmatprep.subr.mxu0 0.0
        %5486 = vmatpush2.msra.mxu0 0.0
        %5487 = vmatprep.subr.mxu0 0.0
        %5488 = vmatpush2.msra.mxu0 0.0
        %5489 = vmatprep.subr.mxu0 0.0
        %5490 = vmatpush2.msra.mxu0 0.0
        %5491 = vmatprep.subr.mxu0 0.0
        %5492 = vmatpush2.msra.mxu0 0.0
        %5493 = vmatprep.subr.mxu0 0.0
        %5494 = vmatpush2.msra.mxu0 0.0
        %5495 = vmatprep.subr.mxu0 0.0
        %5496 = vmatpush2.msra.mxu0 0.0
        %5497 = vmatprep.subr.mxu0 0.0
        %5498 = vmatpush2.msra.mxu0 0.0
        %5499 = vmatprep.subr.mxu0 0.0
        %5500 = vmatpush2.msra.mxu0 0.0
        %5501 = vmatprep.subr.mxu0 0.0
        %5502 = vmatpush2.msra.mxu0 0.0
        %5503 = vmatprep.subr.mxu0 0.0
        %5504 = vmatpush2.msra.mxu0 0.0
        %5505 = vmatprep.subr.mxu0 0.0
        %5506 = vmatpush2.msra.mxu0 0.0
        %5507 = vmatprep.subr.mxu0 0.0
        %5508 = vmatpush2.msra.mxu0 0.0
        %5509 = vmatprep.subr.mxu0 0.0
        %5510 = vmatpush2.msra.mxu0 0.0
        %5511 = vmatprep.subr.mxu0 0.0
        %5512 = vmatpush2.msra.mxu0 0.0
        %5513 = vmatprep.mubr.f32.mxu0 0.0
        %5514 = vmatmul.mubr.f32.gmra.mxu0 %v5444
        %v5515 = vpop.f32.mrf.mxu0
        %v5516 = vadd.f32 0.0, %v5515
        %v5517 = vpop.f32.mrf.mxu0
        %5518 = vdwg.mxu0
        %v5519 = vadd.f32 %v5439, %v5516
        %s5520 = scalar_lea.vmem %s6, 160
        %v5521 = vld [vmem:[%s5520] sm:$0xff]
        %v5522 = vld [vmem:[%s5520 + $0x8] sm:$0xf]
        %v5523 = vrot.slane %v4870, 4
        %v5524 = vsel %vm4709, %v5523, 0
        %v5527 = vsel %vm459, %v5522, 0
        %5529 = vmatprep.subr.mxu0 0.0
        %5530 = vmatpush1.msra.mxu0 0.0
        %5531 = vmatprep.subr.mxu0 0.0
        %5532 = vmatpush1.msra.mxu0 0.0
        %5533 = vmatprep.subr.mxu0 0.0
        %5534 = vmatpush1.msra.mxu0 0.0
        %5535 = vmatprep.subr.mxu0 0.0
        %5536 = vmatpush1.msra.mxu0 0.0
        %5537 = vmatprep.subr.mxu0 0.0
        %5538 = vmatpush1.msra.mxu0 0.0
        %5539 = vmatprep.subr.mxu0 0.0
        %5540 = vmatpush1.msra.mxu0 0.0
        %5541 = vmatprep.subr.mxu0 0.0
        %5542 = vmatpush1.msra.mxu0 0.0
        %5543 = vmatprep.subr.mxu0 0.0
        %5544 = vmatpush1.msra.mxu0 0.0
        %5545 = vmatprep.subr.mxu0 0.0
        %5546 = vmatpush1.msra.mxu0 0.0
        %5547 = vmatprep.subr.mxu0 0.0
        %5548 = vmatpush1.msra.mxu0 0.0
        %5549 = vmatprep.subr.mxu0 0.0
        %5550 = vmatpush1.msra.mxu0 0.0
        %5551 = vmatprep.subr.mxu0 0.0
        %5552 = vmatpush1.msra.mxu0 0.0
        %5553 = vmatprep.subr.mxu0 0.0
        %5554 = vmatpush1.msra.mxu0 0.0
        %5555 = vmatprep.subr.mxu0 0.0
        %5556 = vmatpush1.msra.mxu0 0.0
        %5557 = vmatprep.subr.mxu0 0.0
        %5558 = vmatpush1.msra.mxu0 %v5527
        %5559 = vmatprep.subr.mxu0 0.0
        %5560 = vmatpush1.msra.mxu0 %v5521
        %5561 = vmatprep.subr.mxu0 0.0
        %5562 = vmatpush2.msra.mxu0 0.0
        %5563 = vmatprep.subr.mxu0 0.0
        %5564 = vmatpush2.msra.mxu0 0.0
        %5565 = vmatprep.subr.mxu0 0.0
        %5566 = vmatpush2.msra.mxu0 0.0
        %5567 = vmatprep.subr.mxu0 0.0
        %5568 = vmatpush2.msra.mxu0 0.0
        %5569 = vmatprep.subr.mxu0 0.0
        %5570 = vmatpush2.msra.mxu0 0.0
        %5571 = vmatprep.subr.mxu0 0.0
        %5572 = vmatpush2.msra.mxu0 0.0
        %5573 = vmatprep.subr.mxu0 0.0
        %5574 = vmatpush2.msra.mxu0 0.0
        %5575 = vmatprep.subr.mxu0 0.0
        %5576 = vmatpush2.msra.mxu0 0.0
        %5577 = vmatprep.subr.mxu0 0.0
        %5578 = vmatpush2.msra.mxu0 0.0
        %5579 = vmatprep.subr.mxu0 0.0
        %5580 = vmatpush2.msra.mxu0 0.0
        %5581 = vmatprep.subr.mxu0 0.0
        %5582 = vmatpush2.msra.mxu0 0.0
        %5583 = vmatprep.subr.mxu0 0.0
        %5584 = vmatpush2.msra.mxu0 0.0
        %5585 = vmatprep.subr.mxu0 0.0
        %5586 = vmatpush2.msra.mxu0 0.0
        %5587 = vmatprep.subr.mxu0 0.0
        %5588 = vmatpush2.msra.mxu0 0.0
        %5589 = vmatprep.subr.mxu0 0.0
        %5590 = vmatpush2.msra.mxu0 0.0
        %5591 = vmatprep.subr.mxu0 0.0
        %5592 = vmatpush2.msra.mxu0 0.0
        %5593 = vmatprep.mubr.f32.mxu0 0.0
        %5594 = vmatmul.mubr.f32.gmra.mxu0 %v5524
        %v5595 = vpop.f32.mrf.mxu0
        %v5596 = vadd.f32 0.0, %v5595
        %v5597 = vpop.f32.mrf.mxu0
        %5598 = vdwg.mxu0
        %v5599 = vadd.f32 %v5519, %v5596
        %s5600 = scalar_lea.vmem %s6, 176
        %v5601 = vld [vmem:[%s5600] sm:$0xff]
        %v5602 = vld [vmem:[%s5600 + $0x8] sm:$0xf]
        %v5603 = vrot.slane %v4959, 4
        %v5604 = vsel %vm4709, %v5603, 0
        %v5607 = vsel %vm459, %v5602, 0
        %5609 = vmatprep.subr.mxu0 0.0
        %5610 = vmatpush1.msra.mxu0 0.0
        %5611 = vmatprep.subr.mxu0 0.0
        %5612 = vmatpush1.msra.mxu0 0.0
        %5613 = vmatprep.subr.mxu0 0.0
        %5614 = vmatpush1.msra.mxu0 0.0
        %5615 = vmatprep.subr.mxu0 0.0
        %5616 = vmatpush1.msra.mxu0 0.0
        %5617 = vmatprep.subr.mxu0 0.0
        %5618 = vmatpush1.msra.mxu0 0.0
        %5619 = vmatprep.subr.mxu0 0.0
        %5620 = vmatpush1.msra.mxu0 0.0
        %5621 = vmatprep.subr.mxu0 0.0
        %5622 = vmatpush1.msra.mxu0 0.0
        %5623 = vmatprep.subr.mxu0 0.0
        %5624 = vmatpush1.msra.mxu0 0.0
        %5625 = vmatprep.subr.mxu0 0.0
        %5626 = vmatpush1.msra.mxu0 0.0
        %5627 = vmatprep.subr.mxu0 0.0
        %5628 = vmatpush1.msra.mxu0 0.0
        %5629 = vmatprep.subr.mxu0 0.0
        %5630 = vmatpush1.msra.mxu0 0.0
        %5631 = vmatprep.subr.mxu0 0.0
        %5632 = vmatpush1.msra.mxu0 0.0
        %5633 = vmatprep.subr.mxu0 0.0
        %5634 = vmatpush1.msra.mxu0 0.0
        %5635 = vmatprep.subr.mxu0 0.0
        %5636 = vmatpush1.msra.mxu0 0.0
        %5637 = vmatprep.subr.mxu0 0.0
        %5638 = vmatpush1.msra.mxu0 %v5607
        %5639 = vmatprep.subr.mxu0 0.0
        %5640 = vmatpush1.msra.mxu0 %v5601
        %5641 = vmatprep.subr.mxu0 0.0
        %5642 = vmatpush2.msra.mxu0 0.0
        %5643 = vmatprep.subr.mxu0 0.0
        %5644 = vmatpush2.msra.mxu0 0.0
        %5645 = vmatprep.subr.mxu0 0.0
        %5646 = vmatpush2.msra.mxu0 0.0
        %5647 = vmatprep.subr.mxu0 0.0
        %5648 = vmatpush2.msra.mxu0 0.0
        %5649 = vmatprep.subr.mxu0 0.0
        %5650 = vmatpush2.msra.mxu0 0.0
        %5651 = vmatprep.subr.mxu0 0.0
        %5652 = vmatpush2.msra.mxu0 0.0
        %5653 = vmatprep.subr.mxu0 0.0
        %5654 = vmatpush2.msra.mxu0 0.0
        %5655 = vmatprep.subr.mxu0 0.0
        %5656 = vmatpush2.msra.mxu0 0.0
        %5657 = vmatprep.subr.mxu0 0.0
        %5658 = vmatpush2.msra.mxu0 0.0
        %5659 = vmatprep.subr.mxu0 0.0
        %5660 = vmatpush2.msra.mxu0 0.0
        %5661 = vmatprep.subr.mxu0 0.0
        %5662 = vmatpush2.msra.mxu0 0.0
        %5663 = vmatprep.subr.mxu0 0.0
        %5664 = vmatpush2.msra.mxu0 0.0
        %5665 = vmatprep.subr.mxu0 0.0
        %5666 = vmatpush2.msra.mxu0 0.0
        %5667 = vmatprep.subr.mxu0 0.0
        %5668 = vmatpush2.msra.mxu0 0.0
        %5669 = vmatprep.subr.mxu0 0.0
        %5670 = vmatpush2.msra.mxu0 0.0
        %5671 = vmatprep.subr.mxu0 0.0
        %5672 = vmatpush2.msra.mxu0 0.0
        %5673 = vmatprep.mubr.f32.mxu0 0.0
        %5674 = vmatmul.mubr.f32.gmra.mxu0 %v5604
        %v5675 = vpop.f32.mrf.mxu0
        %v5676 = vadd.f32 0.0, %v5675
        %v5677 = vpop.f32.mrf.mxu0
        %5678 = vdwg.mxu0
        %v5679 = vadd.f32 %v5599, %v5676
        %s5680 = scalar_lea.vmem %s6, 192
        %v5681 = vld [vmem:[%s5680] sm:$0xff]
        %v5682 = vld [vmem:[%s5680 + $0x8] sm:$0xf]
        %v5683 = vrot.slane %v4694, 6
        %v5684 = vsel %vm4709, %v5683, 0
        %v5687 = vsel %vm459, %v5682, 0
        %5689 = vmatprep.subr.mxu0 0.0
        %5690 = vmatpush1.msra.mxu0 0.0
        %5691 = vmatprep.subr.mxu0 0.0
        %5692 = vmatpush1.msra.mxu0 0.0
        %5693 = vmatprep.subr.mxu0 0.0
        %5694 = vmatpush1.msra.mxu0 0.0
        %5695 = vmatprep.subr.mxu0 0.0
        %5696 = vmatpush1.msra.mxu0 0.0
        %5697 = vmatprep.subr.mxu0 0.0
        %5698 = vmatpush1.msra.mxu0 0.0
        %5699 = vmatprep.subr.mxu0 0.0
        %5700 = vmatpush1.msra.mxu0 0.0
        %5701 = vmatprep.subr.mxu0 0.0
        %5702 = vmatpush1.msra.mxu0 0.0
        %5703 = vmatprep.subr.mxu0 0.0
        %5704 = vmatpush1.msra.mxu0 0.0
        %5705 = vmatprep.subr.mxu0 0.0
        %5706 = vmatpush1.msra.mxu0 0.0
        %5707 = vmatprep.subr.mxu0 0.0
        %5708 = vmatpush1.msra.mxu0 0.0
        %5709 = vmatprep.subr.mxu0 0.0
        %5710 = vmatpush1.msra.mxu0 0.0
        %5711 = vmatprep.subr.mxu0 0.0
        %5712 = vmatpush1.msra.mxu0 0.0
        %5713 = vmatprep.subr.mxu0 0.0
        %5714 = vmatpush1.msra.mxu0 0.0
        %5715 = vmatprep.subr.mxu0 0.0
        %5716 = vmatpush1.msra.mxu0 0.0
        %5717 = vmatprep.subr.mxu0 0.0
        %5718 = vmatpush1.msra.mxu0 %v5687
        %5719 = vmatprep.subr.mxu0 0.0
        %5720 = vmatpush1.msra.mxu0 %v5681
        %5721 = vmatprep.subr.mxu0 0.0
        %5722 = vmatpush2.msra.mxu0 0.0
        %5723 = vmatprep.subr.mxu0 0.0
        %5724 = vmatpush2.msra.mxu0 0.0
        %5725 = vmatprep.subr.mxu0 0.0
        %5726 = vmatpush2.msra.mxu0 0.0
        %5727 = vmatprep.subr.mxu0 0.0
        %5728 = vmatpush2.msra.mxu0 0.0
        %5729 = vmatprep.subr.mxu0 0.0
        %5730 = vmatpush2.msra.mxu0 0.0
        %5731 = vmatprep.subr.mxu0 0.0
        %5732 = vmatpush2.msra.mxu0 0.0
        %5733 = vmatprep.subr.mxu0 0.0
        %5734 = vmatpush2.msra.mxu0 0.0
        %5735 = vmatprep.subr.mxu0 0.0
        %5736 = vmatpush2.msra.mxu0 0.0
        %5737 = vmatprep.subr.mxu0 0.0
        %5738 = vmatpush2.msra.mxu0 0.0
        %5739 = vmatprep.subr.mxu0 0.0
        %5740 = vmatpush2.msra.mxu0 0.0
        %5741 = vmatprep.subr.mxu0 0.0
        %5742 = vmatpush2.msra.mxu0 0.0
        %5743 = vmatprep.subr.mxu0 0.0
        %5744 = vmatpush2.msra.mxu0 0.0
        %5745 = vmatprep.subr.mxu0 0.0
        %5746 = vmatpush2.msra.mxu0 0.0
        %5747 = vmatprep.subr.mxu0 0.0
        %5748 = vmatpush2.msra.mxu0 0.0
        %5749 = vmatprep.subr.mxu0 0.0
        %5750 = vmatpush2.msra.mxu0 0.0
        %5751 = vmatprep.subr.mxu0 0.0
        %5752 = vmatpush2.msra.mxu0 0.0
        %5753 = vmatprep.mubr.f32.mxu0 0.0
        %5754 = vmatmul.mubr.f32.gmra.mxu0 %v5684
        %v5755 = vpop.f32.mrf.mxu0
        %v5756 = vadd.f32 0.0, %v5755
        %v5757 = vpop.f32.mrf.mxu0
        %5758 = vdwg.mxu0
        %v5759 = vadd.f32 %v5679, %v5756
        %s5760 = scalar_lea.vmem %s6, 208
        %v5761 = vld [vmem:[%s5760] sm:$0xff]
        %v5762 = vld [vmem:[%s5760 + $0x8] sm:$0xf]
        %v5763 = vrot.slane %v4705, 6
        %v5764 = vsel %vm4709, %v5763, 0
        %v5767 = vsel %vm459, %v5762, 0
        %5769 = vmatprep.subr.mxu0 0.0
        %5770 = vmatpush1.msra.mxu0 0.0
        %5771 = vmatprep.subr.mxu0 0.0
        %5772 = vmatpush1.msra.mxu0 0.0
        %5773 = vmatprep.subr.mxu0 0.0
        %5774 = vmatpush1.msra.mxu0 0.0
        %5775 = vmatprep.subr.mxu0 0.0
        %5776 = vmatpush1.msra.mxu0 0.0
        %5777 = vmatprep.subr.mxu0 0.0
        %5778 = vmatpush1.msra.mxu0 0.0
        %5779 = vmatprep.subr.mxu0 0.0
        %5780 = vmatpush1.msra.mxu0 0.0
        %5781 = vmatprep.subr.mxu0 0.0
        %5782 = vmatpush1.msra.mxu0 0.0
        %5783 = vmatprep.subr.mxu0 0.0
        %5784 = vmatpush1.msra.mxu0 0.0
        %5785 = vmatprep.subr.mxu0 0.0
        %5786 = vmatpush1.msra.mxu0 0.0
        %5787 = vmatprep.subr.mxu0 0.0
        %5788 = vmatpush1.msra.mxu0 0.0
        %5789 = vmatprep.subr.mxu0 0.0
        %5790 = vmatpush1.msra.mxu0 0.0
        %5791 = vmatprep.subr.mxu0 0.0
        %5792 = vmatpush1.msra.mxu0 0.0
        %5793 = vmatprep.subr.mxu0 0.0
        %5794 = vmatpush1.msra.mxu0 0.0
        %5795 = vmatprep.subr.mxu0 0.0
        %5796 = vmatpush1.msra.mxu0 0.0
        %5797 = vmatprep.subr.mxu0 0.0
        %5798 = vmatpush1.msra.mxu0 %v5767
        %5799 = vmatprep.subr.mxu0 0.0
        %5800 = vmatpush1.msra.mxu0 %v5761
        %5801 = vmatprep.subr.mxu0 0.0
        %5802 = vmatpush2.msra.mxu0 0.0
        %5803 = vmatprep.subr.mxu0 0.0
        %5804 = vmatpush2.msra.mxu0 0.0
        %5805 = vmatprep.subr.mxu0 0.0
        %5806 = vmatpush2.msra.mxu0 0.0
        %5807 = vmatprep.subr.mxu0 0.0
        %5808 = vmatpush2.msra.mxu0 0.0
        %5809 = vmatprep.subr.mxu0 0.0
        %5810 = vmatpush2.msra.mxu0 0.0
        %5811 = vmatprep.subr.mxu0 0.0
        %5812 = vmatpush2.msra.mxu0 0.0
        %5813 = vmatprep.subr.mxu0 0.0
        %5814 = vmatpush2.msra.mxu0 0.0
        %5815 = vmatprep.subr.mxu0 0.0
        %5816 = vmatpush2.msra.mxu0 0.0
        %5817 = vmatprep.subr.mxu0 0.0
        %5818 = vmatpush2.msra.mxu0 0.0
        %5819 = vmatprep.subr.mxu0 0.0
        %5820 = vmatpush2.msra.mxu0 0.0
        %5821 = vmatprep.subr.mxu0 0.0
        %5822 = vmatpush2.msra.mxu0 0.0
        %5823 = vmatprep.subr.mxu0 0.0
        %5824 = vmatpush2.msra.mxu0 0.0
        %5825 = vmatprep.subr.mxu0 0.0
        %5826 = vmatpush2.msra.mxu0 0.0
        %5827 = vmatprep.subr.mxu0 0.0
        %5828 = vmatpush2.msra.mxu0 0.0
        %5829 = vmatprep.subr.mxu0 0.0
        %5830 = vmatpush2.msra.mxu0 0.0
        %5831 = vmatprep.subr.mxu0 0.0
        %5832 = vmatpush2.msra.mxu0 0.0
        %5833 = vmatprep.mubr.f32.mxu0 0.0
        %5834 = vmatmul.mubr.f32.gmra.mxu0 %v5764
        %v5835 = vpop.f32.mrf.mxu0
        %v5836 = vadd.f32 0.0, %v5835
        %v5837 = vpop.f32.mrf.mxu0
        %5838 = vdwg.mxu0
        %v5839 = vadd.f32 %v5759, %v5836
        %s5840 = scalar_lea.vmem %s6, 224
        %v5841 = vld [vmem:[%s5840] sm:$0xff]
        %v5842 = vld [vmem:[%s5840 + $0x8] sm:$0xf]
        %v5843 = vrot.slane %v4870, 6
        %v5844 = vsel %vm4709, %v5843, 0
        %v5847 = vsel %vm459, %v5842, 0
        %5849 = vmatprep.subr.mxu0 0.0
        %5850 = vmatpush1.msra.mxu0 0.0
        %5851 = vmatprep.subr.mxu0 0.0
        %5852 = vmatpush1.msra.mxu0 0.0
        %5853 = vmatprep.subr.mxu0 0.0
        %5854 = vmatpush1.msra.mxu0 0.0
        %5855 = vmatprep.subr.mxu0 0.0
        %5856 = vmatpush1.msra.mxu0 0.0
        %5857 = vmatprep.subr.mxu0 0.0
        %5858 = vmatpush1.msra.mxu0 0.0
        %5859 = vmatprep.subr.mxu0 0.0
        %5860 = vmatpush1.msra.mxu0 0.0
        %5861 = vmatprep.subr.mxu0 0.0
        %5862 = vmatpush1.msra.mxu0 0.0
        %5863 = vmatprep.subr.mxu0 0.0
        %5864 = vmatpush1.msra.mxu0 0.0
        %5865 = vmatprep.subr.mxu0 0.0
        %5866 = vmatpush1.msra.mxu0 0.0
        %5867 = vmatprep.subr.mxu0 0.0
        %5868 = vmatpush1.msra.mxu0 0.0
        %5869 = vmatprep.subr.mxu0 0.0
        %5870 = vmatpush1.msra.mxu0 0.0
        %5871 = vmatprep.subr.mxu0 0.0
        %5872 = vmatpush1.msra.mxu0 0.0
        %5873 = vmatprep.subr.mxu0 0.0
        %5874 = vmatpush1.msra.mxu0 0.0
        %5875 = vmatprep.subr.mxu0 0.0
        %5876 = vmatpush1.msra.mxu0 0.0
        %5877 = vmatprep.subr.mxu0 0.0
        %5878 = vmatpush1.msra.mxu0 %v5847
        %5879 = vmatprep.subr.mxu0 0.0
        %5880 = vmatpush1.msra.mxu0 %v5841
        %5881 = vmatprep.subr.mxu0 0.0
        %5882 = vmatpush2.msra.mxu0 0.0
        %5883 = vmatprep.subr.mxu0 0.0
        %5884 = vmatpush2.msra.mxu0 0.0
        %5885 = vmatprep.subr.mxu0 0.0
        %5886 = vmatpush2.msra.mxu0 0.0
        %5887 = vmatprep.subr.mxu0 0.0
        %5888 = vmatpush2.msra.mxu0 0.0
        %5889 = vmatprep.subr.mxu0 0.0
        %5890 = vmatpush2.msra.mxu0 0.0
        %5891 = vmatprep.subr.mxu0 0.0
        %5892 = vmatpush2.msra.mxu0 0.0
        %5893 = vmatprep.subr.mxu0 0.0
        %5894 = vmatpush2.msra.mxu0 0.0
        %5895 = vmatprep.subr.mxu0 0.0
        %5896 = vmatpush2.msra.mxu0 0.0
        %5897 = vmatprep.subr.mxu0 0.0
        %5898 = vmatpush2.msra.mxu0 0.0
        %5899 = vmatprep.subr.mxu0 0.0
        %5900 = vmatpush2.msra.mxu0 0.0
        %5901 = vmatprep.subr.mxu0 0.0
        %5902 = vmatpush2.msra.mxu0 0.0
        %5903 = vmatprep.subr.mxu0 0.0
        %5904 = vmatpush2.msra.mxu0 0.0
        %5905 = vmatprep.subr.mxu0 0.0
        %5906 = vmatpush2.msra.mxu0 0.0
        %5907 = vmatprep.subr.mxu0 0.0
        %5908 = vmatpush2.msra.mxu0 0.0
        %5909 = vmatprep.subr.mxu0 0.0
        %5910 = vmatpush2.msra.mxu0 0.0
        %5911 = vmatprep.subr.mxu0 0.0
        %5912 = vmatpush2.msra.mxu0 0.0
        %5913 = vmatprep.mubr.f32.mxu0 0.0
        %5914 = vmatmul.mubr.f32.gmra.mxu0 %v5844
        %v5915 = vpop.f32.mrf.mxu0
        %v5916 = vadd.f32 0.0, %v5915
        %v5917 = vpop.f32.mrf.mxu0
        %5918 = vdwg.mxu0
        %v5919 = vadd.f32 %v5839, %v5916
        %s5920 = scalar_lea.vmem %s6, 240
        %v5921 = vld [vmem:[%s5920] sm:$0xff]
        %v5922 = vld [vmem:[%s5920 + $0x8] sm:$0xf]
        %v5923 = vrot.slane %v4959, 6
        %v5924 = vsel %vm4709, %v5923, 0
        %v5927 = vsel %vm459, %v5922, 0
        %5929 = vmatprep.subr.mxu0 0.0
        %5930 = vmatpush1.msra.mxu0 0.0
        %5931 = vmatprep.subr.mxu0 0.0
        %5932 = vmatpush1.msra.mxu0 0.0
        %5933 = vmatprep.subr.mxu0 0.0
        %5934 = vmatpush1.msra.mxu0 0.0
        %5935 = vmatprep.subr.mxu0 0.0
        %5936 = vmatpush1.msra.mxu0 0.0
        %5937 = vmatprep.subr.mxu0 0.0
        %5938 = vmatpush1.msra.mxu0 0.0
        %5939 = vmatprep.subr.mxu0 0.0
        %5940 = vmatpush1.msra.mxu0 0.0
        %5941 = vmatprep.subr.mxu0 0.0
        %5942 = vmatpush1.msra.mxu0 0.0
        %5943 = vmatprep.subr.mxu0 0.0
        %5944 = vmatpush1.msra.mxu0 0.0
        %5945 = vmatprep.subr.mxu0 0.0
        %5946 = vmatpush1.msra.mxu0 0.0
        %5947 = vmatprep.subr.mxu0 0.0
        %5948 = vmatpush1.msra.mxu0 0.0
        %5949 = vmatprep.subr.mxu0 0.0
        %5950 = vmatpush1.msra.mxu0 0.0
        %5951 = vmatprep.subr.mxu0 0.0
        %5952 = vmatpush1.msra.mxu0 0.0
        %5953 = vmatprep.subr.mxu0 0.0
        %5954 = vmatpush1.msra.mxu0 0.0
        %5955 = vmatprep.subr.mxu0 0.0
        %5956 = vmatpush1.msra.mxu0 0.0
        %5957 = vmatprep.subr.mxu0 0.0
        %5958 = vmatpush1.msra.mxu0 %v5927
        %5959 = vmatprep.subr.mxu0 0.0
        %5960 = vmatpush1.msra.mxu0 %v5921
        %5961 = vmatprep.subr.mxu0 0.0
        %5962 = vmatpush2.msra.mxu0 0.0
        %5963 = vmatprep.subr.mxu0 0.0
        %5964 = vmatpush2.msra.mxu0 0.0
        %5965 = vmatprep.subr.mxu0 0.0
        %5966 = vmatpush2.msra.mxu0 0.0
        %5967 = vmatprep.subr.mxu0 0.0
        %5968 = vmatpush2.msra.mxu0 0.0
        %5969 = vmatprep.subr.mxu0 0.0
        %5970 = vmatpush2.msra.mxu0 0.0
        %5971 = vmatprep.subr.mxu0 0.0
        %5972 = vmatpush2.msra.mxu0 0.0
        %5973 = vmatprep.subr.mxu0 0.0
        %5974 = vmatpush2.msra.mxu0 0.0
        %5975 = vmatprep.subr.mxu0 0.0
        %5976 = vmatpush2.msra.mxu0 0.0
        %5977 = vmatprep.subr.mxu0 0.0
        %5978 = vmatpush2.msra.mxu0 0.0
        %5979 = vmatprep.subr.mxu0 0.0
        %5980 = vmatpush2.msra.mxu0 0.0
        %5981 = vmatprep.subr.mxu0 0.0
        %5982 = vmatpush2.msra.mxu0 0.0
        %5983 = vmatprep.subr.mxu0 0.0
        %5984 = vmatpush2.msra.mxu0 0.0
        %5985 = vmatprep.subr.mxu0 0.0
        %5986 = vmatpush2.msra.mxu0 0.0
        %5987 = vmatprep.subr.mxu0 0.0
        %5988 = vmatpush2.msra.mxu0 0.0
        %5989 = vmatprep.subr.mxu0 0.0
        %5990 = vmatpush2.msra.mxu0 0.0
        %5991 = vmatprep.subr.mxu0 0.0
        %5992 = vmatpush2.msra.mxu0 0.0
        %5993 = vmatprep.mubr.f32.mxu0 0.0
        %5994 = vmatmul.mubr.f32.gmra.mxu0 %v5924
        %v5995 = vpop.f32.mrf.mxu0
        %v5996 = vadd.f32 0.0, %v5995
        %v5997 = vpop.f32.mrf.mxu0
        %5998 = vdwg.mxu0
        %v5999 = vadd.f32 %v5919, %v5996
        %v6000 = vld [vmem:[%s7] sm:$0x1]
        %v6001 = vadd.f32 %v5999, %v6000
        %v6002 = vmax.f32 %v6001, 0.0
        %v6003 = vld [vmem:[%s8] sm:$0xff]
        %v6004 = vld [vmem:[%s8 + $0x8] sm:$0xff]
        %v6005 = vld [vmem:[%s8 + $0x10] sm:$0xff]
        %v6006 = vld [vmem:[%s8 + $0x18] sm:$0xff]
        %v6007 = vld [vmem:[%s8 + $0x20] sm:$0xff]
        %v6008 = vld [vmem:[%s8 + $0x28] sm:$0xff]
        %v6009 = vld [vmem:[%s8 + $0x30] sm:$0xff]
        %v6010 = vld [vmem:[%s8 + $0x38] sm:$0xff]
        %v6011 = vld [vmem:[%s8 + $0x40] sm:$0xff]
        %v6012 = vld [vmem:[%s8 + $0x48] sm:$0xff]
        %v6013 = vld [vmem:[%s8 + $0x50] sm:$0xff]
        %v6014 = vld [vmem:[%s8 + $0x58] sm:$0xff]
        %v6015 = vld [vmem:[%s8 + $0x60] sm:$0xff]
        %v6016 = vld [vmem:[%s8 + $0x68] sm:$0xff]
        %v6017 = vld [vmem:[%s8 + $0x70] sm:$0xff]
        %v6018 = vld [vmem:[%s9] sm:$0x1]
        %vm6019 = vcmask 982016
        %v6021 = vsel %vm6019, %v6002, 0
        %6023 = vmatprep.subr.mxu0 0.0
        %6024 = vmatpush1.msra.mxu0 0.0
        %6025 = vmatprep.subr.mxu0 0.0
        %6026 = vmatpush1.msra.mxu0 %v6017
        %6027 = vmatprep.subr.mxu0 0.0
        %6028 = vmatpush1.msra.mxu0 %v6016
        %6029 = vmatprep.subr.mxu0 0.0
        %6030 = vmatpush1.msra.mxu0 %v6015
        %6031 = vmatprep.subr.mxu0 0.0
        %6032 = vmatpush1.msra.mxu0 %v6014
        %6033 = vmatprep.subr.mxu0 0.0
        %6034 = vmatpush1.msra.mxu0 %v6013
        %6035 = vmatprep.subr.mxu0 0.0
        %6036 = vmatpush1.msra.mxu0 %v6012
        %6037 = vmatprep.subr.mxu0 0.0
        %6038 = vmatpush1.msra.mxu0 %v6011
        %6039 = vmatprep.subr.mxu0 0.0
        %6040 = vmatpush1.msra.mxu0 %v6010
        %6041 = vmatprep.subr.mxu0 0.0
        %6042 = vmatpush1.msra.mxu0 %v6009
        %6043 = vmatprep.subr.mxu0 0.0
        %6044 = vmatpush1.msra.mxu0 %v6008
        %6045 = vmatprep.subr.mxu0 0.0
        %6046 = vmatpush1.msra.mxu0 %v6007
        %6047 = vmatprep.subr.mxu0 0.0
        %6048 = vmatpush1.msra.mxu0 %v6006
        %6049 = vmatprep.subr.mxu0 0.0
        %6050 = vmatpush1.msra.mxu0 %v6005
        %6051 = vmatprep.subr.mxu0 0.0
        %6052 = vmatpush1.msra.mxu0 %v6004
        %6053 = vmatprep.subr.mxu0 0.0
        %6054 = vmatpush1.msra.mxu0 %v6003
        %6055 = vmatprep.subr.mxu0 0.0
        %6056 = vmatpush2.msra.mxu0 0.0
        %6057 = vmatprep.subr.mxu0 0.0
        %6058 = vmatpush2.msra.mxu0 0.0
        %6059 = vmatprep.subr.mxu0 0.0
        %6060 = vmatpush2.msra.mxu0 0.0
        %6061 = vmatprep.subr.mxu0 0.0
        %6062 = vmatpush2.msra.mxu0 0.0
        %6063 = vmatprep.subr.mxu0 0.0
        %6064 = vmatpush2.msra.mxu0 0.0
        %6065 = vmatprep.subr.mxu0 0.0
        %6066 = vmatpush2.msra.mxu0 0.0
        %6067 = vmatprep.subr.mxu0 0.0
        %6068 = vmatpush2.msra.mxu0 0.0
        %6069 = vmatprep.subr.mxu0 0.0
        %6070 = vmatpush2.msra.mxu0 0.0
        %6071 = vmatprep.subr.mxu0 0.0
        %6072 = vmatpush2.msra.mxu0 0.0
        %6073 = vmatprep.subr.mxu0 0.0
        %6074 = vmatpush2.msra.mxu0 0.0
        %6075 = vmatprep.subr.mxu0 0.0
        %6076 = vmatpush2.msra.mxu0 0.0
        %6077 = vmatprep.subr.mxu0 0.0
        %6078 = vmatpush2.msra.mxu0 0.0
        %6079 = vmatprep.subr.mxu0 0.0
        %6080 = vmatpush2.msra.mxu0 0.0
        %6081 = vmatprep.subr.mxu0 0.0
        %6082 = vmatpush2.msra.mxu0 0.0
        %6083 = vmatprep.subr.mxu0 0.0
        %6084 = vmatpush2.msra.mxu0 0.0
        %6085 = vmatprep.subr.mxu0 0.0
        %6086 = vmatpush2.msra.mxu0 0.0
        %6087 = vmatprep.mubr.f32.mxu0 0.0
        %6088 = vmatmul.mubr.f32.gmra.mxu0 %v6021
        %v6089 = vpop.f32.mrf.mxu0
        %v6090 = vadd.f32 %v6018, %v6089
        %v6091 = vpop.f32.mrf.mxu0
        %6092 = vdwg.mxu0
        %v6093 = vmax.f32 %v6090, 0.0
        %v6094 = vld [vmem:[%s10] sm:$0xff]
        %v6095 = vld [vmem:[%s10 + $0x8] sm:$0xff]
        %v6096 = vld [vmem:[%s10 + $0x10] sm:$0xff]
        %v6097 = vld [vmem:[%s10 + $0x18] sm:$0xff]
        %v6098 = vld [vmem:[%s10 + $0x20] sm:$0xff]
        %v6099 = vld [vmem:[%s10 + $0x28] sm:$0xff]
        %v6100 = vld [vmem:[%s10 + $0x30] sm:$0xff]
        %v6101 = vld [vmem:[%s10 + $0x38] sm:$0xf]
        %v6102 = vld [vmem:[%s11] sm:$0x1]
        %vm6103 = vcmask 490496
        %v6105 = vsel %vm6103, %v6093, 0
        %v6108 = vsel %vm459, %v6101, 0
        %6110 = vmatprep.subr.mxu0 0.0
        %6111 = vmatpush1.msra.mxu0 0.0
        %6112 = vmatprep.subr.mxu0 0.0
        %6113 = vmatpush1.msra.mxu0 0.0
        %6114 = vmatprep.subr.mxu0 0.0
        %6115 = vmatpush1.msra.mxu0 0.0
        %6116 = vmatprep.subr.mxu0 0.0
        %6117 = vmatpush1.msra.mxu0 0.0
        %6118 = vmatprep.subr.mxu0 0.0
        %6119 = vmatpush1.msra.mxu0 0.0
        %6120 = vmatprep.subr.mxu0 0.0
        %6121 = vmatpush1.msra.mxu0 0.0
        %6122 = vmatprep.subr.mxu0 0.0
        %6123 = vmatpush1.msra.mxu0 0.0
        %6124 = vmatprep.subr.mxu0 0.0
        %6125 = vmatpush1.msra.mxu0 0.0
        %6126 = vmatprep.subr.mxu0 0.0
        %6127 = vmatpush1.msra.mxu0 %v6108
        %6128 = vmatprep.subr.mxu0 0.0
        %6129 = vmatpush1.msra.mxu0 %v6100
        %6130 = vmatprep.subr.mxu0 0.0
        %6131 = vmatpush1.msra.mxu0 %v6099
        %6132 = vmatprep.subr.mxu0 0.0
        %6133 = vmatpush1.msra.mxu0 %v6098
        %6134 = vmatprep.subr.mxu0 0.0
        %6135 = vmatpush1.msra.mxu0 %v6097
        %6136 = vmatprep.subr.mxu0 0.0
        %6137 = vmatpush1.msra.mxu0 %v6096
        %6138 = vmatprep.subr.mxu0 0.0
        %6139 = vmatpush1.msra.mxu0 %v6095
        %6140 = vmatprep.subr.mxu0 0.0
        %6141 = vmatpush1.msra.mxu0 %v6094
        %6142 = vmatprep.subr.mxu0 0.0
        %6143 = vmatpush2.msra.mxu0 0.0
        %6144 = vmatprep.subr.mxu0 0.0
        %6145 = vmatpush2.msra.mxu0 0.0
        %6146 = vmatprep.subr.mxu0 0.0
        %6147 = vmatpush2.msra.mxu0 0.0
        %6148 = vmatprep.subr.mxu0 0.0
        %6149 = vmatpush2.msra.mxu0 0.0
        %6150 = vmatprep.subr.mxu0 0.0
        %6151 = vmatpush2.msra.mxu0 0.0
        %6152 = vmatprep.subr.mxu0 0.0
        %6153 = vmatpush2.msra.mxu0 0.0
        %6154 = vmatprep.subr.mxu0 0.0
        %6155 = vmatpush2.msra.mxu0 0.0
        %6156 = vmatprep.subr.mxu0 0.0
        %6157 = vmatpush2.msra.mxu0 0.0
        %6158 = vmatprep.subr.mxu0 0.0
        %6159 = vmatpush2.msra.mxu0 0.0
        %6160 = vmatprep.subr.mxu0 0.0
        %6161 = vmatpush2.msra.mxu0 0.0
        %6162 = vmatprep.subr.mxu0 0.0
        %6163 = vmatpush2.msra.mxu0 0.0
        %6164 = vmatprep.subr.mxu0 0.0
        %6165 = vmatpush2.msra.mxu0 0.0
        %6166 = vmatprep.subr.mxu0 0.0
        %6167 = vmatpush2.msra.mxu0 0.0
        %6168 = vmatprep.subr.mxu0 0.0
        %6169 = vmatpush2.msra.mxu0 0.0
        %6170 = vmatprep.subr.mxu0 0.0
        %6171 = vmatpush2.msra.mxu0 0.0
        %6172 = vmatprep.subr.mxu0 0.0
        %6173 = vmatpush2.msra.mxu0 0.0
        %6174 = vmatprep.mubr.f32.mxu0 0.0
        %6175 = vmatmul.mubr.f32.gmra.mxu0 %v6105
        %v6176 = vpop.f32.mrf.mxu0
        %v6177 = vadd.f32 %v6102, %v6176
        %v6178 = vpop.f32.mrf.mxu0
        %6179 = vdwg.mxu0
        %vm6180 = vcmask 73728
        %6181 = vst.msk [vmem:[%s420] sm:$0x1] %vm6180, %v6177
        %s6182 = sand.u32 %s296, 1
        %s6183 = scalar_lea.sflag [#allocation4], %s6182
        %s6184 = sand.u32 %s296, 1
        %s6185 = scalar_lea.vmem [#allocation3], %s6184
        // Predicated region
        $region69: #{network_forward.1} parent=67 // pred_check
          %p6186 = pneg %p306
        $region70: #{network_forward.1} parent=67 // pred_check_branch
          %6188 = sbr.rel (%p6186) target = $region72
        $region71: #{network_forward.1} parent=67 // pred_region
          %s6190 = ssub.s32 16, 16
          %6191 = vsyncadd %s6183, %s6190
          %s6192 = smul.addr %s26, 16
          %s6193 = scalar_lea.hbm %s12, %s6192
          %s6195 = sshll.u32 %s6185, 4
          %s6196 = int_to_ptr.vmem [resolvable:$true] %s6195
          %6198 = dma.vmem_to_hbm [thread:$0]  %s6196, 16, %s6193, %s6183
        $region72: #{network_forward.1} parent=67 // pred_fallthru
          _
      $region68: #{network_forward.1} parent=5 // pred_fallthru
        _
      %p6199 = scmp.le.s32.totalorder 2, %s21
      // Predicated region
      $region73: #{network_forward.1} parent=5 // pred_check
        %p6200 = pneg %p6199
      $region74: #{network_forward.1} parent=5 // pred_check_branch
        %6202 = sbr.rel (%p6200) target = $region76
      $region75: #{network_forward.1} parent=5 // pred_region
        %s6203 = ssub.s32 %s21, 2
        // Predicated region
        $region77: #{network_forward.1} parent=75 // pred_check
          %p6204 = pneg %p312
        $region78: #{network_forward.1} parent=75 // pred_check_branch
          %6206 = sbr.rel (%p6204) target = $region80
        $region79: #{network_forward.1} parent=75 // pred_region
          %s6207 = sand.u32 %s297, 1
          %s6208 = scalar_lea.sflag [#allocation4], %s6207
          %s6209 = sand.u32 %s297, 1
          %s6210 = scalar_lea.vmem [#allocation3], %s6209
          %6211 = dma.done %s6208, 16
        $region80: #{network_forward.1} parent=75 // pred_fallthru
          _
      $region76: #{network_forward.1} parent=5 // pred_fallthru
        _
    $region6: #{network_forward.1} parent=1 // loop_footer
      %s25 = sadd.s32 1, %s21
    $region7: #{network_forward.1} parent=1 // loop_footer_branch
      %20 = sbr.rel target = $region3
    $region8: #{network_forward.1} parent=1 // loop_exit
      _
    %6212 = vsyncpa [#allocation4], 1
    %s6213 = scalar_lea.sflag [#allocation4], 1
    %6214 = vsyncpa %s6213, 1

</llo_original>
